<compile_context>
chip_gen: v5e
topology: v5e:2x2
jax: 0.10.0
libtpu: 0.0.40
codegen_flags: <defaults>
</compile_context>

<pallas_src>
import functools
import numpy as np
import jax
import jax.numpy as jnp
from jax.experimental import pallas as pl
from jax.experimental.pallas import tpu as pltpu


# ----------------------------- fused Pallas kernel ---------------------------

def _clsandloc_kernel(x_ref, z_ref, r_ref,
                      w5_ref, wccA_ref, woff_ref, wadd_ref, wccB_ref,
                      whead_ref, v32_ref, v64_ref, pmat_ref, bhead_ref,
                      m61_ref, m41_ref, out_ref, scr32, scr64, *,
                      eps, WX, WZ, hx, wx, hzk, wzk, hc, wc):
    """Entire clsandloc forward for one batch element, fully fused in VMEM.

    Flat layouts:
      x_ref : (1, HX*WX, C)   search features, row p = r*WX + c
      z_ref : (1, HZ*WZ, C)   template features
      r_ref : (1, Hp*Wp, Ca)  APN features, already zero-padded (pad=1)
      scr32 : (Hp*Wp, C)      padded-frame scratch (borders stay zero)
      scr64 : (Hp*Wp, 2C)     padded-frame scratch for the fused branches
    """
    f32 = jnp.float32
    bf16 = jnp.bfloat16

    Wp = wc + 2                        # padded frame width
    S1 = Wp + 1                        # first interior position (pad=1 frame)
    Lp1 = (hc - 1) * Wp + wc           # span covering all pad-1 outputs (61)
    S2 = 2 * Wp + 2                    # first interior position (pad=2 frame)
    Lp2 = (hc - 3) * Wp + (wc - 2)     # span covering all 5x5 outputs (41)
    Lc1 = (hx - 1) * WX + wx           # conv1 output span (WX-wide layout)
    Lc2 = (hzk - 1) * WZ + wzk         # conv2 output span (WZ-wide layout)
    Lxc = (hc - 1) * WX + wc           # xcorr output span (WX-wide layout)
    D9 = [(a - 1) * Wp + (b - 1) for a in range(3) for b in range(3)]

    # Fresh zero borders each grid step; interiors are overwritten below.
    scr32[...] = jnp.zeros(scr32.shape, f32)
    scr64[...] = jnp.zeros(scr64.shape, f32)

    m61 = m61_ref[...]                 # (Lp1, 1) 0/1 valid-column mask
    m41 = m41_ref[...]                 # (Lp2, 1)
    P64 = pmat_ref[...]                # (2C, 2C) group-mean broadcast matrix
    C = scr32.shape[-1]
    P32 = P64[:C, :C]
    V32 = v32_ref[...]                 # (13, C)  per-channel scale/shift/bias
    V64 = v64_ref[...]                 # (6, 2C)
    nvalid = float(hc * wc)

    def v32(i):
        return V32[i:i + 1, :]

    def v64(i):
        return V64[i:i + 1, :]

    def conv3x3(src, start, length, deltas, w):
        # src is a flat (rows, Cin) value or ref; 9 sublane-shift slabs ->
        # lane-concat -> one bf16 MXU matmul with f32 accumulation.
        cols = [src[start + d:start + d + length, :] for d in deltas]
        patch = jnp.concatenate(cols, axis=-1).astype(bf16)
        return jnp.dot(patch, w, preferred_element_type=f32)

    def gn_relu(t, mask, gamma, beta, P):
        # t already has its garbage rows zeroed (masked); stats over the
        # hc*wc valid rows via per-channel sums + group-broadcast matmul.
        s1 = jnp.sum(t, axis=0, keepdims=True)
        s2 = jnp.sum(t * t, axis=0, keepdims=True)
        stats = jnp.concatenate([s1, s2], axis=0) * f32(1.0 / nvalid)
        g = jnp.dot(stats, P, preferred_element_type=f32)
        mu = g[0:1, :]
        var = jnp.maximum(g[1:2, :] - mu * mu, 0.0)
        scale = gamma * jax.lax.rsqrt(var + eps)
        shift = beta - mu * scale
        return jnp.maximum(t * scale + shift, 0.0) * mask

    # ---- conv1 (+ folded BN + ReLU), WX-wide flat layout ---------------------
    x2 = x_ref[0]
    d1 = [a * WX + b for a in range(3) for b in range(3)]
    xf = conv3x3(x2, 0, Lc1, d1, w5_ref[0])
    xf = jnp.maximum(xf * v32(0) + v32(1), 0.0)                  # (Lc1, C)

    # ---- conv2 (+ folded BN + ReLU), WZ-wide flat layout ---------------------
    z2 = z_ref[0]
    d2 = [a * WZ + b for a in range(3) for b in range(3)]
    zf = conv3x3(z2, 0, Lc2, d2, w5_ref[1])
    zf = jnp.maximum(zf * v32(2) + v32(3), 0.0)                  # (Lc2, C)

    # ---- depthwise cross-correlation: sublane-shift slabs, VPU MAC -----------
    acc = jnp.zeros((Lxc, C), f32)
    for u in range(hzk):
        for v in range(wzk):
            acc = acc + (xf[u * WX + v:u * WX + v + Lxc, :] *
                         zf[u * WZ + v:u * WZ + v + 1, :])
    # scatter the hc x wc valid rows into the padded 9-wide frame
    for r in range(hc):
        scr32[S1 + r * Wp:S1 + r * Wp + wc, :] = acc[r * WX:r * WX + wc, :]

    # ---- resize: conv(pad1) + GN + ReLU, then conv(valid) --------------------
    t = (conv3x3(scr32, S1, Lp1, D9, w5_ref[2]) + v32(4)) * m61
    t = gn_relu(t, m61, v32(5), v32(6), P32)
    scr32[S1:S1 + Lp1, :] = t
    res5 = conv3x3(scr32, S2, Lp2, D9, w5_ref[3]) + v32(7)       # (Lp2, C)

    # ---- conv_offset: conv(pad1, Ca->C) + GN + ReLU, then conv(valid) --------
    r2 = r_ref[0]                                                # (Hp*Wp, Ca)
    t = (conv3x3(r2, S1, Lp1, D9, woff_ref[...]) + v32(8)) * m61
    t = gn_relu(t, m61, v32(9), v32(10), P32)
    scr32[S1:S1 + Lp1, :] = t
    ress5 = conv3x3(scr32, S2, Lp2, D9, w5_ref[4]) + v32(11)     # (Lp2, C)

    # ---- add: relu(cat) -> ConvTranspose2d(2C,C,3,1) == VALID conv of pad-2 --
    cat5 = jnp.maximum(jnp.concatenate([res5, ress5], axis=-1), 0.0) * m41
    scr64[S2:S2 + Lp2, :] = cat5
    radd = (conv3x3(scr64, S1, Lp1, D9, wadd_ref[...]) + v32(12)) * m61
    scr32[S1:S1 + Lp1, :] = radd

    # ---- convcls & convloc fused along channels (block-diag weights) ---------
    t = (conv3x3(scr32, S1, Lp1, D9, wccA_ref[...]) + v64(0)) * m61
    t = gn_relu(t, m61, v64(1), v64(2), P64)
    scr64[S1:S1 + Lp1, :] = t
    t = (conv3x3(scr64, S1, Lp1, D9, wccB_ref[...]) + v64(3)) * m61
    t = gn_relu(t, m61, v64(4), v64(5), P64)
    scr64[S1:S1 + Lp1, :] = t

    # ---- fused heads: [cls1(2)|cls2(2)|cls3(1)|loc(4)] in one matmul ---------
    out9 = conv3x3(scr64, S1, Lp1, D9, whead_ref[...]) + bhead_ref[...]
    out_ref[...] = out9[None, :, :].astype(out_ref.dtype)


# ------------------------------- JAX wrappers --------------------------------

def nchw_to_nhwc(a):
    return jnp.transpose(a, (0, 2, 3, 1))


def nhwc_to_nchw(a):
    return jnp.transpose(a, (0, 3, 1, 2))


def fold_bn(gamma, beta, mean, var, conv_bias, eps=1e-5):
    s = gamma / jnp.sqrt(var + eps)
    return s, (conv_bias - mean) * s + beta


def _w2mat(w):
    # (3, 3, cin, cout) HWIO -> (9*cin, cout); row order (kh, kw, cin) matches
    # the tap/lane-concat order used in the kernel.
    kh, kw, cin, cout = w.shape
    return w.reshape(kh * kw * cin, cout)


def pack_clsandloc_params(p, groups):
    """Pack all module parameters into a few VMEM-resident arrays (bf16 MXU)."""
    C = p["conv1_w"].shape[-1]
    s1, sh1 = fold_bn(p["bn1_g"], p["bn1_b"], p["bn1_m"], p["bn1_v"], p["conv1_b"])
    s2, sh2 = fold_bn(p["bn2_g"], p["bn2_b"], p["bn2_m"], p["bn2_v"], p["conv2_b"])

    bf16 = jnp.bfloat16
    W5 = jnp.stack([_w2mat(p["conv1_w"]), _w2mat(p["conv2_w"]),
                    _w2mat(p["rs_w0"]), _w2mat(p["rs_w1"]),
                    _w2mat(p["off_w1"])], axis=0).astype(bf16)      # (5, 9C, C)
    Woff = _w2mat(p["off_w0"]).astype(bf16)                          # (9*Ca, C)
    Wadd = _w2mat(p["add_w"]).astype(bf16)                           # (9*2C, C)
    WccA = jnp.concatenate([_w2mat(p["cc_w0"]), _w2mat(p["cl_w0"])],
                           axis=-1).astype(bf16)                     # (9C, 2C)

    wB = jnp.zeros((3, 3, 2 * C, 2 * C), jnp.float32)
    wB = wB.at[:, :, :C, :C].set(p["cc_w1"]).at[:, :, C:, C:].set(p["cl_w1"])
    WccB = _w2mat(wB).astype(bf16)                                   # (9*2C, 2C)

    ncls = (p["cls1_w"].shape[-1] + p["cls2_w"].shape[-1] + p["cls3_w"].shape[-1])
    nloc = p["cl_w2"].shape[-1]
    wH = jnp.zeros((3, 3, 2 * C, ncls + nloc), jnp.float32)
    wH = wH.at[:, :, :C, 0:ncls].set(
        jnp.concatenate([p["cls1_w"], p["cls2_w"], p["cls3_w"]], axis=-1))
    wH = wH.at[:, :, C:, ncls:].set(p["cl_w2"])
    Whead = _w2mat(wH).astype(bf16)                                  # (9*2C, 9)

    Vec32 = jnp.stack([
        s1, sh1, s2, sh2,
        p["rs_b0"], p["rs_gn_g"], p["rs_gn_b"], p["rs_b1"],
        p["off_b0"], p["off_gn_g"], p["off_gn_b"], p["off_b1"],
        p["add_b"]], axis=0).astype(jnp.float32)                     # (13, C)
    Vec64 = jnp.stack([
        jnp.concatenate([p["cc_b0"], p["cl_b0"]]),
        jnp.concatenate([p["cc_gn0_g"], p["cl_gn0_g"]]),
        jnp.concatenate([p["cc_gn0_b"], p["cl_gn0_b"]]),
        jnp.concatenate([p["cc_b1"], p["cl_b1"]]),
        jnp.concatenate([p["cc_gn1_g"], p["cl_gn1_g"]]),
        jnp.concatenate([p["cc_gn1_b"], p["cl_gn1_b"]])],
        axis=0).astype(jnp.float32)                                  # (6, 2C)
    Bhead = jnp.concatenate(
        [p["cls1_b"], p["cls2_b"], p["cls3_b"], p["cl_b2"]]).reshape(1, -1)

    cg = C // groups
    gid = np.arange(2 * C) // cg
    Pmat = jnp.asarray((gid[:, None] == gid[None, :]).astype(np.float32) / cg)

    return dict(W5=W5, WccA=WccA, Woff=Woff, Wadd=Wadd, WccB=WccB, Whead=Whead,
                Vec32=Vec32, Vec64=Vec64, Pmat=Pmat, Bhead=Bhead)


def clsandloc_pallas(packed, x_nchw, z_nchw, ress_nchw, *, eps=1e-5):
    """Single fused pallas_call implementing clsandloc.forward (NCHW API)."""
    x = nchw_to_nhwc(x_nchw).astype(jnp.float32)
    z = nchw_to_nhwc(z_nchw).astype(jnp.float32)
    r = nchw_to_nhwc(ress_nchw).astype(jnp.float32)
    B, HX, WX, C = x.shape
    _, HZ, WZ, _ = z.shape
    _, HR, WR, CA = r.shape

    hx, wx = HX - 2, WX - 2                    # conv1 output
    hzk, wzk = HZ - 2, WZ - 2                  # conv2 output == xcorr kernel
    hc, wc = hx - hzk + 1, wx - wzk + 1        # xcorr output
    assert (hc, wc) == (HR, WR), "res / ress spatial mismatch"
    Hp, Wp = hc + 2, wc + 2
    Np = Hp * Wp
    S1, Lp1 = Wp + 1, (hc - 1) * Wp + wc
    S2, Lp2 = 2 * Wp + 2, (hc - 3) * Wp + (wc - 2)
    Lc1 = (hx - 1) * WX + wx
    Lc2 = (hzk - 1) * WZ + wzk
    nout = packed["Whead"].shape[-1]

    # Flatten / pre-pad the tiny inputs in XLA (layout plumbing, not compute).
    xf2 = x.reshape(B, HX * WX, C)
    zf2 = z.reshape(B, HZ * WZ, C)
    rp2 = jnp.pad(r, ((0, 0), (1, 1), (1, 1), (0, 0))).reshape(B, Np, CA)

    # 0/1 valid-column masks for the flat padded frames (trace-time constants).
    p1 = np.arange(S1, S1 + Lp1) % Wp
    m61 = jnp.asarray(((p1 >= 1) & (p1 <= wc)).astype(np.float32).reshape(Lp1, 1))
    p2 = np.arange(S2, S2 + Lp2) % Wp
    m41 = jnp.asarray(((p2 >= 2) & (p2 <= wc - 1)).astype(np.float32).reshape(Lp2, 1))

    kern = functools.partial(
        _clsandloc_kernel, eps=eps, WX=WX, WZ=WZ, hx=hx, wx=wx,
        hzk=hzk, wzk=wzk, hc=hc, wc=wc)

    mm = [(Lc1, 9 * C, C), (Lc2, 9 * C, C),
          (Lp1, 9 * C, C), (Lp2, 9 * C, C),
          (Lp1, 9 * CA, C), (Lp2, 9 * C, C),
          (Lp1, 18 * C, C),
          (Lp1, 9 * C, 2 * C), (Lp1, 18 * C, 2 * C),
          (Lp1, 18 * C, nout)]
    flops = int(2 * B * sum(m * k * n for m, k, n in mm))
    bytes_accessed = int(sum(a.size * a.dtype.itemsize
                             for a in (xf2, zf2, rp2, *packed.values()))
                         + B * Lp1 * nout * 4)
    transcendentals = int(B * 6 * 2 * C)

    out = pl.pallas_call(
        kern,
        out_shape=jax.ShapeDtypeStruct((B, Lp1, nout), jnp.float32),
        grid=(B,),
        in_specs=[
            pl.BlockSpec((1, HX * WX, C), lambda i: (i, 0, 0)),
            pl.BlockSpec((1, HZ * WZ, C), lambda i: (i, 0, 0)),
            pl.BlockSpec((1, Np, CA), lambda i: (i, 0, 0)),
            pl.BlockSpec(packed["W5"].shape, lambda i: (0, 0, 0)),
            pl.BlockSpec(packed["WccA"].shape, lambda i: (0, 0)),
            pl.BlockSpec(packed["Woff"].shape, lambda i: (0, 0)),
            pl.BlockSpec(packed["Wadd"].shape, lambda i: (0, 0)),
            pl.BlockSpec(packed["WccB"].shape, lambda i: (0, 0)),
            pl.BlockSpec(packed["Whead"].shape, lambda i: (0, 0)),
            pl.BlockSpec(packed["Vec32"].shape, lambda i: (0, 0)),
            pl.BlockSpec(packed["Vec64"].shape, lambda i: (0, 0)),
            pl.BlockSpec(packed["Pmat"].shape, lambda i: (0, 0)),
            pl.BlockSpec(packed["Bhead"].shape, lambda i: (0, 0)),
            pl.BlockSpec((Lp1, 1), lambda i: (0, 0)),
            pl.BlockSpec((Lp2, 1), lambda i: (0, 0)),
        ],
        out_specs=pl.BlockSpec((1, Lp1, nout), lambda i: (i, 0, 0)),
        scratch_shapes=[pltpu.VMEM((Np, C), jnp.float32),
                        pltpu.VMEM((Np, 2 * C), jnp.float32)],
        compiler_params=pltpu.CompilerParams(
            dimension_semantics=("parallel",)),
        cost_estimate=pl.CostEstimate(flops=flops,
                                      transcendentals=transcendentals,
                                      bytes_accessed=bytes_accessed),
    )(xf2, zf2, rp2, packed["W5"], packed["WccA"], packed["Woff"],
      packed["Wadd"], packed["WccB"], packed["Whead"], packed["Vec32"],
      packed["Vec64"], packed["Pmat"], packed["Bhead"], m61, m41)

    # Un-flatten the padded-grid packed output and split the heads (tiny XLA).
    full = jnp.pad(out, ((0, 0), (S1, Np - S1 - Lp1), (0, 0)))
    full = full.reshape(B, Hp, Wp, nout)[:, 1:1 + hc, 1:1 + wc, :]
    full = jnp.transpose(full, (0, 3, 1, 2))
    cls1 = full[:, 0:2]
    cls2 = full[:, 2:4]
    cls3 = full[:, 4:5]
    loc = full[:, 5:5 + 4]
    return cls1, cls2, cls3, loc


# ----------------------------- parameter init --------------------------------

def init_params(key, channel, apnchannel):
    it = iter(jax.random.split(key, 16))
    C, Ca = channel, apnchannel

    def w(cin, cout):
        return 0.01 * jax.random.normal(next(it), (3, 3, cin, cout), jnp.float32)

    def zeros(n):
        return jnp.zeros((n,), jnp.float32)

    def ones(n):
        return jnp.ones((n,), jnp.float32)

    p = {}
    p["conv1_w"], p["conv1_b"] = w(C, C), zeros(C)
    p["bn1_g"], p["bn1_b"], p["bn1_m"], p["bn1_v"] = ones(C), zeros(C), zeros(C), ones(C)
    p["conv2_w"], p["conv2_b"] = w(C, C), zeros(C)
    p["bn2_g"], p["bn2_b"], p["bn2_m"], p["bn2_v"] = ones(C), zeros(C), zeros(C), ones(C)

    p["rs_w0"], p["rs_b0"] = w(C, C), zeros(C)
    p["rs_gn_g"], p["rs_gn_b"] = ones(C), zeros(C)
    p["rs_w1"], p["rs_b1"] = w(C, C), zeros(C)

    p["off_w0"], p["off_b0"] = w(Ca, C), zeros(C)
    p["off_gn_g"], p["off_gn_b"] = ones(C), zeros(C)
    p["off_w1"], p["off_b1"] = w(C, C), zeros(C)

    # ConvTranspose2d(2C, C, 3, 1): torch weight layout (in=2C, out=C, 3, 3).
    wt = 0.01 * jax.random.normal(next(it), (2 * C, C, 3, 3), jnp.float32)
    # Equivalent VALID-conv (HWIO) weight for a 2-padded input: flip + transpose.
    p["add_w"] = jnp.transpose(wt[:, :, ::-1, ::-1], (2, 3, 0, 1))
    p["add_b"] = zeros(C)

    p["cc_w0"], p["cc_b0"] = w(C, C), zeros(C)
    p["cc_gn0_g"], p["cc_gn0_b"] = ones(C), zeros(C)
    p["cc_w1"], p["cc_b1"] = w(C, C), zeros(C)
    p["cc_gn1_g"], p["cc_gn1_b"] = ones(C), zeros(C)

    p["cl_w0"], p["cl_b0"] = w(C, C), zeros(C)
    p["cl_gn0_g"], p["cl_gn0_b"] = ones(C), zeros(C)
    p["cl_w1"], p["cl_b1"] = w(C, C), zeros(C)
    p["cl_gn1_g"], p["cl_gn1_b"] = ones(C), zeros(C)
    p["cl_w2"], p["cl_b2"] = w(C, 4), zeros(4)

    p["cls1_w"], p["cls1_b"] = w(C, 2), zeros(2)
    p["cls2_w"], p["cls2_b"] = w(C, 2), zeros(2)
    p["cls3_w"], p["cls3_b"] = w(C, 1), zeros(1)
    return p


# ---------------------------- pure-JAX reference -----------------------------

def pad1(a):
    return jnp.pad(a, ((0, 0), (1, 1), (1, 1), (0, 0)))


def pad2(a):
    return jnp.pad(a, ((0, 0), (2, 2), (2, 2), (0, 0)))


def conv3x3_ref(x, w, scale, shift, *, relu_in=False, relu_out=False):
    if relu_in:
        x = jnp.maximum(x, 0.0)
    y = jax.lax.conv_general_dilated(
        x, w, window_strides=(1, 1), padding="VALID",
        dimension_numbers=("NHWC", "HWIO", "NHWC"))
    y = y * scale.reshape(1, 1, 1, -1) + shift.reshape(1, 1, 1, -1)
    if relu_out:
        y = jnp.maximum(y, 0.0)
    return y


def groupnorm_relu_ref(x, gamma, beta, num_groups, eps=1e-5):
    n, h, w, c = x.shape
    cg = c // num_groups
    xr = x.reshape(n, h, w, num_groups, cg)
    mu = jnp.mean(xr, axis=(1, 2, 4), keepdims=True)
    var = jnp.mean((xr - mu) ** 2, axis=(1, 2, 4), keepdims=True)
    y = ((xr - mu) / jnp.sqrt(var + eps)).reshape(n, h, w, c)
    y = y * gamma.reshape(1, 1, 1, c) + beta.reshape(1, 1, 1, c)
    return jnp.maximum(y, 0.0)


def xcorr_depthwise_ref(x, z):
    c = x.shape[-1]
    outs = []
    for b in range(x.shape[0]):
        wb = z[b][:, :, None, :]  # (Hz, Wz, 1, C), feature_group_count = C
        y = jax.lax.conv_general_dilated(
            x[b:b + 1], wb, window_strides=(1, 1), padding="VALID",
            dimension_numbers=("NHWC", "HWIO", "NHWC"), feature_group_count=c)
        outs.append(y)
    return jnp.concatenate(outs, axis=0)


def _forward_ref(p, x, z, ress, *, groups):
    C = p["conv1_w"].shape[-1]
    ones_c = jnp.ones((C,), jnp.float32)

    s1, sh1 = fold_bn(p["bn1_g"], p["bn1_b"], p["bn1_m"], p["bn1_v"], p["conv1_b"])
    x = conv3x3_ref(x, p["conv1_w"], s1, sh1, relu_out=True)
    s2, sh2 = fold_bn(p["bn2_g"], p["bn2_b"], p["bn2_m"], p["bn2_v"], p["conv2_b"])
    z = conv3x3_ref(z, p["conv2_w"], s2, sh2, relu_out=True)

    res = xcorr_depthwise_ref(x, z)

    t = conv3x3_ref(pad1(res), p["rs_w0"], ones_c, p["rs_b0"])
    t = groupnorm_relu_ref(t, p["rs_gn_g"], p["rs_gn_b"], groups)
    res = conv3x3_ref(t, p["rs_w1"], ones_c, p["rs_b1"])

    t = conv3x3_ref(pad1(ress), p["off_w0"], ones_c, p["off_b0"])
    t = groupnorm_relu_ref(t, p["off_gn_g"], p["off_gn_b"], groups)
    ress = conv3x3_ref(t, p["off_w1"], ones_c, p["off_b1"])

    cat = jnp.concatenate([res, ress], axis=-1)
    res = conv3x3_ref(pad2(cat), p["add_w"], ones_c, p["add_b"], relu_in=True)

    t = conv3x3_ref(pad1(res), p["cc_w0"], ones_c, p["cc_b0"])
    t = groupnorm_relu_ref(t, p["cc_gn0_g"], p["cc_gn0_b"], groups)
    t = conv3x3_ref(pad1(t), p["cc_w1"], ones_c, p["cc_b1"])
    cls = groupnorm_relu_ref(t, p["cc_gn1_g"], p["cc_gn1_b"], groups)
    cls1 = conv3x3_ref(pad1(cls), p["cls1_w"], jnp.ones((2,), jnp.float32), p["cls1_b"])
    cls2 = conv3x3_ref(pad1(cls), p["cls2_w"], jnp.ones((2,), jnp.float32), p["cls2_b"])
    cls3 = conv3x3_ref(pad1(cls), p["cls3_w"], jnp.ones((1,), jnp.float32), p["cls3_b"])

    t = conv3x3_ref(pad1(res), p["cl_w0"], ones_c, p["cl_b0"])
    t = groupnorm_relu_ref(t, p["cl_gn0_g"], p["cl_gn0_b"], groups)
    t = conv3x3_ref(pad1(t), p["cl_w1"], ones_c, p["cl_b1"])
    t = groupnorm_relu_ref(t, p["cl_gn1_g"], p["cl_gn1_b"], groups)
    loc = conv3x3_ref(pad1(t), p["cl_w2"], jnp.ones((4,), jnp.float32), p["cl_b2"])
    return cls1, cls2, cls3, loc


def clsandloc_ref(params, x_nchw, z_nchw, ress_nchw, *, groups):
    x, z, r = map(nchw_to_nhwc, (x_nchw, z_nchw, ress_nchw))
    outs = _forward_ref(params, x, z, r, groups=groups)
    return tuple(nhwc_to_nchw(o) for o in outs)


# ----------------------------------- main -------------------------------------

if __name__ == "__main__":
    # cfg.TRAIN.clsandlocchannel, cfg.TRAIN.apnchannel, cfg.TRAIN.groupchannel
    channel, apnchannel, groups = 32, 48, 8
    B = 2

    key = jax.random.PRNGKey(0)
    kp, kx, kz, kr = jax.random.split(key, 4)
    params = init_params(kp, channel, apnchannel)

    # NCHW inputs, like the PyTorch module.
    x = jax.random.normal(kx, (B, channel, 12, 12), jnp.float32)      # search feats
    z = jax.random.normal(kz, (B, channel, 6, 6), jnp.float32)        # template feats
    ress = jax.random.normal(kr, (B, apnchannel, 7, 7), jnp.float32)  # APN feats

    packed = pack_clsandloc_params(params, groups)
    fwd = jax.jit(clsandloc_pallas)
    cls1, cls2, cls3, loc = jax.block_until_ready(fwd(packed, x, z, ress))

    r1, r2, r3, rl = clsandloc_ref(params, x, z, ress, groups=groups)
    for got, want in ((cls1, r1), (cls2, r2), (cls3, r3), (loc, rl)):
        assert got.shape == want.shape, (got.shape, want.shape)
        # tolerance accounts for bf16 MXU operands (f32 accumulation)
        np.testing.assert_allclose(np.asarray(got), np.asarray(want),
                                   rtol=2e-2, atol=2e-2)

    assert cls1.shape == (B, 2, 7, 7)
    assert cls2.shape == (B, 2, 7, 7)
    assert cls3.shape == (B, 1, 7, 7)
    assert loc.shape == (B, 4, 7, 7)
    print("KERNEL_OK")
</pallas_src>

<mosaic_0001>
module attributes {stable_mosaic.version = 11 : i64} {
  func.func @_clsandloc_kernel(%arg0: i32, %arg1: memref<1x144x32xf32, #tpu.memory_space<vmem>>, %arg2: memref<1x36x32xf32, #tpu.memory_space<vmem>>, %arg3: memref<1x81x48xf32, #tpu.memory_space<vmem>>, %arg4: memref<5x288x32xbf16, #tpu.memory_space<vmem>>, %arg5: memref<288x64xbf16, #tpu.memory_space<vmem>>, %arg6: memref<432x32xbf16, #tpu.memory_space<vmem>>, %arg7: memref<576x32xbf16, #tpu.memory_space<vmem>>, %arg8: memref<576x64xbf16, #tpu.memory_space<vmem>>, %arg9: memref<576x9xbf16, #tpu.memory_space<vmem>>, %arg10: memref<13x32xf32, #tpu.memory_space<vmem>>, %arg11: memref<6x64xf32, #tpu.memory_space<vmem>>, %arg12: memref<64x64xf32, #tpu.memory_space<vmem>>, %arg13: memref<1x9xf32, #tpu.memory_space<vmem>>, %arg14: memref<61x1xf32, #tpu.memory_space<vmem>>, %arg15: memref<41x1xf32, #tpu.memory_space<vmem>>, %arg16: memref<1x61x9xf32, #tpu.memory_space<vmem>>, %arg17: memref<81x32xf32, #tpu.memory_space<vmem>>, %arg18: memref<81x64xf32, #tpu.memory_space<vmem>>) attributes {dimension_semantics = [#tpu.dimension_semantics<parallel>], iteration_bounds = array<i64: 2>, scalar_prefetch = 0 : i64, scratch_operands = 2 : i64, tpu.core_type = #tpu.core_type<tc>, window_params = [{transform_indices = @transform_0, window_bounds = array<i64: 1, 144, 32>}, {transform_indices = @transform_1, window_bounds = array<i64: 1, 36, 32>}, {transform_indices = @transform_2, window_bounds = array<i64: 1, 81, 48>}, {pipeline_mode = #tpu.pipeline_mode<synchronous>, transform_indices = @transform_3, window_bounds = array<i64: 5, 288, 32>}, {pipeline_mode = #tpu.pipeline_mode<synchronous>, transform_indices = @transform_4, window_bounds = array<i64: 288, 64>}, {pipeline_mode = #tpu.pipeline_mode<synchronous>, transform_indices = @transform_5, window_bounds = array<i64: 432, 32>}, {pipeline_mode = #tpu.pipeline_mode<synchronous>, transform_indices = @transform_6, window_bounds = array<i64: 576, 32>}, {pipeline_mode = #tpu.pipeline_mode<synchronous>, transform_indices = @transform_7, window_bounds = array<i64: 576, 64>}, {pipeline_mode = #tpu.pipeline_mode<synchronous>, transform_indices = @transform_8, window_bounds = array<i64: 576, 9>}, {pipeline_mode = #tpu.pipeline_mode<synchronous>, transform_indices = @transform_9, window_bounds = array<i64: 13, 32>}, {pipeline_mode = #tpu.pipeline_mode<synchronous>, transform_indices = @transform_10, window_bounds = array<i64: 6, 64>}, {pipeline_mode = #tpu.pipeline_mode<synchronous>, transform_indices = @transform_11, window_bounds = array<i64: 64, 64>}, {pipeline_mode = #tpu.pipeline_mode<synchronous>, transform_indices = @transform_12, window_bounds = array<i64: 1, 9>}, {pipeline_mode = #tpu.pipeline_mode<synchronous>, transform_indices = @transform_13, window_bounds = array<i64: 61, 1>}, {pipeline_mode = #tpu.pipeline_mode<synchronous>, transform_indices = @transform_14, window_bounds = array<i64: 41, 1>}, {transform_indices = @transform_15, window_bounds = array<i64: 1, 61, 9>}]} {
    %cst = arith.constant 0.000000e+00 : f32
    %0 = vector.broadcast %cst : f32 to vector<81x32xf32>
    %c0 = arith.constant 0 : index
    %c0_0 = arith.constant 0 : index
    %1 = vector.load %arg17[%c0, %c0_0] : memref<81x32xf32, #tpu.memory_space<vmem>>, vector<81x32xf32>
    tpu.vector_store %arg17[%c0, %c0_0], %0 {strides = array<i32>} : memref<81x32xf32, #tpu.memory_space<vmem>>, vector<81x32xf32>,
    %cst_1 = arith.constant 0.000000e+00 : f32
    %2 = vector.broadcast %cst_1 : f32 to vector<81x64xf32>
    %c0_2 = arith.constant 0 : index
    %c0_3 = arith.constant 0 : index
    %3 = vector.load %arg18[%c0_2, %c0_3] : memref<81x64xf32, #tpu.memory_space<vmem>>, vector<81x64xf32>
    tpu.vector_store %arg18[%c0_2, %c0_3], %2 {strides = array<i32>} : memref<81x64xf32, #tpu.memory_space<vmem>>, vector<81x64xf32>,
    %c0_4 = arith.constant 0 : index
    %c0_5 = arith.constant 0 : index
    %4 = vector.load %arg14[%c0_4, %c0_5] : memref<61x1xf32, #tpu.memory_space<vmem>>, vector<61x1xf32>
    %c0_6 = arith.constant 0 : index
    %c0_7 = arith.constant 0 : index
    %5 = vector.load %arg15[%c0_6, %c0_7] : memref<41x1xf32, #tpu.memory_space<vmem>>, vector<41x1xf32>
    %c0_8 = arith.constant 0 : index
    %c0_9 = arith.constant 0 : index
    %6 = vector.load %arg12[%c0_8, %c0_9] : memref<64x64xf32, #tpu.memory_space<vmem>>, vector<64x64xf32>
    %7 = vector.extract_strided_slice %6 {offsets = [0, 0], sizes = [32, 32], strides = [1, 1]} : vector<64x64xf32> to vector<32x32xf32>
    %c0_10 = arith.constant 0 : index
    %c0_11 = arith.constant 0 : index
    %8 = vector.load %arg10[%c0_10, %c0_11] : memref<13x32xf32, #tpu.memory_space<vmem>>, vector<13x32xf32>
    %c0_12 = arith.constant 0 : index
    %c0_13 = arith.constant 0 : index
    %9 = vector.load %arg11[%c0_12, %c0_13] : memref<6x64xf32, #tpu.memory_space<vmem>>, vector<6x64xf32>
    %c0_14 = arith.constant 0 : index
    %c0_15 = arith.constant 0 : index
    %c0_16 = arith.constant 0 : index
    %10 = vector.load %arg1[%c0_14, %c0_15, %c0_16] : memref<1x144x32xf32, #tpu.memory_space<vmem>>, vector<1x144x32xf32>
    %11 = vector.shape_cast %10 : vector<1x144x32xf32> to vector<144x32xf32>
    %c0_17 = arith.constant 0 : index
    %c0_18 = arith.constant 0 : index
    %c0_19 = arith.constant 0 : index
    %12 = vector.load %arg4[%c0_17, %c0_18, %c0_19] : memref<5x288x32xbf16, #tpu.memory_space<vmem>>, vector<1x288x32xbf16>
    %13 = vector.shape_cast %12 : vector<1x288x32xbf16> to vector<288x32xbf16>
    %14 = vector.extract_strided_slice %11 {offsets = [0, 0], sizes = [118, 32], strides = [1, 1]} : vector<144x32xf32> to vector<118x32xf32>
    %15 = vector.extract_strided_slice %11 {offsets = [1, 0], sizes = [118, 32], strides = [1, 1]} : vector<144x32xf32> to vector<118x32xf32>
    %16 = vector.extract_strided_slice %11 {offsets = [2, 0], sizes = [118, 32], strides = [1, 1]} : vector<144x32xf32> to vector<118x32xf32>
    %17 = vector.extract_strided_slice %11 {offsets = [12, 0], sizes = [118, 32], strides = [1, 1]} : vector<144x32xf32> to vector<118x32xf32>
    %18 = vector.extract_strided_slice %11 {offsets = [13, 0], sizes = [118, 32], strides = [1, 1]} : vector<144x32xf32> to vector<118x32xf32>
    %19 = vector.extract_strided_slice %11 {offsets = [14, 0], sizes = [118, 32], strides = [1, 1]} : vector<144x32xf32> to vector<118x32xf32>
    %20 = vector.extract_strided_slice %11 {offsets = [24, 0], sizes = [118, 32], strides = [1, 1]} : vector<144x32xf32> to vector<118x32xf32>
    %21 = vector.extract_strided_slice %11 {offsets = [25, 0], sizes = [118, 32], strides = [1, 1]} : vector<144x32xf32> to vector<118x32xf32>
    %22 = vector.extract_strided_slice %11 {offsets = [26, 0], sizes = [118, 32], strides = [1, 1]} : vector<144x32xf32> to vector<118x32xf32>
    %23 = tpu.concatenate %14, %15, %16, %17, %18, %19, %20, %21, %22 in 1 : vector<118x32xf32>, vector<118x32xf32>, vector<118x32xf32>, vector<118x32xf32>, vector<118x32xf32>, vector<118x32xf32>, vector<118x32xf32>, vector<118x32xf32>, vector<118x32xf32> -> vector<118x288xf32>
    %24 = arith.truncf %23 : vector<118x288xf32> to vector<118x288xbf16>
    %cst_20 = arith.constant dense<0.000000e+00> : vector<118x32xf32>
    %25 = tpu.matmul %24, %13, %cst_20 {dimension_numbers = #tpu.dot_dimension_numbers<[1], [0], [0], [1], [0, 0, 1, 1], [], []>} : vector<118x288xbf16>, vector<288x32xbf16>, vector<118x32xf32> -> vector<118x32xf32>
    %26 = vector.extract_strided_slice %8 {offsets = [0, 0], sizes = [1, 32], strides = [1, 1]} : vector<13x32xf32> to vector<1x32xf32>
    %27 = vector.broadcast %26 : vector<1x32xf32> to vector<118x32xf32>
    %28 = arith.mulf %25, %27 : vector<118x32xf32>
    %29 = vector.extract_strided_slice %8 {offsets = [1, 0], sizes = [1, 32], strides = [1, 1]} : vector<13x32xf32> to vector<1x32xf32>
    %30 = vector.broadcast %29 : vector<1x32xf32> to vector<118x32xf32>
    %31 = arith.addf %28, %30 : vector<118x32xf32>
    %cst_21 = arith.constant 0.000000e+00 : f32
    %32 = vector.broadcast %cst_21 : f32 to vector<118x32xf32>
    %33 = arith.maximumf %31, %32 : vector<118x32xf32>
    %c0_22 = arith.constant 0 : index
    %c0_23 = arith.constant 0 : index
    %c0_24 = arith.constant 0 : index
    %34 = vector.load %arg2[%c0_22, %c0_23, %c0_24] : memref<1x36x32xf32, #tpu.memory_space<vmem>>, vector<1x36x32xf32>
    %35 = vector.shape_cast %34 : vector<1x36x32xf32> to vector<36x32xf32>
    %c1 = arith.constant 1 : index
    %c0_25 = arith.constant 0 : index
    %c0_26 = arith.constant 0 : index
    %36 = vector.load %arg4[%c1, %c0_25, %c0_26] : memref<5x288x32xbf16, #tpu.memory_space<vmem>>, vector<1x288x32xbf16>
    %37 = vector.shape_cast %36 : vector<1x288x32xbf16> to vector<288x32xbf16>
    %38 = vector.extract_strided_slice %35 {offsets = [0, 0], sizes = [22, 32], strides = [1, 1]} : vector<36x32xf32> to vector<22x32xf32>
    %39 = vector.extract_strided_slice %35 {offsets = [1, 0], sizes = [22, 32], strides = [1, 1]} : vector<36x32xf32> to vector<22x32xf32>
    %40 = vector.extract_strided_slice %35 {offsets = [2, 0], sizes = [22, 32], strides = [1, 1]} : vector<36x32xf32> to vector<22x32xf32>
    %41 = vector.extract_strided_slice %35 {offsets = [6, 0], sizes = [22, 32], strides = [1, 1]} : vector<36x32xf32> to vector<22x32xf32>
    %42 = vector.extract_strided_slice %35 {offsets = [7, 0], sizes = [22, 32], strides = [1, 1]} : vector<36x32xf32> to vector<22x32xf32>
    %43 = vector.extract_strided_slice %35 {offsets = [8, 0], sizes = [22, 32], strides = [1, 1]} : vector<36x32xf32> to vector<22x32xf32>
    %44 = vector.extract_strided_slice %35 {offsets = [12, 0], sizes = [22, 32], strides = [1, 1]} : vector<36x32xf32> to vector<22x32xf32>
    %45 = vector.extract_strided_slice %35 {offsets = [13, 0], sizes = [22, 32], strides = [1, 1]} : vector<36x32xf32> to vector<22x32xf32>
    %46 = vector.extract_strided_slice %35 {offsets = [14, 0], sizes = [22, 32], strides = [1, 1]} : vector<36x32xf32> to vector<22x32xf32>
    %47 = tpu.concatenate %38, %39, %40, %41, %42, %43, %44, %45, %46 in 1 : vector<22x32xf32>, vector<22x32xf32>, vector<22x32xf32>, vector<22x32xf32>, vector<22x32xf32>, vector<22x32xf32>, vector<22x32xf32>, vector<22x32xf32>, vector<22x32xf32> -> vector<22x288xf32>
    %48 = arith.truncf %47 : vector<22x288xf32> to vector<22x288xbf16>
    %cst_27 = arith.constant dense<0.000000e+00> : vector<22x32xf32>
    %49 = tpu.matmul %48, %37, %cst_27 {dimension_numbers = #tpu.dot_dimension_numbers<[1], [0], [0], [1], [0, 0, 1, 1], [], []>} : vector<22x288xbf16>, vector<288x32xbf16>, vector<22x32xf32> -> vector<22x32xf32>
    %50 = vector.extract_strided_slice %8 {offsets = [2, 0], sizes = [1, 32], strides = [1, 1]} : vector<13x32xf32> to vector<1x32xf32>
    %51 = vector.broadcast %50 : vector<1x32xf32> to vector<22x32xf32>
    %52 = arith.mulf %49, %51 : vector<22x32xf32>
    %53 = vector.extract_strided_slice %8 {offsets = [3, 0], sizes = [1, 32], strides = [1, 1]} : vector<13x32xf32> to vector<1x32xf32>
    %54 = vector.broadcast %53 : vector<1x32xf32> to vector<22x32xf32>
    %55 = arith.addf %52, %54 : vector<22x32xf32>
    %cst_28 = arith.constant 0.000000e+00 : f32
    %56 = vector.broadcast %cst_28 : f32 to vector<22x32xf32>
    %57 = arith.maximumf %55, %56 : vector<22x32xf32>
    %cst_29 = arith.constant 0.000000e+00 : f32
    %58 = vector.broadcast %cst_29 : f32 to vector<79x32xf32>
    %59 = vector.extract_strided_slice %33 {offsets = [0, 0], sizes = [79, 32], strides = [1, 1]} : vector<118x32xf32> to vector<79x32xf32>
    %60 = vector.extract_strided_slice %57 {offsets = [0, 0], sizes = [1, 32], strides = [1, 1]} : vector<22x32xf32> to vector<1x32xf32>
    %61 = vector.broadcast %60 : vector<1x32xf32> to vector<79x32xf32>
    %62 = arith.mulf %59, %61 : vector<79x32xf32>
    %63 = arith.addf %58, %62 : vector<79x32xf32>
    %64 = vector.extract_strided_slice %33 {offsets = [1, 0], sizes = [79, 32], strides = [1, 1]} : vector<118x32xf32> to vector<79x32xf32>
    %65 = vector.extract_strided_slice %57 {offsets = [1, 0], sizes = [1, 32], strides = [1, 1]} : vector<22x32xf32> to vector<1x32xf32>
    %66 = vector.broadcast %65 : vector<1x32xf32> to vector<79x32xf32>
    %67 = arith.mulf %64, %66 : vector<79x32xf32>
    %68 = arith.addf %63, %67 : vector<79x32xf32>
    %69 = vector.extract_strided_slice %33 {offsets = [2, 0], sizes = [79, 32], strides = [1, 1]} : vector<118x32xf32> to vector<79x32xf32>
    %70 = vector.extract_strided_slice %57 {offsets = [2, 0], sizes = [1, 32], strides = [1, 1]} : vector<22x32xf32> to vector<1x32xf32>
    %71 = vector.broadcast %70 : vector<1x32xf32> to vector<79x32xf32>
    %72 = arith.mulf %69, %71 : vector<79x32xf32>
    %73 = arith.addf %68, %72 : vector<79x32xf32>
    %74 = vector.extract_strided_slice %33 {offsets = [3, 0], sizes = [79, 32], strides = [1, 1]} : vector<118x32xf32> to vector<79x32xf32>
    %75 = vector.extract_strided_slice %57 {offsets = [3, 0], sizes = [1, 32], strides = [1, 1]} : vector<22x32xf32> to vector<1x32xf32>
    %76 = vector.broadcast %75 : vector<1x32xf32> to vector<79x32xf32>
    %77 = arith.mulf %74, %76 : vector<79x32xf32>
    %78 = arith.addf %73, %77 : vector<79x32xf32>
    %79 = vector.extract_strided_slice %33 {offsets = [12, 0], sizes = [79, 32], strides = [1, 1]} : vector<118x32xf32> to vector<79x32xf32>
    %80 = vector.extract_strided_slice %57 {offsets = [6, 0], sizes = [1, 32], strides = [1, 1]} : vector<22x32xf32> to vector<1x32xf32>
    %81 = vector.broadcast %80 : vector<1x32xf32> to vector<79x32xf32>
    %82 = arith.mulf %79, %81 : vector<79x32xf32>
    %83 = arith.addf %78, %82 : vector<79x32xf32>
    %84 = vector.extract_strided_slice %33 {offsets = [13, 0], sizes = [79, 32], strides = [1, 1]} : vector<118x32xf32> to vector<79x32xf32>
    %85 = vector.extract_strided_slice %57 {offsets = [7, 0], sizes = [1, 32], strides = [1, 1]} : vector<22x32xf32> to vector<1x32xf32>
    %86 = vector.broadcast %85 : vector<1x32xf32> to vector<79x32xf32>
    %87 = arith.mulf %84, %86 : vector<79x32xf32>
    %88 = arith.addf %83, %87 : vector<79x32xf32>
    %89 = vector.extract_strided_slice %33 {offsets = [14, 0], sizes = [79, 32], strides = [1, 1]} : vector<118x32xf32> to vector<79x32xf32>
    %90 = vector.extract_strided_slice %57 {offsets = [8, 0], sizes = [1, 32], strides = [1, 1]} : vector<22x32xf32> to vector<1x32xf32>
    %91 = vector.broadcast %90 : vector<1x32xf32> to vector<79x32xf32>
    %92 = arith.mulf %89, %91 : vector<79x32xf32>
    %93 = arith.addf %88, %92 : vector<79x32xf32>
    %94 = vector.extract_strided_slice %33 {offsets = [15, 0], sizes = [79, 32], strides = [1, 1]} : vector<118x32xf32> to vector<79x32xf32>
    %95 = vector.extract_strided_slice %57 {offsets = [9, 0], sizes = [1, 32], strides = [1, 1]} : vector<22x32xf32> to vector<1x32xf32>
    %96 = vector.broadcast %95 : vector<1x32xf32> to vector<79x32xf32>
    %97 = arith.mulf %94, %96 : vector<79x32xf32>
    %98 = arith.addf %93, %97 : vector<79x32xf32>
    %99 = vector.extract_strided_slice %33 {offsets = [24, 0], sizes = [79, 32], strides = [1, 1]} : vector<118x32xf32> to vector<79x32xf32>
    %100 = vector.extract_strided_slice %57 {offsets = [12, 0], sizes = [1, 32], strides = [1, 1]} : vector<22x32xf32> to vector<1x32xf32>
    %101 = vector.broadcast %100 : vector<1x32xf32> to vector<79x32xf32>
    %102 = arith.mulf %99, %101 : vector<79x32xf32>
    %103 = arith.addf %98, %102 : vector<79x32xf32>
    %104 = vector.extract_strided_slice %33 {offsets = [25, 0], sizes = [79, 32], strides = [1, 1]} : vector<118x32xf32> to vector<79x32xf32>
    %105 = vector.extract_strided_slice %57 {offsets = [13, 0], sizes = [1, 32], strides = [1, 1]} : vector<22x32xf32> to vector<1x32xf32>
    %106 = vector.broadcast %105 : vector<1x32xf32> to vector<79x32xf32>
    %107 = arith.mulf %104, %106 : vector<79x32xf32>
    %108 = arith.addf %103, %107 : vector<79x32xf32>
    %109 = vector.extract_strided_slice %33 {offsets = [26, 0], sizes = [79, 32], strides = [1, 1]} : vector<118x32xf32> to vector<79x32xf32>
    %110 = vector.extract_strided_slice %57 {offsets = [14, 0], sizes = [1, 32], strides = [1, 1]} : vector<22x32xf32> to vector<1x32xf32>
    %111 = vector.broadcast %110 : vector<1x32xf32> to vector<79x32xf32>
    %112 = arith.mulf %109, %111 : vector<79x32xf32>
    %113 = arith.addf %108, %112 : vector<79x32xf32>
    %114 = vector.extract_strided_slice %33 {offsets = [27, 0], sizes = [79, 32], strides = [1, 1]} : vector<118x32xf32> to vector<79x32xf32>
    %115 = vector.extract_strided_slice %57 {offsets = [15, 0], sizes = [1, 32], strides = [1, 1]} : vector<22x32xf32> to vector<1x32xf32>
    %116 = vector.broadcast %115 : vector<1x32xf32> to vector<79x32xf32>
    %117 = arith.mulf %114, %116 : vector<79x32xf32>
    %118 = arith.addf %113, %117 : vector<79x32xf32>
    %119 = vector.extract_strided_slice %33 {offsets = [36, 0], sizes = [79, 32], strides = [1, 1]} : vector<118x32xf32> to vector<79x32xf32>
    %120 = vector.extract_strided_slice %57 {offsets = [18, 0], sizes = [1, 32], strides = [1, 1]} : vector<22x32xf32> to vector<1x32xf32>
    %121 = vector.broadcast %120 : vector<1x32xf32> to vector<79x32xf32>
    %122 = arith.mulf %119, %121 : vector<79x32xf32>
    %123 = arith.addf %118, %122 : vector<79x32xf32>
    %124 = vector.extract_strided_slice %33 {offsets = [37, 0], sizes = [79, 32], strides = [1, 1]} : vector<118x32xf32> to vector<79x32xf32>
    %125 = vector.extract_strided_slice %57 {offsets = [19, 0], sizes = [1, 32], strides = [1, 1]} : vector<22x32xf32> to vector<1x32xf32>
    %126 = vector.broadcast %125 : vector<1x32xf32> to vector<79x32xf32>
    %127 = arith.mulf %124, %126 : vector<79x32xf32>
    %128 = arith.addf %123, %127 : vector<79x32xf32>
    %129 = vector.extract_strided_slice %33 {offsets = [38, 0], sizes = [79, 32], strides = [1, 1]} : vector<118x32xf32> to vector<79x32xf32>
    %130 = vector.extract_strided_slice %57 {offsets = [20, 0], sizes = [1, 32], strides = [1, 1]} : vector<22x32xf32> to vector<1x32xf32>
    %131 = vector.broadcast %130 : vector<1x32xf32> to vector<79x32xf32>
    %132 = arith.mulf %129, %131 : vector<79x32xf32>
    %133 = arith.addf %128, %132 : vector<79x32xf32>
    %134 = vector.extract_strided_slice %33 {offsets = [39, 0], sizes = [79, 32], strides = [1, 1]} : vector<118x32xf32> to vector<79x32xf32>
    %135 = vector.extract_strided_slice %57 {offsets = [21, 0], sizes = [1, 32], strides = [1, 1]} : vector<22x32xf32> to vector<1x32xf32>
    %136 = vector.broadcast %135 : vector<1x32xf32> to vector<79x32xf32>
    %137 = arith.mulf %134, %136 : vector<79x32xf32>
    %138 = arith.addf %133, %137 : vector<79x32xf32>
    %139 = vector.extract_strided_slice %138 {offsets = [0, 0], sizes = [7, 32], strides = [1, 1]} : vector<79x32xf32> to vector<7x32xf32>
    %c10 = arith.constant 10 : index
    %c0_30 = arith.constant 0 : index
    %140 = vector.load %arg17[%c10, %c0_30] : memref<81x32xf32, #tpu.memory_space<vmem>>, vector<7x32xf32>
    tpu.vector_store %arg17[%c10, %c0_30], %139 {strides = array<i32>} : memref<81x32xf32, #tpu.memory_space<vmem>>, vector<7x32xf32>,
    %141 = vector.extract_strided_slice %138 {offsets = [12, 0], sizes = [7, 32], strides = [1, 1]} : vector<79x32xf32> to vector<7x32xf32>
    %c19 = arith.constant 19 : index
    %c0_31 = arith.constant 0 : index
    %142 = vector.load %arg17[%c19, %c0_31] : memref<81x32xf32, #tpu.memory_space<vmem>>, vector<7x32xf32>
    tpu.vector_store %arg17[%c19, %c0_31], %141 {strides = array<i32>} : memref<81x32xf32, #tpu.memory_space<vmem>>, vector<7x32xf32>,
    %143 = vector.extract_strided_slice %138 {offsets = [24, 0], sizes = [7, 32], strides = [1, 1]} : vector<79x32xf32> to vector<7x32xf32>
    %c28 = arith.constant 28 : index
    %c0_32 = arith.constant 0 : index
    %144 = vector.load %arg17[%c28, %c0_32] : memref<81x32xf32, #tpu.memory_space<vmem>>, vector<7x32xf32>
    tpu.vector_store %arg17[%c28, %c0_32], %143 {strides = array<i32>} : memref<81x32xf32, #tpu.memory_space<vmem>>, vector<7x32xf32>,
    %145 = vector.extract_strided_slice %138 {offsets = [36, 0], sizes = [7, 32], strides = [1, 1]} : vector<79x32xf32> to vector<7x32xf32>
    %c37 = arith.constant 37 : index
    %c0_33 = arith.constant 0 : index
    %146 = vector.load %arg17[%c37, %c0_33] : memref<81x32xf32, #tpu.memory_space<vmem>>, vector<7x32xf32>
    tpu.vector_store %arg17[%c37, %c0_33], %145 {strides = array<i32>} : memref<81x32xf32, #tpu.memory_space<vmem>>, vector<7x32xf32>,
    %147 = vector.extract_strided_slice %138 {offsets = [48, 0], sizes = [7, 32], strides = [1, 1]} : vector<79x32xf32> to vector<7x32xf32>
    %c46 = arith.constant 46 : index
    %c0_34 = arith.constant 0 : index
    %148 = vector.load %arg17[%c46, %c0_34] : memref<81x32xf32, #tpu.memory_space<vmem>>, vector<7x32xf32>
    tpu.vector_store %arg17[%c46, %c0_34], %147 {strides = array<i32>} : memref<81x32xf32, #tpu.memory_space<vmem>>, vector<7x32xf32>,
    %149 = vector.extract_strided_slice %138 {offsets = [60, 0], sizes = [7, 32], strides = [1, 1]} : vector<79x32xf32> to vector<7x32xf32>
    %c55 = arith.constant 55 : index
    %c0_35 = arith.constant 0 : index
    %150 = vector.load %arg17[%c55, %c0_35] : memref<81x32xf32, #tpu.memory_space<vmem>>, vector<7x32xf32>
    tpu.vector_store %arg17[%c55, %c0_35], %149 {strides = array<i32>} : memref<81x32xf32, #tpu.memory_space<vmem>>, vector<7x32xf32>,
    %151 = vector.extract_strided_slice %138 {offsets = [72, 0], sizes = [7, 32], strides = [1, 1]} : vector<79x32xf32> to vector<7x32xf32>
    %c64 = arith.constant 64 : index
    %c0_36 = arith.constant 0 : index
    %152 = vector.load %arg17[%c64, %c0_36] : memref<81x32xf32, #tpu.memory_space<vmem>>, vector<7x32xf32>
    tpu.vector_store %arg17[%c64, %c0_36], %151 {strides = array<i32>} : memref<81x32xf32, #tpu.memory_space<vmem>>, vector<7x32xf32>,
    %c2 = arith.constant 2 : index
    %c0_37 = arith.constant 0 : index
    %c0_38 = arith.constant 0 : index
    %153 = vector.load %arg4[%c2, %c0_37, %c0_38] : memref<5x288x32xbf16, #tpu.memory_space<vmem>>, vector<1x288x32xbf16>
    %154 = vector.shape_cast %153 : vector<1x288x32xbf16> to vector<288x32xbf16>
    %c0_39 = arith.constant 0 : index
    %c0_40 = arith.constant 0 : index
    %155 = vector.load %arg17[%c0_39, %c0_40] : memref<81x32xf32, #tpu.memory_space<vmem>>, vector<61x32xf32>
    %c1_41 = arith.constant 1 : index
    %c0_42 = arith.constant 0 : index
    %156 = vector.load %arg17[%c1_41, %c0_42] : memref<81x32xf32, #tpu.memory_space<vmem>>, vector<61x32xf32>
    %c2_43 = arith.constant 2 : index
    %c0_44 = arith.constant 0 : index
    %157 = vector.load %arg17[%c2_43, %c0_44] : memref<81x32xf32, #tpu.memory_space<vmem>>, vector<61x32xf32>
    %c9 = arith.constant 9 : index
    %c0_45 = arith.constant 0 : index
    %158 = vector.load %arg17[%c9, %c0_45] : memref<81x32xf32, #tpu.memory_space<vmem>>, vector<61x32xf32>
    %c10_46 = arith.constant 10 : index
    %c0_47 = arith.constant 0 : index
    %159 = vector.load %arg17[%c10_46, %c0_47] : memref<81x32xf32, #tpu.memory_space<vmem>>, vector<61x32xf32>
    %c11 = arith.constant 11 : index
    %c0_48 = arith.constant 0 : index
    %160 = vector.load %arg17[%c11, %c0_48] : memref<81x32xf32, #tpu.memory_space<vmem>>, vector<61x32xf32>
    %c18 = arith.constant 18 : index
    %c0_49 = arith.constant 0 : index
    %161 = vector.load %arg17[%c18, %c0_49] : memref<81x32xf32, #tpu.memory_space<vmem>>, vector<61x32xf32>
    %c19_50 = arith.constant 19 : index
    %c0_51 = arith.constant 0 : index
    %162 = vector.load %arg17[%c19_50, %c0_51] : memref<81x32xf32, #tpu.memory_space<vmem>>, vector<61x32xf32>
    %c20 = arith.constant 20 : index
    %c0_52 = arith.constant 0 : index
    %163 = vector.load %arg17[%c20, %c0_52] : memref<81x32xf32, #tpu.memory_space<vmem>>, vector<61x32xf32>
    %164 = tpu.concatenate %155, %156, %157, %158, %159, %160, %161, %162, %163 in 1 : vector<61x32xf32>, vector<61x32xf32>, vector<61x32xf32>, vector<61x32xf32>, vector<61x32xf32>, vector<61x32xf32>, vector<61x32xf32>, vector<61x32xf32>, vector<61x32xf32> -> vector<61x288xf32>
    %165 = arith.truncf %164 : vector<61x288xf32> to vector<61x288xbf16>
    %cst_53 = arith.constant dense<0.000000e+00> : vector<61x32xf32>
    %166 = tpu.matmul %165, %154, %cst_53 {dimension_numbers = #tpu.dot_dimension_numbers<[1], [0], [0], [1], [0, 0, 1, 1], [], []>} : vector<61x288xbf16>, vector<288x32xbf16>, vector<61x32xf32> -> vector<61x32xf32>
    %167 = vector.extract_strided_slice %8 {offsets = [4, 0], sizes = [1, 32], strides = [1, 1]} : vector<13x32xf32> to vector<1x32xf32>
    %168 = vector.broadcast %167 : vector<1x32xf32> to vector<61x32xf32>
    %169 = arith.addf %166, %168 : vector<61x32xf32>
    %170 = vector.broadcast %4 : vector<61x1xf32> to vector<61x32xf32>
    %171 = arith.mulf %169, %170 : vector<61x32xf32>
    %172 = vector.extract_strided_slice %8 {offsets = [5, 0], sizes = [1, 32], strides = [1, 1]} : vector<13x32xf32> to vector<1x32xf32>
    %173 = vector.extract_strided_slice %8 {offsets = [6, 0], sizes = [1, 32], strides = [1, 1]} : vector<13x32xf32> to vector<1x32xf32>
    %cst_54 = arith.constant dense<0.000000e+00> : vector<32xf32>
    %174 = vector.multi_reduction <add>, %171, %cst_54 [0] : vector<61x32xf32> to vector<32xf32>
    %175 = vector.shape_cast %174 : vector<32xf32> to vector<1x32xf32>
    %176 = arith.mulf %171, %171 : vector<61x32xf32>
    %cst_55 = arith.constant dense<0.000000e+00> : vector<32xf32>
    %177 = vector.multi_reduction <add>, %176, %cst_55 [0] : vector<61x32xf32> to vector<32xf32>
    %178 = vector.shape_cast %177 : vector<32xf32> to vector<1x32xf32>
    %179 = tpu.concatenate %175, %178 in 0 : vector<1x32xf32>, vector<1x32xf32> -> vector<2x32xf32>
    %cst_56 = arith.constant 0.0204081628 : f32
    %180 = vector.broadcast %cst_56 : f32 to vector<2x32xf32>
    %181 = arith.mulf %179, %180 : vector<2x32xf32>
    %cst_57 = arith.constant dense<0.000000e+00> : vector<2x32xf32>
    %182 = tpu.matmul %181, %7, %cst_57 {dimension_numbers = #tpu.dot_dimension_numbers<[1], [0], [0], [1], [0, 0, 1, 1], [], []>} : vector<2x32xf32>, vector<32x32xf32>, vector<2x32xf32> -> vector<2x32xf32>
    %183 = vector.extract_strided_slice %182 {offsets = [0, 0], sizes = [1, 32], strides = [1, 1]} : vector<2x32xf32> to vector<1x32xf32>
    %184 = vector.extract_strided_slice %182 {offsets = [1, 0], sizes = [1, 32], strides = [1, 1]} : vector<2x32xf32> to vector<1x32xf32>
    %185 = arith.mulf %183, %183 : vector<1x32xf32>
    %186 = arith.subf %184, %185 : vector<1x32xf32>
    %cst_58 = arith.constant 0.000000e+00 : f32
    %187 = vector.broadcast %cst_58 : f32 to vector<1x32xf32>
    %188 = arith.maximumf %186, %187 : vector<1x32xf32>
    %cst_59 = arith.constant 9.99999974E-6 : f32
    %189 = vector.broadcast %cst_59 : f32 to vector<1x32xf32>
    %190 = arith.addf %188, %189 : vector<1x32xf32>
    %191 = math.rsqrt %190 : vector<1x32xf32>
    %192 = arith.mulf %172, %191 : vector<1x32xf32>
    %193 = arith.mulf %183, %192 : vector<1x32xf32>
    %194 = arith.subf %173, %193 : vector<1x32xf32>
    %195 = vector.broadcast %192 : vector<1x32xf32> to vector<61x32xf32>
    %196 = arith.mulf %171, %195 : vector<61x32xf32>
    %197 = vector.broadcast %194 : vector<1x32xf32> to vector<61x32xf32>
    %198 = arith.addf %196, %197 : vector<61x32xf32>
    %cst_60 = arith.constant 0.000000e+00 : f32
    %199 = vector.broadcast %cst_60 : f32 to vector<61x32xf32>
    %200 = arith.maximumf %198, %199 : vector<61x32xf32>
    %201 = vector.broadcast %4 : vector<61x1xf32> to vector<61x32xf32>
    %202 = arith.mulf %200, %201 : vector<61x32xf32>
    %c10_61 = arith.constant 10 : index
    %c0_62 = arith.constant 0 : index
    %203 = vector.load %arg17[%c10_61, %c0_62] : memref<81x32xf32, #tpu.memory_space<vmem>>, vector<61x32xf32>
    tpu.vector_store %arg17[%c10_61, %c0_62], %202 {strides = array<i32>} : memref<81x32xf32, #tpu.memory_space<vmem>>, vector<61x32xf32>,
    %c3 = arith.constant 3 : index
    %c0_63 = arith.constant 0 : index
    %c0_64 = arith.constant 0 : index
    %204 = vector.load %arg4[%c3, %c0_63, %c0_64] : memref<5x288x32xbf16, #tpu.memory_space<vmem>>, vector<1x288x32xbf16>
    %205 = vector.shape_cast %204 : vector<1x288x32xbf16> to vector<288x32xbf16>
    %c10_65 = arith.constant 10 : index
    %c0_66 = arith.constant 0 : index
    %206 = vector.load %arg17[%c10_65, %c0_66] : memref<81x32xf32, #tpu.memory_space<vmem>>, vector<41x32xf32>
    %c11_67 = arith.constant 11 : index
    %c0_68 = arith.constant 0 : index
    %207 = vector.load %arg17[%c11_67, %c0_68] : memref<81x32xf32, #tpu.memory_space<vmem>>, vector<41x32xf32>
    %c12 = arith.constant 12 : index
    %c0_69 = arith.constant 0 : index
    %208 = vector.load %arg17[%c12, %c0_69] : memref<81x32xf32, #tpu.memory_space<vmem>>, vector<41x32xf32>
    %c19_70 = arith.constant 19 : index
    %c0_71 = arith.constant 0 : index
    %209 = vector.load %arg17[%c19_70, %c0_71] : memref<81x32xf32, #tpu.memory_space<vmem>>, vector<41x32xf32>
    %c20_72 = arith.constant 20 : index
    %c0_73 = arith.constant 0 : index
    %210 = vector.load %arg17[%c20_72, %c0_73] : memref<81x32xf32, #tpu.memory_space<vmem>>, vector<41x32xf32>
    %c21 = arith.constant 21 : index
    %c0_74 = arith.constant 0 : index
    %211 = vector.load %arg17[%c21, %c0_74] : memref<81x32xf32, #tpu.memory_space<vmem>>, vector<41x32xf32>
    %c28_75 = arith.constant 28 : index
    %c0_76 = arith.constant 0 : index
    %212 = vector.load %arg17[%c28_75, %c0_76] : memref<81x32xf32, #tpu.memory_space<vmem>>, vector<41x32xf32>
    %c29 = arith.constant 29 : index
    %c0_77 = arith.constant 0 : index
    %213 = vector.load %arg17[%c29, %c0_77] : memref<81x32xf32, #tpu.memory_space<vmem>>, vector<41x32xf32>
    %c30 = arith.constant 30 : index
    %c0_78 = arith.constant 0 : index
    %214 = vector.load %arg17[%c30, %c0_78] : memref<81x32xf32, #tpu.memory_space<vmem>>, vector<41x32xf32>
    %215 = tpu.concatenate %206, %207, %208, %209, %210, %211, %212, %213, %214 in 1 : vector<41x32xf32>, vector<41x32xf32>, vector<41x32xf32>, vector<41x32xf32>, vector<41x32xf32>, vector<41x32xf32>, vector<41x32xf32>, vector<41x32xf32>, vector<41x32xf32> -> vector<41x288xf32>
    %216 = arith.truncf %215 : vector<41x288xf32> to vector<41x288xbf16>
    %cst_79 = arith.constant dense<0.000000e+00> : vector<41x32xf32>
    %217 = tpu.matmul %216, %205, %cst_79 {dimension_numbers = #tpu.dot_dimension_numbers<[1], [0], [0], [1], [0, 0, 1, 1], [], []>} : vector<41x288xbf16>, vector<288x32xbf16>, vector<41x32xf32> -> vector<41x32xf32>
    %218 = vector.extract_strided_slice %8 {offsets = [7, 0], sizes = [1, 32], strides = [1, 1]} : vector<13x32xf32> to vector<1x32xf32>
    %219 = vector.broadcast %218 : vector<1x32xf32> to vector<41x32xf32>
    %220 = arith.addf %217, %219 : vector<41x32xf32>
    %c0_80 = arith.constant 0 : index
    %c0_81 = arith.constant 0 : index
    %c0_82 = arith.constant 0 : index
    %221 = vector.load %arg3[%c0_80, %c0_81, %c0_82] : memref<1x81x48xf32, #tpu.memory_space<vmem>>, vector<1x81x48xf32>
    %222 = vector.shape_cast %221 : vector<1x81x48xf32> to vector<81x48xf32>
    %c0_83 = arith.constant 0 : index
    %c0_84 = arith.constant 0 : index
    %223 = vector.load %arg6[%c0_83, %c0_84] : memref<432x32xbf16, #tpu.memory_space<vmem>>, vector<432x32xbf16>
    %224 = vector.extract_strided_slice %222 {offsets = [0, 0], sizes = [61, 48], strides = [1, 1]} : vector<81x48xf32> to vector<61x48xf32>
    %225 = vector.extract_strided_slice %222 {offsets = [1, 0], sizes = [61, 48], strides = [1, 1]} : vector<81x48xf32> to vector<61x48xf32>
    %226 = vector.extract_strided_slice %222 {offsets = [2, 0], sizes = [61, 48], strides = [1, 1]} : vector<81x48xf32> to vector<61x48xf32>
    %227 = vector.extract_strided_slice %222 {offsets = [9, 0], sizes = [61, 48], strides = [1, 1]} : vector<81x48xf32> to vector<61x48xf32>
    %228 = vector.extract_strided_slice %222 {offsets = [10, 0], sizes = [61, 48], strides = [1, 1]} : vector<81x48xf32> to vector<61x48xf32>
    %229 = vector.extract_strided_slice %222 {offsets = [11, 0], sizes = [61, 48], strides = [1, 1]} : vector<81x48xf32> to vector<61x48xf32>
    %230 = vector.extract_strided_slice %222 {offsets = [18, 0], sizes = [61, 48], strides = [1, 1]} : vector<81x48xf32> to vector<61x48xf32>
    %231 = vector.extract_strided_slice %222 {offsets = [19, 0], sizes = [61, 48], strides = [1, 1]} : vector<81x48xf32> to vector<61x48xf32>
    %232 = vector.extract_strided_slice %222 {offsets = [20, 0], sizes = [61, 48], strides = [1, 1]} : vector<81x48xf32> to vector<61x48xf32>
    %233 = tpu.concatenate %224, %225, %226, %227, %228, %229, %230, %231, %232 in 1 : vector<61x48xf32>, vector<61x48xf32>, vector<61x48xf32>, vector<61x48xf32>, vector<61x48xf32>, vector<61x48xf32>, vector<61x48xf32>, vector<61x48xf32>, vector<61x48xf32> -> vector<61x432xf32>
    %234 = arith.truncf %233 : vector<61x432xf32> to vector<61x432xbf16>
    %cst_85 = arith.constant dense<0.000000e+00> : vector<61x32xf32>
    %235 = tpu.matmul %234, %223, %cst_85 {dimension_numbers = #tpu.dot_dimension_numbers<[1], [0], [0], [1], [0, 0, 1, 1], [], []>} : vector<61x432xbf16>, vector<432x32xbf16>, vector<61x32xf32> -> vector<61x32xf32>
    %236 = vector.extract_strided_slice %8 {offsets = [8, 0], sizes = [1, 32], strides = [1, 1]} : vector<13x32xf32> to vector<1x32xf32>
    %237 = vector.broadcast %236 : vector<1x32xf32> to vector<61x32xf32>
    %238 = arith.addf %235, %237 : vector<61x32xf32>
    %239 = vector.broadcast %4 : vector<61x1xf32> to vector<61x32xf32>
    %240 = arith.mulf %238, %239 : vector<61x32xf32>
    %241 = vector.extract_strided_slice %8 {offsets = [9, 0], sizes = [1, 32], strides = [1, 1]} : vector<13x32xf32> to vector<1x32xf32>
    %242 = vector.extract_strided_slice %8 {offsets = [10, 0], sizes = [1, 32], strides = [1, 1]} : vector<13x32xf32> to vector<1x32xf32>
    %cst_86 = arith.constant dense<0.000000e+00> : vector<32xf32>
    %243 = vector.multi_reduction <add>, %240, %cst_86 [0] : vector<61x32xf32> to vector<32xf32>
    %244 = vector.shape_cast %243 : vector<32xf32> to vector<1x32xf32>
    %245 = arith.mulf %240, %240 : vector<61x32xf32>
    %cst_87 = arith.constant dense<0.000000e+00> : vector<32xf32>
    %246 = vector.multi_reduction <add>, %245, %cst_87 [0] : vector<61x32xf32> to vector<32xf32>
    %247 = vector.shape_cast %246 : vector<32xf32> to vector<1x32xf32>
    %248 = tpu.concatenate %244, %247 in 0 : vector<1x32xf32>, vector<1x32xf32> -> vector<2x32xf32>
    %cst_88 = arith.constant 0.0204081628 : f32
    %249 = vector.broadcast %cst_88 : f32 to vector<2x32xf32>
    %250 = arith.mulf %248, %249 : vector<2x32xf32>
    %cst_89 = arith.constant dense<0.000000e+00> : vector<2x32xf32>
    %251 = tpu.matmul %250, %7, %cst_89 {dimension_numbers = #tpu.dot_dimension_numbers<[1], [0], [0], [1], [0, 0, 1, 1], [], []>} : vector<2x32xf32>, vector<32x32xf32>, vector<2x32xf32> -> vector<2x32xf32>
    %252 = vector.extract_strided_slice %251 {offsets = [0, 0], sizes = [1, 32], strides = [1, 1]} : vector<2x32xf32> to vector<1x32xf32>
    %253 = vector.extract_strided_slice %251 {offsets = [1, 0], sizes = [1, 32], strides = [1, 1]} : vector<2x32xf32> to vector<1x32xf32>
    %254 = arith.mulf %252, %252 : vector<1x32xf32>
    %255 = arith.subf %253, %254 : vector<1x32xf32>
    %cst_90 = arith.constant 0.000000e+00 : f32
    %256 = vector.broadcast %cst_90 : f32 to vector<1x32xf32>
    %257 = arith.maximumf %255, %256 : vector<1x32xf32>
    %cst_91 = arith.constant 9.99999974E-6 : f32
    %258 = vector.broadcast %cst_91 : f32 to vector<1x32xf32>
    %259 = arith.addf %257, %258 : vector<1x32xf32>
    %260 = math.rsqrt %259 : vector<1x32xf32>
    %261 = arith.mulf %241, %260 : vector<1x32xf32>
    %262 = arith.mulf %252, %261 : vector<1x32xf32>
    %263 = arith.subf %242, %262 : vector<1x32xf32>
    %264 = vector.broadcast %261 : vector<1x32xf32> to vector<61x32xf32>
    %265 = arith.mulf %240, %264 : vector<61x32xf32>
    %266 = vector.broadcast %263 : vector<1x32xf32> to vector<61x32xf32>
    %267 = arith.addf %265, %266 : vector<61x32xf32>
    %cst_92 = arith.constant 0.000000e+00 : f32
    %268 = vector.broadcast %cst_92 : f32 to vector<61x32xf32>
    %269 = arith.maximumf %267, %268 : vector<61x32xf32>
    %270 = vector.broadcast %4 : vector<61x1xf32> to vector<61x32xf32>
    %271 = arith.mulf %269, %270 : vector<61x32xf32>
    %c10_93 = arith.constant 10 : index
    %c0_94 = arith.constant 0 : index
    %272 = vector.load %arg17[%c10_93, %c0_94] : memref<81x32xf32, #tpu.memory_space<vmem>>, vector<61x32xf32>
    tpu.vector_store %arg17[%c10_93, %c0_94], %271 {strides = array<i32>} : memref<81x32xf32, #tpu.memory_space<vmem>>, vector<61x32xf32>,
    %c4 = arith.constant 4 : index
    %c0_95 = arith.constant 0 : index
    %c0_96 = arith.constant 0 : index
    %273 = vector.load %arg4[%c4, %c0_95, %c0_96] : memref<5x288x32xbf16, #tpu.memory_space<vmem>>, vector<1x288x32xbf16>
    %274 = vector.shape_cast %273 : vector<1x288x32xbf16> to vector<288x32xbf16>
    %c10_97 = arith.constant 10 : index
    %c0_98 = arith.constant 0 : index
    %275 = vector.load %arg17[%c10_97, %c0_98] : memref<81x32xf32, #tpu.memory_space<vmem>>, vector<41x32xf32>
    %c11_99 = arith.constant 11 : index
    %c0_100 = arith.constant 0 : index
    %276 = vector.load %arg17[%c11_99, %c0_100] : memref<81x32xf32, #tpu.memory_space<vmem>>, vector<41x32xf32>
    %c12_101 = arith.constant 12 : index
    %c0_102 = arith.constant 0 : index
    %277 = vector.load %arg17[%c12_101, %c0_102] : memref<81x32xf32, #tpu.memory_space<vmem>>, vector<41x32xf32>
    %c19_103 = arith.constant 19 : index
    %c0_104 = arith.constant 0 : index
    %278 = vector.load %arg17[%c19_103, %c0_104] : memref<81x32xf32, #tpu.memory_space<vmem>>, vector<41x32xf32>
    %c20_105 = arith.constant 20 : index
    %c0_106 = arith.constant 0 : index
    %279 = vector.load %arg17[%c20_105, %c0_106] : memref<81x32xf32, #tpu.memory_space<vmem>>, vector<41x32xf32>
    %c21_107 = arith.constant 21 : index
    %c0_108 = arith.constant 0 : index
    %280 = vector.load %arg17[%c21_107, %c0_108] : memref<81x32xf32, #tpu.memory_space<vmem>>, vector<41x32xf32>
    %c28_109 = arith.constant 28 : index
    %c0_110 = arith.constant 0 : index
    %281 = vector.load %arg17[%c28_109, %c0_110] : memref<81x32xf32, #tpu.memory_space<vmem>>, vector<41x32xf32>
    %c29_111 = arith.constant 29 : index
    %c0_112 = arith.constant 0 : index
    %282 = vector.load %arg17[%c29_111, %c0_112] : memref<81x32xf32, #tpu.memory_space<vmem>>, vector<41x32xf32>
    %c30_113 = arith.constant 30 : index
    %c0_114 = arith.constant 0 : index
    %283 = vector.load %arg17[%c30_113, %c0_114] : memref<81x32xf32, #tpu.memory_space<vmem>>, vector<41x32xf32>
    %284 = tpu.concatenate %275, %276, %277, %278, %279, %280, %281, %282, %283 in 1 : vector<41x32xf32>, vector<41x32xf32>, vector<41x32xf32>, vector<41x32xf32>, vector<41x32xf32>, vector<41x32xf32>, vector<41x32xf32>, vector<41x32xf32>, vector<41x32xf32> -> vector<41x288xf32>
    %285 = arith.truncf %284 : vector<41x288xf32> to vector<41x288xbf16>
    %cst_115 = arith.constant dense<0.000000e+00> : vector<41x32xf32>
    %286 = tpu.matmul %285, %274, %cst_115 {dimension_numbers = #tpu.dot_dimension_numbers<[1], [0], [0], [1], [0, 0, 1, 1], [], []>} : vector<41x288xbf16>, vector<288x32xbf16>, vector<41x32xf32> -> vector<41x32xf32>
    %287 = vector.extract_strided_slice %8 {offsets = [11, 0], sizes = [1, 32], strides = [1, 1]} : vector<13x32xf32> to vector<1x32xf32>
    %288 = vector.broadcast %287 : vector<1x32xf32> to vector<41x32xf32>
    %289 = arith.addf %286, %288 : vector<41x32xf32>
    %290 = tpu.concatenate %220, %289 in 1 : vector<41x32xf32>, vector<41x32xf32> -> vector<41x64xf32>
    %cst_116 = arith.constant 0.000000e+00 : f32
    %291 = vector.broadcast %cst_116 : f32 to vector<41x64xf32>
    %292 = arith.maximumf %290, %291 : vector<41x64xf32>
    %293 = vector.broadcast %5 : vector<41x1xf32> to vector<41x64xf32>
    %294 = arith.mulf %292, %293 : vector<41x64xf32>
    %c20_117 = arith.constant 20 : index
    %c0_118 = arith.constant 0 : index
    %295 = vector.load %arg18[%c20_117, %c0_118] : memref<81x64xf32, #tpu.memory_space<vmem>>, vector<41x64xf32>
    tpu.vector_store %arg18[%c20_117, %c0_118], %294 {strides = array<i32>} : memref<81x64xf32, #tpu.memory_space<vmem>>, vector<41x64xf32>,
    %c0_119 = arith.constant 0 : index
    %c0_120 = arith.constant 0 : index
    %296 = vector.load %arg7[%c0_119, %c0_120] : memref<576x32xbf16, #tpu.memory_space<vmem>>, vector<576x32xbf16>
    %c0_121 = arith.constant 0 : index
    %c0_122 = arith.constant 0 : index
    %297 = vector.load %arg18[%c0_121, %c0_122] : memref<81x64xf32, #tpu.memory_space<vmem>>, vector<61x64xf32>
    %c1_123 = arith.constant 1 : index
    %c0_124 = arith.constant 0 : index
    %298 = vector.load %arg18[%c1_123, %c0_124] : memref<81x64xf32, #tpu.memory_space<vmem>>, vector<61x64xf32>
    %c2_125 = arith.constant 2 : index
    %c0_126 = arith.constant 0 : index
    %299 = vector.load %arg18[%c2_125, %c0_126] : memref<81x64xf32, #tpu.memory_space<vmem>>, vector<61x64xf32>
    %c9_127 = arith.constant 9 : index
    %c0_128 = arith.constant 0 : index
    %300 = vector.load %arg18[%c9_127, %c0_128] : memref<81x64xf32, #tpu.memory_space<vmem>>, vector<61x64xf32>
    %c10_129 = arith.constant 10 : index
    %c0_130 = arith.constant 0 : index
    %301 = vector.load %arg18[%c10_129, %c0_130] : memref<81x64xf32, #tpu.memory_space<vmem>>, vector<61x64xf32>
    %c11_131 = arith.constant 11 : index
    %c0_132 = arith.constant 0 : index
    %302 = vector.load %arg18[%c11_131, %c0_132] : memref<81x64xf32, #tpu.memory_space<vmem>>, vector<61x64xf32>
    %c18_133 = arith.constant 18 : index
    %c0_134 = arith.constant 0 : index
    %303 = vector.load %arg18[%c18_133, %c0_134] : memref<81x64xf32, #tpu.memory_space<vmem>>, vector<61x64xf32>
    %c19_135 = arith.constant 19 : index
    %c0_136 = arith.constant 0 : index
    %304 = vector.load %arg18[%c19_135, %c0_136] : memref<81x64xf32, #tpu.memory_space<vmem>>, vector<61x64xf32>
    %c20_137 = arith.constant 20 : index
    %c0_138 = arith.constant 0 : index
    %305 = vector.load %arg18[%c20_137, %c0_138] : memref<81x64xf32, #tpu.memory_space<vmem>>, vector<61x64xf32>
    %306 = tpu.concatenate %297, %298, %299, %300, %301, %302, %303, %304, %305 in 1 : vector<61x64xf32>, vector<61x64xf32>, vector<61x64xf32>, vector<61x64xf32>, vector<61x64xf32>, vector<61x64xf32>, vector<61x64xf32>, vector<61x64xf32>, vector<61x64xf32> -> vector<61x576xf32>
    %307 = arith.truncf %306 : vector<61x576xf32> to vector<61x576xbf16>
    %cst_139 = arith.constant dense<0.000000e+00> : vector<61x32xf32>
    %308 = tpu.matmul %307, %296, %cst_139 {dimension_numbers = #tpu.dot_dimension_numbers<[1], [0], [0], [1], [0, 0, 1, 1], [], []>} : vector<61x576xbf16>, vector<576x32xbf16>, vector<61x32xf32> -> vector<61x32xf32>
    %309 = vector.extract_strided_slice %8 {offsets = [12, 0], sizes = [1, 32], strides = [1, 1]} : vector<13x32xf32> to vector<1x32xf32>
    %310 = vector.broadcast %309 : vector<1x32xf32> to vector<61x32xf32>
    %311 = arith.addf %308, %310 : vector<61x32xf32>
    %312 = vector.broadcast %4 : vector<61x1xf32> to vector<61x32xf32>
    %313 = arith.mulf %311, %312 : vector<61x32xf32>
    %c10_140 = arith.constant 10 : index
    %c0_141 = arith.constant 0 : index
    %314 = vector.load %arg17[%c10_140, %c0_141] : memref<81x32xf32, #tpu.memory_space<vmem>>, vector<61x32xf32>
    tpu.vector_store %arg17[%c10_140, %c0_141], %313 {strides = array<i32>} : memref<81x32xf32, #tpu.memory_space<vmem>>, vector<61x32xf32>,
    %c0_142 = arith.constant 0 : index
    %c0_143 = arith.constant 0 : index
    %315 = vector.load %arg5[%c0_142, %c0_143] : memref<288x64xbf16, #tpu.memory_space<vmem>>, vector<288x64xbf16>
    %c0_144 = arith.constant 0 : index
    %c0_145 = arith.constant 0 : index
    %316 = vector.load %arg17[%c0_144, %c0_145] : memref<81x32xf32, #tpu.memory_space<vmem>>, vector<61x32xf32>
    %c1_146 = arith.constant 1 : index
    %c0_147 = arith.constant 0 : index
    %317 = vector.load %arg17[%c1_146, %c0_147] : memref<81x32xf32, #tpu.memory_space<vmem>>, vector<61x32xf32>
    %c2_148 = arith.constant 2 : index
    %c0_149 = arith.constant 0 : index
    %318 = vector.load %arg17[%c2_148, %c0_149] : memref<81x32xf32, #tpu.memory_space<vmem>>, vector<61x32xf32>
    %c9_150 = arith.constant 9 : index
    %c0_151 = arith.constant 0 : index
    %319 = vector.load %arg17[%c9_150, %c0_151] : memref<81x32xf32, #tpu.memory_space<vmem>>, vector<61x32xf32>
    %c10_152 = arith.constant 10 : index
    %c0_153 = arith.constant 0 : index
    %320 = vector.load %arg17[%c10_152, %c0_153] : memref<81x32xf32, #tpu.memory_space<vmem>>, vector<61x32xf32>
    %c11_154 = arith.constant 11 : index
    %c0_155 = arith.constant 0 : index
    %321 = vector.load %arg17[%c11_154, %c0_155] : memref<81x32xf32, #tpu.memory_space<vmem>>, vector<61x32xf32>
    %c18_156 = arith.constant 18 : index
    %c0_157 = arith.constant 0 : index
    %322 = vector.load %arg17[%c18_156, %c0_157] : memref<81x32xf32, #tpu.memory_space<vmem>>, vector<61x32xf32>
    %c19_158 = arith.constant 19 : index
    %c0_159 = arith.constant 0 : index
    %323 = vector.load %arg17[%c19_158, %c0_159] : memref<81x32xf32, #tpu.memory_space<vmem>>, vector<61x32xf32>
    %c20_160 = arith.constant 20 : index
    %c0_161 = arith.constant 0 : index
    %324 = vector.load %arg17[%c20_160, %c0_161] : memref<81x32xf32, #tpu.memory_space<vmem>>, vector<61x32xf32>
    %325 = tpu.concatenate %316, %317, %318, %319, %320, %321, %322, %323, %324 in 1 : vector<61x32xf32>, vector<61x32xf32>, vector<61x32xf32>, vector<61x32xf32>, vector<61x32xf32>, vector<61x32xf32>, vector<61x32xf32>, vector<61x32xf32>, vector<61x32xf32> -> vector<61x288xf32>
    %326 = arith.truncf %325 : vector<61x288xf32> to vector<61x288xbf16>
    %cst_162 = arith.constant dense<0.000000e+00> : vector<61x64xf32>
    %327 = tpu.matmul %326, %315, %cst_162 {dimension_numbers = #tpu.dot_dimension_numbers<[1], [0], [0], [1], [0, 0, 1, 1], [], []>} : vector<61x288xbf16>, vector<288x64xbf16>, vector<61x64xf32> -> vector<61x64xf32>
    %328 = vector.extract_strided_slice %9 {offsets = [0, 0], sizes = [1, 64], strides = [1, 1]} : vector<6x64xf32> to vector<1x64xf32>
    %329 = vector.broadcast %328 : vector<1x64xf32> to vector<61x64xf32>
    %330 = arith.addf %327, %329 : vector<61x64xf32>
    %331 = vector.broadcast %4 : vector<61x1xf32> to vector<61x64xf32>
    %332 = arith.mulf %330, %331 : vector<61x64xf32>
    %333 = vector.extract_strided_slice %9 {offsets = [1, 0], sizes = [1, 64], strides = [1, 1]} : vector<6x64xf32> to vector<1x64xf32>
    %334 = vector.extract_strided_slice %9 {offsets = [2, 0], sizes = [1, 64], strides = [1, 1]} : vector<6x64xf32> to vector<1x64xf32>
    %cst_163 = arith.constant dense<0.000000e+00> : vector<64xf32>
    %335 = vector.multi_reduction <add>, %332, %cst_163 [0] : vector<61x64xf32> to vector<64xf32>
    %336 = vector.shape_cast %335 : vector<64xf32> to vector<1x64xf32>
    %337 = arith.mulf %332, %332 : vector<61x64xf32>
    %cst_164 = arith.constant dense<0.000000e+00> : vector<64xf32>
    %338 = vector.multi_reduction <add>, %337, %cst_164 [0] : vector<61x64xf32> to vector<64xf32>
    %339 = vector.shape_cast %338 : vector<64xf32> to vector<1x64xf32>
    %340 = tpu.concatenate %336, %339 in 0 : vector<1x64xf32>, vector<1x64xf32> -> vector<2x64xf32>
    %cst_165 = arith.constant 0.0204081628 : f32
    %341 = vector.broadcast %cst_165 : f32 to vector<2x64xf32>
    %342 = arith.mulf %340, %341 : vector<2x64xf32>
    %cst_166 = arith.constant dense<0.000000e+00> : vector<2x64xf32>
    %343 = tpu.matmul %342, %6, %cst_166 {dimension_numbers = #tpu.dot_dimension_numbers<[1], [0], [0], [1], [0, 0, 1, 1], [], []>} : vector<2x64xf32>, vector<64x64xf32>, vector<2x64xf32> -> vector<2x64xf32>
    %344 = vector.extract_strided_slice %343 {offsets = [0, 0], sizes = [1, 64], strides = [1, 1]} : vector<2x64xf32> to vector<1x64xf32>
    %345 = vector.extract_strided_slice %343 {offsets = [1, 0], sizes = [1, 64], strides = [1, 1]} : vector<2x64xf32> to vector<1x64xf32>
    %346 = arith.mulf %344, %344 : vector<1x64xf32>
    %347 = arith.subf %345, %346 : vector<1x64xf32>
    %cst_167 = arith.constant 0.000000e+00 : f32
    %348 = vector.broadcast %cst_167 : f32 to vector<1x64xf32>
    %349 = arith.maximumf %347, %348 : vector<1x64xf32>
    %cst_168 = arith.constant 9.99999974E-6 : f32
    %350 = vector.broadcast %cst_168 : f32 to vector<1x64xf32>
    %351 = arith.addf %349, %350 : vector<1x64xf32>
    %352 = math.rsqrt %351 : vector<1x64xf32>
    %353 = arith.mulf %333, %352 : vector<1x64xf32>
    %354 = arith.mulf %344, %353 : vector<1x64xf32>
    %355 = arith.subf %334, %354 : vector<1x64xf32>
    %356 = vector.broadcast %353 : vector<1x64xf32> to vector<61x64xf32>
    %357 = arith.mulf %332, %356 : vector<61x64xf32>
    %358 = vector.broadcast %355 : vector<1x64xf32> to vector<61x64xf32>
    %359 = arith.addf %357, %358 : vector<61x64xf32>
    %cst_169 = arith.constant 0.000000e+00 : f32
    %360 = vector.broadcast %cst_169 : f32 to vector<61x64xf32>
    %361 = arith.maximumf %359, %360 : vector<61x64xf32>
    %362 = vector.broadcast %4 : vector<61x1xf32> to vector<61x64xf32>
    %363 = arith.mulf %361, %362 : vector<61x64xf32>
    %c10_170 = arith.constant 10 : index
    %c0_171 = arith.constant 0 : index
    %364 = vector.load %arg18[%c10_170, %c0_171] : memref<81x64xf32, #tpu.memory_space<vmem>>, vector<61x64xf32>
    tpu.vector_store %arg18[%c10_170, %c0_171], %363 {strides = array<i32>} : memref<81x64xf32, #tpu.memory_space<vmem>>, vector<61x64xf32>,
    %c0_172 = arith.constant 0 : index
    %c0_173 = arith.constant 0 : index
    %365 = vector.load %arg8[%c0_172, %c0_173] : memref<576x64xbf16, #tpu.memory_space<vmem>>, vector<576x64xbf16>
    %c0_174 = arith.constant 0 : index
    %c0_175 = arith.constant 0 : index
    %366 = vector.load %arg18[%c0_174, %c0_175] : memref<81x64xf32, #tpu.memory_space<vmem>>, vector<61x64xf32>
    %c1_176 = arith.constant 1 : index
    %c0_177 = arith.constant 0 : index
    %367 = vector.load %arg18[%c1_176, %c0_177] : memref<81x64xf32, #tpu.memory_space<vmem>>, vector<61x64xf32>
    %c2_178 = arith.constant 2 : index
    %c0_179 = arith.constant 0 : index
    %368 = vector.load %arg18[%c2_178, %c0_179] : memref<81x64xf32, #tpu.memory_space<vmem>>, vector<61x64xf32>
    %c9_180 = arith.constant 9 : index
    %c0_181 = arith.constant 0 : index
    %369 = vector.load %arg18[%c9_180, %c0_181] : memref<81x64xf32, #tpu.memory_space<vmem>>, vector<61x64xf32>
    %c10_182 = arith.constant 10 : index
    %c0_183 = arith.constant 0 : index
    %370 = vector.load %arg18[%c10_182, %c0_183] : memref<81x64xf32, #tpu.memory_space<vmem>>, vector<61x64xf32>
    %c11_184 = arith.constant 11 : index
    %c0_185 = arith.constant 0 : index
    %371 = vector.load %arg18[%c11_184, %c0_185] : memref<81x64xf32, #tpu.memory_space<vmem>>, vector<61x64xf32>
    %c18_186 = arith.constant 18 : index
    %c0_187 = arith.constant 0 : index
    %372 = vector.load %arg18[%c18_186, %c0_187] : memref<81x64xf32, #tpu.memory_space<vmem>>, vector<61x64xf32>
    %c19_188 = arith.constant 19 : index
    %c0_189 = arith.constant 0 : index
    %373 = vector.load %arg18[%c19_188, %c0_189] : memref<81x64xf32, #tpu.memory_space<vmem>>, vector<61x64xf32>
    %c20_190 = arith.constant 20 : index
    %c0_191 = arith.constant 0 : index
    %374 = vector.load %arg18[%c20_190, %c0_191] : memref<81x64xf32, #tpu.memory_space<vmem>>, vector<61x64xf32>
    %375 = tpu.concatenate %366, %367, %368, %369, %370, %371, %372, %373, %374 in 1 : vector<61x64xf32>, vector<61x64xf32>, vector<61x64xf32>, vector<61x64xf32>, vector<61x64xf32>, vector<61x64xf32>, vector<61x64xf32>, vector<61x64xf32>, vector<61x64xf32> -> vector<61x576xf32>
    %376 = arith.truncf %375 : vector<61x576xf32> to vector<61x576xbf16>
    %cst_192 = arith.constant dense<0.000000e+00> : vector<61x64xf32>
    %377 = tpu.matmul %376, %365, %cst_192 {dimension_numbers = #tpu.dot_dimension_numbers<[1], [0], [0], [1], [0, 0, 1, 1], [], []>} : vector<61x576xbf16>, vector<576x64xbf16>, vector<61x64xf32> -> vector<61x64xf32>
    %378 = vector.extract_strided_slice %9 {offsets = [3, 0], sizes = [1, 64], strides = [1, 1]} : vector<6x64xf32> to vector<1x64xf32>
    %379 = vector.broadcast %378 : vector<1x64xf32> to vector<61x64xf32>
    %380 = arith.addf %377, %379 : vector<61x64xf32>
    %381 = vector.broadcast %4 : vector<61x1xf32> to vector<61x64xf32>
    %382 = arith.mulf %380, %381 : vector<61x64xf32>
    %383 = vector.extract_strided_slice %9 {offsets = [4, 0], sizes = [1, 64], strides = [1, 1]} : vector<6x64xf32> to vector<1x64xf32>
    %384 = vector.extract_strided_slice %9 {offsets = [5, 0], sizes = [1, 64], strides = [1, 1]} : vector<6x64xf32> to vector<1x64xf32>
    %cst_193 = arith.constant dense<0.000000e+00> : vector<64xf32>
    %385 = vector.multi_reduction <add>, %382, %cst_193 [0] : vector<61x64xf32> to vector<64xf32>
    %386 = vector.shape_cast %385 : vector<64xf32> to vector<1x64xf32>
    %387 = arith.mulf %382, %382 : vector<61x64xf32>
    %cst_194 = arith.constant dense<0.000000e+00> : vector<64xf32>
    %388 = vector.multi_reduction <add>, %387, %cst_194 [0] : vector<61x64xf32> to vector<64xf32>
    %389 = vector.shape_cast %388 : vector<64xf32> to vector<1x64xf32>
    %390 = tpu.concatenate %386, %389 in 0 : vector<1x64xf32>, vector<1x64xf32> -> vector<2x64xf32>
    %cst_195 = arith.constant 0.0204081628 : f32
    %391 = vector.broadcast %cst_195 : f32 to vector<2x64xf32>
    %392 = arith.mulf %390, %391 : vector<2x64xf32>
    %cst_196 = arith.constant dense<0.000000e+00> : vector<2x64xf32>
    %393 = tpu.matmul %392, %6, %cst_196 {dimension_numbers = #tpu.dot_dimension_numbers<[1], [0], [0], [1], [0, 0, 1, 1], [], []>} : vector<2x64xf32>, vector<64x64xf32>, vector<2x64xf32> -> vector<2x64xf32>
    %394 = vector.extract_strided_slice %393 {offsets = [0, 0], sizes = [1, 64], strides = [1, 1]} : vector<2x64xf32> to vector<1x64xf32>
    %395 = vector.extract_strided_slice %393 {offsets = [1, 0], sizes = [1, 64], strides = [1, 1]} : vector<2x64xf32> to vector<1x64xf32>
    %396 = arith.mulf %394, %394 : vector<1x64xf32>
    %397 = arith.subf %395, %396 : vector<1x64xf32>
    %cst_197 = arith.constant 0.000000e+00 : f32
    %398 = vector.broadcast %cst_197 : f32 to vector<1x64xf32>
    %399 = arith.maximumf %397, %398 : vector<1x64xf32>
    %cst_198 = arith.constant 9.99999974E-6 : f32
    %400 = vector.broadcast %cst_198 : f32 to vector<1x64xf32>
    %401 = arith.addf %399, %400 : vector<1x64xf32>
    %402 = math.rsqrt %401 : vector<1x64xf32>
    %403 = arith.mulf %383, %402 : vector<1x64xf32>
    %404 = arith.mulf %394, %403 : vector<1x64xf32>
    %405 = arith.subf %384, %404 : vector<1x64xf32>
    %406 = vector.broadcast %403 : vector<1x64xf32> to vector<61x64xf32>
    %407 = arith.mulf %382, %406 : vector<61x64xf32>
    %408 = vector.broadcast %405 : vector<1x64xf32> to vector<61x64xf32>
    %409 = arith.addf %407, %408 : vector<61x64xf32>
    %cst_199 = arith.constant 0.000000e+00 : f32
    %410 = vector.broadcast %cst_199 : f32 to vector<61x64xf32>
    %411 = arith.maximumf %409, %410 : vector<61x64xf32>
    %412 = vector.broadcast %4 : vector<61x1xf32> to vector<61x64xf32>
    %413 = arith.mulf %411, %412 : vector<61x64xf32>
    %c10_200 = arith.constant 10 : index
    %c0_201 = arith.constant 0 : index
    %414 = vector.load %arg18[%c10_200, %c0_201] : memref<81x64xf32, #tpu.memory_space<vmem>>, vector<61x64xf32>
    tpu.vector_store %arg18[%c10_200, %c0_201], %413 {strides = array<i32>} : memref<81x64xf32, #tpu.memory_space<vmem>>, vector<61x64xf32>,
    %c0_202 = arith.constant 0 : index
    %c0_203 = arith.constant 0 : index
    %415 = vector.load %arg9[%c0_202, %c0_203] : memref<576x9xbf16, #tpu.memory_space<vmem>>, vector<576x9xbf16>
    %c0_204 = arith.constant 0 : index
    %c0_205 = arith.constant 0 : index
    %416 = vector.load %arg18[%c0_204, %c0_205] : memref<81x64xf32, #tpu.memory_space<vmem>>, vector<61x64xf32>
    %c1_206 = arith.constant 1 : index
    %c0_207 = arith.constant 0 : index
    %417 = vector.load %arg18[%c1_206, %c0_207] : memref<81x64xf32, #tpu.memory_space<vmem>>, vector<61x64xf32>
    %c2_208 = arith.constant 2 : index
    %c0_209 = arith.constant 0 : index
    %418 = vector.load %arg18[%c2_208, %c0_209] : memref<81x64xf32, #tpu.memory_space<vmem>>, vector<61x64xf32>
    %c9_210 = arith.constant 9 : index
    %c0_211 = arith.constant 0 : index
    %419 = vector.load %arg18[%c9_210, %c0_211] : memref<81x64xf32, #tpu.memory_space<vmem>>, vector<61x64xf32>
    %c10_212 = arith.constant 10 : index
    %c0_213 = arith.constant 0 : index
    %420 = vector.load %arg18[%c10_212, %c0_213] : memref<81x64xf32, #tpu.memory_space<vmem>>, vector<61x64xf32>
    %c11_214 = arith.constant 11 : index
    %c0_215 = arith.constant 0 : index
    %421 = vector.load %arg18[%c11_214, %c0_215] : memref<81x64xf32, #tpu.memory_space<vmem>>, vector<61x64xf32>
    %c18_216 = arith.constant 18 : index
    %c0_217 = arith.constant 0 : index
    %422 = vector.load %arg18[%c18_216, %c0_217] : memref<81x64xf32, #tpu.memory_space<vmem>>, vector<61x64xf32>
    %c19_218 = arith.constant 19 : index
    %c0_219 = arith.constant 0 : index
    %423 = vector.load %arg18[%c19_218, %c0_219] : memref<81x64xf32, #tpu.memory_space<vmem>>, vector<61x64xf32>
    %c20_220 = arith.constant 20 : index
    %c0_221 = arith.constant 0 : index
    %424 = vector.load %arg18[%c20_220, %c0_221] : memref<81x64xf32, #tpu.memory_space<vmem>>, vector<61x64xf32>
    %425 = tpu.concatenate %416, %417, %418, %419, %420, %421, %422, %423, %424 in 1 : vector<61x64xf32>, vector<61x64xf32>, vector<61x64xf32>, vector<61x64xf32>, vector<61x64xf32>, vector<61x64xf32>, vector<61x64xf32>, vector<61x64xf32>, vector<61x64xf32> -> vector<61x576xf32>
    %426 = arith.truncf %425 : vector<61x576xf32> to vector<61x576xbf16>
    %cst_222 = arith.constant dense<0.000000e+00> : vector<61x9xf32>
    %427 = tpu.matmul %426, %415, %cst_222 {dimension_numbers = #tpu.dot_dimension_numbers<[1], [0], [0], [1], [0, 0, 1, 1], [], []>} : vector<61x576xbf16>, vector<576x9xbf16>, vector<61x9xf32> -> vector<61x9xf32>
    %c0_223 = arith.constant 0 : index
    %c0_224 = arith.constant 0 : index
    %428 = vector.load %arg13[%c0_223, %c0_224] : memref<1x9xf32, #tpu.memory_space<vmem>>, vector<1x9xf32>
    %429 = vector.broadcast %428 : vector<1x9xf32> to vector<61x9xf32>
    %430 = arith.addf %427, %429 : vector<61x9xf32>
    %431 = vector.shape_cast %430 : vector<61x9xf32> to vector<1x61x9xf32>
    %c0_225 = arith.constant 0 : index
    %c0_226 = arith.constant 0 : index
    %c0_227 = arith.constant 0 : index
    %432 = vector.load %arg16[%c0_225, %c0_226, %c0_227] : memref<1x61x9xf32, #tpu.memory_space<vmem>>, vector<1x61x9xf32>
    tpu.vector_store %arg16[%c0_225, %c0_226, %c0_227], %431 {strides = array<i32>} : memref<1x61x9xf32, #tpu.memory_space<vmem>>, vector<1x61x9xf32>,
    return
  }
  func.func @transform_0(%arg0: i32) -> (i32, i32, i32) {
    %c0_i32 = arith.constant 0 : i32
    %c0_i32_0 = arith.constant 0 : i32
    %c0_i32_1 = arith.constant 0 : i32
    return %arg0, %c0_i32, %c0_i32_0 : i32, i32, i32
  }
  func.func @transform_1(%arg0: i32) -> (i32, i32, i32) {
    %c0_i32 = arith.constant 0 : i32
    %c0_i32_0 = arith.constant 0 : i32
    %c0_i32_1 = arith.constant 0 : i32
    return %arg0, %c0_i32, %c0_i32_0 : i32, i32, i32
  }
  func.func @transform_2(%arg0: i32) -> (i32, i32, i32) {
    %c0_i32 = arith.constant 0 : i32
    %c0_i32_0 = arith.constant 0 : i32
    %c0_i32_1 = arith.constant 0 : i32
    return %arg0, %c0_i32, %c0_i32_0 : i32, i32, i32
  }
  func.func @transform_3(%arg0: i32) -> (i32, i32, i32) {
    %c0_i32 = arith.constant 0 : i32
    %c0_i32_0 = arith.constant 0 : i32
    %c0_i32_1 = arith.constant 0 : i32
    %c0_i32_2 = arith.constant 0 : i32
    return %c0_i32, %c0_i32_0, %c0_i32_1 : i32, i32, i32
  }
  func.func @transform_4(%arg0: i32) -> (i32, i32) {
    %c0_i32 = arith.constant 0 : i32
    %c0_i32_0 = arith.constant 0 : i32
    %c0_i32_1 = arith.constant 0 : i32
    return %c0_i32, %c0_i32_0 : i32, i32
  }
  func.func @transform_5(%arg0: i32) -> (i32, i32) {
    %c0_i32 = arith.constant 0 : i32
    %c0_i32_0 = arith.constant 0 : i32
    %c0_i32_1 = arith.constant 0 : i32
    return %c0_i32, %c0_i32_0 : i32, i32
  }
  func.func @transform_6(%arg0: i32) -> (i32, i32) {
    %c0_i32 = arith.constant 0 : i32
    %c0_i32_0 = arith.constant 0 : i32
    %c0_i32_1 = arith.constant 0 : i32
    return %c0_i32, %c0_i32_0 : i32, i32
  }
  func.func @transform_7(%arg0: i32) -> (i32, i32) {
    %c0_i32 = arith.constant 0 : i32
    %c0_i32_0 = arith.constant 0 : i32
    %c0_i32_1 = arith.constant 0 : i32
    return %c0_i32, %c0_i32_0 : i32, i32
  }
  func.func @transform_8(%arg0: i32) -> (i32, i32) {
    %c0_i32 = arith.constant 0 : i32
    %c0_i32_0 = arith.constant 0 : i32
    %c0_i32_1 = arith.constant 0 : i32
    return %c0_i32, %c0_i32_0 : i32, i32
  }
  func.func @transform_9(%arg0: i32) -> (i32, i32) {
    %c0_i32 = arith.constant 0 : i32
    %c0_i32_0 = arith.constant 0 : i32
    %c0_i32_1 = arith.constant 0 : i32
    return %c0_i32, %c0_i32_0 : i32, i32
  }
  func.func @transform_10(%arg0: i32) -> (i32, i32) {
    %c0_i32 = arith.constant 0 : i32
    %c0_i32_0 = arith.constant 0 : i32
    %c0_i32_1 = arith.constant 0 : i32
    return %c0_i32, %c0_i32_0 : i32, i32
  }
  func.func @transform_11(%arg0: i32) -> (i32, i32) {
    %c0_i32 = arith.constant 0 : i32
    %c0_i32_0 = arith.constant 0 : i32
    %c0_i32_1 = arith.constant 0 : i32
    return %c0_i32, %c0_i32_0 : i32, i32
  }
  func.func @transform_12(%arg0: i32) -> (i32, i32) {
    %c0_i32 = arith.constant 0 : i32
    %c0_i32_0 = arith.constant 0 : i32
    %c0_i32_1 = arith.constant 0 : i32
    return %c0_i32, %c0_i32_0 : i32, i32
  }
  func.func @transform_13(%arg0: i32) -> (i32, i32) {
    %c0_i32 = arith.constant 0 : i32
    %c0_i32_0 = arith.constant 0 : i32
    %c0_i32_1 = arith.constant 0 : i32
    return %c0_i32, %c0_i32_0 : i32, i32
  }
  func.func @transform_14(%arg0: i32) -> (i32, i32) {
    %c0_i32 = arith.constant 0 : i32
    %c0_i32_0 = arith.constant 0 : i32
    %c0_i32_1 = arith.constant 0 : i32
    return %c0_i32, %c0_i32_0 : i32, i32
  }
  func.func @transform_15(%arg0: i32) -> (i32, i32, i32) {
    %c0_i32 = arith.constant 0 : i32
    %c0_i32_0 = arith.constant 0 : i32
    %c0_i32_1 = arith.constant 0 : i32
    return %arg0, %c0_i32, %c0_i32_0 : i32, i32, i32
  }
}

</mosaic_0001>

<llo_original>
// kernel: clsandloc_pallas.1
$region0: #{clsandloc_pallas.1}
  #allocation0 [shape = 'u32[]', space=smem, size = 0x4, offset = 0x4, fixed_abs, tag = 'smem constant byte address 0x4 - core index']
  #allocation1 [shape = 'u32[72,128]{1,0:T(1,128)}', space=vmem, size = 0x9000, scoped, tag = 'internal scratch']
  #allocation2 [shape = 'f32[81,32]{1,0:T(8,128)}', space=vmem, size = 0xb000, scoped, tag = 'scratch operand']
  #allocation3 [shape = 'f32[81,64]{1,0:T(8,128)}', space=vmem, size = 0xb000, scoped, tag = 'scratch operand']
  %s0 = inlined_call_operand.vmem [shape: f32[2,144,32], index: 0, kind: input, shape index: {}]
  %s1 = inlined_call_operand.vmem [shape: f32[2,36,32], index: 1, kind: input, shape index: {}]
  %s2 = inlined_call_operand.vmem [shape: f32[2,81,48], index: 2, kind: input, shape index: {}]
  %s3 = inlined_call_operand.vmem [shape: bf16[5,288,32], index: 3, kind: input, shape index: {}]
  %s4 = inlined_call_operand.vmem [shape: bf16[288,64], index: 4, kind: input, shape index: {}]
  %s5 = inlined_call_operand.vmem [shape: bf16[432,32], index: 5, kind: input, shape index: {}]
  %s6 = inlined_call_operand.vmem [shape: bf16[576,32], index: 6, kind: input, shape index: {}]
  %s7 = inlined_call_operand.vmem [shape: bf16[576,64], index: 7, kind: input, shape index: {}]
  %s8 = inlined_call_operand.vmem [shape: bf16[576,9], index: 8, kind: input, shape index: {}]
  %s9 = inlined_call_operand.vmem [shape: f32[13,32], index: 9, kind: input, shape index: {}]
  %s10 = inlined_call_operand.vmem [shape: f32[6,64], index: 10, kind: input, shape index: {}]
  %s11 = inlined_call_operand.vmem [shape: f32[64,64], index: 11, kind: input, shape index: {}]
  %s12 = inlined_call_operand.vmem [shape: f32[1,9], index: 12, kind: input, shape index: {}]
  %s13 = inlined_call_operand.vmem [shape: f32[61,1], index: 13, kind: input, shape index: {}]
  %s14 = inlined_call_operand.vmem [shape: f32[41,1], index: 14, kind: input, shape index: {}]
  %s15 = inlined_call_operand.vmem [shape: f32[2,61,9], index: 15, kind: output, shape index: {}]
  %s16 = sld [smem:[#allocation0]]
  $region93: #{clsandloc_pallas.1} parent=0
    _
  %s18 = ssub.s32 1, %s16
  %s19 = scalar_select 0, %s18, %s16
  loop: start=0, step=1, limit=4
  $region2: #{clsandloc_pallas.1} parent=0 // loop_pre_header
    _
  $region3: #{clsandloc_pallas.1} parent=0 // loop_header
    %s21 = sphi 0, %s25
    %p22 = scmp.ge.s32.totalorder %s21, 4
    %s31 = sphi 0, %s33
    %s34 = sphi 0, %s31
    %s35 = sphi 0, %s34
    %s51 = sphi 0, %s35
    %s57 = sphi 0, %s59
    %s60 = sphi 0, %s57
    %s61 = sphi 0, %s60
    %s77 = sphi 0, %s61
    %s83 = sphi 0, %s85
    %s86 = sphi 0, %s83
    %s87 = sphi 0, %s86
    %s103 = sphi 0, %s87
    %s107 = sphi 0, %s107
    %s109 = sphi 0, %s107
    %s110 = sphi 0, %s109
    %s124 = sphi 0, %s110
    %s128 = sphi 0, %s128
    %s130 = sphi 0, %s128
    %s131 = sphi 0, %s130
    %s145 = sphi 0, %s131
    %s149 = sphi 0, %s149
    %s151 = sphi 0, %s149
    %s152 = sphi 0, %s151
    %s166 = sphi 0, %s152
    %s170 = sphi 0, %s170
    %s172 = sphi 0, %s170
    %s173 = sphi 0, %s172
    %s187 = sphi 0, %s173
    %s191 = sphi 0, %s191
    %s193 = sphi 0, %s191
    %s194 = sphi 0, %s193
    %s208 = sphi 0, %s194
    %s212 = sphi 0, %s212
    %s214 = sphi 0, %s212
    %s215 = sphi 0, %s214
    %s229 = sphi 0, %s215
    %s233 = sphi 0, %s233
    %s235 = sphi 0, %s233
    %s236 = sphi 0, %s235
    %s250 = sphi 0, %s236
    %s254 = sphi 0, %s254
    %s256 = sphi 0, %s254
    %s257 = sphi 0, %s256
    %s271 = sphi 0, %s257
    %s275 = sphi 0, %s275
    %s277 = sphi 0, %s275
    %s278 = sphi 0, %s277
    %s292 = sphi 0, %s278
    %s296 = sphi 0, %s296
    %s298 = sphi 0, %s296
    %s299 = sphi 0, %s298
    %s313 = sphi 0, %s299
    %s317 = sphi 0, %s317
    %s319 = sphi 0, %s317
    %s320 = sphi 0, %s319
    %s334 = sphi 0, %s320
    %s338 = sphi 0, %s338
    %s340 = sphi 0, %s338
    %s341 = sphi 0, %s340
    %s355 = sphi 0, %s341
    %s361 = sphi 0, %s363
    %s364 = sphi 0, %s361
    %s365 = sphi 0, %s364
    %s381 = sphi 0, %s365
  $region4: #{clsandloc_pallas.1} parent=0 // loop_header_branch
    %24 = sbr.rel (%p22) target = $region8
  $region5: #{clsandloc_pallas.1} parent=0 // loop_body
    %s26 = ssub.s32 %s21, 1
    %s27 = ssub.s32 %s21, 2
    %s28 = sadd.s32 %s21, 1
    %s29 = ssub.s32 %s21, %s28
    %p30 = scmp.eq.s32.totalorder %s29, 0
    %s32 = sadd.s32 %s31, 1
    %s33 = scalar_select %p30, %s31, %s32
    %p36 = pneg %p30
    %p37 = scmp.eq.s32.totalorder %s21, 1
    %p38 = por %p36, %p37
    %p39 = scmp.ne.s32.totalorder %s31, %s34
    %p40 = scmp.eq.s32.totalorder %s21, 0
    %p41 = por %p39, %p40
    %p42 = scmp.ne.s32.totalorder %s31, %s34
    %p43 = scmp.eq.s32.totalorder %s26, 1
    %p44 = por %p42, %p43
    %p45 = scmp.ne.s32.totalorder %s34, %s35
    %p46 = scmp.eq.s32.totalorder %s26, 0
    %p47 = por %p45, %p46
    %p48 = scmp.ne.s32.totalorder %s34, %s35
    %p49 = scmp.eq.s32.totalorder %s27, 1
    %p50 = por %p48, %p49
    %p52 = scmp.ne.s32.totalorder %s35, %s51
    %p53 = scmp.eq.s32.totalorder %s27, 0
    %p54 = por %p52, %p53
    %s55 = ssub.s32 %s21, %s28
    %p56 = scmp.eq.s32.totalorder %s55, 0
    %s58 = sadd.s32 %s57, 1
    %s59 = scalar_select %p56, %s57, %s58
    %p62 = pneg %p56
    %p63 = scmp.eq.s32.totalorder %s21, 1
    %p64 = por %p62, %p63
    %p65 = scmp.ne.s32.totalorder %s57, %s60
    %p66 = scmp.eq.s32.totalorder %s21, 0
    %p67 = por %p65, %p66
    %p68 = scmp.ne.s32.totalorder %s57, %s60
    %p69 = scmp.eq.s32.totalorder %s26, 1
    %p70 = por %p68, %p69
    %p71 = scmp.ne.s32.totalorder %s60, %s61
    %p72 = scmp.eq.s32.totalorder %s26, 0
    %p73 = por %p71, %p72
    %p74 = scmp.ne.s32.totalorder %s60, %s61
    %p75 = scmp.eq.s32.totalorder %s27, 1
    %p76 = por %p74, %p75
    %p78 = scmp.ne.s32.totalorder %s61, %s77
    %p79 = scmp.eq.s32.totalorder %s27, 0
    %p80 = por %p78, %p79
    %s81 = ssub.s32 %s21, %s28
    %p82 = scmp.eq.s32.totalorder %s81, 0
    %s84 = sadd.s32 %s83, 1
    %s85 = scalar_select %p82, %s83, %s84
    %p88 = pneg %p82
    %p89 = scmp.eq.s32.totalorder %s21, 1
    %p90 = por %p88, %p89
    %p91 = scmp.ne.s32.totalorder %s83, %s86
    %p92 = scmp.eq.s32.totalorder %s21, 0
    %p93 = por %p91, %p92
    %p94 = scmp.ne.s32.totalorder %s83, %s86
    %p95 = scmp.eq.s32.totalorder %s26, 1
    %p96 = por %p94, %p95
    %p97 = scmp.ne.s32.totalorder %s86, %s87
    %p98 = scmp.eq.s32.totalorder %s26, 0
    %p99 = por %p97, %p98
    %p100 = scmp.ne.s32.totalorder %s86, %s87
    %p101 = scmp.eq.s32.totalorder %s27, 1
    %p102 = por %p100, %p101
    %p104 = scmp.ne.s32.totalorder %s87, %s103
    %p105 = scmp.eq.s32.totalorder %s27, 0
    %p106 = por %p104, %p105
    %s108 = sadd.s32 %s107, 1
    %p111 = scmp.eq.s32.totalorder %s21, 1
    %p112 = scmp.ne.s32.totalorder %s107, %s109
    %p113 = scmp.eq.s32.totalorder %s21, 0
    %p114 = por %p112, %p113
    %p115 = scmp.ne.s32.totalorder %s107, %s109
    %p116 = scmp.eq.s32.totalorder %s26, 1
    %p117 = por %p115, %p116
    %p118 = scmp.ne.s32.totalorder %s109, %s110
    %p119 = scmp.eq.s32.totalorder %s26, 0
    %p120 = por %p118, %p119
    %p121 = scmp.ne.s32.totalorder %s109, %s110
    %p122 = scmp.eq.s32.totalorder %s27, 1
    %p123 = por %p121, %p122
    %p125 = scmp.ne.s32.totalorder %s110, %s124
    %p126 = scmp.eq.s32.totalorder %s27, 0
    %p127 = por %p125, %p126
    %s129 = sadd.s32 %s128, 1
    %p132 = scmp.eq.s32.totalorder %s21, 1
    %p133 = scmp.ne.s32.totalorder %s128, %s130
    %p134 = scmp.eq.s32.totalorder %s21, 0
    %p135 = por %p133, %p134
    %p136 = scmp.ne.s32.totalorder %s128, %s130
    %p137 = scmp.eq.s32.totalorder %s26, 1
    %p138 = por %p136, %p137
    %p139 = scmp.ne.s32.totalorder %s130, %s131
    %p140 = scmp.eq.s32.totalorder %s26, 0
    %p141 = por %p139, %p140
    %p142 = scmp.ne.s32.totalorder %s130, %s131
    %p143 = scmp.eq.s32.totalorder %s27, 1
    %p144 = por %p142, %p143
    %p146 = scmp.ne.s32.totalorder %s131, %s145
    %p147 = scmp.eq.s32.totalorder %s27, 0
    %p148 = por %p146, %p147
    %s150 = sadd.s32 %s149, 1
    %p153 = scmp.eq.s32.totalorder %s21, 1
    %p154 = scmp.ne.s32.totalorder %s149, %s151
    %p155 = scmp.eq.s32.totalorder %s21, 0
    %p156 = por %p154, %p155
    %p157 = scmp.ne.s32.totalorder %s149, %s151
    %p158 = scmp.eq.s32.totalorder %s26, 1
    %p159 = por %p157, %p158
    %p160 = scmp.ne.s32.totalorder %s151, %s152
    %p161 = scmp.eq.s32.totalorder %s26, 0
    %p162 = por %p160, %p161
    %p163 = scmp.ne.s32.totalorder %s151, %s152
    %p164 = scmp.eq.s32.totalorder %s27, 1
    %p165 = por %p163, %p164
    %p167 = scmp.ne.s32.totalorder %s152, %s166
    %p168 = scmp.eq.s32.totalorder %s27, 0
    %p169 = por %p167, %p168
    %s171 = sadd.s32 %s170, 1
    %p174 = scmp.eq.s32.totalorder %s21, 1
    %p175 = scmp.ne.s32.totalorder %s170, %s172
    %p176 = scmp.eq.s32.totalorder %s21, 0
    %p177 = por %p175, %p176
    %p178 = scmp.ne.s32.totalorder %s170, %s172
    %p179 = scmp.eq.s32.totalorder %s26, 1
    %p180 = por %p178, %p179
    %p181 = scmp.ne.s32.totalorder %s172, %s173
    %p182 = scmp.eq.s32.totalorder %s26, 0
    %p183 = por %p181, %p182
    %p184 = scmp.ne.s32.totalorder %s172, %s173
    %p185 = scmp.eq.s32.totalorder %s27, 1
    %p186 = por %p184, %p185
    %p188 = scmp.ne.s32.totalorder %s173, %s187
    %p189 = scmp.eq.s32.totalorder %s27, 0
    %p190 = por %p188, %p189
    %s192 = sadd.s32 %s191, 1
    %p195 = scmp.eq.s32.totalorder %s21, 1
    %p196 = scmp.ne.s32.totalorder %s191, %s193
    %p197 = scmp.eq.s32.totalorder %s21, 0
    %p198 = por %p196, %p197
    %p199 = scmp.ne.s32.totalorder %s191, %s193
    %p200 = scmp.eq.s32.totalorder %s26, 1
    %p201 = por %p199, %p200
    %p202 = scmp.ne.s32.totalorder %s193, %s194
    %p203 = scmp.eq.s32.totalorder %s26, 0
    %p204 = por %p202, %p203
    %p205 = scmp.ne.s32.totalorder %s193, %s194
    %p206 = scmp.eq.s32.totalorder %s27, 1
    %p207 = por %p205, %p206
    %p209 = scmp.ne.s32.totalorder %s194, %s208
    %p210 = scmp.eq.s32.totalorder %s27, 0
    %p211 = por %p209, %p210
    %s213 = sadd.s32 %s212, 1
    %p216 = scmp.eq.s32.totalorder %s21, 1
    %p217 = scmp.ne.s32.totalorder %s212, %s214
    %p218 = scmp.eq.s32.totalorder %s21, 0
    %p219 = por %p217, %p218
    %p220 = scmp.ne.s32.totalorder %s212, %s214
    %p221 = scmp.eq.s32.totalorder %s26, 1
    %p222 = por %p220, %p221
    %p223 = scmp.ne.s32.totalorder %s214, %s215
    %p224 = scmp.eq.s32.totalorder %s26, 0
    %p225 = por %p223, %p224
    %p226 = scmp.ne.s32.totalorder %s214, %s215
    %p227 = scmp.eq.s32.totalorder %s27, 1
    %p228 = por %p226, %p227
    %p230 = scmp.ne.s32.totalorder %s215, %s229
    %p231 = scmp.eq.s32.totalorder %s27, 0
    %p232 = por %p230, %p231
    %s234 = sadd.s32 %s233, 1
    %p237 = scmp.eq.s32.totalorder %s21, 1
    %p238 = scmp.ne.s32.totalorder %s233, %s235
    %p239 = scmp.eq.s32.totalorder %s21, 0
    %p240 = por %p238, %p239
    %p241 = scmp.ne.s32.totalorder %s233, %s235
    %p242 = scmp.eq.s32.totalorder %s26, 1
    %p243 = por %p241, %p242
    %p244 = scmp.ne.s32.totalorder %s235, %s236
    %p245 = scmp.eq.s32.totalorder %s26, 0
    %p246 = por %p244, %p245
    %p247 = scmp.ne.s32.totalorder %s235, %s236
    %p248 = scmp.eq.s32.totalorder %s27, 1
    %p249 = por %p247, %p248
    %p251 = scmp.ne.s32.totalorder %s236, %s250
    %p252 = scmp.eq.s32.totalorder %s27, 0
    %p253 = por %p251, %p252
    %s255 = sadd.s32 %s254, 1
    %p258 = scmp.eq.s32.totalorder %s21, 1
    %p259 = scmp.ne.s32.totalorder %s254, %s256
    %p260 = scmp.eq.s32.totalorder %s21, 0
    %p261 = por %p259, %p260
    %p262 = scmp.ne.s32.totalorder %s254, %s256
    %p263 = scmp.eq.s32.totalorder %s26, 1
    %p264 = por %p262, %p263
    %p265 = scmp.ne.s32.totalorder %s256, %s257
    %p266 = scmp.eq.s32.totalorder %s26, 0
    %p267 = por %p265, %p266
    %p268 = scmp.ne.s32.totalorder %s256, %s257
    %p269 = scmp.eq.s32.totalorder %s27, 1
    %p270 = por %p268, %p269
    %p272 = scmp.ne.s32.totalorder %s257, %s271
    %p273 = scmp.eq.s32.totalorder %s27, 0
    %p274 = por %p272, %p273
    %s276 = sadd.s32 %s275, 1
    %p279 = scmp.eq.s32.totalorder %s21, 1
    %p280 = scmp.ne.s32.totalorder %s275, %s277
    %p281 = scmp.eq.s32.totalorder %s21, 0
    %p282 = por %p280, %p281
    %p283 = scmp.ne.s32.totalorder %s275, %s277
    %p284 = scmp.eq.s32.totalorder %s26, 1
    %p285 = por %p283, %p284
    %p286 = scmp.ne.s32.totalorder %s277, %s278
    %p287 = scmp.eq.s32.totalorder %s26, 0
    %p288 = por %p286, %p287
    %p289 = scmp.ne.s32.totalorder %s277, %s278
    %p290 = scmp.eq.s32.totalorder %s27, 1
    %p291 = por %p289, %p290
    %p293 = scmp.ne.s32.totalorder %s278, %s292
    %p294 = scmp.eq.s32.totalorder %s27, 0
    %p295 = por %p293, %p294
    %s297 = sadd.s32 %s296, 1
    %p300 = scmp.eq.s32.totalorder %s21, 1
    %p301 = scmp.ne.s32.totalorder %s296, %s298
    %p302 = scmp.eq.s32.totalorder %s21, 0
    %p303 = por %p301, %p302
    %p304 = scmp.ne.s32.totalorder %s296, %s298
    %p305 = scmp.eq.s32.totalorder %s26, 1
    %p306 = por %p304, %p305
    %p307 = scmp.ne.s32.totalorder %s298, %s299
    %p308 = scmp.eq.s32.totalorder %s26, 0
    %p309 = por %p307, %p308
    %p310 = scmp.ne.s32.totalorder %s298, %s299
    %p311 = scmp.eq.s32.totalorder %s27, 1
    %p312 = por %p310, %p311
    %p314 = scmp.ne.s32.totalorder %s299, %s313
    %p315 = scmp.eq.s32.totalorder %s27, 0
    %p316 = por %p314, %p315
    %s318 = sadd.s32 %s317, 1
    %p321 = scmp.eq.s32.totalorder %s21, 1
    %p322 = scmp.ne.s32.totalorder %s317, %s319
    %p323 = scmp.eq.s32.totalorder %s21, 0
    %p324 = por %p322, %p323
    %p325 = scmp.ne.s32.totalorder %s317, %s319
    %p326 = scmp.eq.s32.totalorder %s26, 1
    %p327 = por %p325, %p326
    %p328 = scmp.ne.s32.totalorder %s319, %s320
    %p329 = scmp.eq.s32.totalorder %s26, 0
    %p330 = por %p328, %p329
    %p331 = scmp.ne.s32.totalorder %s319, %s320
    %p332 = scmp.eq.s32.totalorder %s27, 1
    %p333 = por %p331, %p332
    %p335 = scmp.ne.s32.totalorder %s320, %s334
    %p336 = scmp.eq.s32.totalorder %s27, 0
    %p337 = por %p335, %p336
    %s339 = sadd.s32 %s338, 1
    %p342 = scmp.eq.s32.totalorder %s21, 1
    %p343 = scmp.ne.s32.totalorder %s338, %s340
    %p344 = scmp.eq.s32.totalorder %s21, 0
    %p345 = por %p343, %p344
    %p346 = scmp.ne.s32.totalorder %s338, %s340
    %p347 = scmp.eq.s32.totalorder %s26, 1
    %p348 = por %p346, %p347
    %p349 = scmp.ne.s32.totalorder %s340, %s341
    %p350 = scmp.eq.s32.totalorder %s26, 0
    %p351 = por %p349, %p350
    %p352 = scmp.ne.s32.totalorder %s340, %s341
    %p353 = scmp.eq.s32.totalorder %s27, 1
    %p354 = por %p352, %p353
    %p356 = scmp.ne.s32.totalorder %s341, %s355
    %p357 = scmp.eq.s32.totalorder %s27, 0
    %p358 = por %p356, %p357
    %s359 = ssub.s32 %s21, %s28
    %p360 = scmp.eq.s32.totalorder %s359, 0
    %s362 = sadd.s32 %s361, 1
    %s363 = scalar_select %p360, %s361, %s362
    %p366 = pneg %p360
    %p367 = scmp.eq.s32.totalorder %s21, 1
    %p368 = por %p366, %p367
    %p369 = scmp.ne.s32.totalorder %s361, %s364
    %p370 = scmp.eq.s32.totalorder %s21, 0
    %p371 = por %p369, %p370
    %p372 = scmp.ne.s32.totalorder %s361, %s364
    %p373 = scmp.eq.s32.totalorder %s26, 1
    %p374 = por %p372, %p373
    %p375 = scmp.ne.s32.totalorder %s364, %s365
    %p376 = scmp.eq.s32.totalorder %s26, 0
    %p377 = por %p375, %p376
    %p378 = scmp.ne.s32.totalorder %s364, %s365
    %p379 = scmp.eq.s32.totalorder %s27, 1
    %p380 = por %p378, %p379
    %p382 = scmp.ne.s32.totalorder %s365, %s381
    %p383 = scmp.eq.s32.totalorder %s27, 0
    %p384 = por %p382, %p383
    %p385 = scmp.le.s32.totalorder 1, %s21
    %p386 = scmp.lt.s32.totalorder %s21, 3
    %p387 = pnand %p385, %p386
    %p388 = pneg %p387
    // Predicated region
    $region9: #{clsandloc_pallas.1} parent=5 // pred_check
      _
    $region10: #{clsandloc_pallas.1} parent=5 // pred_check_branch
      %390 = sbr.rel (%p387) target = $region12
    $region11: #{clsandloc_pallas.1} parent=5 // pred_region
      %s391 = ssub.s32 %s21, 1
      // Predicated region
      $region13: #{clsandloc_pallas.1} parent=11 // pred_check
        %p392 = pneg %p120
      $region14: #{clsandloc_pallas.1} parent=11 // pred_check_branch
        %394 = sbr.rel (%p392) target = $region16
      $region15: #{clsandloc_pallas.1} parent=11 // pred_region
        _
      $region16: #{clsandloc_pallas.1} parent=11 // pred_fallthru
        _
      // Predicated region
      $region17: #{clsandloc_pallas.1} parent=11 // pred_check
        %p395 = pneg %p141
      $region18: #{clsandloc_pallas.1} parent=11 // pred_check_branch
        %397 = sbr.rel (%p395) target = $region20
      $region19: #{clsandloc_pallas.1} parent=11 // pred_region
        _
      $region20: #{clsandloc_pallas.1} parent=11 // pred_fallthru
        _
      // Predicated region
      $region21: #{clsandloc_pallas.1} parent=11 // pred_check
        %p398 = pneg %p162
      $region22: #{clsandloc_pallas.1} parent=11 // pred_check_branch
        %400 = sbr.rel (%p398) target = $region24
      $region23: #{clsandloc_pallas.1} parent=11 // pred_region
        _
      $region24: #{clsandloc_pallas.1} parent=11 // pred_fallthru
        _
      // Predicated region
      $region25: #{clsandloc_pallas.1} parent=11 // pred_check
        %p401 = pneg %p183
      $region26: #{clsandloc_pallas.1} parent=11 // pred_check_branch
        %403 = sbr.rel (%p401) target = $region28
      $region27: #{clsandloc_pallas.1} parent=11 // pred_region
        _
      $region28: #{clsandloc_pallas.1} parent=11 // pred_fallthru
        _
      // Predicated region
      $region29: #{clsandloc_pallas.1} parent=11 // pred_check
        %p404 = pneg %p204
      $region30: #{clsandloc_pallas.1} parent=11 // pred_check_branch
        %406 = sbr.rel (%p404) target = $region32
      $region31: #{clsandloc_pallas.1} parent=11 // pred_region
        _
      $region32: #{clsandloc_pallas.1} parent=11 // pred_fallthru
        _
      // Predicated region
      $region33: #{clsandloc_pallas.1} parent=11 // pred_check
        %p407 = pneg %p225
      $region34: #{clsandloc_pallas.1} parent=11 // pred_check_branch
        %409 = sbr.rel (%p407) target = $region36
      $region35: #{clsandloc_pallas.1} parent=11 // pred_region
        _
      $region36: #{clsandloc_pallas.1} parent=11 // pred_fallthru
        _
      // Predicated region
      $region37: #{clsandloc_pallas.1} parent=11 // pred_check
        %p410 = pneg %p246
      $region38: #{clsandloc_pallas.1} parent=11 // pred_check_branch
        %412 = sbr.rel (%p410) target = $region40
      $region39: #{clsandloc_pallas.1} parent=11 // pred_region
        _
      $region40: #{clsandloc_pallas.1} parent=11 // pred_fallthru
        _
      // Predicated region
      $region41: #{clsandloc_pallas.1} parent=11 // pred_check
        %p413 = pneg %p267
      $region42: #{clsandloc_pallas.1} parent=11 // pred_check_branch
        %415 = sbr.rel (%p413) target = $region44
      $region43: #{clsandloc_pallas.1} parent=11 // pred_region
        _
      $region44: #{clsandloc_pallas.1} parent=11 // pred_fallthru
        _
      // Predicated region
      $region45: #{clsandloc_pallas.1} parent=11 // pred_check
        %p416 = pneg %p288
      $region46: #{clsandloc_pallas.1} parent=11 // pred_check_branch
        %418 = sbr.rel (%p416) target = $region48
      $region47: #{clsandloc_pallas.1} parent=11 // pred_region
        _
      $region48: #{clsandloc_pallas.1} parent=11 // pred_fallthru
        _
      // Predicated region
      $region49: #{clsandloc_pallas.1} parent=11 // pred_check
        %p419 = pneg %p309
      $region50: #{clsandloc_pallas.1} parent=11 // pred_check_branch
        %421 = sbr.rel (%p419) target = $region52
      $region51: #{clsandloc_pallas.1} parent=11 // pred_region
        _
      $region52: #{clsandloc_pallas.1} parent=11 // pred_fallthru
        _
      // Predicated region
      $region53: #{clsandloc_pallas.1} parent=11 // pred_check
        %p422 = pneg %p330
      $region54: #{clsandloc_pallas.1} parent=11 // pred_check_branch
        %424 = sbr.rel (%p422) target = $region56
      $region55: #{clsandloc_pallas.1} parent=11 // pred_region
        _
      $region56: #{clsandloc_pallas.1} parent=11 // pred_fallthru
        _
      // Predicated region
      $region57: #{clsandloc_pallas.1} parent=11 // pred_check
        %p425 = pneg %p351
      $region58: #{clsandloc_pallas.1} parent=11 // pred_check_branch
        %427 = sbr.rel (%p425) target = $region60
      $region59: #{clsandloc_pallas.1} parent=11 // pred_region
        _
      $region60: #{clsandloc_pallas.1} parent=11 // pred_fallthru
        _
    $region12: #{clsandloc_pallas.1} parent=5 // pred_fallthru
      _
    %p428 = scmp.lt.s32.totalorder %s21, 2
    // Predicated region
    $region61: #{clsandloc_pallas.1} parent=5 // pred_check
      %p429 = pneg %p428
    $region62: #{clsandloc_pallas.1} parent=5 // pred_check_branch
      %431 = sbr.rel (%p429) target = $region64
    $region63: #{clsandloc_pallas.1} parent=5 // pred_region
      // Predicated region
      $region65: #{clsandloc_pallas.1} parent=63 // pred_check
        %p432 = pneg %p41
      $region66: #{clsandloc_pallas.1} parent=63 // pred_check_branch
        %434 = sbr.rel (%p432) target = $region68
      $region67: #{clsandloc_pallas.1} parent=63 // pred_region
        %p435 = scmp.lt.s32.totalorder %s21, 1
        %s436 = scalar_select %p435, %s21, 1
        %s437 = smul.addr %s436, 18
        %s438 = smul.addr %s437, 8
        %s439 = scalar_lea.vmem %s0, %s438
      $region68: #{clsandloc_pallas.1} parent=63 // pred_fallthru
        _
      // Predicated region
      $region69: #{clsandloc_pallas.1} parent=63 // pred_check
        %p440 = pneg %p67
      $region70: #{clsandloc_pallas.1} parent=63 // pred_check_branch
        %442 = sbr.rel (%p440) target = $region72
      $region71: #{clsandloc_pallas.1} parent=63 // pred_region
        %p443 = scmp.lt.s32.totalorder %s21, 1
        %s444 = scalar_select %p443, %s21, 1
        %s445 = smul.addr %s444, 5
        %s446 = smul.addr %s445, 8
        %s447 = scalar_lea.vmem %s1, %s446
      $region72: #{clsandloc_pallas.1} parent=63 // pred_fallthru
        _
      // Predicated region
      $region73: #{clsandloc_pallas.1} parent=63 // pred_check
        %p448 = pneg %p93
      $region74: #{clsandloc_pallas.1} parent=63 // pred_check_branch
        %450 = sbr.rel (%p448) target = $region76
      $region75: #{clsandloc_pallas.1} parent=63 // pred_region
        %p451 = scmp.lt.s32.totalorder %s21, 1
        %s452 = scalar_select %p451, %s21, 1
        %s453 = smul.addr %s452, 11
        %s454 = smul.addr %s453, 8
        %s455 = scalar_lea.vmem %s2, %s454
      $region76: #{clsandloc_pallas.1} parent=63 // pred_fallthru
        _
    $region64: #{clsandloc_pallas.1} parent=5 // pred_fallthru
      _
    %p456 = scmp.le.s32.totalorder 1, %s21
    %p457 = scmp.lt.s32.totalorder %s21, 3
    %p458 = pnand %p456, %p457
    %p459 = pneg %p458
    // Predicated region
    $region77: #{clsandloc_pallas.1} parent=5 // pred_check
      _
    $region78: #{clsandloc_pallas.1} parent=5 // pred_check_branch
      %461 = sbr.rel (%p458) target = $region80
    $region79: #{clsandloc_pallas.1} parent=5 // pred_region
      %s462 = ssub.s32 %s21, 1
      %p463 = scmp.lt.s32.totalorder %s26, 1
      %s464 = scalar_select %p463, %s26, 1
      %s465 = smul.addr %s464, 18
      %s466 = smul.addr %s465, 8
      %s467 = scalar_lea.vmem %s0, %s466
      %p468 = pneg %p47
      %p469 = pneg %p44
      %p470 = scmp.lt.s32.totalorder %s26, 1
      %s471 = scalar_select %p470, %s26, 1
      %s472 = smul.addr %s471, 5
      %s473 = smul.addr %s472, 8
      %s474 = scalar_lea.vmem %s1, %s473
      %p475 = pneg %p73
      %p476 = pneg %p70
      %p477 = scmp.lt.s32.totalorder %s26, 1
      %s478 = scalar_select %p477, %s26, 1
      %s479 = smul.addr %s478, 11
      %s480 = smul.addr %s479, 8
      %s481 = scalar_lea.vmem %s2, %s480
      %p482 = pneg %p99
      %p483 = pneg %p96
      %p484 = pneg %p120
      %p485 = pneg %p117
      %p486 = pneg %p141
      %p487 = pneg %p138
      %p488 = pneg %p162
      %p489 = pneg %p159
      %p490 = pneg %p183
      %p491 = pneg %p180
      %p492 = pneg %p204
      %p493 = pneg %p201
      %p494 = pneg %p225
      %p495 = pneg %p222
      %p496 = pneg %p246
      %p497 = pneg %p243
      %p498 = pneg %p267
      %p499 = pneg %p264
      %p500 = pneg %p288
      %p501 = pneg %p285
      %p502 = pneg %p309
      %p503 = pneg %p306
      %p504 = pneg %p330
      %p505 = pneg %p327
      %p506 = pneg %p351
      %p507 = pneg %p348
      %p508 = pneg %p377
      %p509 = pneg %p374
      %p510 = scmp.lt.s32.totalorder %s26, 1
      %s511 = scalar_select %p510, %s26, 1
      %s512 = smul.addr %s511, 8
      %s513 = smul.addr %s512, 8
      %s514 = scalar_lea.vmem %s15, %s513
      %p515 = scmp.lt.s32.totalorder %s26, 1
      %s516 = scalar_select %p515, %s26, 1
      %s517 = smul.addr %s516, 18
      %s518 = smul.addr %s517, 8
      %s519 = scalar_lea.vmem %s0, %s518
      %p520 = scmp.lt.s32.totalorder %s26, 1
      %s521 = scalar_select %p520, %s26, 1
      %s522 = smul.addr %s521, 5
      %s523 = smul.addr %s522, 8
      %s524 = scalar_lea.vmem %s1, %s523
      %p525 = scmp.lt.s32.totalorder %s26, 1
      %s526 = scalar_select %p525, %s26, 1
      %s527 = smul.addr %s526, 11
      %s528 = smul.addr %s527, 8
      %s529 = scalar_lea.vmem %s2, %s528
      %p530 = scmp.lt.s32.totalorder %s26, 1
      %s531 = scalar_select %p530, %s26, 1
      %s532 = smul.addr %s531, 8
      %s533 = smul.addr %s532, 8
      %s534 = scalar_lea.vmem %s15, %s533
      %vm536 = vcmask 261120
      %537 = vst.msk [vmem:[#allocation2] sm:$0xff] %vm536, 0.0
      %538 = vst.msk [vmem:[#allocation2 + $0x8] sm:$0xff] %vm536, 0.0
      %539 = vst.msk [vmem:[#allocation2 + $0x10] sm:$0xff] %vm536, 0.0
      %540 = vst.msk [vmem:[#allocation2 + $0x18] sm:$0xff] %vm536, 0.0
      %541 = vst.msk [vmem:[#allocation2 + $0x20] sm:$0xff] %vm536, 0.0
      %542 = vst.msk [vmem:[#allocation2 + $0x28] sm:$0xff] %vm536, 0.0
      %543 = vst.msk [vmem:[#allocation2 + $0x30] sm:$0xff] %vm536, 0.0
      %544 = vst.msk [vmem:[#allocation2 + $0x38] sm:$0xff] %vm536, 0.0
      %545 = vst.msk [vmem:[#allocation2 + $0x40] sm:$0xff] %vm536, 0.0
      %546 = vst.msk [vmem:[#allocation2 + $0x48] sm:$0xff] %vm536, 0.0
      %vm547 = vcmask 253952
      %548 = vst.msk [vmem:[#allocation2 + $0x50] sm:$0x1] %vm547, 0.0
      %vm549 = vcmask 523264
      %550 = vst.msk [vmem:[#allocation3] sm:$0xff] %vm549, 0.0
      %551 = vst.msk [vmem:[#allocation3 + $0x8] sm:$0xff] %vm549, 0.0
      %552 = vst.msk [vmem:[#allocation3 + $0x10] sm:$0xff] %vm549, 0.0
      %553 = vst.msk [vmem:[#allocation3 + $0x18] sm:$0xff] %vm549, 0.0
      %554 = vst.msk [vmem:[#allocation3 + $0x20] sm:$0xff] %vm549, 0.0
      %555 = vst.msk [vmem:[#allocation3 + $0x28] sm:$0xff] %vm549, 0.0
      %556 = vst.msk [vmem:[#allocation3 + $0x30] sm:$0xff] %vm549, 0.0
      %557 = vst.msk [vmem:[#allocation3 + $0x38] sm:$0xff] %vm549, 0.0
      %558 = vst.msk [vmem:[#allocation3 + $0x40] sm:$0xff] %vm549, 0.0
      %559 = vst.msk [vmem:[#allocation3 + $0x48] sm:$0xff] %vm549, 0.0
      %vm560 = vcmask 516096
      %561 = vst.msk [vmem:[#allocation3 + $0x50] sm:$0x1] %vm560, 0.0
      %v562 = vld [vmem:[%s13] sm:$0xff]
      %v563 = vld [vmem:[%s13 + $0x8] sm:$0xff]
      %v564 = vld [vmem:[%s13 + $0x10] sm:$0xff]
      %v565 = vld [vmem:[%s13 + $0x18] sm:$0xff]
      %v566 = vld [vmem:[%s13 + $0x20] sm:$0xff]
      %v567 = vld [vmem:[%s13 + $0x28] sm:$0xff]
      %v568 = vld [vmem:[%s13 + $0x30] sm:$0xff]
      %v569 = vld [vmem:[%s13 + $0x38] sm:$0x1f]
      %v570 = vld [vmem:[%s14] sm:$0xff]
      %v571 = vld [vmem:[%s14 + $0x8] sm:$0xff]
      %v572 = vld [vmem:[%s14 + $0x10] sm:$0xff]
      %v573 = vld [vmem:[%s14 + $0x18] sm:$0xff]
      %v574 = vld [vmem:[%s14 + $0x20] sm:$0xff]
      %v575 = vld [vmem:[%s14 + $0x28] sm:$0x1]
      %v576 = vld [vmem:[%s11] sm:$0xff]
      %v577 = vld [vmem:[%s11 + $0x8] sm:$0xff]
      %v578 = vld [vmem:[%s11 + $0x10] sm:$0xff]
      %v579 = vld [vmem:[%s11 + $0x18] sm:$0xff]
      %v580 = vld [vmem:[%s11 + $0x20] sm:$0xff]
      %v581 = vld [vmem:[%s11 + $0x28] sm:$0xff]
      %v582 = vld [vmem:[%s11 + $0x30] sm:$0xff]
      %v583 = vld [vmem:[%s11 + $0x38] sm:$0xff]
      %v584 = vld [vmem:[%s9] sm:$0xff]
      %v585 = vld [vmem:[%s9 + $0x8] sm:$0x1f]
      %v586 = vld [vmem:[%s10] sm:$0x3f]
      %v587 = vld [vmem:[%s519] sm:$0xff]
      %v588 = vld [vmem:[%s519 + $0x8] sm:$0xff]
      %v589 = vld [vmem:[%s519 + $0x10] sm:$0xff]
      %v590 = vld [vmem:[%s519 + $0x18] sm:$0xff]
      %v591 = vld [vmem:[%s519 + $0x20] sm:$0xff]
      %v592 = vld [vmem:[%s519 + $0x28] sm:$0xff]
      %v593 = vld [vmem:[%s519 + $0x30] sm:$0xff]
      %v594 = vld [vmem:[%s519 + $0x38] sm:$0xff]
      %v595 = vld [vmem:[%s519 + $0x40] sm:$0xff]
      %v596 = vld [vmem:[%s519 + $0x48] sm:$0xff]
      %v597 = vld [vmem:[%s519 + $0x50] sm:$0xff]
      %v598 = vld [vmem:[%s519 + $0x58] sm:$0xff]
      %v599 = vld [vmem:[%s519 + $0x60] sm:$0xff]
      %v600 = vld [vmem:[%s519 + $0x68] sm:$0xff]
      %v601 = vld [vmem:[%s519 + $0x70] sm:$0xff]
      %v602 = vld [vmem:[%s519 + $0x78] sm:$0xff]
      %v603 = vld [vmem:[%s519 + $0x80] sm:$0xff]
      %v604 = vld [vmem:[%s519 + $0x88] sm:$0xff]
      %v605 = vld [vmem:[%s3] sm:$0xf]
      %v606 = vld [vmem:[%s3 + $0x4] sm:$0xf]
      %v607 = vld [vmem:[%s3 + $0x8] sm:$0xf]
      %v608 = vld [vmem:[%s3 + $0xc] sm:$0xf]
      %v609 = vld [vmem:[%s3 + $0x10] sm:$0xf]
      %v610 = vld [vmem:[%s3 + $0x14] sm:$0xf]
      %v611 = vld [vmem:[%s3 + $0x18] sm:$0xf]
      %v612 = vld [vmem:[%s3 + $0x1c] sm:$0xf]
      %v613 = vld [vmem:[%s3 + $0x20] sm:$0xf]
      %v614 = vld [vmem:[%s3 + $0x24] sm:$0xf]
      %v615 = vld [vmem:[%s3 + $0x28] sm:$0xf]
      %v616 = vld [vmem:[%s3 + $0x2c] sm:$0xf]
      %v617 = vld [vmem:[%s3 + $0x30] sm:$0xf]
      %v618 = vld [vmem:[%s3 + $0x34] sm:$0xf]
      %v619 = vld [vmem:[%s3 + $0x38] sm:$0xf]
      %v620 = vld [vmem:[%s3 + $0x3c] sm:$0xf]
      %v621 = vld [vmem:[%s3 + $0x40] sm:$0xf]
      %v622 = vld [vmem:[%s3 + $0x44] sm:$0xf]
      %v623 = vld [vmem:[%s3 + $0x48] sm:$0xf]
      %v624 = vld [vmem:[%s3 + $0x4c] sm:$0xf]
      %v625 = vld [vmem:[%s3 + $0x50] sm:$0xf]
      %v626 = vld [vmem:[%s3 + $0x54] sm:$0xf]
      %v627 = vld [vmem:[%s3 + $0x58] sm:$0xf]
      %v628 = vld [vmem:[%s3 + $0x5c] sm:$0xf]
      %v629 = vld [vmem:[%s3 + $0x60] sm:$0xf]
      %v630 = vld [vmem:[%s3 + $0x64] sm:$0xf]
      %v631 = vld [vmem:[%s3 + $0x68] sm:$0xf]
      %v632 = vld [vmem:[%s3 + $0x6c] sm:$0xf]
      %v633 = vld [vmem:[%s3 + $0x70] sm:$0xf]
      %v634 = vld [vmem:[%s3 + $0x74] sm:$0xf]
      %v635 = vld [vmem:[%s3 + $0x78] sm:$0xf]
      %v636 = vld [vmem:[%s3 + $0x7c] sm:$0xf]
      %v637 = vld [vmem:[%s3 + $0x80] sm:$0xf]
      %v638 = vld [vmem:[%s3 + $0x84] sm:$0xf]
      %v639 = vld [vmem:[%s3 + $0x88] sm:$0xf]
      %v640 = vld [vmem:[%s3 + $0x8c] sm:$0xf]
      %vm656 = vcmask 1046528
      %v657 = vrot.slane %v587, 1
      %v658 = vrot.slane %v588, 1
      %v659 = vsel %vm656, %v657, %v658
      %v660 = vrot.slane %v589, 1
      %v661 = vsel %vm656, %v658, %v660
      %v662 = vrot.slane %v590, 1
      %v663 = vsel %vm656, %v660, %v662
      %v664 = vrot.slane %v591, 1
      %v665 = vsel %vm656, %v662, %v664
      %v666 = vrot.slane %v592, 1
      %v667 = vsel %vm656, %v664, %v666
      %v668 = vrot.slane %v593, 1
      %v669 = vsel %vm656, %v666, %v668
      %v670 = vrot.slane %v594, 1
      %v671 = vsel %vm656, %v668, %v670
      %v672 = vrot.slane %v595, 1
      %v673 = vsel %vm656, %v670, %v672
      %v674 = vrot.slane %v596, 1
      %v675 = vsel %vm656, %v672, %v674
      %v676 = vrot.slane %v597, 1
      %v677 = vsel %vm656, %v674, %v676
      %v678 = vrot.slane %v598, 1
      %v679 = vsel %vm656, %v676, %v678
      %v680 = vrot.slane %v599, 1
      %v681 = vsel %vm656, %v678, %v680
      %v682 = vrot.slane %v600, 1
      %v683 = vsel %vm656, %v680, %v682
      %v684 = vrot.slane %v601, 1
      %v685 = vsel %vm656, %v682, %v684
      %686 = vrot.lane.b32.xlu0 %v659, 32
      %v687 = vpop.permute.xlu0 %686
      %688 = vrot.lane.b32.xlu0 %v661, 32
      %v689 = vpop.permute.xlu0 %688
      %690 = vrot.lane.b32.xlu0 %v663, 32
      %v691 = vpop.permute.xlu0 %690
      %692 = vrot.lane.b32.xlu0 %v665, 32
      %v693 = vpop.permute.xlu0 %692
      %694 = vrot.lane.b32.xlu0 %v667, 32
      %v695 = vpop.permute.xlu0 %694
      %696 = vrot.lane.b32.xlu0 %v669, 32
      %v697 = vpop.permute.xlu0 %696
      %698 = vrot.lane.b32.xlu0 %v671, 32
      %v699 = vpop.permute.xlu0 %698
      %700 = vrot.lane.b32.xlu0 %v673, 32
      %v701 = vpop.permute.xlu0 %700
      %702 = vrot.lane.b32.xlu0 %v675, 32
      %v703 = vpop.permute.xlu0 %702
      %704 = vrot.lane.b32.xlu0 %v677, 32
      %v705 = vpop.permute.xlu0 %704
      %706 = vrot.lane.b32.xlu0 %v679, 32
      %v707 = vpop.permute.xlu0 %706
      %708 = vrot.lane.b32.xlu0 %v681, 32
      %v709 = vpop.permute.xlu0 %708
      %710 = vrot.lane.b32.xlu0 %v683, 32
      %v711 = vpop.permute.xlu0 %710
      %712 = vrot.lane.b32.xlu0 %v685, 32
      %v713 = vpop.permute.xlu0 %712
      %714 = vrot.lane.b32.xlu0 %v684, 32
      %v715 = vpop.permute.xlu0 %714
      %vm731 = vcmask 1045504
      %v732 = vrot.slane %v587, 2
      %v733 = vrot.slane %v588, 2
      %v734 = vsel %vm731, %v732, %v733
      %v735 = vrot.slane %v589, 2
      %v736 = vsel %vm731, %v733, %v735
      %v737 = vrot.slane %v590, 2
      %v738 = vsel %vm731, %v735, %v737
      %v739 = vrot.slane %v591, 2
      %v740 = vsel %vm731, %v737, %v739
      %v741 = vrot.slane %v592, 2
      %v742 = vsel %vm731, %v739, %v741
      %v743 = vrot.slane %v593, 2
      %v744 = vsel %vm731, %v741, %v743
      %v745 = vrot.slane %v594, 2
      %v746 = vsel %vm731, %v743, %v745
      %v747 = vrot.slane %v595, 2
      %v748 = vsel %vm731, %v745, %v747
      %v749 = vrot.slane %v596, 2
      %v750 = vsel %vm731, %v747, %v749
      %v751 = vrot.slane %v597, 2
      %v752 = vsel %vm731, %v749, %v751
      %v753 = vrot.slane %v598, 2
      %v754 = vsel %vm731, %v751, %v753
      %v755 = vrot.slane %v599, 2
      %v756 = vsel %vm731, %v753, %v755
      %v757 = vrot.slane %v600, 2
      %v758 = vsel %vm731, %v755, %v757
      %v759 = vrot.slane %v601, 2
      %v760 = vsel %vm731, %v757, %v759
      %761 = vrot.lane.b32.xlu0 %v734, 64
      %v762 = vpop.permute.xlu0 %761
      %763 = vrot.lane.b32.xlu0 %v736, 64
      %v764 = vpop.permute.xlu0 %763
      %765 = vrot.lane.b32.xlu0 %v738, 64
      %v766 = vpop.permute.xlu0 %765
      %767 = vrot.lane.b32.xlu0 %v740, 64
      %v768 = vpop.permute.xlu0 %767
      %769 = vrot.lane.b32.xlu0 %v742, 64
      %v770 = vpop.permute.xlu0 %769
      %771 = vrot.lane.b32.xlu0 %v744, 64
      %v772 = vpop.permute.xlu0 %771
      %773 = vrot.lane.b32.xlu0 %v746, 64
      %v774 = vpop.permute.xlu0 %773
      %775 = vrot.lane.b32.xlu0 %v748, 64
      %v776 = vpop.permute.xlu0 %775
      %777 = vrot.lane.b32.xlu0 %v750, 64
      %v778 = vpop.permute.xlu0 %777
      %779 = vrot.lane.b32.xlu0 %v752, 64
      %v780 = vpop.permute.xlu0 %779
      %781 = vrot.lane.b32.xlu0 %v754, 64
      %v782 = vpop.permute.xlu0 %781
      %783 = vrot.lane.b32.xlu0 %v756, 64
      %v784 = vpop.permute.xlu0 %783
      %785 = vrot.lane.b32.xlu0 %v758, 64
      %v786 = vpop.permute.xlu0 %785
      %787 = vrot.lane.b32.xlu0 %v760, 64
      %v788 = vpop.permute.xlu0 %787
      %789 = vrot.lane.b32.xlu0 %v759, 64
      %v790 = vpop.permute.xlu0 %789
      %vm808 = vcmask 1043456
      %v809 = vrot.slane %v588, 4
      %v810 = vrot.slane %v589, 4
      %v811 = vsel %vm808, %v809, %v810
      %v812 = vrot.slane %v590, 4
      %v813 = vsel %vm808, %v810, %v812
      %v814 = vrot.slane %v591, 4
      %v815 = vsel %vm808, %v812, %v814
      %v816 = vrot.slane %v592, 4
      %v817 = vsel %vm808, %v814, %v816
      %v818 = vrot.slane %v593, 4
      %v819 = vsel %vm808, %v816, %v818
      %v820 = vrot.slane %v594, 4
      %v821 = vsel %vm808, %v818, %v820
      %v822 = vrot.slane %v595, 4
      %v823 = vsel %vm808, %v820, %v822
      %v824 = vrot.slane %v596, 4
      %v825 = vsel %vm808, %v822, %v824
      %v826 = vrot.slane %v597, 4
      %v827 = vsel %vm808, %v824, %v826
      %v828 = vrot.slane %v598, 4
      %v829 = vsel %vm808, %v826, %v828
      %v830 = vrot.slane %v599, 4
      %v831 = vsel %vm808, %v828, %v830
      %v832 = vrot.slane %v600, 4
      %v833 = vsel %vm808, %v830, %v832
      %v834 = vrot.slane %v601, 4
      %v835 = vsel %vm808, %v832, %v834
      %v836 = vrot.slane %v602, 4
      %v837 = vsel %vm808, %v834, %v836
      %v838 = vrot.slane %v603, 4
      %v839 = vsel %vm808, %v836, %v838
      %840 = vrot.lane.b32.xlu0 %v811, 96
      %v841 = vpop.permute.xlu0 %840
      %842 = vrot.lane.b32.xlu0 %v813, 96
      %v843 = vpop.permute.xlu0 %842
      %844 = vrot.lane.b32.xlu0 %v815, 96
      %v845 = vpop.permute.xlu0 %844
      %846 = vrot.lane.b32.xlu0 %v817, 96
      %v847 = vpop.permute.xlu0 %846
      %848 = vrot.lane.b32.xlu0 %v819, 96
      %v849 = vpop.permute.xlu0 %848
      %850 = vrot.lane.b32.xlu0 %v821, 96
      %v851 = vpop.permute.xlu0 %850
      %852 = vrot.lane.b32.xlu0 %v823, 96
      %v853 = vpop.permute.xlu0 %852
      %854 = vrot.lane.b32.xlu0 %v825, 96
      %v855 = vpop.permute.xlu0 %854
      %856 = vrot.lane.b32.xlu0 %v827, 96
      %v857 = vpop.permute.xlu0 %856
      %858 = vrot.lane.b32.xlu0 %v829, 96
      %v859 = vpop.permute.xlu0 %858
      %860 = vrot.lane.b32.xlu0 %v831, 96
      %v861 = vpop.permute.xlu0 %860
      %862 = vrot.lane.b32.xlu0 %v833, 96
      %v863 = vpop.permute.xlu0 %862
      %864 = vrot.lane.b32.xlu0 %v835, 96
      %v865 = vpop.permute.xlu0 %864
      %866 = vrot.lane.b32.xlu0 %v837, 96
      %v867 = vpop.permute.xlu0 %866
      %868 = vrot.lane.b32.xlu0 %v839, 96
      %v869 = vpop.permute.xlu0 %868
      %vm885 = vcmask 1042432
      %v886 = vrot.slane %v588, 5
      %v887 = vrot.slane %v589, 5
      %v888 = vsel %vm885, %v886, %v887
      %v889 = vrot.slane %v590, 5
      %v890 = vsel %vm885, %v887, %v889
      %v891 = vrot.slane %v591, 5
      %v892 = vsel %vm885, %v889, %v891
      %v893 = vrot.slane %v592, 5
      %v894 = vsel %vm885, %v891, %v893
      %v895 = vrot.slane %v593, 5
      %v896 = vsel %vm885, %v893, %v895
      %v897 = vrot.slane %v594, 5
      %v898 = vsel %vm885, %v895, %v897
      %v899 = vrot.slane %v595, 5
      %v900 = vsel %vm885, %v897, %v899
      %v901 = vrot.slane %v596, 5
      %v902 = vsel %vm885, %v899, %v901
      %v903 = vrot.slane %v597, 5
      %v904 = vsel %vm885, %v901, %v903
      %v905 = vrot.slane %v598, 5
      %v906 = vsel %vm885, %v903, %v905
      %v907 = vrot.slane %v599, 5
      %v908 = vsel %vm885, %v905, %v907
      %v909 = vrot.slane %v600, 5
      %v910 = vsel %vm885, %v907, %v909
      %v911 = vrot.slane %v601, 5
      %v912 = vsel %vm885, %v909, %v911
      %v913 = vrot.slane %v602, 5
      %v914 = vsel %vm885, %v911, %v913
      %v915 = vrot.slane %v603, 5
      %v916 = vsel %vm885, %v913, %v915
      %vm932 = vcmask 1041408
      %v933 = vrot.slane %v588, 6
      %v934 = vrot.slane %v589, 6
      %v935 = vsel %vm932, %v933, %v934
      %v936 = vrot.slane %v590, 6
      %v937 = vsel %vm932, %v934, %v936
      %v938 = vrot.slane %v591, 6
      %v939 = vsel %vm932, %v936, %v938
      %v940 = vrot.slane %v592, 6
      %v941 = vsel %vm932, %v938, %v940
      %v942 = vrot.slane %v593, 6
      %v943 = vsel %vm932, %v940, %v942
      %v944 = vrot.slane %v594, 6
      %v945 = vsel %vm932, %v942, %v944
      %v946 = vrot.slane %v595, 6
      %v947 = vsel %vm932, %v944, %v946
      %v948 = vrot.slane %v596, 6
      %v949 = vsel %vm932, %v946, %v948
      %v950 = vrot.slane %v597, 6
      %v951 = vsel %vm932, %v948, %v950
      %v952 = vrot.slane %v598, 6
      %v953 = vsel %vm932, %v950, %v952
      %v954 = vrot.slane %v599, 6
      %v955 = vsel %vm932, %v952, %v954
      %v956 = vrot.slane %v600, 6
      %v957 = vsel %vm932, %v954, %v956
      %v958 = vrot.slane %v601, 6
      %v959 = vsel %vm932, %v956, %v958
      %v960 = vrot.slane %v602, 6
      %v961 = vsel %vm932, %v958, %v960
      %v962 = vrot.slane %v603, 6
      %v963 = vsel %vm932, %v960, %v962
      %964 = vrot.lane.b32.xlu0 %v935, 32
      %v965 = vpop.permute.xlu0 %964
      %966 = vrot.lane.b32.xlu0 %v937, 32
      %v967 = vpop.permute.xlu0 %966
      %968 = vrot.lane.b32.xlu0 %v939, 32
      %v969 = vpop.permute.xlu0 %968
      %970 = vrot.lane.b32.xlu0 %v941, 32
      %v971 = vpop.permute.xlu0 %970
      %972 = vrot.lane.b32.xlu0 %v943, 32
      %v973 = vpop.permute.xlu0 %972
      %974 = vrot.lane.b32.xlu0 %v945, 32
      %v975 = vpop.permute.xlu0 %974
      %976 = vrot.lane.b32.xlu0 %v947, 32
      %v977 = vpop.permute.xlu0 %976
      %978 = vrot.lane.b32.xlu0 %v949, 32
      %v979 = vpop.permute.xlu0 %978
      %980 = vrot.lane.b32.xlu0 %v951, 32
      %v981 = vpop.permute.xlu0 %980
      %982 = vrot.lane.b32.xlu0 %v953, 32
      %v983 = vpop.permute.xlu0 %982
      %984 = vrot.lane.b32.xlu0 %v955, 32
      %v985 = vpop.permute.xlu0 %984
      %986 = vrot.lane.b32.xlu0 %v957, 32
      %v987 = vpop.permute.xlu0 %986
      %988 = vrot.lane.b32.xlu0 %v959, 32
      %v989 = vpop.permute.xlu0 %988
      %990 = vrot.lane.b32.xlu0 %v961, 32
      %v991 = vpop.permute.xlu0 %990
      %992 = vrot.lane.b32.xlu0 %v963, 32
      %v993 = vpop.permute.xlu0 %992
      %1010 = vrot.lane.b32.xlu0 %v590, 64
      %v1011 = vpop.permute.xlu0 %1010
      %1012 = vrot.lane.b32.xlu0 %v591, 64
      %v1013 = vpop.permute.xlu0 %1012
      %1014 = vrot.lane.b32.xlu0 %v592, 64
      %v1015 = vpop.permute.xlu0 %1014
      %1016 = vrot.lane.b32.xlu0 %v593, 64
      %v1017 = vpop.permute.xlu0 %1016
      %1018 = vrot.lane.b32.xlu0 %v594, 64
      %v1019 = vpop.permute.xlu0 %1018
      %1020 = vrot.lane.b32.xlu0 %v595, 64
      %v1021 = vpop.permute.xlu0 %1020
      %1022 = vrot.lane.b32.xlu0 %v596, 64
      %v1023 = vpop.permute.xlu0 %1022
      %1024 = vrot.lane.b32.xlu0 %v597, 64
      %v1025 = vpop.permute.xlu0 %1024
      %1026 = vrot.lane.b32.xlu0 %v598, 64
      %v1027 = vpop.permute.xlu0 %1026
      %1028 = vrot.lane.b32.xlu0 %v599, 64
      %v1029 = vpop.permute.xlu0 %1028
      %1030 = vrot.lane.b32.xlu0 %v600, 64
      %v1031 = vpop.permute.xlu0 %1030
      %1032 = vrot.lane.b32.xlu0 %v601, 64
      %v1033 = vpop.permute.xlu0 %1032
      %1034 = vrot.lane.b32.xlu0 %v602, 64
      %v1035 = vpop.permute.xlu0 %1034
      %1036 = vrot.lane.b32.xlu0 %v603, 64
      %v1037 = vpop.permute.xlu0 %1036
      %1038 = vrot.lane.b32.xlu0 %v604, 64
      %v1039 = vpop.permute.xlu0 %1038
      %v1055 = vrot.slane %v602, 1
      %v1056 = vsel %vm656, %v684, %v1055
      %v1057 = vrot.slane %v603, 1
      %v1058 = vsel %vm656, %v1055, %v1057
      %v1059 = vrot.slane %v604, 1
      %v1060 = vsel %vm656, %v1057, %v1059
      %1061 = vrot.lane.b32.xlu0 %v665, 96
      %v1062 = vpop.permute.xlu0 %1061
      %1063 = vrot.lane.b32.xlu0 %v667, 96
      %v1064 = vpop.permute.xlu0 %1063
      %1065 = vrot.lane.b32.xlu0 %v669, 96
      %v1066 = vpop.permute.xlu0 %1065
      %1067 = vrot.lane.b32.xlu0 %v671, 96
      %v1068 = vpop.permute.xlu0 %1067
      %1069 = vrot.lane.b32.xlu0 %v673, 96
      %v1070 = vpop.permute.xlu0 %1069
      %1071 = vrot.lane.b32.xlu0 %v675, 96
      %v1072 = vpop.permute.xlu0 %1071
      %1073 = vrot.lane.b32.xlu0 %v677, 96
      %v1074 = vpop.permute.xlu0 %1073
      %1075 = vrot.lane.b32.xlu0 %v679, 96
      %v1076 = vpop.permute.xlu0 %1075
      %1077 = vrot.lane.b32.xlu0 %v681, 96
      %v1078 = vpop.permute.xlu0 %1077
      %1079 = vrot.lane.b32.xlu0 %v683, 96
      %v1080 = vpop.permute.xlu0 %1079
      %1081 = vrot.lane.b32.xlu0 %v685, 96
      %v1082 = vpop.permute.xlu0 %1081
      %1083 = vrot.lane.b32.xlu0 %v1056, 96
      %v1084 = vpop.permute.xlu0 %1083
      %1085 = vrot.lane.b32.xlu0 %v1058, 96
      %v1086 = vpop.permute.xlu0 %1085
      %1087 = vrot.lane.b32.xlu0 %v1060, 96
      %v1088 = vpop.permute.xlu0 %1087
      %1089 = vrot.lane.b32.xlu0 %v1059, 96
      %v1090 = vpop.permute.xlu0 %1089
      %v1106 = vrot.slane %v602, 2
      %v1107 = vsel %vm731, %v759, %v1106
      %v1108 = vrot.slane %v603, 2
      %v1109 = vsel %vm731, %v1106, %v1108
      %v1110 = vrot.slane %v604, 2
      %v1111 = vsel %vm731, %v1108, %v1110
      %v1127 = vsel %vm536, %v587, %v687
      %v1128 = vsel %vm536, %v588, %v689
      %v1129 = vsel %vm536, %v589, %v691
      %v1130 = vsel %vm536, %v590, %v693
      %v1131 = vsel %vm536, %v591, %v695
      %v1132 = vsel %vm536, %v592, %v697
      %v1133 = vsel %vm536, %v593, %v699
      %v1134 = vsel %vm536, %v594, %v701
      %v1135 = vsel %vm536, %v595, %v703
      %v1136 = vsel %vm536, %v596, %v705
      %v1137 = vsel %vm536, %v597, %v707
      %v1138 = vsel %vm536, %v598, %v709
      %v1139 = vsel %vm536, %v599, %v711
      %v1140 = vsel %vm536, %v600, %v713
      %v1141 = vsel %vm536, %v601, %v715
      %v1142 = vsel %vm549, %v1127, %v762
      %v1143 = vsel %vm549, %v1128, %v764
      %v1144 = vsel %vm549, %v1129, %v766
      %v1145 = vsel %vm549, %v1130, %v768
      %v1146 = vsel %vm549, %v1131, %v770
      %v1147 = vsel %vm549, %v1132, %v772
      %v1148 = vsel %vm549, %v1133, %v774
      %v1149 = vsel %vm549, %v1134, %v776
      %v1150 = vsel %vm549, %v1135, %v778
      %v1151 = vsel %vm549, %v1136, %v780
      %v1152 = vsel %vm549, %v1137, %v782
      %v1153 = vsel %vm549, %v1138, %v784
      %v1154 = vsel %vm549, %v1139, %v786
      %v1155 = vsel %vm549, %v1140, %v788
      %v1156 = vsel %vm549, %v1141, %v790
      %vm1157 = vcmask 785408
      %v1158 = vsel %vm1157, %v1142, %v841
      %v1159 = vsel %vm1157, %v1143, %v843
      %v1160 = vsel %vm1157, %v1144, %v845
      %v1161 = vsel %vm1157, %v1145, %v847
      %v1162 = vsel %vm1157, %v1146, %v849
      %v1163 = vsel %vm1157, %v1147, %v851
      %v1164 = vsel %vm1157, %v1148, %v853
      %v1165 = vsel %vm1157, %v1149, %v855
      %v1166 = vsel %vm1157, %v1150, %v857
      %v1167 = vsel %vm1157, %v1151, %v859
      %v1168 = vsel %vm1157, %v1152, %v861
      %v1169 = vsel %vm1157, %v1153, %v863
      %v1170 = vsel %vm1157, %v1154, %v865
      %v1171 = vsel %vm1157, %v1155, %v867
      %v1172 = vsel %vm1157, %v1156, %v869
      %v1173 = vsel %vm536, %v888, %v965
      %v1174 = vsel %vm536, %v890, %v967
      %v1175 = vsel %vm536, %v892, %v969
      %v1176 = vsel %vm536, %v894, %v971
      %v1177 = vsel %vm536, %v896, %v973
      %v1178 = vsel %vm536, %v898, %v975
      %v1179 = vsel %vm536, %v900, %v977
      %v1180 = vsel %vm536, %v902, %v979
      %v1181 = vsel %vm536, %v904, %v981
      %v1182 = vsel %vm536, %v906, %v983
      %v1183 = vsel %vm536, %v908, %v985
      %v1184 = vsel %vm536, %v910, %v987
      %v1185 = vsel %vm536, %v912, %v989
      %v1186 = vsel %vm536, %v914, %v991
      %v1187 = vsel %vm536, %v916, %v993
      %v1188 = vsel %vm549, %v1173, %v1011
      %v1189 = vsel %vm549, %v1174, %v1013
      %v1190 = vsel %vm549, %v1175, %v1015
      %v1191 = vsel %vm549, %v1176, %v1017
      %v1192 = vsel %vm549, %v1177, %v1019
      %v1193 = vsel %vm549, %v1178, %v1021
      %v1194 = vsel %vm549, %v1179, %v1023
      %v1195 = vsel %vm549, %v1180, %v1025
      %v1196 = vsel %vm549, %v1181, %v1027
      %v1197 = vsel %vm549, %v1182, %v1029
      %v1198 = vsel %vm549, %v1183, %v1031
      %v1199 = vsel %vm549, %v1184, %v1033
      %v1200 = vsel %vm549, %v1185, %v1035
      %v1201 = vsel %vm549, %v1186, %v1037
      %v1202 = vsel %vm549, %v1187, %v1039
      %v1203 = vsel %vm1157, %v1188, %v1062
      %v1204 = vsel %vm1157, %v1189, %v1064
      %v1205 = vsel %vm1157, %v1190, %v1066
      %v1206 = vsel %vm1157, %v1191, %v1068
      %v1207 = vsel %vm1157, %v1192, %v1070
      %v1208 = vsel %vm1157, %v1193, %v1072
      %v1209 = vsel %vm1157, %v1194, %v1074
      %v1210 = vsel %vm1157, %v1195, %v1076
      %v1211 = vsel %vm1157, %v1196, %v1078
      %v1212 = vsel %vm1157, %v1197, %v1080
      %v1213 = vsel %vm1157, %v1198, %v1082
      %v1214 = vsel %vm1157, %v1199, %v1084
      %v1215 = vsel %vm1157, %v1200, %v1086
      %v1216 = vsel %vm1157, %v1201, %v1088
      %v1217 = vsel %vm1157, %v1202, %v1090
      %v1218 = vpack.c.bf16 %v1159, %v1158
      %v1219 = vpack.c.bf16 %v1204, %v1203
      %v1220 = vpack.c.bf16 %v742, %v740
      %v1221 = vpack.c.bf16 %v1161, %v1160
      %v1222 = vpack.c.bf16 %v1206, %v1205
      %v1223 = vpack.c.bf16 %v746, %v744
      %v1224 = vpack.c.bf16 %v1163, %v1162
      %v1225 = vpack.c.bf16 %v1208, %v1207
      %v1226 = vpack.c.bf16 %v750, %v748
      %v1227 = vpack.c.bf16 %v1165, %v1164
      %v1228 = vpack.c.bf16 %v1210, %v1209
      %v1229 = vpack.c.bf16 %v754, %v752
      %v1230 = vpack.c.bf16 %v1167, %v1166
      %v1231 = vpack.c.bf16 %v1212, %v1211
      %v1232 = vpack.c.bf16 %v758, %v756
      %v1233 = vpack.c.bf16 %v1169, %v1168
      %v1234 = vpack.c.bf16 %v1214, %v1213
      %v1235 = vpack.c.bf16 %v1107, %v760
      %v1236 = vpack.c.bf16 %v1171, %v1170
      %v1237 = vpack.c.bf16 %v1216, %v1215
      %v1238 = vpack.c.bf16 %v1111, %v1109
      %v1239 = vpack.c.bf16 %v1172, %v1172
      %v1240 = vpack.c.bf16 %v1217, %v1217
      %v1241 = vpack.c.bf16 %v1110, %v1110
      %v1278 = vunpack.c.l.b16 %v605
      %v1279 = vunpack.c.l.b16 %v606
      %v1280 = vunpack.c.l.b16 %v607
      %v1281 = vunpack.c.l.b16 %v608
      %v1282 = vunpack.c.l.b16 %v609
      %v1283 = vunpack.c.l.b16 %v610
      %v1284 = vunpack.c.l.b16 %v611
      %v1285 = vunpack.c.l.b16 %v612
      %v1286 = vunpack.c.l.b16 %v613
      %v1287 = vunpack.c.l.b16 %v614
      %v1288 = vunpack.c.l.b16 %v615
      %v1289 = vunpack.c.l.b16 %v616
      %v1290 = vunpack.c.l.b16 %v617
      %v1291 = vunpack.c.l.b16 %v618
      %v1292 = vunpack.c.l.b16 %v619
      %v1293 = vunpack.c.l.b16 %v620
      %v1294 = vunpack.c.l.b16 %v621
      %v1295 = vunpack.c.l.b16 %v622
      %v1296 = vunpack.c.l.b16 %v623
      %v1297 = vunpack.c.l.b16 %v624
      %v1298 = vunpack.c.l.b16 %v625
      %v1299 = vunpack.c.l.b16 %v626
      %v1300 = vunpack.c.l.b16 %v627
      %v1301 = vunpack.c.l.b16 %v628
      %v1302 = vunpack.c.l.b16 %v629
      %v1303 = vunpack.c.l.b16 %v630
      %v1304 = vunpack.c.l.b16 %v631
      %v1305 = vunpack.c.l.b16 %v632
      %v1306 = vunpack.c.l.b16 %v633
      %v1307 = vunpack.c.l.b16 %v634
      %v1308 = vunpack.c.l.b16 %v635
      %v1309 = vunpack.c.l.b16 %v636
      %v1310 = vunpack.c.l.b16 %v637
      %v1311 = vunpack.c.l.b16 %v638
      %v1312 = vunpack.c.l.b16 %v639
      %v1313 = vunpack.c.l.b16 %v640
      %v1314 = vpack.c.b16 %v1279, %v1278
      %v1315 = vpack.c.b16 %v1281, %v1280
      %v1316 = vpack.c.b16 %v1283, %v1282
      %v1317 = vpack.c.b16 %v1285, %v1284
      %v1318 = vpack.c.b16 %v1287, %v1286
      %v1319 = vpack.c.b16 %v1289, %v1288
      %v1320 = vpack.c.b16 %v1291, %v1290
      %v1321 = vpack.c.b16 %v1293, %v1292
      %v1322 = vpack.c.b16 %v1295, %v1294
      %v1323 = vpack.c.b16 %v1297, %v1296
      %v1324 = vpack.c.b16 %v1299, %v1298
      %v1325 = vpack.c.b16 %v1301, %v1300
      %v1326 = vpack.c.b16 %v1303, %v1302
      %v1327 = vpack.c.b16 %v1305, %v1304
      %v1328 = vpack.c.b16 %v1307, %v1306
      %v1329 = vpack.c.b16 %v1309, %v1308
      %v1330 = vpack.c.b16 %v1311, %v1310
      %v1331 = vpack.c.b16 %v1313, %v1312
      %v1351 = vsel %vm536, %v1220, 0
      %v1354 = vsel %vm536, %v1223, 0
      %v1357 = vsel %vm536, %v1226, 0
      %v1360 = vsel %vm536, %v1229, 0
      %v1363 = vsel %vm536, %v1232, 0
      %v1366 = vsel %vm536, %v1235, 0
      %v1369 = vsel %vm536, %v1238, 0
      %v1372 = vsel %vm536, %v1241, 0
      %1374 = vmatpush.bf16.msra.mxu0 %v1321
      %1375 = vmatpush.bf16.msra.mxu0 %v1320
      %1376 = vmatpush.bf16.msra.mxu0 %v1319
      %1377 = vmatpush.bf16.msra.mxu0 %v1318
      %1378 = vmatpush.bf16.msra.mxu0 %v1317
      %1379 = vmatpush.bf16.msra.mxu0 %v1316
      %1380 = vmatpush.bf16.msra.mxu0 %v1315
      %1381 = vmatpush.bf16.msra.mxu0 %v1314
      %1382 = vmatmul.bf16.gmra.mxu0 %v1218
      %v1383 = vpop.f32.mrf.mxu0
      %v1384 = vadd.f32 0.0, %v1383
      %v1385 = vpop.f32.mrf.mxu0
      %v1386 = vadd.f32 0.0, %v1385
      %1387 = vmatmul.bf16.gmra.mxu0 %v1221
      %v1388 = vpop.f32.mrf.mxu0
      %v1389 = vadd.f32 0.0, %v1388
      %v1390 = vpop.f32.mrf.mxu0
      %v1391 = vadd.f32 0.0, %v1390
      %1392 = vmatmul.bf16.gmra.mxu0 %v1224
      %v1393 = vpop.f32.mrf.mxu0
      %v1394 = vadd.f32 0.0, %v1393
      %v1395 = vpop.f32.mrf.mxu0
      %v1396 = vadd.f32 0.0, %v1395
      %1397 = vmatmul.bf16.gmra.mxu0 %v1227
      %v1398 = vpop.f32.mrf.mxu0
      %v1399 = vadd.f32 0.0, %v1398
      %v1400 = vpop.f32.mrf.mxu0
      %v1401 = vadd.f32 0.0, %v1400
      %1402 = vmatmul.bf16.gmra.mxu0 %v1230
      %v1403 = vpop.f32.mrf.mxu0
      %v1404 = vadd.f32 0.0, %v1403
      %v1405 = vpop.f32.mrf.mxu0
      %v1406 = vadd.f32 0.0, %v1405
      %1407 = vmatmul.bf16.gmra.mxu0 %v1233
      %v1408 = vpop.f32.mrf.mxu0
      %v1409 = vadd.f32 0.0, %v1408
      %v1410 = vpop.f32.mrf.mxu0
      %v1411 = vadd.f32 0.0, %v1410
      %1412 = vmatmul.bf16.gmra.mxu0 %v1236
      %v1413 = vpop.f32.mrf.mxu0
      %v1414 = vadd.f32 0.0, %v1413
      %v1415 = vpop.f32.mrf.mxu0
      %v1416 = vadd.f32 0.0, %v1415
      %1417 = vmatmul.bf16.gmra.mxu0 %v1239
      %v1418 = vpop.f32.mrf.mxu0
      %v1419 = vadd.f32 0.0, %v1418
      %v1420 = vpop.f32.mrf.mxu0
      %1421 = vdwg.mxu0
      %1422 = vmatpush.bf16.msra.mxu0 %v1329
      %1423 = vmatpush.bf16.msra.mxu0 %v1328
      %1424 = vmatpush.bf16.msra.mxu0 %v1327
      %1425 = vmatpush.bf16.msra.mxu0 %v1326
      %1426 = vmatpush.bf16.msra.mxu0 %v1325
      %1427 = vmatpush.bf16.msra.mxu0 %v1324
      %1428 = vmatpush.bf16.msra.mxu0 %v1323
      %1429 = vmatpush.bf16.msra.mxu0 %v1322
      %1430 = vmatmul.bf16.gmra.mxu0 %v1219
      %v1431 = vpop.f32.mrf.mxu0
      %v1432 = vadd.f32 %v1384, %v1431
      %v1433 = vpop.f32.mrf.mxu0
      %v1434 = vadd.f32 %v1386, %v1433
      %1435 = vmatmul.bf16.gmra.mxu0 %v1222
      %v1436 = vpop.f32.mrf.mxu0
      %v1437 = vadd.f32 %v1389, %v1436
      %v1438 = vpop.f32.mrf.mxu0
      %v1439 = vadd.f32 %v1391, %v1438
      %1440 = vmatmul.bf16.gmra.mxu0 %v1225
      %v1441 = vpop.f32.mrf.mxu0
      %v1442 = vadd.f32 %v1394, %v1441
      %v1443 = vpop.f32.mrf.mxu0
      %v1444 = vadd.f32 %v1396, %v1443
      %1445 = vmatmul.bf16.gmra.mxu0 %v1228
      %v1446 = vpop.f32.mrf.mxu0
      %v1447 = vadd.f32 %v1399, %v1446
      %v1448 = vpop.f32.mrf.mxu0
      %v1449 = vadd.f32 %v1401, %v1448
      %1450 = vmatmul.bf16.gmra.mxu0 %v1231
      %v1451 = vpop.f32.mrf.mxu0
      %v1452 = vadd.f32 %v1404, %v1451
      %v1453 = vpop.f32.mrf.mxu0
      %v1454 = vadd.f32 %v1406, %v1453
      %1455 = vmatmul.bf16.gmra.mxu0 %v1234
      %v1456 = vpop.f32.mrf.mxu0
      %v1457 = vadd.f32 %v1409, %v1456
      %v1458 = vpop.f32.mrf.mxu0
      %v1459 = vadd.f32 %v1411, %v1458
      %1460 = vmatmul.bf16.gmra.mxu0 %v1237
      %v1461 = vpop.f32.mrf.mxu0
      %v1462 = vadd.f32 %v1414, %v1461
      %v1463 = vpop.f32.mrf.mxu0
      %v1464 = vadd.f32 %v1416, %v1463
      %1465 = vmatmul.bf16.gmra.mxu0 %v1240
      %v1466 = vpop.f32.mrf.mxu0
      %v1467 = vadd.f32 %v1419, %v1466
      %v1468 = vpop.f32.mrf.mxu0
      %1469 = vdwg.mxu0
      %1470 = vmatpush.bf16.msra.mxu0 0
      %1471 = vmatpush.bf16.msra.mxu0 0
      %1472 = vmatpush.bf16.msra.mxu0 0
      %1473 = vmatpush.bf16.msra.mxu0 0
      %1474 = vmatpush.bf16.msra.mxu0 0
      %1475 = vmatpush.bf16.msra.mxu0 0
      %1476 = vmatpush.bf16.msra.mxu0 %v1331
      %1477 = vmatpush.bf16.msra.mxu0 %v1330
      %1478 = vmatmul.bf16.gmra.mxu0 %v1351
      %v1479 = vpop.f32.mrf.mxu0
      %v1480 = vadd.f32 %v1432, %v1479
      %v1481 = vpop.f32.mrf.mxu0
      %v1482 = vadd.f32 %v1434, %v1481
      %1483 = vmatmul.bf16.gmra.mxu0 %v1354
      %v1484 = vpop.f32.mrf.mxu0
      %v1485 = vadd.f32 %v1437, %v1484
      %v1486 = vpop.f32.mrf.mxu0
      %v1487 = vadd.f32 %v1439, %v1486
      %1488 = vmatmul.bf16.gmra.mxu0 %v1357
      %v1489 = vpop.f32.mrf.mxu0
      %v1490 = vadd.f32 %v1442, %v1489
      %v1491 = vpop.f32.mrf.mxu0
      %v1492 = vadd.f32 %v1444, %v1491
      %1493 = vmatmul.bf16.gmra.mxu0 %v1360
      %v1494 = vpop.f32.mrf.mxu0
      %v1495 = vadd.f32 %v1447, %v1494
      %v1496 = vpop.f32.mrf.mxu0
      %v1497 = vadd.f32 %v1449, %v1496
      %1498 = vmatmul.bf16.gmra.mxu0 %v1363
      %v1499 = vpop.f32.mrf.mxu0
      %v1500 = vadd.f32 %v1452, %v1499
      %v1501 = vpop.f32.mrf.mxu0
      %v1502 = vadd.f32 %v1454, %v1501
      %1503 = vmatmul.bf16.gmra.mxu0 %v1366
      %v1504 = vpop.f32.mrf.mxu0
      %v1505 = vadd.f32 %v1457, %v1504
      %v1506 = vpop.f32.mrf.mxu0
      %v1507 = vadd.f32 %v1459, %v1506
      %1508 = vmatmul.bf16.gmra.mxu0 %v1369
      %v1509 = vpop.f32.mrf.mxu0
      %v1510 = vadd.f32 %v1462, %v1509
      %v1511 = vpop.f32.mrf.mxu0
      %v1512 = vadd.f32 %v1464, %v1511
      %1513 = vmatmul.bf16.gmra.mxu0 %v1372
      %v1514 = vpop.f32.mrf.mxu0
      %v1515 = vadd.f32 %v1467, %v1514
      %v1516 = vpop.f32.mrf.mxu0
      %1517 = vdwg.mxu0
      %v1518 = vperm.slane %v584, 0
      %v1519 = vmul.f32 %v1480, %v1518
      %v1520 = vmul.f32 %v1482, %v1518
      %v1521 = vmul.f32 %v1485, %v1518
      %v1522 = vmul.f32 %v1487, %v1518
      %v1523 = vmul.f32 %v1490, %v1518
      %v1524 = vmul.f32 %v1492, %v1518
      %v1525 = vmul.f32 %v1495, %v1518
      %v1526 = vmul.f32 %v1497, %v1518
      %v1527 = vmul.f32 %v1500, %v1518
      %v1528 = vmul.f32 %v1502, %v1518
      %v1529 = vmul.f32 %v1505, %v1518
      %v1530 = vmul.f32 %v1507, %v1518
      %v1531 = vmul.f32 %v1510, %v1518
      %v1532 = vmul.f32 %v1512, %v1518
      %v1533 = vmul.f32 %v1515, %v1518
      %v1534 = vperm.slane %v584, 1
      %v1535 = vadd.f32 %v1519, %v1534
      %v1536 = vadd.f32 %v1520, %v1534
      %v1537 = vadd.f32 %v1521, %v1534
      %v1538 = vadd.f32 %v1522, %v1534
      %v1539 = vadd.f32 %v1523, %v1534
      %v1540 = vadd.f32 %v1524, %v1534
      %v1541 = vadd.f32 %v1525, %v1534
      %v1542 = vadd.f32 %v1526, %v1534
      %v1543 = vadd.f32 %v1527, %v1534
      %v1544 = vadd.f32 %v1528, %v1534
      %v1545 = vadd.f32 %v1529, %v1534
      %v1546 = vadd.f32 %v1530, %v1534
      %v1547 = vadd.f32 %v1531, %v1534
      %v1548 = vadd.f32 %v1532, %v1534
      %v1549 = vadd.f32 %v1533, %v1534
      %v1550 = vmax.f32 %v1535, 0.0
      %v1551 = vmax.f32 %v1536, 0.0
      %v1552 = vmax.f32 %v1537, 0.0
      %v1553 = vmax.f32 %v1538, 0.0
      %v1554 = vmax.f32 %v1539, 0.0
      %v1555 = vmax.f32 %v1540, 0.0
      %v1556 = vmax.f32 %v1541, 0.0
      %v1557 = vmax.f32 %v1542, 0.0
      %v1558 = vmax.f32 %v1543, 0.0
      %v1559 = vmax.f32 %v1544, 0.0
      %v1560 = vmax.f32 %v1545, 0.0
      %v1561 = vmax.f32 %v1546, 0.0
      %v1562 = vmax.f32 %v1547, 0.0
      %v1563 = vmax.f32 %v1548, 0.0
      %v1564 = vmax.f32 %v1549, 0.0
      %v1565 = vld [vmem:[%s524] sm:$0xff]
      %v1566 = vld [vmem:[%s524 + $0x8] sm:$0xff]
      %v1567 = vld [vmem:[%s524 + $0x10] sm:$0xff]
      %v1568 = vld [vmem:[%s524 + $0x18] sm:$0xff]
      %v1569 = vld [vmem:[%s524 + $0x20] sm:$0xf]
      %s1570 = scalar_lea.vmem %s3, 144
      %v1571 = vld [vmem:[%s1570] sm:$0xf]
      %v1572 = vld [vmem:[%s1570 + $0x4] sm:$0xf]
      %v1573 = vld [vmem:[%s1570 + $0x8] sm:$0xf]
      %v1574 = vld [vmem:[%s1570 + $0xc] sm:$0xf]
      %v1575 = vld [vmem:[%s1570 + $0x10] sm:$0xf]
      %v1576 = vld [vmem:[%s1570 + $0x14] sm:$0xf]
      %v1577 = vld [vmem:[%s1570 + $0x18] sm:$0xf]
      %v1578 = vld [vmem:[%s1570 + $0x1c] sm:$0xf]
      %v1579 = vld [vmem:[%s1570 + $0x20] sm:$0xf]
      %v1580 = vld [vmem:[%s1570 + $0x24] sm:$0xf]
      %v1581 = vld [vmem:[%s1570 + $0x28] sm:$0xf]
      %v1582 = vld [vmem:[%s1570 + $0x2c] sm:$0xf]
      %v1583 = vld [vmem:[%s1570 + $0x30] sm:$0xf]
      %v1584 = vld [vmem:[%s1570 + $0x34] sm:$0xf]
      %v1585 = vld [vmem:[%s1570 + $0x38] sm:$0xf]
      %v1586 = vld [vmem:[%s1570 + $0x3c] sm:$0xf]
      %v1587 = vld [vmem:[%s1570 + $0x40] sm:$0xf]
      %v1588 = vld [vmem:[%s1570 + $0x44] sm:$0xf]
      %v1589 = vld [vmem:[%s1570 + $0x48] sm:$0xf]
      %v1590 = vld [vmem:[%s1570 + $0x4c] sm:$0xf]
      %v1591 = vld [vmem:[%s1570 + $0x50] sm:$0xf]
      %v1592 = vld [vmem:[%s1570 + $0x54] sm:$0xf]
      %v1593 = vld [vmem:[%s1570 + $0x58] sm:$0xf]
      %v1594 = vld [vmem:[%s1570 + $0x5c] sm:$0xf]
      %v1595 = vld [vmem:[%s1570 + $0x60] sm:$0xf]
      %v1596 = vld [vmem:[%s1570 + $0x64] sm:$0xf]
      %v1597 = vld [vmem:[%s1570 + $0x68] sm:$0xf]
      %v1598 = vld [vmem:[%s1570 + $0x6c] sm:$0xf]
      %v1599 = vld [vmem:[%s1570 + $0x70] sm:$0xf]
      %v1600 = vld [vmem:[%s1570 + $0x74] sm:$0xf]
      %v1601 = vld [vmem:[%s1570 + $0x78] sm:$0xf]
      %v1602 = vld [vmem:[%s1570 + $0x7c] sm:$0xf]
      %v1603 = vld [vmem:[%s1570 + $0x80] sm:$0xf]
      %v1604 = vld [vmem:[%s1570 + $0x84] sm:$0xf]
      %v1605 = vld [vmem:[%s1570 + $0x88] sm:$0xf]
      %v1606 = vld [vmem:[%s1570 + $0x8c] sm:$0xf]
      %v1610 = vrot.slane %v1565, 1
      %v1611 = vrot.slane %v1566, 1
      %v1612 = vsel %vm656, %v1610, %v1611
      %v1613 = vrot.slane %v1567, 1
      %v1614 = vsel %vm656, %v1611, %v1613
      %1615 = vrot.lane.b32.xlu0 %v1612, 32
      %v1616 = vpop.permute.xlu0 %1615
      %1617 = vrot.lane.b32.xlu0 %v1614, 32
      %v1618 = vpop.permute.xlu0 %1617
      %1619 = vrot.lane.b32.xlu0 %v1613, 32
      %v1620 = vpop.permute.xlu0 %1619
      %v1624 = vrot.slane %v1565, 2
      %v1625 = vrot.slane %v1566, 2
      %v1626 = vsel %vm731, %v1624, %v1625
      %v1627 = vrot.slane %v1567, 2
      %v1628 = vsel %vm731, %v1625, %v1627
      %1629 = vrot.lane.b32.xlu0 %v1626, 64
      %v1630 = vpop.permute.xlu0 %1629
      %1631 = vrot.lane.b32.xlu0 %v1628, 64
      %v1632 = vpop.permute.xlu0 %1631
      %1633 = vrot.lane.b32.xlu0 %v1627, 64
      %v1634 = vpop.permute.xlu0 %1633
      %v1639 = vrot.slane %v1565, 6
      %v1640 = vrot.slane %v1566, 6
      %v1641 = vsel %vm932, %v1639, %v1640
      %v1642 = vrot.slane %v1567, 6
      %v1643 = vsel %vm932, %v1640, %v1642
      %v1644 = vrot.slane %v1568, 6
      %v1645 = vsel %vm932, %v1642, %v1644
      %1646 = vrot.lane.b32.xlu0 %v1641, 96
      %v1647 = vpop.permute.xlu0 %1646
      %1648 = vrot.lane.b32.xlu0 %v1643, 96
      %v1649 = vpop.permute.xlu0 %1648
      %1650 = vrot.lane.b32.xlu0 %v1645, 96
      %v1651 = vpop.permute.xlu0 %1650
      %vm1655 = vcmask 1040384
      %v1656 = vrot.slane %v1565, 7
      %v1657 = vrot.slane %v1566, 7
      %v1658 = vsel %vm1655, %v1656, %v1657
      %v1659 = vrot.slane %v1567, 7
      %v1660 = vsel %vm1655, %v1657, %v1659
      %v1661 = vrot.slane %v1568, 7
      %v1662 = vsel %vm1655, %v1659, %v1661
      %1666 = vrot.lane.b32.xlu0 %v1566, 32
      %v1667 = vpop.permute.xlu0 %1666
      %1668 = vrot.lane.b32.xlu0 %v1567, 32
      %v1669 = vpop.permute.xlu0 %1668
      %1670 = vrot.lane.b32.xlu0 %v1568, 32
      %v1671 = vpop.permute.xlu0 %1670
      %v1676 = vrot.slane %v1566, 4
      %v1677 = vrot.slane %v1567, 4
      %v1678 = vsel %vm808, %v1676, %v1677
      %v1679 = vrot.slane %v1568, 4
      %v1680 = vsel %vm808, %v1677, %v1679
      %v1681 = vrot.slane %v1569, 4
      %v1682 = vsel %vm808, %v1679, %v1681
      %1683 = vrot.lane.b32.xlu0 %v1678, 64
      %v1684 = vpop.permute.xlu0 %1683
      %1685 = vrot.lane.b32.xlu0 %v1680, 64
      %v1686 = vpop.permute.xlu0 %1685
      %1687 = vrot.lane.b32.xlu0 %v1682, 64
      %v1688 = vpop.permute.xlu0 %1687
      %v1692 = vrot.slane %v1566, 5
      %v1693 = vrot.slane %v1567, 5
      %v1694 = vsel %vm885, %v1692, %v1693
      %v1695 = vrot.slane %v1568, 5
      %v1696 = vsel %vm885, %v1693, %v1695
      %v1697 = vrot.slane %v1569, 5
      %v1698 = vsel %vm885, %v1695, %v1697
      %1699 = vrot.lane.b32.xlu0 %v1694, 96
      %v1700 = vpop.permute.xlu0 %1699
      %1701 = vrot.lane.b32.xlu0 %v1696, 96
      %v1702 = vpop.permute.xlu0 %1701
      %1703 = vrot.lane.b32.xlu0 %v1698, 96
      %v1704 = vpop.permute.xlu0 %1703
      %v1708 = vrot.slane %v1569, 6
      %v1709 = vsel %vm932, %v1644, %v1708
      %v1713 = vsel %vm536, %v1565, %v1616
      %v1714 = vsel %vm536, %v1566, %v1618
      %v1715 = vsel %vm536, %v1567, %v1620
      %v1716 = vsel %vm549, %v1713, %v1630
      %v1717 = vsel %vm549, %v1714, %v1632
      %v1718 = vsel %vm549, %v1715, %v1634
      %v1719 = vsel %vm1157, %v1716, %v1647
      %v1720 = vsel %vm1157, %v1717, %v1649
      %v1721 = vsel %vm1157, %v1718, %v1651
      %v1722 = vsel %vm536, %v1658, %v1667
      %v1723 = vsel %vm536, %v1660, %v1669
      %v1724 = vsel %vm536, %v1662, %v1671
      %v1725 = vsel %vm549, %v1722, %v1684
      %v1726 = vsel %vm549, %v1723, %v1686
      %v1727 = vsel %vm549, %v1724, %v1688
      %v1728 = vsel %vm1157, %v1725, %v1700
      %v1729 = vsel %vm1157, %v1726, %v1702
      %v1730 = vsel %vm1157, %v1727, %v1704
      %v1731 = vpack.c.bf16 %v1720, %v1719
      %v1732 = vpack.c.bf16 %v1729, %v1728
      %v1733 = vpack.c.bf16 %v1645, %v1643
      %v1734 = vpack.c.bf16 %v1721, %v1721
      %v1735 = vpack.c.bf16 %v1730, %v1730
      %v1736 = vpack.c.bf16 %v1709, %v1709
      %v1773 = vunpack.c.l.b16 %v1571
      %v1774 = vunpack.c.l.b16 %v1572
      %v1775 = vunpack.c.l.b16 %v1573
      %v1776 = vunpack.c.l.b16 %v1574
      %v1777 = vunpack.c.l.b16 %v1575
      %v1778 = vunpack.c.l.b16 %v1576
      %v1779 = vunpack.c.l.b16 %v1577
      %v1780 = vunpack.c.l.b16 %v1578
      %v1781 = vunpack.c.l.b16 %v1579
      %v1782 = vunpack.c.l.b16 %v1580
      %v1783 = vunpack.c.l.b16 %v1581
      %v1784 = vunpack.c.l.b16 %v1582
      %v1785 = vunpack.c.l.b16 %v1583
      %v1786 = vunpack.c.l.b16 %v1584
      %v1787 = vunpack.c.l.b16 %v1585
      %v1788 = vunpack.c.l.b16 %v1586
      %v1789 = vunpack.c.l.b16 %v1587
      %v1790 = vunpack.c.l.b16 %v1588
      %v1791 = vunpack.c.l.b16 %v1589
      %v1792 = vunpack.c.l.b16 %v1590
      %v1793 = vunpack.c.l.b16 %v1591
      %v1794 = vunpack.c.l.b16 %v1592
      %v1795 = vunpack.c.l.b16 %v1593
      %v1796 = vunpack.c.l.b16 %v1594
      %v1797 = vunpack.c.l.b16 %v1595
      %v1798 = vunpack.c.l.b16 %v1596
      %v1799 = vunpack.c.l.b16 %v1597
      %v1800 = vunpack.c.l.b16 %v1598
      %v1801 = vunpack.c.l.b16 %v1599
      %v1802 = vunpack.c.l.b16 %v1600
      %v1803 = vunpack.c.l.b16 %v1601
      %v1804 = vunpack.c.l.b16 %v1602
      %v1805 = vunpack.c.l.b16 %v1603
      %v1806 = vunpack.c.l.b16 %v1604
      %v1807 = vunpack.c.l.b16 %v1605
      %v1808 = vunpack.c.l.b16 %v1606
      %v1809 = vpack.c.b16 %v1774, %v1773
      %v1810 = vpack.c.b16 %v1776, %v1775
      %v1811 = vpack.c.b16 %v1778, %v1777
      %v1812 = vpack.c.b16 %v1780, %v1779
      %v1813 = vpack.c.b16 %v1782, %v1781
      %v1814 = vpack.c.b16 %v1784, %v1783
      %v1815 = vpack.c.b16 %v1786, %v1785
      %v1816 = vpack.c.b16 %v1788, %v1787
      %v1817 = vpack.c.b16 %v1790, %v1789
      %v1818 = vpack.c.b16 %v1792, %v1791
      %v1819 = vpack.c.b16 %v1794, %v1793
      %v1820 = vpack.c.b16 %v1796, %v1795
      %v1821 = vpack.c.b16 %v1798, %v1797
      %v1822 = vpack.c.b16 %v1800, %v1799
      %v1823 = vpack.c.b16 %v1802, %v1801
      %v1824 = vpack.c.b16 %v1804, %v1803
      %v1825 = vpack.c.b16 %v1806, %v1805
      %v1826 = vpack.c.b16 %v1808, %v1807
      %v1846 = vsel %vm536, %v1733, 0
      %v1849 = vsel %vm536, %v1736, 0
      %1851 = vmatpush.bf16.msra.mxu0 %v1816
      %1852 = vmatpush.bf16.msra.mxu0 %v1815
      %1853 = vmatpush.bf16.msra.mxu0 %v1814
      %1854 = vmatpush.bf16.msra.mxu0 %v1813
      %1855 = vmatpush.bf16.msra.mxu0 %v1812
      %1856 = vmatpush.bf16.msra.mxu0 %v1811
      %1857 = vmatpush.bf16.msra.mxu0 %v1810
      %1858 = vmatpush.bf16.msra.mxu0 %v1809
      %1859 = vmatmul.bf16.gmra.mxu0 %v1731
      %v1860 = vpop.f32.mrf.mxu0
      %v1861 = vadd.f32 0.0, %v1860
      %v1862 = vpop.f32.mrf.mxu0
      %v1863 = vadd.f32 0.0, %v1862
      %1864 = vmatmul.bf16.gmra.mxu0 %v1734
      %v1865 = vpop.f32.mrf.mxu0
      %v1866 = vadd.f32 0.0, %v1865
      %v1867 = vpop.f32.mrf.mxu0
      %1868 = vdwg.mxu0
      %1869 = vmatpush.bf16.msra.mxu0 %v1824
      %1870 = vmatpush.bf16.msra.mxu0 %v1823
      %1871 = vmatpush.bf16.msra.mxu0 %v1822
      %1872 = vmatpush.bf16.msra.mxu0 %v1821
      %1873 = vmatpush.bf16.msra.mxu0 %v1820
      %1874 = vmatpush.bf16.msra.mxu0 %v1819
      %1875 = vmatpush.bf16.msra.mxu0 %v1818
      %1876 = vmatpush.bf16.msra.mxu0 %v1817
      %1877 = vmatmul.bf16.gmra.mxu0 %v1732
      %v1878 = vpop.f32.mrf.mxu0
      %v1879 = vadd.f32 %v1861, %v1878
      %v1880 = vpop.f32.mrf.mxu0
      %v1881 = vadd.f32 %v1863, %v1880
      %1882 = vmatmul.bf16.gmra.mxu0 %v1735
      %v1883 = vpop.f32.mrf.mxu0
      %v1884 = vadd.f32 %v1866, %v1883
      %v1885 = vpop.f32.mrf.mxu0
      %1886 = vdwg.mxu0
      %1887 = vmatpush.bf16.msra.mxu0 0
      %1888 = vmatpush.bf16.msra.mxu0 0
      %1889 = vmatpush.bf16.msra.mxu0 0
      %1890 = vmatpush.bf16.msra.mxu0 0
      %1891 = vmatpush.bf16.msra.mxu0 0
      %1892 = vmatpush.bf16.msra.mxu0 0
      %1893 = vmatpush.bf16.msra.mxu0 %v1826
      %1894 = vmatpush.bf16.msra.mxu0 %v1825
      %1895 = vmatmul.bf16.gmra.mxu0 %v1846
      %v1896 = vpop.f32.mrf.mxu0
      %v1897 = vadd.f32 %v1879, %v1896
      %v1898 = vpop.f32.mrf.mxu0
      %v1899 = vadd.f32 %v1881, %v1898
      %1900 = vmatmul.bf16.gmra.mxu0 %v1849
      %v1901 = vpop.f32.mrf.mxu0
      %v1902 = vadd.f32 %v1884, %v1901
      %v1903 = vpop.f32.mrf.mxu0
      %1904 = vdwg.mxu0
      %v1905 = vperm.slane %v584, 2
      %v1906 = vmul.f32 %v1897, %v1905
      %v1907 = vmul.f32 %v1899, %v1905
      %v1908 = vmul.f32 %v1902, %v1905
      %v1909 = vperm.slane %v584, 3
      %v1910 = vadd.f32 %v1906, %v1909
      %v1911 = vadd.f32 %v1907, %v1909
      %v1912 = vadd.f32 %v1908, %v1909
      %v1913 = vmax.f32 %v1910, 0.0
      %v1914 = vmax.f32 %v1911, 0.0
      %v1915 = vmax.f32 %v1912, 0.0
      %v1916 = vperm.slane %v1913, 0
      %v1917 = vmul.f32 %v1550, %v1916
      %v1918 = vmul.f32 %v1551, %v1916
      %v1919 = vmul.f32 %v1552, %v1916
      %v1920 = vmul.f32 %v1553, %v1916
      %v1921 = vmul.f32 %v1554, %v1916
      %v1922 = vmul.f32 %v1555, %v1916
      %v1923 = vmul.f32 %v1556, %v1916
      %v1924 = vmul.f32 %v1557, %v1916
      %v1925 = vmul.f32 %v1558, %v1916
      %v1926 = vmul.f32 %v1559, %v1916
      %v1927 = vadd.f32 %v1917, 0.0
      %v1928 = vadd.f32 %v1918, 0.0
      %v1929 = vadd.f32 %v1919, 0.0
      %v1930 = vadd.f32 %v1920, 0.0
      %v1931 = vadd.f32 %v1921, 0.0
      %v1932 = vadd.f32 %v1922, 0.0
      %v1933 = vadd.f32 %v1923, 0.0
      %v1934 = vadd.f32 %v1924, 0.0
      %v1935 = vadd.f32 %v1925, 0.0
      %v1936 = vadd.f32 %v1926, 0.0
      %v1937 = vperm.slane %v1913, 1
      %v1938 = vmul.f32 %v1550, %v1937
      %v1939 = vmul.f32 %v1551, %v1937
      %v1940 = vmul.f32 %v1552, %v1937
      %v1941 = vmul.f32 %v1553, %v1937
      %v1942 = vmul.f32 %v1554, %v1937
      %v1943 = vmul.f32 %v1555, %v1937
      %v1944 = vmul.f32 %v1556, %v1937
      %v1945 = vmul.f32 %v1557, %v1937
      %v1946 = vmul.f32 %v1558, %v1937
      %v1947 = vmul.f32 %v1559, %v1937
      %v1958 = vrot.slane %v1938, 1
      %v1959 = vrot.slane %v1939, 1
      %v1960 = vsel %vm656, %v1958, %v1959
      %v1961 = vrot.slane %v1940, 1
      %v1962 = vsel %vm656, %v1959, %v1961
      %v1963 = vrot.slane %v1941, 1
      %v1964 = vsel %vm656, %v1961, %v1963
      %v1965 = vrot.slane %v1942, 1
      %v1966 = vsel %vm656, %v1963, %v1965
      %v1967 = vrot.slane %v1943, 1
      %v1968 = vsel %vm656, %v1965, %v1967
      %v1969 = vrot.slane %v1944, 1
      %v1970 = vsel %vm656, %v1967, %v1969
      %v1971 = vrot.slane %v1945, 1
      %v1972 = vsel %vm656, %v1969, %v1971
      %v1973 = vrot.slane %v1946, 1
      %v1974 = vsel %vm656, %v1971, %v1973
      %v1975 = vrot.slane %v1947, 1
      %v1976 = vsel %vm656, %v1973, %v1975
      %v1987 = vadd.f32 %v1927, %v1960
      %v1988 = vadd.f32 %v1928, %v1962
      %v1989 = vadd.f32 %v1929, %v1964
      %v1990 = vadd.f32 %v1930, %v1966
      %v1991 = vadd.f32 %v1931, %v1968
      %v1992 = vadd.f32 %v1932, %v1970
      %v1993 = vadd.f32 %v1933, %v1972
      %v1994 = vadd.f32 %v1934, %v1974
      %v1995 = vadd.f32 %v1935, %v1976
      %v1996 = vadd.f32 %v1936, %v1975
      %v1997 = vperm.slane %v1913, 2
      %v1998 = vmul.f32 %v1550, %v1997
      %v1999 = vmul.f32 %v1551, %v1997
      %v2000 = vmul.f32 %v1552, %v1997
      %v2001 = vmul.f32 %v1553, %v1997
      %v2002 = vmul.f32 %v1554, %v1997
      %v2003 = vmul.f32 %v1555, %v1997
      %v2004 = vmul.f32 %v1556, %v1997
      %v2005 = vmul.f32 %v1557, %v1997
      %v2006 = vmul.f32 %v1558, %v1997
      %v2007 = vmul.f32 %v1559, %v1997
      %v2008 = vmul.f32 %v1560, %v1997
      %v2020 = vrot.slane %v1998, 2
      %v2021 = vrot.slane %v1999, 2
      %v2022 = vsel %vm731, %v2020, %v2021
      %v2023 = vrot.slane %v2000, 2
      %v2024 = vsel %vm731, %v2021, %v2023
      %v2025 = vrot.slane %v2001, 2
      %v2026 = vsel %vm731, %v2023, %v2025
      %v2027 = vrot.slane %v2002, 2
      %v2028 = vsel %vm731, %v2025, %v2027
      %v2029 = vrot.slane %v2003, 2
      %v2030 = vsel %vm731, %v2027, %v2029
      %v2031 = vrot.slane %v2004, 2
      %v2032 = vsel %vm731, %v2029, %v2031
      %v2033 = vrot.slane %v2005, 2
      %v2034 = vsel %vm731, %v2031, %v2033
      %v2035 = vrot.slane %v2006, 2
      %v2036 = vsel %vm731, %v2033, %v2035
      %v2037 = vrot.slane %v2007, 2
      %v2038 = vsel %vm731, %v2035, %v2037
      %v2039 = vrot.slane %v2008, 2
      %v2040 = vsel %vm731, %v2037, %v2039
      %v2051 = vadd.f32 %v1987, %v2022
      %v2052 = vadd.f32 %v1988, %v2024
      %v2053 = vadd.f32 %v1989, %v2026
      %v2054 = vadd.f32 %v1990, %v2028
      %v2055 = vadd.f32 %v1991, %v2030
      %v2056 = vadd.f32 %v1992, %v2032
      %v2057 = vadd.f32 %v1993, %v2034
      %v2058 = vadd.f32 %v1994, %v2036
      %v2059 = vadd.f32 %v1995, %v2038
      %v2060 = vadd.f32 %v1996, %v2040
      %v2061 = vperm.slane %v1913, 3
      %v2062 = vmul.f32 %v1550, %v2061
      %v2063 = vmul.f32 %v1551, %v2061
      %v2064 = vmul.f32 %v1552, %v2061
      %v2065 = vmul.f32 %v1553, %v2061
      %v2066 = vmul.f32 %v1554, %v2061
      %v2067 = vmul.f32 %v1555, %v2061
      %v2068 = vmul.f32 %v1556, %v2061
      %v2069 = vmul.f32 %v1557, %v2061
      %v2070 = vmul.f32 %v1558, %v2061
      %v2071 = vmul.f32 %v1559, %v2061
      %v2072 = vmul.f32 %v1560, %v2061
      %vm2084 = vcmask 1044480
      %v2085 = vrot.slane %v2062, 3
      %v2086 = vrot.slane %v2063, 3
      %v2087 = vsel %vm2084, %v2085, %v2086
      %v2088 = vrot.slane %v2064, 3
      %v2089 = vsel %vm2084, %v2086, %v2088
      %v2090 = vrot.slane %v2065, 3
      %v2091 = vsel %vm2084, %v2088, %v2090
      %v2092 = vrot.slane %v2066, 3
      %v2093 = vsel %vm2084, %v2090, %v2092
      %v2094 = vrot.slane %v2067, 3
      %v2095 = vsel %vm2084, %v2092, %v2094
      %v2096 = vrot.slane %v2068, 3
      %v2097 = vsel %vm2084, %v2094, %v2096
      %v2098 = vrot.slane %v2069, 3
      %v2099 = vsel %vm2084, %v2096, %v2098
      %v2100 = vrot.slane %v2070, 3
      %v2101 = vsel %vm2084, %v2098, %v2100
      %v2102 = vrot.slane %v2071, 3
      %v2103 = vsel %vm2084, %v2100, %v2102
      %v2104 = vrot.slane %v2072, 3
      %v2105 = vsel %vm2084, %v2102, %v2104
      %v2116 = vadd.f32 %v2051, %v2087
      %v2117 = vadd.f32 %v2052, %v2089
      %v2118 = vadd.f32 %v2053, %v2091
      %v2119 = vadd.f32 %v2054, %v2093
      %v2120 = vadd.f32 %v2055, %v2095
      %v2121 = vadd.f32 %v2056, %v2097
      %v2122 = vadd.f32 %v2057, %v2099
      %v2123 = vadd.f32 %v2058, %v2101
      %v2124 = vadd.f32 %v2059, %v2103
      %v2125 = vadd.f32 %v2060, %v2105
      %v2126 = vperm.slane %v1913, 6
      %v2127 = vmul.f32 %v1551, %v2126
      %v2128 = vmul.f32 %v1552, %v2126
      %v2129 = vmul.f32 %v1553, %v2126
      %v2130 = vmul.f32 %v1554, %v2126
      %v2131 = vmul.f32 %v1555, %v2126
      %v2132 = vmul.f32 %v1556, %v2126
      %v2133 = vmul.f32 %v1557, %v2126
      %v2134 = vmul.f32 %v1558, %v2126
      %v2135 = vmul.f32 %v1559, %v2126
      %v2136 = vmul.f32 %v1560, %v2126
      %v2137 = vmul.f32 %v1561, %v2126
      %v2149 = vrot.slane %v2127, 4
      %v2150 = vrot.slane %v2128, 4
      %v2151 = vsel %vm808, %v2149, %v2150
      %v2152 = vrot.slane %v2129, 4
      %v2153 = vsel %vm808, %v2150, %v2152
      %v2154 = vrot.slane %v2130, 4
      %v2155 = vsel %vm808, %v2152, %v2154
      %v2156 = vrot.slane %v2131, 4
      %v2157 = vsel %vm808, %v2154, %v2156
      %v2158 = vrot.slane %v2132, 4
      %v2159 = vsel %vm808, %v2156, %v2158
      %v2160 = vrot.slane %v2133, 4
      %v2161 = vsel %vm808, %v2158, %v2160
      %v2162 = vrot.slane %v2134, 4
      %v2163 = vsel %vm808, %v2160, %v2162
      %v2164 = vrot.slane %v2135, 4
      %v2165 = vsel %vm808, %v2162, %v2164
      %v2166 = vrot.slane %v2136, 4
      %v2167 = vsel %vm808, %v2164, %v2166
      %v2168 = vrot.slane %v2137, 4
      %v2169 = vsel %vm808, %v2166, %v2168
      %v2180 = vadd.f32 %v2116, %v2151
      %v2181 = vadd.f32 %v2117, %v2153
      %v2182 = vadd.f32 %v2118, %v2155
      %v2183 = vadd.f32 %v2119, %v2157
      %v2184 = vadd.f32 %v2120, %v2159
      %v2185 = vadd.f32 %v2121, %v2161
      %v2186 = vadd.f32 %v2122, %v2163
      %v2187 = vadd.f32 %v2123, %v2165
      %v2188 = vadd.f32 %v2124, %v2167
      %v2189 = vadd.f32 %v2125, %v2169
      %v2190 = vperm.slane %v1913, 7
      %v2191 = vmul.f32 %v1551, %v2190
      %v2192 = vmul.f32 %v1552, %v2190
      %v2193 = vmul.f32 %v1553, %v2190
      %v2194 = vmul.f32 %v1554, %v2190
      %v2195 = vmul.f32 %v1555, %v2190
      %v2196 = vmul.f32 %v1556, %v2190
      %v2197 = vmul.f32 %v1557, %v2190
      %v2198 = vmul.f32 %v1558, %v2190
      %v2199 = vmul.f32 %v1559, %v2190
      %v2200 = vmul.f32 %v1560, %v2190
      %v2201 = vmul.f32 %v1561, %v2190
      %v2213 = vrot.slane %v2191, 5
      %v2214 = vrot.slane %v2192, 5
      %v2215 = vsel %vm885, %v2213, %v2214
      %v2216 = vrot.slane %v2193, 5
      %v2217 = vsel %vm885, %v2214, %v2216
      %v2218 = vrot.slane %v2194, 5
      %v2219 = vsel %vm885, %v2216, %v2218
      %v2220 = vrot.slane %v2195, 5
      %v2221 = vsel %vm885, %v2218, %v2220
      %v2222 = vrot.slane %v2196, 5
      %v2223 = vsel %vm885, %v2220, %v2222
      %v2224 = vrot.slane %v2197, 5
      %v2225 = vsel %vm885, %v2222, %v2224
      %v2226 = vrot.slane %v2198, 5
      %v2227 = vsel %vm885, %v2224, %v2226
      %v2228 = vrot.slane %v2199, 5
      %v2229 = vsel %vm885, %v2226, %v2228
      %v2230 = vrot.slane %v2200, 5
      %v2231 = vsel %vm885, %v2228, %v2230
      %v2232 = vrot.slane %v2201, 5
      %v2233 = vsel %vm885, %v2230, %v2232
      %v2244 = vadd.f32 %v2180, %v2215
      %v2245 = vadd.f32 %v2181, %v2217
      %v2246 = vadd.f32 %v2182, %v2219
      %v2247 = vadd.f32 %v2183, %v2221
      %v2248 = vadd.f32 %v2184, %v2223
      %v2249 = vadd.f32 %v2185, %v2225
      %v2250 = vadd.f32 %v2186, %v2227
      %v2251 = vadd.f32 %v2187, %v2229
      %v2252 = vadd.f32 %v2188, %v2231
      %v2253 = vadd.f32 %v2189, %v2233
      %v2254 = vperm.slane %v1914, 0
      %v2255 = vmul.f32 %v1551, %v2254
      %v2256 = vmul.f32 %v1552, %v2254
      %v2257 = vmul.f32 %v1553, %v2254
      %v2258 = vmul.f32 %v1554, %v2254
      %v2259 = vmul.f32 %v1555, %v2254
      %v2260 = vmul.f32 %v1556, %v2254
      %v2261 = vmul.f32 %v1557, %v2254
      %v2262 = vmul.f32 %v1558, %v2254
      %v2263 = vmul.f32 %v1559, %v2254
      %v2264 = vmul.f32 %v1560, %v2254
      %v2265 = vmul.f32 %v1561, %v2254
      %v2277 = vrot.slane %v2255, 6
      %v2278 = vrot.slane %v2256, 6
      %v2279 = vsel %vm932, %v2277, %v2278
      %v2280 = vrot.slane %v2257, 6
      %v2281 = vsel %vm932, %v2278, %v2280
      %v2282 = vrot.slane %v2258, 6
      %v2283 = vsel %vm932, %v2280, %v2282
      %v2284 = vrot.slane %v2259, 6
      %v2285 = vsel %vm932, %v2282, %v2284
      %v2286 = vrot.slane %v2260, 6
      %v2287 = vsel %vm932, %v2284, %v2286
      %v2288 = vrot.slane %v2261, 6
      %v2289 = vsel %vm932, %v2286, %v2288
      %v2290 = vrot.slane %v2262, 6
      %v2291 = vsel %vm932, %v2288, %v2290
      %v2292 = vrot.slane %v2263, 6
      %v2293 = vsel %vm932, %v2290, %v2292
      %v2294 = vrot.slane %v2264, 6
      %v2295 = vsel %vm932, %v2292, %v2294
      %v2296 = vrot.slane %v2265, 6
      %v2297 = vsel %vm932, %v2294, %v2296
      %v2308 = vadd.f32 %v2244, %v2279
      %v2309 = vadd.f32 %v2245, %v2281
      %v2310 = vadd.f32 %v2246, %v2283
      %v2311 = vadd.f32 %v2247, %v2285
      %v2312 = vadd.f32 %v2248, %v2287
      %v2313 = vadd.f32 %v2249, %v2289
      %v2314 = vadd.f32 %v2250, %v2291
      %v2315 = vadd.f32 %v2251, %v2293
      %v2316 = vadd.f32 %v2252, %v2295
      %v2317 = vadd.f32 %v2253, %v2297
      %v2318 = vperm.slane %v1914, 1
      %v2319 = vmul.f32 %v1551, %v2318
      %v2320 = vmul.f32 %v1552, %v2318
      %v2321 = vmul.f32 %v1553, %v2318
      %v2322 = vmul.f32 %v1554, %v2318
      %v2323 = vmul.f32 %v1555, %v2318
      %v2324 = vmul.f32 %v1556, %v2318
      %v2325 = vmul.f32 %v1557, %v2318
      %v2326 = vmul.f32 %v1558, %v2318
      %v2327 = vmul.f32 %v1559, %v2318
      %v2328 = vmul.f32 %v1560, %v2318
      %v2329 = vmul.f32 %v1561, %v2318
      %v2341 = vrot.slane %v2319, 7
      %v2342 = vrot.slane %v2320, 7
      %v2343 = vsel %vm1655, %v2341, %v2342
      %v2344 = vrot.slane %v2321, 7
      %v2345 = vsel %vm1655, %v2342, %v2344
      %v2346 = vrot.slane %v2322, 7
      %v2347 = vsel %vm1655, %v2344, %v2346
      %v2348 = vrot.slane %v2323, 7
      %v2349 = vsel %vm1655, %v2346, %v2348
      %v2350 = vrot.slane %v2324, 7
      %v2351 = vsel %vm1655, %v2348, %v2350
      %v2352 = vrot.slane %v2325, 7
      %v2353 = vsel %vm1655, %v2350, %v2352
      %v2354 = vrot.slane %v2326, 7
      %v2355 = vsel %vm1655, %v2352, %v2354
      %v2356 = vrot.slane %v2327, 7
      %v2357 = vsel %vm1655, %v2354, %v2356
      %v2358 = vrot.slane %v2328, 7
      %v2359 = vsel %vm1655, %v2356, %v2358
      %v2360 = vrot.slane %v2329, 7
      %v2361 = vsel %vm1655, %v2358, %v2360
      %v2372 = vadd.f32 %v2308, %v2343
      %v2373 = vadd.f32 %v2309, %v2345
      %v2374 = vadd.f32 %v2310, %v2347
      %v2375 = vadd.f32 %v2311, %v2349
      %v2376 = vadd.f32 %v2312, %v2351
      %v2377 = vadd.f32 %v2313, %v2353
      %v2378 = vadd.f32 %v2314, %v2355
      %v2379 = vadd.f32 %v2315, %v2357
      %v2380 = vadd.f32 %v2316, %v2359
      %v2381 = vadd.f32 %v2317, %v2361
      %v2382 = vperm.slane %v1914, 4
      %v2383 = vmul.f32 %v1553, %v2382
      %v2384 = vmul.f32 %v1554, %v2382
      %v2385 = vmul.f32 %v1555, %v2382
      %v2386 = vmul.f32 %v1556, %v2382
      %v2387 = vmul.f32 %v1557, %v2382
      %v2388 = vmul.f32 %v1558, %v2382
      %v2389 = vmul.f32 %v1559, %v2382
      %v2390 = vmul.f32 %v1560, %v2382
      %v2391 = vmul.f32 %v1561, %v2382
      %v2392 = vmul.f32 %v1562, %v2382
      %v2393 = vadd.f32 %v2372, %v2383
      %v2394 = vadd.f32 %v2373, %v2384
      %v2395 = vadd.f32 %v2374, %v2385
      %v2396 = vadd.f32 %v2375, %v2386
      %v2397 = vadd.f32 %v2376, %v2387
      %v2398 = vadd.f32 %v2377, %v2388
      %v2399 = vadd.f32 %v2378, %v2389
      %v2400 = vadd.f32 %v2379, %v2390
      %v2401 = vadd.f32 %v2380, %v2391
      %v2402 = vadd.f32 %v2381, %v2392
      %v2403 = vperm.slane %v1914, 5
      %v2404 = vmul.f32 %v1553, %v2403
      %v2405 = vmul.f32 %v1554, %v2403
      %v2406 = vmul.f32 %v1555, %v2403
      %v2407 = vmul.f32 %v1556, %v2403
      %v2408 = vmul.f32 %v1557, %v2403
      %v2409 = vmul.f32 %v1558, %v2403
      %v2410 = vmul.f32 %v1559, %v2403
      %v2411 = vmul.f32 %v1560, %v2403
      %v2412 = vmul.f32 %v1561, %v2403
      %v2413 = vmul.f32 %v1562, %v2403
      %v2424 = vrot.slane %v2404, 1
      %v2425 = vrot.slane %v2405, 1
      %v2426 = vsel %vm656, %v2424, %v2425
      %v2427 = vrot.slane %v2406, 1
      %v2428 = vsel %vm656, %v2425, %v2427
      %v2429 = vrot.slane %v2407, 1
      %v2430 = vsel %vm656, %v2427, %v2429
      %v2431 = vrot.slane %v2408, 1
      %v2432 = vsel %vm656, %v2429, %v2431
      %v2433 = vrot.slane %v2409, 1
      %v2434 = vsel %vm656, %v2431, %v2433
      %v2435 = vrot.slane %v2410, 1
      %v2436 = vsel %vm656, %v2433, %v2435
      %v2437 = vrot.slane %v2411, 1
      %v2438 = vsel %vm656, %v2435, %v2437
      %v2439 = vrot.slane %v2412, 1
      %v2440 = vsel %vm656, %v2437, %v2439
      %v2441 = vrot.slane %v2413, 1
      %v2442 = vsel %vm656, %v2439, %v2441
      %v2453 = vadd.f32 %v2393, %v2426
      %v2454 = vadd.f32 %v2394, %v2428
      %v2455 = vadd.f32 %v2395, %v2430
      %v2456 = vadd.f32 %v2396, %v2432
      %v2457 = vadd.f32 %v2397, %v2434
      %v2458 = vadd.f32 %v2398, %v2436
      %v2459 = vadd.f32 %v2399, %v2438
      %v2460 = vadd.f32 %v2400, %v2440
      %v2461 = vadd.f32 %v2401, %v2442
      %v2462 = vadd.f32 %v2402, %v2441
      %v2463 = vperm.slane %v1914, 6
      %v2464 = vmul.f32 %v1553, %v2463
      %v2465 = vmul.f32 %v1554, %v2463
      %v2466 = vmul.f32 %v1555, %v2463
      %v2467 = vmul.f32 %v1556, %v2463
      %v2468 = vmul.f32 %v1557, %v2463
      %v2469 = vmul.f32 %v1558, %v2463
      %v2470 = vmul.f32 %v1559, %v2463
      %v2471 = vmul.f32 %v1560, %v2463
      %v2472 = vmul.f32 %v1561, %v2463
      %v2473 = vmul.f32 %v1562, %v2463
      %v2474 = vmul.f32 %v1563, %v2463
      %v2486 = vrot.slane %v2464, 2
      %v2487 = vrot.slane %v2465, 2
      %v2488 = vsel %vm731, %v2486, %v2487
      %v2489 = vrot.slane %v2466, 2
      %v2490 = vsel %vm731, %v2487, %v2489
      %v2491 = vrot.slane %v2467, 2
      %v2492 = vsel %vm731, %v2489, %v2491
      %v2493 = vrot.slane %v2468, 2
      %v2494 = vsel %vm731, %v2491, %v2493
      %v2495 = vrot.slane %v2469, 2
      %v2496 = vsel %vm731, %v2493, %v2495
      %v2497 = vrot.slane %v2470, 2
      %v2498 = vsel %vm731, %v2495, %v2497
      %v2499 = vrot.slane %v2471, 2
      %v2500 = vsel %vm731, %v2497, %v2499
      %v2501 = vrot.slane %v2472, 2
      %v2502 = vsel %vm731, %v2499, %v2501
      %v2503 = vrot.slane %v2473, 2
      %v2504 = vsel %vm731, %v2501, %v2503
      %v2505 = vrot.slane %v2474, 2
      %v2506 = vsel %vm731, %v2503, %v2505
      %v2517 = vadd.f32 %v2453, %v2488
      %v2518 = vadd.f32 %v2454, %v2490
      %v2519 = vadd.f32 %v2455, %v2492
      %v2520 = vadd.f32 %v2456, %v2494
      %v2521 = vadd.f32 %v2457, %v2496
      %v2522 = vadd.f32 %v2458, %v2498
      %v2523 = vadd.f32 %v2459, %v2500
      %v2524 = vadd.f32 %v2460, %v2502
      %v2525 = vadd.f32 %v2461, %v2504
      %v2526 = vadd.f32 %v2462, %v2506
      %v2527 = vperm.slane %v1914, 7
      %v2528 = vmul.f32 %v1553, %v2527
      %v2529 = vmul.f32 %v1554, %v2527
      %v2530 = vmul.f32 %v1555, %v2527
      %v2531 = vmul.f32 %v1556, %v2527
      %v2532 = vmul.f32 %v1557, %v2527
      %v2533 = vmul.f32 %v1558, %v2527
      %v2534 = vmul.f32 %v1559, %v2527
      %v2535 = vmul.f32 %v1560, %v2527
      %v2536 = vmul.f32 %v1561, %v2527
      %v2537 = vmul.f32 %v1562, %v2527
      %v2538 = vmul.f32 %v1563, %v2527
      %v2550 = vrot.slane %v2528, 3
      %v2551 = vrot.slane %v2529, 3
      %v2552 = vsel %vm2084, %v2550, %v2551
      %v2553 = vrot.slane %v2530, 3
      %v2554 = vsel %vm2084, %v2551, %v2553
      %v2555 = vrot.slane %v2531, 3
      %v2556 = vsel %vm2084, %v2553, %v2555
      %v2557 = vrot.slane %v2532, 3
      %v2558 = vsel %vm2084, %v2555, %v2557
      %v2559 = vrot.slane %v2533, 3
      %v2560 = vsel %vm2084, %v2557, %v2559
      %v2561 = vrot.slane %v2534, 3
      %v2562 = vsel %vm2084, %v2559, %v2561
      %v2563 = vrot.slane %v2535, 3
      %v2564 = vsel %vm2084, %v2561, %v2563
      %v2565 = vrot.slane %v2536, 3
      %v2566 = vsel %vm2084, %v2563, %v2565
      %v2567 = vrot.slane %v2537, 3
      %v2568 = vsel %vm2084, %v2565, %v2567
      %v2569 = vrot.slane %v2538, 3
      %v2570 = vsel %vm2084, %v2567, %v2569
      %v2581 = vadd.f32 %v2517, %v2552
      %v2582 = vadd.f32 %v2518, %v2554
      %v2583 = vadd.f32 %v2519, %v2556
      %v2584 = vadd.f32 %v2520, %v2558
      %v2585 = vadd.f32 %v2521, %v2560
      %v2586 = vadd.f32 %v2522, %v2562
      %v2587 = vadd.f32 %v2523, %v2564
      %v2588 = vadd.f32 %v2524, %v2566
      %v2589 = vadd.f32 %v2525, %v2568
      %v2590 = vadd.f32 %v2526, %v2570
      %v2591 = vperm.slane %v1915, 2
      %v2592 = vmul.f32 %v1554, %v2591
      %v2593 = vmul.f32 %v1555, %v2591
      %v2594 = vmul.f32 %v1556, %v2591
      %v2595 = vmul.f32 %v1557, %v2591
      %v2596 = vmul.f32 %v1558, %v2591
      %v2597 = vmul.f32 %v1559, %v2591
      %v2598 = vmul.f32 %v1560, %v2591
      %v2599 = vmul.f32 %v1561, %v2591
      %v2600 = vmul.f32 %v1562, %v2591
      %v2601 = vmul.f32 %v1563, %v2591
      %v2602 = vmul.f32 %v1564, %v2591
      %v2614 = vrot.slane %v2592, 4
      %v2615 = vrot.slane %v2593, 4
      %v2616 = vsel %vm808, %v2614, %v2615
      %v2617 = vrot.slane %v2594, 4
      %v2618 = vsel %vm808, %v2615, %v2617
      %v2619 = vrot.slane %v2595, 4
      %v2620 = vsel %vm808, %v2617, %v2619
      %v2621 = vrot.slane %v2596, 4
      %v2622 = vsel %vm808, %v2619, %v2621
      %v2623 = vrot.slane %v2597, 4
      %v2624 = vsel %vm808, %v2621, %v2623
      %v2625 = vrot.slane %v2598, 4
      %v2626 = vsel %vm808, %v2623, %v2625
      %v2627 = vrot.slane %v2599, 4
      %v2628 = vsel %vm808, %v2625, %v2627
      %v2629 = vrot.slane %v2600, 4
      %v2630 = vsel %vm808, %v2627, %v2629
      %v2631 = vrot.slane %v2601, 4
      %v2632 = vsel %vm808, %v2629, %v2631
      %v2633 = vrot.slane %v2602, 4
      %v2634 = vsel %vm808, %v2631, %v2633
      %v2645 = vadd.f32 %v2581, %v2616
      %v2646 = vadd.f32 %v2582, %v2618
      %v2647 = vadd.f32 %v2583, %v2620
      %v2648 = vadd.f32 %v2584, %v2622
      %v2649 = vadd.f32 %v2585, %v2624
      %v2650 = vadd.f32 %v2586, %v2626
      %v2651 = vadd.f32 %v2587, %v2628
      %v2652 = vadd.f32 %v2588, %v2630
      %v2653 = vadd.f32 %v2589, %v2632
      %v2654 = vadd.f32 %v2590, %v2634
      %v2655 = vperm.slane %v1915, 3
      %v2656 = vmul.f32 %v1554, %v2655
      %v2657 = vmul.f32 %v1555, %v2655
      %v2658 = vmul.f32 %v1556, %v2655
      %v2659 = vmul.f32 %v1557, %v2655
      %v2660 = vmul.f32 %v1558, %v2655
      %v2661 = vmul.f32 %v1559, %v2655
      %v2662 = vmul.f32 %v1560, %v2655
      %v2663 = vmul.f32 %v1561, %v2655
      %v2664 = vmul.f32 %v1562, %v2655
      %v2665 = vmul.f32 %v1563, %v2655
      %v2666 = vmul.f32 %v1564, %v2655
      %v2678 = vrot.slane %v2656, 5
      %v2679 = vrot.slane %v2657, 5
      %v2680 = vsel %vm885, %v2678, %v2679
      %v2681 = vrot.slane %v2658, 5
      %v2682 = vsel %vm885, %v2679, %v2681
      %v2683 = vrot.slane %v2659, 5
      %v2684 = vsel %vm885, %v2681, %v2683
      %v2685 = vrot.slane %v2660, 5
      %v2686 = vsel %vm885, %v2683, %v2685
      %v2687 = vrot.slane %v2661, 5
      %v2688 = vsel %vm885, %v2685, %v2687
      %v2689 = vrot.slane %v2662, 5
      %v2690 = vsel %vm885, %v2687, %v2689
      %v2691 = vrot.slane %v2663, 5
      %v2692 = vsel %vm885, %v2689, %v2691
      %v2693 = vrot.slane %v2664, 5
      %v2694 = vsel %vm885, %v2691, %v2693
      %v2695 = vrot.slane %v2665, 5
      %v2696 = vsel %vm885, %v2693, %v2695
      %v2697 = vrot.slane %v2666, 5
      %v2698 = vsel %vm885, %v2695, %v2697
      %v2709 = vadd.f32 %v2645, %v2680
      %v2710 = vadd.f32 %v2646, %v2682
      %v2711 = vadd.f32 %v2647, %v2684
      %v2712 = vadd.f32 %v2648, %v2686
      %v2713 = vadd.f32 %v2649, %v2688
      %v2714 = vadd.f32 %v2650, %v2690
      %v2715 = vadd.f32 %v2651, %v2692
      %v2716 = vadd.f32 %v2652, %v2694
      %v2717 = vadd.f32 %v2653, %v2696
      %v2718 = vadd.f32 %v2654, %v2698
      %v2719 = vperm.slane %v1915, 4
      %v2720 = vmul.f32 %v1554, %v2719
      %v2721 = vmul.f32 %v1555, %v2719
      %v2722 = vmul.f32 %v1556, %v2719
      %v2723 = vmul.f32 %v1557, %v2719
      %v2724 = vmul.f32 %v1558, %v2719
      %v2725 = vmul.f32 %v1559, %v2719
      %v2726 = vmul.f32 %v1560, %v2719
      %v2727 = vmul.f32 %v1561, %v2719
      %v2728 = vmul.f32 %v1562, %v2719
      %v2729 = vmul.f32 %v1563, %v2719
      %v2730 = vmul.f32 %v1564, %v2719
      %v2742 = vrot.slane %v2720, 6
      %v2743 = vrot.slane %v2721, 6
      %v2744 = vsel %vm932, %v2742, %v2743
      %v2745 = vrot.slane %v2722, 6
      %v2746 = vsel %vm932, %v2743, %v2745
      %v2747 = vrot.slane %v2723, 6
      %v2748 = vsel %vm932, %v2745, %v2747
      %v2749 = vrot.slane %v2724, 6
      %v2750 = vsel %vm932, %v2747, %v2749
      %v2751 = vrot.slane %v2725, 6
      %v2752 = vsel %vm932, %v2749, %v2751
      %v2753 = vrot.slane %v2726, 6
      %v2754 = vsel %vm932, %v2751, %v2753
      %v2755 = vrot.slane %v2727, 6
      %v2756 = vsel %vm932, %v2753, %v2755
      %v2757 = vrot.slane %v2728, 6
      %v2758 = vsel %vm932, %v2755, %v2757
      %v2759 = vrot.slane %v2729, 6
      %v2760 = vsel %vm932, %v2757, %v2759
      %v2761 = vrot.slane %v2730, 6
      %v2762 = vsel %vm932, %v2759, %v2761
      %v2773 = vadd.f32 %v2709, %v2744
      %v2774 = vadd.f32 %v2710, %v2746
      %v2775 = vadd.f32 %v2711, %v2748
      %v2776 = vadd.f32 %v2712, %v2750
      %v2777 = vadd.f32 %v2713, %v2752
      %v2778 = vadd.f32 %v2714, %v2754
      %v2779 = vadd.f32 %v2715, %v2756
      %v2780 = vadd.f32 %v2716, %v2758
      %v2781 = vadd.f32 %v2717, %v2760
      %v2782 = vadd.f32 %v2718, %v2762
      %v2783 = vperm.slane %v1915, 5
      %v2784 = vmul.f32 %v1554, %v2783
      %v2785 = vmul.f32 %v1555, %v2783
      %v2786 = vmul.f32 %v1556, %v2783
      %v2787 = vmul.f32 %v1557, %v2783
      %v2788 = vmul.f32 %v1558, %v2783
      %v2789 = vmul.f32 %v1559, %v2783
      %v2790 = vmul.f32 %v1560, %v2783
      %v2791 = vmul.f32 %v1561, %v2783
      %v2792 = vmul.f32 %v1562, %v2783
      %v2793 = vmul.f32 %v1563, %v2783
      %v2794 = vmul.f32 %v1564, %v2783
      %v2806 = vrot.slane %v2784, 7
      %v2807 = vrot.slane %v2785, 7
      %v2808 = vsel %vm1655, %v2806, %v2807
      %v2809 = vrot.slane %v2786, 7
      %v2810 = vsel %vm1655, %v2807, %v2809
      %v2811 = vrot.slane %v2787, 7
      %v2812 = vsel %vm1655, %v2809, %v2811
      %v2813 = vrot.slane %v2788, 7
      %v2814 = vsel %vm1655, %v2811, %v2813
      %v2815 = vrot.slane %v2789, 7
      %v2816 = vsel %vm1655, %v2813, %v2815
      %v2817 = vrot.slane %v2790, 7
      %v2818 = vsel %vm1655, %v2815, %v2817
      %v2819 = vrot.slane %v2791, 7
      %v2820 = vsel %vm1655, %v2817, %v2819
      %v2821 = vrot.slane %v2792, 7
      %v2822 = vsel %vm1655, %v2819, %v2821
      %v2823 = vrot.slane %v2793, 7
      %v2824 = vsel %vm1655, %v2821, %v2823
      %v2825 = vrot.slane %v2794, 7
      %v2826 = vsel %vm1655, %v2823, %v2825
      %v2837 = vadd.f32 %v2773, %v2808
      %v2838 = vadd.f32 %v2774, %v2810
      %v2839 = vadd.f32 %v2775, %v2812
      %v2840 = vadd.f32 %v2776, %v2814
      %v2841 = vadd.f32 %v2777, %v2816
      %v2842 = vadd.f32 %v2778, %v2818
      %v2843 = vadd.f32 %v2779, %v2820
      %v2844 = vadd.f32 %v2780, %v2822
      %v2845 = vadd.f32 %v2781, %v2824
      %v2846 = vadd.f32 %v2782, %v2826
      %vm2847 = vcmask 260096
      %2848 = vst.msk [vmem:[#allocation2 + $0xa] sm:$0x7f] %vm2847, %v2837
      %vm2849 = vcmask 261124
      %2850 = vst.msk [vmem:[#allocation2 + $0xf] sm:$0xf0] %vm2849, %v2838
      %vm2851 = vcmask 256000
      %2852 = vst.msk [vmem:[#allocation2 + $0x17] sm:$0x7] %vm2851, %v2839
      %2853 = vst.msk [vmem:[#allocation2 + $0x1c] sm:$0x7f] %vm2847, %v2840
      %2854 = vst.msk [vmem:[#allocation2 + $0x21] sm:$0xf0] %vm2849, %v2841
      %2855 = vst.msk [vmem:[#allocation2 + $0x29] sm:$0x7] %vm2851, %v2842
      %2856 = vst.msk [vmem:[#allocation2 + $0x2e] sm:$0x7f] %vm2847, %v2843
      %2857 = vst.msk [vmem:[#allocation2 + $0x33] sm:$0xf0] %vm2849, %v2844
      %2858 = vst.msk [vmem:[#allocation2 + $0x3b] sm:$0x7] %vm2851, %v2845
      %2859 = vst.msk [vmem:[#allocation2 + $0x40] sm:$0x7f] %vm2847, %v2846
      %s2860 = scalar_lea.vmem %s3, 288
      %v2861 = vld [vmem:[%s2860] sm:$0xf]
      %v2862 = vld [vmem:[%s2860 + $0x4] sm:$0xf]
      %v2863 = vld [vmem:[%s2860 + $0x8] sm:$0xf]
      %v2864 = vld [vmem:[%s2860 + $0xc] sm:$0xf]
      %v2865 = vld [vmem:[%s2860 + $0x10] sm:$0xf]
      %v2866 = vld [vmem:[%s2860 + $0x14] sm:$0xf]
      %v2867 = vld [vmem:[%s2860 + $0x18] sm:$0xf]
      %v2868 = vld [vmem:[%s2860 + $0x1c] sm:$0xf]
      %v2869 = vld [vmem:[%s2860 + $0x20] sm:$0xf]
      %v2870 = vld [vmem:[%s2860 + $0x24] sm:$0xf]
      %v2871 = vld [vmem:[%s2860 + $0x28] sm:$0xf]
      %v2872 = vld [vmem:[%s2860 + $0x2c] sm:$0xf]
      %v2873 = vld [vmem:[%s2860 + $0x30] sm:$0xf]
      %v2874 = vld [vmem:[%s2860 + $0x34] sm:$0xf]
      %v2875 = vld [vmem:[%s2860 + $0x38] sm:$0xf]
      %v2876 = vld [vmem:[%s2860 + $0x3c] sm:$0xf]
      %v2877 = vld [vmem:[%s2860 + $0x40] sm:$0xf]
      %v2878 = vld [vmem:[%s2860 + $0x44] sm:$0xf]
      %v2879 = vld [vmem:[%s2860 + $0x48] sm:$0xf]
      %v2880 = vld [vmem:[%s2860 + $0x4c] sm:$0xf]
      %v2881 = vld [vmem:[%s2860 + $0x50] sm:$0xf]
      %v2882 = vld [vmem:[%s2860 + $0x54] sm:$0xf]
      %v2883 = vld [vmem:[%s2860 + $0x58] sm:$0xf]
      %v2884 = vld [vmem:[%s2860 + $0x5c] sm:$0xf]
      %v2885 = vld [vmem:[%s2860 + $0x60] sm:$0xf]
      %v2886 = vld [vmem:[%s2860 + $0x64] sm:$0xf]
      %v2887 = vld [vmem:[%s2860 + $0x68] sm:$0xf]
      %v2888 = vld [vmem:[%s2860 + $0x6c] sm:$0xf]
      %v2889 = vld [vmem:[%s2860 + $0x70] sm:$0xf]
      %v2890 = vld [vmem:[%s2860 + $0x74] sm:$0xf]
      %v2891 = vld [vmem:[%s2860 + $0x78] sm:$0xf]
      %v2892 = vld [vmem:[%s2860 + $0x7c] sm:$0xf]
      %v2893 = vld [vmem:[%s2860 + $0x80] sm:$0xf]
      %v2894 = vld [vmem:[%s2860 + $0x84] sm:$0xf]
      %v2895 = vld [vmem:[%s2860 + $0x88] sm:$0xf]
      %v2896 = vld [vmem:[%s2860 + $0x8c] sm:$0xf]
      %v2897 = vld [vmem:[#allocation2] sm:$0xff]
      %v2898 = vld [vmem:[#allocation2 + $0x8] sm:$0xff]
      %v2899 = vld [vmem:[#allocation2 + $0x10] sm:$0xff]
      %v2900 = vld [vmem:[#allocation2 + $0x18] sm:$0xff]
      %v2901 = vld [vmem:[#allocation2 + $0x20] sm:$0xff]
      %v2902 = vld [vmem:[#allocation2 + $0x28] sm:$0xff]
      %v2903 = vld [vmem:[#allocation2 + $0x30] sm:$0xff]
      %v2904 = vld [vmem:[#allocation2 + $0x38] sm:$0x1f]
      %v2905 = vld [vmem:[#allocation2 + $0x1] sm:$0xff]
      %v2906 = vld [vmem:[#allocation2 + $0x9] sm:$0xff]
      %v2907 = vld [vmem:[#allocation2 + $0x11] sm:$0xff]
      %v2908 = vld [vmem:[#allocation2 + $0x19] sm:$0xff]
      %v2909 = vld [vmem:[#allocation2 + $0x21] sm:$0xff]
      %v2910 = vld [vmem:[#allocation2 + $0x29] sm:$0xff]
      %v2911 = vld [vmem:[#allocation2 + $0x31] sm:$0xff]
      %v2912 = vld [vmem:[#allocation2 + $0x39] sm:$0x1f]
      %v2913 = vld [vmem:[#allocation2 + $0x2] sm:$0xff]
      %v2914 = vld [vmem:[#allocation2 + $0xa] sm:$0xff]
      %v2915 = vld [vmem:[#allocation2 + $0x12] sm:$0xff]
      %v2916 = vld [vmem:[#allocation2 + $0x1a] sm:$0xff]
      %v2917 = vld [vmem:[#allocation2 + $0x22] sm:$0xff]
      %v2918 = vld [vmem:[#allocation2 + $0x2a] sm:$0xff]
      %v2919 = vld [vmem:[#allocation2 + $0x32] sm:$0xff]
      %v2920 = vld [vmem:[#allocation2 + $0x3a] sm:$0x1f]
      %v2921 = vld [vmem:[#allocation2 + $0x39] sm:$0xff]
      %v2922 = vld [vmem:[#allocation2 + $0x41] sm:$0x1f]
      %v2923 = vld [vmem:[#allocation2 + $0x3a] sm:$0xff]
      %v2924 = vld [vmem:[#allocation2 + $0x42] sm:$0x1f]
      %v2925 = vld [vmem:[#allocation2 + $0xb] sm:$0xff]
      %v2926 = vld [vmem:[#allocation2 + $0x13] sm:$0xff]
      %v2927 = vld [vmem:[#allocation2 + $0x1b] sm:$0xff]
      %v2928 = vld [vmem:[#allocation2 + $0x23] sm:$0xff]
      %v2929 = vld [vmem:[#allocation2 + $0x2b] sm:$0xff]
      %v2930 = vld [vmem:[#allocation2 + $0x33] sm:$0xff]
      %v2931 = vld [vmem:[#allocation2 + $0x3b] sm:$0xff]
      %v2932 = vld [vmem:[#allocation2 + $0x43] sm:$0x1f]
      %v2933 = vld [vmem:[#allocation2 + $0x42] sm:$0xff]
      %v2934 = vld [vmem:[#allocation2 + $0x4a] sm:$0x1f]
      %v2935 = vld [vmem:[#allocation2 + $0x43] sm:$0xff]
      %v2936 = vld [vmem:[#allocation2 + $0x4b] sm:$0x1f]
      %v2937 = vld [vmem:[#allocation2 + $0x14] sm:$0xff]
      %v2938 = vld [vmem:[#allocation2 + $0x1c] sm:$0xff]
      %v2939 = vld [vmem:[#allocation2 + $0x24] sm:$0xff]
      %v2940 = vld [vmem:[#allocation2 + $0x2c] sm:$0xff]
      %v2941 = vld [vmem:[#allocation2 + $0x34] sm:$0xff]
      %v2942 = vld [vmem:[#allocation2 + $0x3c] sm:$0xff]
      %v2943 = vld [vmem:[#allocation2 + $0x44] sm:$0xff]
      %v2944 = vld [vmem:[#allocation2 + $0x4c] sm:$0x1f]
      %2953 = vrot.lane.b32.xlu0 %v2905, 32
      %v2954 = vpop.permute.xlu0 %2953
      %2955 = vrot.lane.b32.xlu0 %v2906, 32
      %v2956 = vpop.permute.xlu0 %2955
      %2957 = vrot.lane.b32.xlu0 %v2907, 32
      %v2958 = vpop.permute.xlu0 %2957
      %2959 = vrot.lane.b32.xlu0 %v2908, 32
      %v2960 = vpop.permute.xlu0 %2959
      %2961 = vrot.lane.b32.xlu0 %v2909, 32
      %v2962 = vpop.permute.xlu0 %2961
      %2963 = vrot.lane.b32.xlu0 %v2910, 32
      %v2964 = vpop.permute.xlu0 %2963
      %2965 = vrot.lane.b32.xlu0 %v2911, 32
      %v2966 = vpop.permute.xlu0 %2965
      %2967 = vrot.lane.b32.xlu0 %v2912, 32
      %v2968 = vpop.permute.xlu0 %2967
      %2985 = vrot.lane.b32.xlu0 %v2913, 64
      %v2986 = vpop.permute.xlu0 %2985
      %2987 = vrot.lane.b32.xlu0 %v2914, 64
      %v2988 = vpop.permute.xlu0 %2987
      %2989 = vrot.lane.b32.xlu0 %v2915, 64
      %v2990 = vpop.permute.xlu0 %2989
      %2991 = vrot.lane.b32.xlu0 %v2916, 64
      %v2992 = vpop.permute.xlu0 %2991
      %2993 = vrot.lane.b32.xlu0 %v2917, 64
      %v2994 = vpop.permute.xlu0 %2993
      %2995 = vrot.lane.b32.xlu0 %v2918, 64
      %v2996 = vpop.permute.xlu0 %2995
      %2997 = vrot.lane.b32.xlu0 %v2919, 64
      %v2998 = vpop.permute.xlu0 %2997
      %2999 = vrot.lane.b32.xlu0 %v2920, 64
      %v3000 = vpop.permute.xlu0 %2999
      %3011 = vrot.lane.b32.xlu0 %v2906, 96
      %v3012 = vpop.permute.xlu0 %3011
      %3013 = vrot.lane.b32.xlu0 %v2907, 96
      %v3014 = vpop.permute.xlu0 %3013
      %3015 = vrot.lane.b32.xlu0 %v2908, 96
      %v3016 = vpop.permute.xlu0 %3015
      %3017 = vrot.lane.b32.xlu0 %v2909, 96
      %v3018 = vpop.permute.xlu0 %3017
      %3019 = vrot.lane.b32.xlu0 %v2910, 96
      %v3020 = vpop.permute.xlu0 %3019
      %3021 = vrot.lane.b32.xlu0 %v2911, 96
      %v3022 = vpop.permute.xlu0 %3021
      %3023 = vrot.lane.b32.xlu0 %v2921, 96
      %v3024 = vpop.permute.xlu0 %3023
      %3025 = vrot.lane.b32.xlu0 %v2922, 96
      %v3026 = vpop.permute.xlu0 %3025
      %3043 = vrot.lane.b32.xlu0 %v2925, 32
      %v3044 = vpop.permute.xlu0 %3043
      %3045 = vrot.lane.b32.xlu0 %v2926, 32
      %v3046 = vpop.permute.xlu0 %3045
      %3047 = vrot.lane.b32.xlu0 %v2927, 32
      %v3048 = vpop.permute.xlu0 %3047
      %3049 = vrot.lane.b32.xlu0 %v2928, 32
      %v3050 = vpop.permute.xlu0 %3049
      %3051 = vrot.lane.b32.xlu0 %v2929, 32
      %v3052 = vpop.permute.xlu0 %3051
      %3053 = vrot.lane.b32.xlu0 %v2930, 32
      %v3054 = vpop.permute.xlu0 %3053
      %3055 = vrot.lane.b32.xlu0 %v2931, 32
      %v3056 = vpop.permute.xlu0 %3055
      %3057 = vrot.lane.b32.xlu0 %v2932, 32
      %v3058 = vpop.permute.xlu0 %3057
      %3070 = vrot.lane.b32.xlu0 %v2923, 64
      %v3071 = vpop.permute.xlu0 %3070
      %3072 = vrot.lane.b32.xlu0 %v2933, 64
      %v3073 = vpop.permute.xlu0 %3072
      %3074 = vrot.lane.b32.xlu0 %v2934, 64
      %v3075 = vpop.permute.xlu0 %3074
      %3081 = vrot.lane.b32.xlu0 %v2926, 96
      %v3082 = vpop.permute.xlu0 %3081
      %3083 = vrot.lane.b32.xlu0 %v2927, 96
      %v3084 = vpop.permute.xlu0 %3083
      %3085 = vrot.lane.b32.xlu0 %v2928, 96
      %v3086 = vpop.permute.xlu0 %3085
      %3087 = vrot.lane.b32.xlu0 %v2929, 96
      %v3088 = vpop.permute.xlu0 %3087
      %3089 = vrot.lane.b32.xlu0 %v2930, 96
      %v3090 = vpop.permute.xlu0 %3089
      %3091 = vrot.lane.b32.xlu0 %v2931, 96
      %v3092 = vpop.permute.xlu0 %3091
      %3093 = vrot.lane.b32.xlu0 %v2935, 96
      %v3094 = vpop.permute.xlu0 %3093
      %3095 = vrot.lane.b32.xlu0 %v2936, 96
      %v3096 = vpop.permute.xlu0 %3095
      %v3105 = vsel %vm536, %v2897, %v2954
      %v3106 = vsel %vm536, %v2898, %v2956
      %v3107 = vsel %vm536, %v2899, %v2958
      %v3108 = vsel %vm536, %v2900, %v2960
      %v3109 = vsel %vm536, %v2901, %v2962
      %v3110 = vsel %vm536, %v2902, %v2964
      %v3111 = vsel %vm536, %v2903, %v2966
      %v3112 = vsel %vm536, %v2904, %v2968
      %v3113 = vsel %vm549, %v3105, %v2986
      %v3114 = vsel %vm549, %v3106, %v2988
      %v3115 = vsel %vm549, %v3107, %v2990
      %v3116 = vsel %vm549, %v3108, %v2992
      %v3117 = vsel %vm549, %v3109, %v2994
      %v3118 = vsel %vm549, %v3110, %v2996
      %v3119 = vsel %vm549, %v3111, %v2998
      %v3120 = vsel %vm549, %v3112, %v3000
      %v3121 = vsel %vm1157, %v3113, %v3012
      %v3122 = vsel %vm1157, %v3114, %v3014
      %v3123 = vsel %vm1157, %v3115, %v3016
      %v3124 = vsel %vm1157, %v3116, %v3018
      %v3125 = vsel %vm1157, %v3117, %v3020
      %v3126 = vsel %vm1157, %v3118, %v3022
      %v3127 = vsel %vm1157, %v3119, %v3024
      %v3128 = vsel %vm1157, %v3120, %v3026
      %v3129 = vsel %vm536, %v2914, %v3044
      %v3130 = vsel %vm536, %v2915, %v3046
      %v3131 = vsel %vm536, %v2916, %v3048
      %v3132 = vsel %vm536, %v2917, %v3050
      %v3133 = vsel %vm536, %v2918, %v3052
      %v3134 = vsel %vm536, %v2919, %v3054
      %v3135 = vsel %vm536, %v2923, %v3056
      %v3136 = vsel %vm536, %v2924, %v3058
      %v3137 = vsel %vm549, %v3129, %v2990
      %v3138 = vsel %vm549, %v3130, %v2992
      %v3139 = vsel %vm549, %v3131, %v2994
      %v3140 = vsel %vm549, %v3132, %v2996
      %v3141 = vsel %vm549, %v3133, %v2998
      %v3142 = vsel %vm549, %v3134, %v3071
      %v3143 = vsel %vm549, %v3135, %v3073
      %v3144 = vsel %vm549, %v3136, %v3075
      %v3145 = vsel %vm1157, %v3137, %v3082
      %v3146 = vsel %vm1157, %v3138, %v3084
      %v3147 = vsel %vm1157, %v3139, %v3086
      %v3148 = vsel %vm1157, %v3140, %v3088
      %v3149 = vsel %vm1157, %v3141, %v3090
      %v3150 = vsel %vm1157, %v3142, %v3092
      %v3151 = vsel %vm1157, %v3143, %v3094
      %v3152 = vsel %vm1157, %v3144, %v3096
      %v3153 = vpack.c.bf16 %v3122, %v3121
      %v3154 = vpack.c.bf16 %v3146, %v3145
      %v3155 = vpack.c.bf16 %v2938, %v2937
      %v3156 = vpack.c.bf16 %v3124, %v3123
      %v3157 = vpack.c.bf16 %v3148, %v3147
      %v3158 = vpack.c.bf16 %v2940, %v2939
      %v3159 = vpack.c.bf16 %v3126, %v3125
      %v3160 = vpack.c.bf16 %v3150, %v3149
      %v3161 = vpack.c.bf16 %v2942, %v2941
      %v3162 = vpack.c.bf16 %v3128, %v3127
      %v3163 = vpack.c.bf16 %v3152, %v3151
      %v3164 = vpack.c.bf16 %v2944, %v2943
      %v3165 = vperm.slane %v584, 4
      %v3202 = vunpack.c.l.b16 %v2861
      %v3203 = vunpack.c.l.b16 %v2862
      %v3204 = vunpack.c.l.b16 %v2863
      %v3205 = vunpack.c.l.b16 %v2864
      %v3206 = vunpack.c.l.b16 %v2865
      %v3207 = vunpack.c.l.b16 %v2866
      %v3208 = vunpack.c.l.b16 %v2867
      %v3209 = vunpack.c.l.b16 %v2868
      %v3210 = vunpack.c.l.b16 %v2869
      %v3211 = vunpack.c.l.b16 %v2870
      %v3212 = vunpack.c.l.b16 %v2871
      %v3213 = vunpack.c.l.b16 %v2872
      %v3214 = vunpack.c.l.b16 %v2873
      %v3215 = vunpack.c.l.b16 %v2874
      %v3216 = vunpack.c.l.b16 %v2875
      %v3217 = vunpack.c.l.b16 %v2876
      %v3218 = vunpack.c.l.b16 %v2877
      %v3219 = vunpack.c.l.b16 %v2878
      %v3220 = vunpack.c.l.b16 %v2879
      %v3221 = vunpack.c.l.b16 %v2880
      %v3222 = vunpack.c.l.b16 %v2881
      %v3223 = vunpack.c.l.b16 %v2882
      %v3224 = vunpack.c.l.b16 %v2883
      %v3225 = vunpack.c.l.b16 %v2884
      %v3226 = vunpack.c.l.b16 %v2885
      %v3227 = vunpack.c.l.b16 %v2886
      %v3228 = vunpack.c.l.b16 %v2887
      %v3229 = vunpack.c.l.b16 %v2888
      %v3230 = vunpack.c.l.b16 %v2889
      %v3231 = vunpack.c.l.b16 %v2890
      %v3232 = vunpack.c.l.b16 %v2891
      %v3233 = vunpack.c.l.b16 %v2892
      %v3234 = vunpack.c.l.b16 %v2893
      %v3235 = vunpack.c.l.b16 %v2894
      %v3236 = vunpack.c.l.b16 %v2895
      %v3237 = vunpack.c.l.b16 %v2896
      %v3238 = vpack.c.b16 %v3203, %v3202
      %v3239 = vpack.c.b16 %v3205, %v3204
      %v3240 = vpack.c.b16 %v3207, %v3206
      %v3241 = vpack.c.b16 %v3209, %v3208
      %v3242 = vpack.c.b16 %v3211, %v3210
      %v3243 = vpack.c.b16 %v3213, %v3212
      %v3244 = vpack.c.b16 %v3215, %v3214
      %v3245 = vpack.c.b16 %v3217, %v3216
      %v3246 = vpack.c.b16 %v3219, %v3218
      %v3247 = vpack.c.b16 %v3221, %v3220
      %v3248 = vpack.c.b16 %v3223, %v3222
      %v3249 = vpack.c.b16 %v3225, %v3224
      %v3250 = vpack.c.b16 %v3227, %v3226
      %v3251 = vpack.c.b16 %v3229, %v3228
      %v3252 = vpack.c.b16 %v3231, %v3230
      %v3253 = vpack.c.b16 %v3233, %v3232
      %v3254 = vpack.c.b16 %v3235, %v3234
      %v3255 = vpack.c.b16 %v3237, %v3236
      %v3275 = vsel %vm536, %v3155, 0
      %v3278 = vsel %vm536, %v3158, 0
      %v3281 = vsel %vm536, %v3161, 0
      %v3284 = vsel %vm536, %v3164, 0
      %3286 = vmatpush.bf16.msra.mxu0 %v3245
      %3287 = vmatpush.bf16.msra.mxu0 %v3244
      %3288 = vmatpush.bf16.msra.mxu0 %v3243
      %3289 = vmatpush.bf16.msra.mxu0 %v3242
      %3290 = vmatpush.bf16.msra.mxu0 %v3241
      %3291 = vmatpush.bf16.msra.mxu0 %v3240
      %3292 = vmatpush.bf16.msra.mxu0 %v3239
      %3293 = vmatpush.bf16.msra.mxu0 %v3238
      %3294 = vmatmul.bf16.gmra.mxu0 %v3153
      %v3295 = vpop.f32.mrf.mxu0
      %v3296 = vadd.f32 %v3165, %v3295
      %v3297 = vpop.f32.mrf.mxu0
      %v3298 = vadd.f32 %v3165, %v3297
      %3299 = vmatmul.bf16.gmra.mxu0 %v3156
      %v3300 = vpop.f32.mrf.mxu0
      %v3301 = vadd.f32 %v3165, %v3300
      %v3302 = vpop.f32.mrf.mxu0
      %v3303 = vadd.f32 %v3165, %v3302
      %3304 = vmatmul.bf16.gmra.mxu0 %v3159
      %v3305 = vpop.f32.mrf.mxu0
      %v3306 = vadd.f32 %v3165, %v3305
      %v3307 = vpop.f32.mrf.mxu0
      %v3308 = vadd.f32 %v3165, %v3307
      %3309 = vmatmul.bf16.gmra.mxu0 %v3162
      %v3310 = vpop.f32.mrf.mxu0
      %v3311 = vadd.f32 %v3165, %v3310
      %v3312 = vpop.f32.mrf.mxu0
      %v3313 = vadd.f32 %v3165, %v3312
      %3314 = vdwg.mxu0
      %3315 = vmatpush.bf16.msra.mxu0 %v3253
      %3316 = vmatpush.bf16.msra.mxu0 %v3252
      %3317 = vmatpush.bf16.msra.mxu0 %v3251
      %3318 = vmatpush.bf16.msra.mxu0 %v3250
      %3319 = vmatpush.bf16.msra.mxu0 %v3249
      %3320 = vmatpush.bf16.msra.mxu0 %v3248
      %3321 = vmatpush.bf16.msra.mxu0 %v3247
      %3322 = vmatpush.bf16.msra.mxu0 %v3246
      %3323 = vmatmul.bf16.gmra.mxu0 %v3154
      %v3324 = vpop.f32.mrf.mxu0
      %v3325 = vadd.f32 %v3296, %v3324
      %v3326 = vpop.f32.mrf.mxu0
      %v3327 = vadd.f32 %v3298, %v3326
      %3328 = vmatmul.bf16.gmra.mxu0 %v3157
      %v3329 = vpop.f32.mrf.mxu0
      %v3330 = vadd.f32 %v3301, %v3329
      %v3331 = vpop.f32.mrf.mxu0
      %v3332 = vadd.f32 %v3303, %v3331
      %3333 = vmatmul.bf16.gmra.mxu0 %v3160
      %v3334 = vpop.f32.mrf.mxu0
      %v3335 = vadd.f32 %v3306, %v3334
      %v3336 = vpop.f32.mrf.mxu0
      %v3337 = vadd.f32 %v3308, %v3336
      %3338 = vmatmul.bf16.gmra.mxu0 %v3163
      %v3339 = vpop.f32.mrf.mxu0
      %v3340 = vadd.f32 %v3311, %v3339
      %v3341 = vpop.f32.mrf.mxu0
      %v3342 = vadd.f32 %v3313, %v3341
      %3343 = vdwg.mxu0
      %3344 = vmatpush.bf16.msra.mxu0 0
      %3345 = vmatpush.bf16.msra.mxu0 0
      %3346 = vmatpush.bf16.msra.mxu0 0
      %3347 = vmatpush.bf16.msra.mxu0 0
      %3348 = vmatpush.bf16.msra.mxu0 0
      %3349 = vmatpush.bf16.msra.mxu0 0
      %3350 = vmatpush.bf16.msra.mxu0 %v3255
      %3351 = vmatpush.bf16.msra.mxu0 %v3254
      %3352 = vmatmul.bf16.gmra.mxu0 %v3275
      %v3353 = vpop.f32.mrf.mxu0
      %v3354 = vadd.f32 %v3325, %v3353
      %v3355 = vpop.f32.mrf.mxu0
      %v3356 = vadd.f32 %v3327, %v3355
      %3357 = vmatmul.bf16.gmra.mxu0 %v3278
      %v3358 = vpop.f32.mrf.mxu0
      %v3359 = vadd.f32 %v3330, %v3358
      %v3360 = vpop.f32.mrf.mxu0
      %v3361 = vadd.f32 %v3332, %v3360
      %3362 = vmatmul.bf16.gmra.mxu0 %v3281
      %v3363 = vpop.f32.mrf.mxu0
      %v3364 = vadd.f32 %v3335, %v3363
      %v3365 = vpop.f32.mrf.mxu0
      %v3366 = vadd.f32 %v3337, %v3365
      %3367 = vmatmul.bf16.gmra.mxu0 %v3284
      %v3368 = vpop.f32.mrf.mxu0
      %v3369 = vadd.f32 %v3340, %v3368
      %v3370 = vpop.f32.mrf.mxu0
      %v3371 = vadd.f32 %v3342, %v3370
      %3372 = vdwg.mxu0
      %3374 = vset.pattern.permute.xlu0 0
      %3375 = vperm.xlu0 %3374, %v562
      %v3376 = vpop.permute.xlu0 %3375
      %3379 = vset.pattern.permute.xlu0 0
      %3380 = vperm.xlu0 %3379, %v563
      %v3381 = vpop.permute.xlu0 %3380
      %3384 = vset.pattern.permute.xlu0 0
      %3385 = vperm.xlu0 %3384, %v564
      %v3386 = vpop.permute.xlu0 %3385
      %3389 = vset.pattern.permute.xlu0 0
      %3390 = vperm.xlu0 %3389, %v565
      %v3391 = vpop.permute.xlu0 %3390
      %3394 = vset.pattern.permute.xlu0 0
      %3395 = vperm.xlu0 %3394, %v566
      %v3396 = vpop.permute.xlu0 %3395
      %3399 = vset.pattern.permute.xlu0 0
      %3400 = vperm.xlu0 %3399, %v567
      %v3401 = vpop.permute.xlu0 %3400
      %3404 = vset.pattern.permute.xlu0 0
      %3405 = vperm.xlu0 %3404, %v568
      %v3406 = vpop.permute.xlu0 %3405
      %3409 = vset.pattern.permute.xlu0 0
      %3410 = vperm.xlu0 %3409, %v569
      %v3411 = vpop.permute.xlu0 %3410
      %v3413 = vmul.f32 %v3354, %v3376
      %v3414 = vmul.f32 %v3356, %v3381
      %v3415 = vmul.f32 %v3359, %v3386
      %v3416 = vmul.f32 %v3361, %v3391
      %v3417 = vmul.f32 %v3364, %v3396
      %v3418 = vmul.f32 %v3366, %v3401
      %v3419 = vmul.f32 %v3369, %v3406
      %v3420 = vmul.f32 %v3371, %v3411
      %v3421 = vsel %vm536, %v3413, 0.0
      %v3422 = vsel %vm536, %v3414, 0.0
      %v3423 = vadd.f32 %v3421, %v3422
      %v3424 = vsel %vm536, %v3415, 0.0
      %v3425 = vadd.f32 %v3423, %v3424
      %v3426 = vsel %vm536, %v3416, 0.0
      %v3427 = vadd.f32 %v3425, %v3426
      %v3428 = vsel %vm536, %v3417, 0.0
      %v3429 = vadd.f32 %v3427, %v3428
      %v3430 = vsel %vm536, %v3418, 0.0
      %v3431 = vadd.f32 %v3429, %v3430
      %v3432 = vsel %vm536, %v3419, 0.0
      %v3433 = vadd.f32 %v3431, %v3432
      %vm3434 = vcmask 258048
      %v3435 = vsel %vm3434, %v3420, 0.0
      %v3436 = vadd.f32 %v3433, %v3435
      %v3437 = vrot.slane %v3436, 4
      %v3438 = vadd.f32 %v3436, %v3437
      %v3439 = vrot.slane %v3438, 2
      %v3440 = vadd.f32 %v3438, %v3439
      %v3441 = vrot.slane %v3440, 1
      %v3442 = vadd.f32 %v3440, %v3441
      %v3443 = vmul.f32 %v3413, %v3413
      %v3444 = vmul.f32 %v3414, %v3414
      %v3445 = vmul.f32 %v3415, %v3415
      %v3446 = vmul.f32 %v3416, %v3416
      %v3447 = vmul.f32 %v3417, %v3417
      %v3448 = vmul.f32 %v3418, %v3418
      %v3449 = vmul.f32 %v3419, %v3419
      %v3450 = vmul.f32 %v3420, %v3420
      %v3451 = vsel %vm536, %v3443, 0.0
      %v3452 = vsel %vm536, %v3444, 0.0
      %v3453 = vadd.f32 %v3451, %v3452
      %v3454 = vsel %vm536, %v3445, 0.0
      %v3455 = vadd.f32 %v3453, %v3454
      %v3456 = vsel %vm536, %v3446, 0.0
      %v3457 = vadd.f32 %v3455, %v3456
      %v3458 = vsel %vm536, %v3447, 0.0
      %v3459 = vadd.f32 %v3457, %v3458
      %v3460 = vsel %vm536, %v3448, 0.0
      %v3461 = vadd.f32 %v3459, %v3460
      %v3462 = vsel %vm536, %v3449, 0.0
      %v3463 = vadd.f32 %v3461, %v3462
      %v3464 = vsel %vm3434, %v3450, 0.0
      %v3465 = vadd.f32 %v3463, %v3464
      %v3466 = vrot.slane %v3465, 4
      %v3467 = vadd.f32 %v3465, %v3466
      %v3468 = vrot.slane %v3467, 2
      %v3469 = vadd.f32 %v3467, %v3468
      %v3470 = vrot.slane %v3469, 1
      %v3471 = vadd.f32 %v3469, %v3470
      %v3472 = vsel %vm1655, %v3442, %v3471
      %v3473 = vmul.f32 %v3472, 0.020408163
      %v3475 = vsel %vm536, %v3473, 0
      %3477 = vmatpush.msra.mxu0 0.0
      %3478 = vmatpush.msra.mxu0 0.0
      %3479 = vmatpush.msra.mxu0 0.0
      %3480 = vmatpush.msra.mxu0 0.0
      %3481 = vmatpush.msra.mxu0 0.0
      %3482 = vmatpush.msra.mxu0 0.0
      %3483 = vmatpush.msra.mxu0 0.0
      %3484 = vmatpush.msra.mxu0 0.0
      %3485 = vmatpush.msra.mxu0 0.0
      %3486 = vmatpush.msra.mxu0 0.0
      %3487 = vmatpush.msra.mxu0 0.0
      %3488 = vmatpush.msra.mxu0 0.0
      %3489 = vmatpush.msra.mxu0 %v579
      %3490 = vmatpush.msra.mxu0 %v578
      %3491 = vmatpush.msra.mxu0 %v577
      %3492 = vmatpush.msra.mxu0 %v576
      %3493 = vmatmul.f32.gmra.mxu0 %v3475
      %v3494 = vpop.f32.mrf.mxu0
      %v3495 = vadd.f32 0.0, %v3494
      %3496 = vdwg.mxu0
      %v3497 = vmul.f32 %v3495, %v3495
      %v3499 = vrot.slane %v3497, 7
      %v3501 = vsub.f32 %v3495, %v3499
      %v3502 = vmax.f32 %v3501, 0.0
      %v3503 = vadd.f32 %v3502, 1e-05
      %v3504 = vrsqrt.pop %v3503
      %v3505 = vmul.f32 %v3504, %v3503
      %v3506 = vmul.f32 %v3505, %v3504
      %v3507 = vmul.f32 0.5, %v3506
      %v3508 = vsub.f32 1.5, %v3507
      %v3509 = vmul.f32 %v3504, %v3508
      %vm3510 = vweird.f32 %v3503
      %vm3511 = vweird.f32 %v3504
      %vm3512 = vmor %vm3510, %vm3511
      %v3513 = vsel %vm3512, %v3504, %v3509
      %v3515 = vrot.slane %v3513, 4
      %v3517 = vmul.f32 %v584, %v3515
      %v3519 = vrot.slane %v3517, 5
      %v3521 = vmul.f32 %v3495, %v3519
      %v3523 = vrot.slane %v3521, 2
      %v3525 = vsub.f32 %v584, %v3523
      %v3526 = vperm.slane %v3517, 5
      %v3527 = vmul.f32 %v3413, %v3526
      %v3528 = vmul.f32 %v3414, %v3526
      %v3529 = vmul.f32 %v3415, %v3526
      %v3530 = vmul.f32 %v3416, %v3526
      %v3531 = vmul.f32 %v3417, %v3526
      %v3532 = vmul.f32 %v3418, %v3526
      %v3533 = vmul.f32 %v3419, %v3526
      %v3534 = vmul.f32 %v3420, %v3526
      %v3535 = vperm.slane %v3525, 6
      %v3536 = vadd.f32 %v3527, %v3535
      %v3537 = vadd.f32 %v3528, %v3535
      %v3538 = vadd.f32 %v3529, %v3535
      %v3539 = vadd.f32 %v3530, %v3535
      %v3540 = vadd.f32 %v3531, %v3535
      %v3541 = vadd.f32 %v3532, %v3535
      %v3542 = vadd.f32 %v3533, %v3535
      %v3543 = vadd.f32 %v3534, %v3535
      %v3544 = vmax.f32 %v3536, 0.0
      %v3545 = vmax.f32 %v3537, 0.0
      %v3546 = vmax.f32 %v3538, 0.0
      %v3547 = vmax.f32 %v3539, 0.0
      %v3548 = vmax.f32 %v3540, 0.0
      %v3549 = vmax.f32 %v3541, 0.0
      %v3550 = vmax.f32 %v3542, 0.0
      %v3551 = vmax.f32 %v3543, 0.0
      %v3552 = vmul.f32 %v3544, %v3376
      %v3553 = vmul.f32 %v3545, %v3381
      %v3554 = vmul.f32 %v3546, %v3386
      %v3555 = vmul.f32 %v3547, %v3391
      %v3556 = vmul.f32 %v3548, %v3396
      %v3557 = vmul.f32 %v3549, %v3401
      %v3558 = vmul.f32 %v3550, %v3406
      %v3559 = vmul.f32 %v3551, %v3411
      %3560 = vst.msk [vmem:[#allocation2 + $0xa] sm:$0xff] %vm536, %v3552
      %3561 = vst.msk [vmem:[#allocation2 + $0x12] sm:$0xff] %vm536, %v3553
      %3562 = vst.msk [vmem:[#allocation2 + $0x1a] sm:$0xff] %vm536, %v3554
      %3563 = vst.msk [vmem:[#allocation2 + $0x22] sm:$0xff] %vm536, %v3555
      %3564 = vst.msk [vmem:[#allocation2 + $0x2a] sm:$0xff] %vm536, %v3556
      %3565 = vst.msk [vmem:[#allocation2 + $0x32] sm:$0xff] %vm536, %v3557
      %3566 = vst.msk [vmem:[#allocation2 + $0x3a] sm:$0xff] %vm536, %v3558
      %3567 = vst.msk [vmem:[#allocation2 + $0x42] sm:$0x1f] %vm3434, %v3559
      %s3568 = scalar_lea.vmem %s3, 432
      %v3569 = vld [vmem:[%s3568] sm:$0xf]
      %v3570 = vld [vmem:[%s3568 + $0x4] sm:$0xf]
      %v3571 = vld [vmem:[%s3568 + $0x8] sm:$0xf]
      %v3572 = vld [vmem:[%s3568 + $0xc] sm:$0xf]
      %v3573 = vld [vmem:[%s3568 + $0x10] sm:$0xf]
      %v3574 = vld [vmem:[%s3568 + $0x14] sm:$0xf]
      %v3575 = vld [vmem:[%s3568 + $0x18] sm:$0xf]
      %v3576 = vld [vmem:[%s3568 + $0x1c] sm:$0xf]
      %v3577 = vld [vmem:[%s3568 + $0x20] sm:$0xf]
      %v3578 = vld [vmem:[%s3568 + $0x24] sm:$0xf]
      %v3579 = vld [vmem:[%s3568 + $0x28] sm:$0xf]
      %v3580 = vld [vmem:[%s3568 + $0x2c] sm:$0xf]
      %v3581 = vld [vmem:[%s3568 + $0x30] sm:$0xf]
      %v3582 = vld [vmem:[%s3568 + $0x34] sm:$0xf]
      %v3583 = vld [vmem:[%s3568 + $0x38] sm:$0xf]
      %v3584 = vld [vmem:[%s3568 + $0x3c] sm:$0xf]
      %v3585 = vld [vmem:[%s3568 + $0x40] sm:$0xf]
      %v3586 = vld [vmem:[%s3568 + $0x44] sm:$0xf]
      %v3587 = vld [vmem:[%s3568 + $0x48] sm:$0xf]
      %v3588 = vld [vmem:[%s3568 + $0x4c] sm:$0xf]
      %v3589 = vld [vmem:[%s3568 + $0x50] sm:$0xf]
      %v3590 = vld [vmem:[%s3568 + $0x54] sm:$0xf]
      %v3591 = vld [vmem:[%s3568 + $0x58] sm:$0xf]
      %v3592 = vld [vmem:[%s3568 + $0x5c] sm:$0xf]
      %v3593 = vld [vmem:[%s3568 + $0x60] sm:$0xf]
      %v3594 = vld [vmem:[%s3568 + $0x64] sm:$0xf]
      %v3595 = vld [vmem:[%s3568 + $0x68] sm:$0xf]
      %v3596 = vld [vmem:[%s3568 + $0x6c] sm:$0xf]
      %v3597 = vld [vmem:[%s3568 + $0x70] sm:$0xf]
      %v3598 = vld [vmem:[%s3568 + $0x74] sm:$0xf]
      %v3599 = vld [vmem:[%s3568 + $0x78] sm:$0xf]
      %v3600 = vld [vmem:[%s3568 + $0x7c] sm:$0xf]
      %v3601 = vld [vmem:[%s3568 + $0x80] sm:$0xf]
      %v3602 = vld [vmem:[%s3568 + $0x84] sm:$0xf]
      %v3603 = vld [vmem:[%s3568 + $0x88] sm:$0xf]
      %v3604 = vld [vmem:[%s3568 + $0x8c] sm:$0xf]
      %v3605 = vld [vmem:[#allocation2 + $0xa] sm:$0xff]
      %v3606 = vld [vmem:[#allocation2 + $0x12] sm:$0xff]
      %v3607 = vld [vmem:[#allocation2 + $0x1a] sm:$0xff]
      %v3608 = vld [vmem:[#allocation2 + $0x22] sm:$0xff]
      %v3609 = vld [vmem:[#allocation2 + $0x2a] sm:$0xff]
      %v3610 = vld [vmem:[#allocation2 + $0x32] sm:$0x1]
      %v3611 = vld [vmem:[#allocation2 + $0xb] sm:$0xff]
      %v3612 = vld [vmem:[#allocation2 + $0x13] sm:$0xff]
      %v3613 = vld [vmem:[#allocation2 + $0x1b] sm:$0xff]
      %v3614 = vld [vmem:[#allocation2 + $0x23] sm:$0xff]
      %v3615 = vld [vmem:[#allocation2 + $0x2b] sm:$0xff]
      %v3616 = vld [vmem:[#allocation2 + $0x33] sm:$0x1]
      %v3617 = vld [vmem:[#allocation2 + $0xc] sm:$0xff]
      %v3618 = vld [vmem:[#allocation2 + $0x14] sm:$0xff]
      %v3619 = vld [vmem:[#allocation2 + $0x1c] sm:$0xff]
      %v3620 = vld [vmem:[#allocation2 + $0x24] sm:$0xff]
      %v3621 = vld [vmem:[#allocation2 + $0x2c] sm:$0xff]
      %v3622 = vld [vmem:[#allocation2 + $0x34] sm:$0x1]
      %v3623 = vld [vmem:[#allocation2 + $0x33] sm:$0xff]
      %v3624 = vld [vmem:[#allocation2 + $0x3b] sm:$0x1]
      %v3625 = vld [vmem:[#allocation2 + $0x34] sm:$0xff]
      %v3626 = vld [vmem:[#allocation2 + $0x3c] sm:$0x1]
      %v3627 = vld [vmem:[#allocation2 + $0x15] sm:$0xff]
      %v3628 = vld [vmem:[#allocation2 + $0x1d] sm:$0xff]
      %v3629 = vld [vmem:[#allocation2 + $0x25] sm:$0xff]
      %v3630 = vld [vmem:[#allocation2 + $0x2d] sm:$0xff]
      %v3631 = vld [vmem:[#allocation2 + $0x35] sm:$0xff]
      %v3632 = vld [vmem:[#allocation2 + $0x3d] sm:$0x1]
      %v3633 = vld [vmem:[#allocation2 + $0x3c] sm:$0xff]
      %v3634 = vld [vmem:[#allocation2 + $0x44] sm:$0x1]
      %v3635 = vld [vmem:[#allocation2 + $0x3d] sm:$0xff]
      %v3636 = vld [vmem:[#allocation2 + $0x45] sm:$0x1]
      %v3637 = vld [vmem:[#allocation2 + $0x1e] sm:$0xff]
      %v3638 = vld [vmem:[#allocation2 + $0x26] sm:$0xff]
      %v3639 = vld [vmem:[#allocation2 + $0x2e] sm:$0xff]
      %v3640 = vld [vmem:[#allocation2 + $0x36] sm:$0xff]
      %v3641 = vld [vmem:[#allocation2 + $0x3e] sm:$0xff]
      %v3642 = vld [vmem:[#allocation2 + $0x46] sm:$0x1]
      %3649 = vrot.lane.b32.xlu0 %v3611, 32
      %v3650 = vpop.permute.xlu0 %3649
      %3651 = vrot.lane.b32.xlu0 %v3612, 32
      %v3652 = vpop.permute.xlu0 %3651
      %3653 = vrot.lane.b32.xlu0 %v3613, 32
      %v3654 = vpop.permute.xlu0 %3653
      %3655 = vrot.lane.b32.xlu0 %v3614, 32
      %v3656 = vpop.permute.xlu0 %3655
      %3657 = vrot.lane.b32.xlu0 %v3615, 32
      %v3658 = vpop.permute.xlu0 %3657
      %3659 = vrot.lane.b32.xlu0 %v3616, 32
      %v3660 = vpop.permute.xlu0 %3659
      %3673 = vrot.lane.b32.xlu0 %v3617, 64
      %v3674 = vpop.permute.xlu0 %3673
      %3675 = vrot.lane.b32.xlu0 %v3618, 64
      %v3676 = vpop.permute.xlu0 %3675
      %3677 = vrot.lane.b32.xlu0 %v3619, 64
      %v3678 = vpop.permute.xlu0 %3677
      %3679 = vrot.lane.b32.xlu0 %v3620, 64
      %v3680 = vpop.permute.xlu0 %3679
      %3681 = vrot.lane.b32.xlu0 %v3621, 64
      %v3682 = vpop.permute.xlu0 %3681
      %3683 = vrot.lane.b32.xlu0 %v3622, 64
      %v3684 = vpop.permute.xlu0 %3683
      %3693 = vrot.lane.b32.xlu0 %v3612, 96
      %v3694 = vpop.permute.xlu0 %3693
      %3695 = vrot.lane.b32.xlu0 %v3613, 96
      %v3696 = vpop.permute.xlu0 %3695
      %3697 = vrot.lane.b32.xlu0 %v3614, 96
      %v3698 = vpop.permute.xlu0 %3697
      %3699 = vrot.lane.b32.xlu0 %v3615, 96
      %v3700 = vpop.permute.xlu0 %3699
      %3701 = vrot.lane.b32.xlu0 %v3623, 96
      %v3702 = vpop.permute.xlu0 %3701
      %3703 = vrot.lane.b32.xlu0 %v3624, 96
      %v3704 = vpop.permute.xlu0 %3703
      %3717 = vrot.lane.b32.xlu0 %v3627, 32
      %v3718 = vpop.permute.xlu0 %3717
      %3719 = vrot.lane.b32.xlu0 %v3628, 32
      %v3720 = vpop.permute.xlu0 %3719
      %3721 = vrot.lane.b32.xlu0 %v3629, 32
      %v3722 = vpop.permute.xlu0 %3721
      %3723 = vrot.lane.b32.xlu0 %v3630, 32
      %v3724 = vpop.permute.xlu0 %3723
      %3725 = vrot.lane.b32.xlu0 %v3631, 32
      %v3726 = vpop.permute.xlu0 %3725
      %3727 = vrot.lane.b32.xlu0 %v3632, 32
      %v3728 = vpop.permute.xlu0 %3727
      %3738 = vrot.lane.b32.xlu0 %v3625, 64
      %v3739 = vpop.permute.xlu0 %3738
      %3740 = vrot.lane.b32.xlu0 %v3633, 64
      %v3741 = vpop.permute.xlu0 %3740
      %3742 = vrot.lane.b32.xlu0 %v3634, 64
      %v3743 = vpop.permute.xlu0 %3742
      %3749 = vrot.lane.b32.xlu0 %v3628, 96
      %v3750 = vpop.permute.xlu0 %3749
      %3751 = vrot.lane.b32.xlu0 %v3629, 96
      %v3752 = vpop.permute.xlu0 %3751
      %3753 = vrot.lane.b32.xlu0 %v3630, 96
      %v3754 = vpop.permute.xlu0 %3753
      %3755 = vrot.lane.b32.xlu0 %v3631, 96
      %v3756 = vpop.permute.xlu0 %3755
      %3757 = vrot.lane.b32.xlu0 %v3635, 96
      %v3758 = vpop.permute.xlu0 %3757
      %3759 = vrot.lane.b32.xlu0 %v3636, 96
      %v3760 = vpop.permute.xlu0 %3759
      %v3767 = vsel %vm536, %v3605, %v3650
      %v3768 = vsel %vm536, %v3606, %v3652
      %v3769 = vsel %vm536, %v3607, %v3654
      %v3770 = vsel %vm536, %v3608, %v3656
      %v3771 = vsel %vm536, %v3609, %v3658
      %v3772 = vsel %vm536, %v3610, %v3660
      %v3773 = vsel %vm549, %v3767, %v3674
      %v3774 = vsel %vm549, %v3768, %v3676
      %v3775 = vsel %vm549, %v3769, %v3678
      %v3776 = vsel %vm549, %v3770, %v3680
      %v3777 = vsel %vm549, %v3771, %v3682
      %v3778 = vsel %vm549, %v3772, %v3684
      %v3779 = vsel %vm1157, %v3773, %v3694
      %v3780 = vsel %vm1157, %v3774, %v3696
      %v3781 = vsel %vm1157, %v3775, %v3698
      %v3782 = vsel %vm1157, %v3776, %v3700
      %v3783 = vsel %vm1157, %v3777, %v3702
      %v3784 = vsel %vm1157, %v3778, %v3704
      %v3785 = vsel %vm536, %v3618, %v3718
      %v3786 = vsel %vm536, %v3619, %v3720
      %v3787 = vsel %vm536, %v3620, %v3722
      %v3788 = vsel %vm536, %v3621, %v3724
      %v3789 = vsel %vm536, %v3625, %v3726
      %v3790 = vsel %vm536, %v3626, %v3728
      %v3791 = vsel %vm549, %v3785, %v3678
      %v3792 = vsel %vm549, %v3786, %v3680
      %v3793 = vsel %vm549, %v3787, %v3682
      %v3794 = vsel %vm549, %v3788, %v3739
      %v3795 = vsel %vm549, %v3789, %v3741
      %v3796 = vsel %vm549, %v3790, %v3743
      %v3797 = vsel %vm1157, %v3791, %v3750
      %v3798 = vsel %vm1157, %v3792, %v3752
      %v3799 = vsel %vm1157, %v3793, %v3754
      %v3800 = vsel %vm1157, %v3794, %v3756
      %v3801 = vsel %vm1157, %v3795, %v3758
      %v3802 = vsel %vm1157, %v3796, %v3760
      %v3803 = vpack.c.bf16 %v3780, %v3779
      %v3804 = vpack.c.bf16 %v3798, %v3797
      %v3805 = vpack.c.bf16 %v3638, %v3637
      %v3806 = vpack.c.bf16 %v3782, %v3781
      %v3807 = vpack.c.bf16 %v3800, %v3799
      %v3808 = vpack.c.bf16 %v3640, %v3639
      %v3809 = vpack.c.bf16 %v3784, %v3783
      %v3810 = vpack.c.bf16 %v3802, %v3801
      %v3811 = vpack.c.bf16 %v3642, %v3641
      %v3812 = vperm.slane %v584, 7
      %v3849 = vunpack.c.l.b16 %v3569
      %v3850 = vunpack.c.l.b16 %v3570
      %v3851 = vunpack.c.l.b16 %v3571
      %v3852 = vunpack.c.l.b16 %v3572
      %v3853 = vunpack.c.l.b16 %v3573
      %v3854 = vunpack.c.l.b16 %v3574
      %v3855 = vunpack.c.l.b16 %v3575
      %v3856 = vunpack.c.l.b16 %v3576
      %v3857 = vunpack.c.l.b16 %v3577
      %v3858 = vunpack.c.l.b16 %v3578
      %v3859 = vunpack.c.l.b16 %v3579
      %v3860 = vunpack.c.l.b16 %v3580
      %v3861 = vunpack.c.l.b16 %v3581
      %v3862 = vunpack.c.l.b16 %v3582
      %v3863 = vunpack.c.l.b16 %v3583
      %v3864 = vunpack.c.l.b16 %v3584
      %v3865 = vunpack.c.l.b16 %v3585
      %v3866 = vunpack.c.l.b16 %v3586
      %v3867 = vunpack.c.l.b16 %v3587
      %v3868 = vunpack.c.l.b16 %v3588
      %v3869 = vunpack.c.l.b16 %v3589
      %v3870 = vunpack.c.l.b16 %v3590
      %v3871 = vunpack.c.l.b16 %v3591
      %v3872 = vunpack.c.l.b16 %v3592
      %v3873 = vunpack.c.l.b16 %v3593
      %v3874 = vunpack.c.l.b16 %v3594
      %v3875 = vunpack.c.l.b16 %v3595
      %v3876 = vunpack.c.l.b16 %v3596
      %v3877 = vunpack.c.l.b16 %v3597
      %v3878 = vunpack.c.l.b16 %v3598
      %v3879 = vunpack.c.l.b16 %v3599
      %v3880 = vunpack.c.l.b16 %v3600
      %v3881 = vunpack.c.l.b16 %v3601
      %v3882 = vunpack.c.l.b16 %v3602
      %v3883 = vunpack.c.l.b16 %v3603
      %v3884 = vunpack.c.l.b16 %v3604
      %v3885 = vpack.c.b16 %v3850, %v3849
      %v3886 = vpack.c.b16 %v3852, %v3851
      %v3887 = vpack.c.b16 %v3854, %v3853
      %v3888 = vpack.c.b16 %v3856, %v3855
      %v3889 = vpack.c.b16 %v3858, %v3857
      %v3890 = vpack.c.b16 %v3860, %v3859
      %v3891 = vpack.c.b16 %v3862, %v3861
      %v3892 = vpack.c.b16 %v3864, %v3863
      %v3893 = vpack.c.b16 %v3866, %v3865
      %v3894 = vpack.c.b16 %v3868, %v3867
      %v3895 = vpack.c.b16 %v3870, %v3869
      %v3896 = vpack.c.b16 %v3872, %v3871
      %v3897 = vpack.c.b16 %v3874, %v3873
      %v3898 = vpack.c.b16 %v3876, %v3875
      %v3899 = vpack.c.b16 %v3878, %v3877
      %v3900 = vpack.c.b16 %v3880, %v3879
      %v3901 = vpack.c.b16 %v3882, %v3881
      %v3902 = vpack.c.b16 %v3884, %v3883
      %v3922 = vsel %vm536, %v3805, 0
      %v3925 = vsel %vm536, %v3808, 0
      %v3928 = vsel %vm536, %v3811, 0
      %3930 = vmatpush.bf16.msra.mxu0 %v3892
      %3931 = vmatpush.bf16.msra.mxu0 %v3891
      %3932 = vmatpush.bf16.msra.mxu0 %v3890
      %3933 = vmatpush.bf16.msra.mxu0 %v3889
      %3934 = vmatpush.bf16.msra.mxu0 %v3888
      %3935 = vmatpush.bf16.msra.mxu0 %v3887
      %3936 = vmatpush.bf16.msra.mxu0 %v3886
      %3937 = vmatpush.bf16.msra.mxu0 %v3885
      %3938 = vmatmul.bf16.gmra.mxu0 %v3803
      %v3939 = vpop.f32.mrf.mxu0
      %v3940 = vadd.f32 %v3812, %v3939
      %v3941 = vpop.f32.mrf.mxu0
      %v3942 = vadd.f32 %v3812, %v3941
      %3943 = vmatmul.bf16.gmra.mxu0 %v3806
      %v3944 = vpop.f32.mrf.mxu0
      %v3945 = vadd.f32 %v3812, %v3944
      %v3946 = vpop.f32.mrf.mxu0
      %v3947 = vadd.f32 %v3812, %v3946
      %3948 = vmatmul.bf16.gmra.mxu0 %v3809
      %v3949 = vpop.f32.mrf.mxu0
      %v3950 = vadd.f32 %v3812, %v3949
      %v3951 = vpop.f32.mrf.mxu0
      %v3952 = vadd.f32 %v3812, %v3951
      %3953 = vdwg.mxu0
      %3954 = vmatpush.bf16.msra.mxu0 %v3900
      %3955 = vmatpush.bf16.msra.mxu0 %v3899
      %3956 = vmatpush.bf16.msra.mxu0 %v3898
      %3957 = vmatpush.bf16.msra.mxu0 %v3897
      %3958 = vmatpush.bf16.msra.mxu0 %v3896
      %3959 = vmatpush.bf16.msra.mxu0 %v3895
      %3960 = vmatpush.bf16.msra.mxu0 %v3894
      %3961 = vmatpush.bf16.msra.mxu0 %v3893
      %3962 = vmatmul.bf16.gmra.mxu0 %v3804
      %v3963 = vpop.f32.mrf.mxu0
      %v3964 = vadd.f32 %v3940, %v3963
      %v3965 = vpop.f32.mrf.mxu0
      %v3966 = vadd.f32 %v3942, %v3965
      %3967 = vmatmul.bf16.gmra.mxu0 %v3807
      %v3968 = vpop.f32.mrf.mxu0
      %v3969 = vadd.f32 %v3945, %v3968
      %v3970 = vpop.f32.mrf.mxu0
      %v3971 = vadd.f32 %v3947, %v3970
      %3972 = vmatmul.bf16.gmra.mxu0 %v3810
      %v3973 = vpop.f32.mrf.mxu0
      %v3974 = vadd.f32 %v3950, %v3973
      %v3975 = vpop.f32.mrf.mxu0
      %v3976 = vadd.f32 %v3952, %v3975
      %3977 = vdwg.mxu0
      %3978 = vmatpush.bf16.msra.mxu0 0
      %3979 = vmatpush.bf16.msra.mxu0 0
      %3980 = vmatpush.bf16.msra.mxu0 0
      %3981 = vmatpush.bf16.msra.mxu0 0
      %3982 = vmatpush.bf16.msra.mxu0 0
      %3983 = vmatpush.bf16.msra.mxu0 0
      %3984 = vmatpush.bf16.msra.mxu0 %v3902
      %3985 = vmatpush.bf16.msra.mxu0 %v3901
      %3986 = vmatmul.bf16.gmra.mxu0 %v3922
      %v3987 = vpop.f32.mrf.mxu0
      %v3988 = vadd.f32 %v3964, %v3987
      %v3989 = vpop.f32.mrf.mxu0
      %v3990 = vadd.f32 %v3966, %v3989
      %3991 = vmatmul.bf16.gmra.mxu0 %v3925
      %v3992 = vpop.f32.mrf.mxu0
      %v3993 = vadd.f32 %v3969, %v3992
      %v3994 = vpop.f32.mrf.mxu0
      %v3995 = vadd.f32 %v3971, %v3994
      %3996 = vmatmul.bf16.gmra.mxu0 %v3928
      %v3997 = vpop.f32.mrf.mxu0
      %v3998 = vadd.f32 %v3974, %v3997
      %v3999 = vpop.f32.mrf.mxu0
      %v4000 = vadd.f32 %v3976, %v3999
      %4001 = vdwg.mxu0
      %v4002 = vld [vmem:[%s529] sm:$0xff]
      %v4003 = vld [vmem:[%s529 + $0x8] sm:$0xff]
      %v4004 = vld [vmem:[%s529 + $0x10] sm:$0xff]
      %v4005 = vld [vmem:[%s529 + $0x18] sm:$0xff]
      %v4006 = vld [vmem:[%s529 + $0x20] sm:$0xff]
      %v4007 = vld [vmem:[%s529 + $0x28] sm:$0xff]
      %v4008 = vld [vmem:[%s529 + $0x30] sm:$0xff]
      %v4009 = vld [vmem:[%s529 + $0x38] sm:$0xff]
      %v4010 = vld [vmem:[%s529 + $0x40] sm:$0xff]
      %v4011 = vld [vmem:[%s529 + $0x48] sm:$0xff]
      %v4012 = vld [vmem:[%s529 + $0x50] sm:$0x1]
      %v4013 = vld [vmem:[%s5] sm:$0xf]
      %v4014 = vld [vmem:[%s5 + $0x4] sm:$0xf]
      %v4015 = vld [vmem:[%s5 + $0x8] sm:$0xf]
      %v4016 = vld [vmem:[%s5 + $0xc] sm:$0xf]
      %v4017 = vld [vmem:[%s5 + $0x10] sm:$0xf]
      %v4018 = vld [vmem:[%s5 + $0x14] sm:$0xf]
      %v4019 = vld [vmem:[%s5 + $0x18] sm:$0xf]
      %v4020 = vld [vmem:[%s5 + $0x1c] sm:$0xf]
      %v4021 = vld [vmem:[%s5 + $0x20] sm:$0xf]
      %v4022 = vld [vmem:[%s5 + $0x24] sm:$0xf]
      %v4023 = vld [vmem:[%s5 + $0x28] sm:$0xf]
      %v4024 = vld [vmem:[%s5 + $0x2c] sm:$0xf]
      %v4025 = vld [vmem:[%s5 + $0x30] sm:$0xf]
      %v4026 = vld [vmem:[%s5 + $0x34] sm:$0xf]
      %v4027 = vld [vmem:[%s5 + $0x38] sm:$0xf]
      %v4028 = vld [vmem:[%s5 + $0x3c] sm:$0xf]
      %v4029 = vld [vmem:[%s5 + $0x40] sm:$0xf]
      %v4030 = vld [vmem:[%s5 + $0x44] sm:$0xf]
      %v4031 = vld [vmem:[%s5 + $0x48] sm:$0xf]
      %v4032 = vld [vmem:[%s5 + $0x4c] sm:$0xf]
      %v4033 = vld [vmem:[%s5 + $0x50] sm:$0xf]
      %v4034 = vld [vmem:[%s5 + $0x54] sm:$0xf]
      %v4035 = vld [vmem:[%s5 + $0x58] sm:$0xf]
      %v4036 = vld [vmem:[%s5 + $0x5c] sm:$0xf]
      %v4037 = vld [vmem:[%s5 + $0x60] sm:$0xf]
      %v4038 = vld [vmem:[%s5 + $0x64] sm:$0xf]
      %v4039 = vld [vmem:[%s5 + $0x68] sm:$0xf]
      %v4040 = vld [vmem:[%s5 + $0x6c] sm:$0xf]
      %v4041 = vld [vmem:[%s5 + $0x70] sm:$0xf]
      %v4042 = vld [vmem:[%s5 + $0x74] sm:$0xf]
      %v4043 = vld [vmem:[%s5 + $0x78] sm:$0xf]
      %v4044 = vld [vmem:[%s5 + $0x7c] sm:$0xf]
      %v4045 = vld [vmem:[%s5 + $0x80] sm:$0xf]
      %v4046 = vld [vmem:[%s5 + $0x84] sm:$0xf]
      %v4047 = vld [vmem:[%s5 + $0x88] sm:$0xf]
      %v4048 = vld [vmem:[%s5 + $0x8c] sm:$0xf]
      %v4049 = vld [vmem:[%s5 + $0x90] sm:$0xf]
      %v4050 = vld [vmem:[%s5 + $0x94] sm:$0xf]
      %v4051 = vld [vmem:[%s5 + $0x98] sm:$0xf]
      %v4052 = vld [vmem:[%s5 + $0x9c] sm:$0xf]
      %v4053 = vld [vmem:[%s5 + $0xa0] sm:$0xf]
      %v4054 = vld [vmem:[%s5 + $0xa4] sm:$0xf]
      %v4055 = vld [vmem:[%s5 + $0xa8] sm:$0xf]
      %v4056 = vld [vmem:[%s5 + $0xac] sm:$0xf]
      %v4057 = vld [vmem:[%s5 + $0xb0] sm:$0xf]
      %v4058 = vld [vmem:[%s5 + $0xb4] sm:$0xf]
      %v4059 = vld [vmem:[%s5 + $0xb8] sm:$0xf]
      %v4060 = vld [vmem:[%s5 + $0xbc] sm:$0xf]
      %v4061 = vld [vmem:[%s5 + $0xc0] sm:$0xf]
      %v4062 = vld [vmem:[%s5 + $0xc4] sm:$0xf]
      %v4063 = vld [vmem:[%s5 + $0xc8] sm:$0xf]
      %v4064 = vld [vmem:[%s5 + $0xcc] sm:$0xf]
      %v4065 = vld [vmem:[%s5 + $0xd0] sm:$0xf]
      %v4066 = vld [vmem:[%s5 + $0xd4] sm:$0xf]
      %v4075 = vrot.slane %v4002, 1
      %v4076 = vrot.slane %v4003, 1
      %v4077 = vsel %vm656, %v4075, %v4076
      %v4078 = vrot.slane %v4004, 1
      %v4079 = vsel %vm656, %v4076, %v4078
      %v4080 = vrot.slane %v4005, 1
      %v4081 = vsel %vm656, %v4078, %v4080
      %v4082 = vrot.slane %v4006, 1
      %v4083 = vsel %vm656, %v4080, %v4082
      %v4084 = vrot.slane %v4007, 1
      %v4085 = vsel %vm656, %v4082, %v4084
      %v4086 = vrot.slane %v4008, 1
      %v4087 = vsel %vm656, %v4084, %v4086
      %v4088 = vrot.slane %v4009, 1
      %v4089 = vsel %vm656, %v4086, %v4088
      %4090 = vrot.lane.b32.xlu0 %v4077, 48
      %v4091 = vpop.permute.xlu0 %4090
      %4092 = vrot.lane.b32.xlu0 %v4079, 48
      %v4093 = vpop.permute.xlu0 %4092
      %4094 = vrot.lane.b32.xlu0 %v4081, 48
      %v4095 = vpop.permute.xlu0 %4094
      %4096 = vrot.lane.b32.xlu0 %v4083, 48
      %v4097 = vpop.permute.xlu0 %4096
      %4098 = vrot.lane.b32.xlu0 %v4085, 48
      %v4099 = vpop.permute.xlu0 %4098
      %4100 = vrot.lane.b32.xlu0 %v4087, 48
      %v4101 = vpop.permute.xlu0 %4100
      %4102 = vrot.lane.b32.xlu0 %v4089, 48
      %v4103 = vpop.permute.xlu0 %4102
      %4104 = vrot.lane.b32.xlu0 %v4088, 48
      %v4105 = vpop.permute.xlu0 %4104
      %v4114 = vrot.slane %v4002, 2
      %v4115 = vrot.slane %v4003, 2
      %v4116 = vsel %vm731, %v4114, %v4115
      %v4117 = vrot.slane %v4004, 2
      %v4118 = vsel %vm731, %v4115, %v4117
      %v4119 = vrot.slane %v4005, 2
      %v4120 = vsel %vm731, %v4117, %v4119
      %v4121 = vrot.slane %v4006, 2
      %v4122 = vsel %vm731, %v4119, %v4121
      %v4123 = vrot.slane %v4007, 2
      %v4124 = vsel %vm731, %v4121, %v4123
      %v4125 = vrot.slane %v4008, 2
      %v4126 = vsel %vm731, %v4123, %v4125
      %v4127 = vrot.slane %v4009, 2
      %v4128 = vsel %vm731, %v4125, %v4127
      %4129 = vrot.lane.b32.xlu0 %v4116, 96
      %v4130 = vpop.permute.xlu0 %4129
      %4131 = vrot.lane.b32.xlu0 %v4118, 96
      %v4132 = vpop.permute.xlu0 %4131
      %4133 = vrot.lane.b32.xlu0 %v4120, 96
      %v4134 = vpop.permute.xlu0 %4133
      %4135 = vrot.lane.b32.xlu0 %v4122, 96
      %v4136 = vpop.permute.xlu0 %4135
      %4137 = vrot.lane.b32.xlu0 %v4124, 96
      %v4138 = vpop.permute.xlu0 %4137
      %4139 = vrot.lane.b32.xlu0 %v4126, 96
      %v4140 = vpop.permute.xlu0 %4139
      %4141 = vrot.lane.b32.xlu0 %v4128, 96
      %v4142 = vpop.permute.xlu0 %4141
      %4143 = vrot.lane.b32.xlu0 %v4127, 96
      %v4144 = vpop.permute.xlu0 %4143
      %v4154 = vrot.slane %v4010, 1
      %v4155 = vsel %vm656, %v4088, %v4154
      %4156 = vrot.lane.b32.xlu0 %v4079, 16
      %v4157 = vpop.permute.xlu0 %4156
      %4158 = vrot.lane.b32.xlu0 %v4081, 16
      %v4159 = vpop.permute.xlu0 %4158
      %4160 = vrot.lane.b32.xlu0 %v4083, 16
      %v4161 = vpop.permute.xlu0 %4160
      %4162 = vrot.lane.b32.xlu0 %v4085, 16
      %v4163 = vpop.permute.xlu0 %4162
      %4164 = vrot.lane.b32.xlu0 %v4087, 16
      %v4165 = vpop.permute.xlu0 %4164
      %4166 = vrot.lane.b32.xlu0 %v4089, 16
      %v4167 = vpop.permute.xlu0 %4166
      %4168 = vrot.lane.b32.xlu0 %v4155, 16
      %v4169 = vpop.permute.xlu0 %4168
      %4170 = vrot.lane.b32.xlu0 %v4154, 16
      %v4171 = vpop.permute.xlu0 %4170
      %v4180 = vrot.slane %v4010, 2
      %v4181 = vsel %vm731, %v4127, %v4180
      %4182 = vrot.lane.b32.xlu0 %v4118, 64
      %v4183 = vpop.permute.xlu0 %4182
      %4184 = vrot.lane.b32.xlu0 %v4120, 64
      %v4185 = vpop.permute.xlu0 %4184
      %4186 = vrot.lane.b32.xlu0 %v4122, 64
      %v4187 = vpop.permute.xlu0 %4186
      %4188 = vrot.lane.b32.xlu0 %v4124, 64
      %v4189 = vpop.permute.xlu0 %4188
      %4190 = vrot.lane.b32.xlu0 %v4126, 64
      %v4191 = vpop.permute.xlu0 %4190
      %4192 = vrot.lane.b32.xlu0 %v4128, 64
      %v4193 = vpop.permute.xlu0 %4192
      %4194 = vrot.lane.b32.xlu0 %v4181, 64
      %v4195 = vpop.permute.xlu0 %4194
      %4196 = vrot.lane.b32.xlu0 %v4180, 64
      %v4197 = vpop.permute.xlu0 %4196
      %v4206 = vrot.slane %v4003, 3
      %v4207 = vrot.slane %v4004, 3
      %v4208 = vsel %vm2084, %v4206, %v4207
      %v4209 = vrot.slane %v4005, 3
      %v4210 = vsel %vm2084, %v4207, %v4209
      %v4211 = vrot.slane %v4006, 3
      %v4212 = vsel %vm2084, %v4209, %v4211
      %v4213 = vrot.slane %v4007, 3
      %v4214 = vsel %vm2084, %v4211, %v4213
      %v4215 = vrot.slane %v4008, 3
      %v4216 = vsel %vm2084, %v4213, %v4215
      %v4217 = vrot.slane %v4009, 3
      %v4218 = vsel %vm2084, %v4215, %v4217
      %v4219 = vrot.slane %v4010, 3
      %v4220 = vsel %vm2084, %v4217, %v4219
      %4221 = vrot.lane.b32.xlu0 %v4208, 112
      %v4222 = vpop.permute.xlu0 %4221
      %4223 = vrot.lane.b32.xlu0 %v4210, 112
      %v4224 = vpop.permute.xlu0 %4223
      %4225 = vrot.lane.b32.xlu0 %v4212, 112
      %v4226 = vpop.permute.xlu0 %4225
      %4227 = vrot.lane.b32.xlu0 %v4214, 112
      %v4228 = vpop.permute.xlu0 %4227
      %4229 = vrot.lane.b32.xlu0 %v4216, 112
      %v4230 = vpop.permute.xlu0 %4229
      %4231 = vrot.lane.b32.xlu0 %v4218, 112
      %v4232 = vpop.permute.xlu0 %4231
      %4233 = vrot.lane.b32.xlu0 %v4220, 112
      %v4234 = vpop.permute.xlu0 %4233
      %4235 = vrot.lane.b32.xlu0 %v4219, 112
      %v4236 = vpop.permute.xlu0 %4235
      %v4246 = vrot.slane %v4011, 2
      %v4247 = vsel %vm731, %v4180, %v4246
      %4248 = vrot.lane.b32.xlu0 %v4120, 32
      %v4249 = vpop.permute.xlu0 %4248
      %4250 = vrot.lane.b32.xlu0 %v4122, 32
      %v4251 = vpop.permute.xlu0 %4250
      %4252 = vrot.lane.b32.xlu0 %v4124, 32
      %v4253 = vpop.permute.xlu0 %4252
      %4254 = vrot.lane.b32.xlu0 %v4126, 32
      %v4255 = vpop.permute.xlu0 %4254
      %4256 = vrot.lane.b32.xlu0 %v4128, 32
      %v4257 = vpop.permute.xlu0 %4256
      %4258 = vrot.lane.b32.xlu0 %v4181, 32
      %v4259 = vpop.permute.xlu0 %4258
      %4260 = vrot.lane.b32.xlu0 %v4247, 32
      %v4261 = vpop.permute.xlu0 %4260
      %4262 = vrot.lane.b32.xlu0 %v4246, 32
      %v4263 = vpop.permute.xlu0 %4262
      %v4272 = vrot.slane %v4011, 3
      %v4273 = vsel %vm2084, %v4219, %v4272
      %4274 = vrot.lane.b32.xlu0 %v4210, 80
      %v4275 = vpop.permute.xlu0 %4274
      %4276 = vrot.lane.b32.xlu0 %v4212, 80
      %v4277 = vpop.permute.xlu0 %4276
      %4278 = vrot.lane.b32.xlu0 %v4214, 80
      %v4279 = vpop.permute.xlu0 %4278
      %4280 = vrot.lane.b32.xlu0 %v4216, 80
      %v4281 = vpop.permute.xlu0 %4280
      %4282 = vrot.lane.b32.xlu0 %v4218, 80
      %v4283 = vpop.permute.xlu0 %4282
      %4284 = vrot.lane.b32.xlu0 %v4220, 80
      %v4285 = vpop.permute.xlu0 %4284
      %4286 = vrot.lane.b32.xlu0 %v4273, 80
      %v4287 = vpop.permute.xlu0 %4286
      %4288 = vrot.lane.b32.xlu0 %v4272, 80
      %v4289 = vpop.permute.xlu0 %4288
      %v4299 = vrot.slane %v4004, 4
      %v4300 = vrot.slane %v4005, 4
      %v4301 = vsel %vm808, %v4299, %v4300
      %v4302 = vrot.slane %v4006, 4
      %v4303 = vsel %vm808, %v4300, %v4302
      %v4304 = vrot.slane %v4007, 4
      %v4305 = vsel %vm808, %v4302, %v4304
      %v4306 = vrot.slane %v4008, 4
      %v4307 = vsel %vm808, %v4304, %v4306
      %v4308 = vrot.slane %v4009, 4
      %v4309 = vsel %vm808, %v4306, %v4308
      %v4310 = vrot.slane %v4010, 4
      %v4311 = vsel %vm808, %v4308, %v4310
      %v4312 = vrot.slane %v4011, 4
      %v4313 = vsel %vm808, %v4310, %v4312
      %v4314 = vrot.slane %v4012, 4
      %v4315 = vsel %vm808, %v4312, %v4314
      %vm4324 = vcmask 392192
      %v4325 = vsel %vm4324, %v4002, %v4091
      %v4326 = vsel %vm4324, %v4003, %v4093
      %v4327 = vsel %vm4324, %v4004, %v4095
      %v4328 = vsel %vm4324, %v4005, %v4097
      %v4329 = vsel %vm4324, %v4006, %v4099
      %v4330 = vsel %vm4324, %v4007, %v4101
      %v4331 = vsel %vm4324, %v4008, %v4103
      %v4332 = vsel %vm4324, %v4009, %v4105
      %v4333 = vsel %vm1157, %v4325, %v4130
      %v4334 = vsel %vm1157, %v4326, %v4132
      %v4335 = vsel %vm1157, %v4327, %v4134
      %v4336 = vsel %vm1157, %v4328, %v4136
      %v4337 = vsel %vm1157, %v4329, %v4138
      %v4338 = vsel %vm1157, %v4330, %v4140
      %v4339 = vsel %vm1157, %v4331, %v4142
      %v4340 = vsel %vm1157, %v4332, %v4144
      %vm4341 = vcmask 130048
      %v4342 = vsel %vm4341, %v4130, %v4157
      %v4343 = vsel %vm4341, %v4132, %v4159
      %v4344 = vsel %vm4341, %v4134, %v4161
      %v4345 = vsel %vm4341, %v4136, %v4163
      %v4346 = vsel %vm4341, %v4138, %v4165
      %v4347 = vsel %vm4341, %v4140, %v4167
      %v4348 = vsel %vm4341, %v4142, %v4169
      %v4349 = vsel %vm4341, %v4144, %v4171
      %v4350 = vsel %vm549, %v4342, %v4183
      %v4351 = vsel %vm549, %v4343, %v4185
      %v4352 = vsel %vm549, %v4344, %v4187
      %v4353 = vsel %vm549, %v4345, %v4189
      %v4354 = vsel %vm549, %v4346, %v4191
      %v4355 = vsel %vm549, %v4347, %v4193
      %v4356 = vsel %vm549, %v4348, %v4195
      %v4357 = vsel %vm549, %v4349, %v4197
      %vm4358 = vcmask 916480
      %v4359 = vsel %vm4358, %v4350, %v4222
      %v4360 = vsel %vm4358, %v4351, %v4224
      %v4361 = vsel %vm4358, %v4352, %v4226
      %v4362 = vsel %vm4358, %v4353, %v4228
      %v4363 = vsel %vm4358, %v4354, %v4230
      %v4364 = vsel %vm4358, %v4355, %v4232
      %v4365 = vsel %vm4358, %v4356, %v4234
      %v4366 = vsel %vm4358, %v4357, %v4236
      %v4367 = vsel %vm536, %v4222, %v4249
      %v4368 = vsel %vm536, %v4224, %v4251
      %v4369 = vsel %vm536, %v4226, %v4253
      %v4370 = vsel %vm536, %v4228, %v4255
      %v4371 = vsel %vm536, %v4230, %v4257
      %v4372 = vsel %vm536, %v4232, %v4259
      %v4373 = vsel %vm536, %v4234, %v4261
      %v4374 = vsel %vm536, %v4236, %v4263
      %vm4375 = vcmask 654336
      %v4376 = vsel %vm4375, %v4367, %v4275
      %v4377 = vsel %vm4375, %v4368, %v4277
      %v4378 = vsel %vm4375, %v4369, %v4279
      %v4379 = vsel %vm4375, %v4370, %v4281
      %v4380 = vsel %vm4375, %v4371, %v4283
      %v4381 = vsel %vm4375, %v4372, %v4285
      %v4382 = vsel %vm4375, %v4373, %v4287
      %v4383 = vsel %vm4375, %v4374, %v4289
      %v4384 = vpack.c.bf16 %v4334, %v4333
      %v4385 = vpack.c.bf16 %v4360, %v4359
      %v4386 = vpack.c.bf16 %v4377, %v4376
      %v4387 = vpack.c.bf16 %v4303, %v4301
      %v4388 = vpack.c.bf16 %v4336, %v4335
      %v4389 = vpack.c.bf16 %v4362, %v4361
      %v4390 = vpack.c.bf16 %v4379, %v4378
      %v4391 = vpack.c.bf16 %v4307, %v4305
      %v4392 = vpack.c.bf16 %v4338, %v4337
      %v4393 = vpack.c.bf16 %v4364, %v4363
      %v4394 = vpack.c.bf16 %v4381, %v4380
      %v4395 = vpack.c.bf16 %v4311, %v4309
      %v4396 = vpack.c.bf16 %v4340, %v4339
      %v4397 = vpack.c.bf16 %v4366, %v4365
      %v4398 = vpack.c.bf16 %v4383, %v4382
      %v4399 = vpack.c.bf16 %v4315, %v4313
      %v4400 = vperm.slane %v585, 0
      %v4455 = vunpack.c.l.b16 %v4013
      %v4456 = vunpack.c.l.b16 %v4014
      %v4457 = vunpack.c.l.b16 %v4015
      %v4458 = vunpack.c.l.b16 %v4016
      %v4459 = vunpack.c.l.b16 %v4017
      %v4460 = vunpack.c.l.b16 %v4018
      %v4461 = vunpack.c.l.b16 %v4019
      %v4462 = vunpack.c.l.b16 %v4020
      %v4463 = vunpack.c.l.b16 %v4021
      %v4464 = vunpack.c.l.b16 %v4022
      %v4465 = vunpack.c.l.b16 %v4023
      %v4466 = vunpack.c.l.b16 %v4024
      %v4467 = vunpack.c.l.b16 %v4025
      %v4468 = vunpack.c.l.b16 %v4026
      %v4469 = vunpack.c.l.b16 %v4027
      %v4470 = vunpack.c.l.b16 %v4028
      %v4471 = vunpack.c.l.b16 %v4029
      %v4472 = vunpack.c.l.b16 %v4030
      %v4473 = vunpack.c.l.b16 %v4031
      %v4474 = vunpack.c.l.b16 %v4032
      %v4475 = vunpack.c.l.b16 %v4033
      %v4476 = vunpack.c.l.b16 %v4034
      %v4477 = vunpack.c.l.b16 %v4035
      %v4478 = vunpack.c.l.b16 %v4036
      %v4479 = vunpack.c.l.b16 %v4037
      %v4480 = vunpack.c.l.b16 %v4038
      %v4481 = vunpack.c.l.b16 %v4039
      %v4482 = vunpack.c.l.b16 %v4040
      %v4483 = vunpack.c.l.b16 %v4041
      %v4484 = vunpack.c.l.b16 %v4042
      %v4485 = vunpack.c.l.b16 %v4043
      %v4486 = vunpack.c.l.b16 %v4044
      %v4487 = vunpack.c.l.b16 %v4045
      %v4488 = vunpack.c.l.b16 %v4046
      %v4489 = vunpack.c.l.b16 %v4047
      %v4490 = vunpack.c.l.b16 %v4048
      %v4491 = vunpack.c.l.b16 %v4049
      %v4492 = vunpack.c.l.b16 %v4050
      %v4493 = vunpack.c.l.b16 %v4051
      %v4494 = vunpack.c.l.b16 %v4052
      %v4495 = vunpack.c.l.b16 %v4053
      %v4496 = vunpack.c.l.b16 %v4054
      %v4497 = vunpack.c.l.b16 %v4055
      %v4498 = vunpack.c.l.b16 %v4056
      %v4499 = vunpack.c.l.b16 %v4057
      %v4500 = vunpack.c.l.b16 %v4058
      %v4501 = vunpack.c.l.b16 %v4059
      %v4502 = vunpack.c.l.b16 %v4060
      %v4503 = vunpack.c.l.b16 %v4061
      %v4504 = vunpack.c.l.b16 %v4062
      %v4505 = vunpack.c.l.b16 %v4063
      %v4506 = vunpack.c.l.b16 %v4064
      %v4507 = vunpack.c.l.b16 %v4065
      %v4508 = vunpack.c.l.b16 %v4066
      %v4509 = vpack.c.b16 %v4456, %v4455
      %v4510 = vpack.c.b16 %v4458, %v4457
      %v4511 = vpack.c.b16 %v4460, %v4459
      %v4512 = vpack.c.b16 %v4462, %v4461
      %v4513 = vpack.c.b16 %v4464, %v4463
      %v4514 = vpack.c.b16 %v4466, %v4465
      %v4515 = vpack.c.b16 %v4468, %v4467
      %v4516 = vpack.c.b16 %v4470, %v4469
      %v4517 = vpack.c.b16 %v4472, %v4471
      %v4518 = vpack.c.b16 %v4474, %v4473
      %v4519 = vpack.c.b16 %v4476, %v4475
      %v4520 = vpack.c.b16 %v4478, %v4477
      %v4521 = vpack.c.b16 %v4480, %v4479
      %v4522 = vpack.c.b16 %v4482, %v4481
      %v4523 = vpack.c.b16 %v4484, %v4483
      %v4524 = vpack.c.b16 %v4486, %v4485
      %v4525 = vpack.c.b16 %v4488, %v4487
      %v4526 = vpack.c.b16 %v4490, %v4489
      %v4527 = vpack.c.b16 %v4492, %v4491
      %v4528 = vpack.c.b16 %v4494, %v4493
      %v4529 = vpack.c.b16 %v4496, %v4495
      %v4530 = vpack.c.b16 %v4498, %v4497
      %v4531 = vpack.c.b16 %v4500, %v4499
      %v4532 = vpack.c.b16 %v4502, %v4501
      %v4533 = vpack.c.b16 %v4504, %v4503
      %v4534 = vpack.c.b16 %v4506, %v4505
      %v4535 = vpack.c.b16 %v4508, %v4507
      %v4564 = vsel %vm4324, %v4387, 0
      %v4567 = vsel %vm4324, %v4391, 0
      %v4570 = vsel %vm4324, %v4395, 0
      %v4573 = vsel %vm4324, %v4399, 0
      %4575 = vmatpush.bf16.msra.mxu0 %v4516
      %4576 = vmatpush.bf16.msra.mxu0 %v4515
      %4577 = vmatpush.bf16.msra.mxu0 %v4514
      %4578 = vmatpush.bf16.msra.mxu0 %v4513
      %4579 = vmatpush.bf16.msra.mxu0 %v4512
      %4580 = vmatpush.bf16.msra.mxu0 %v4511
      %4581 = vmatpush.bf16.msra.mxu0 %v4510
      %4582 = vmatpush.bf16.msra.mxu0 %v4509
      %4583 = vmatmul.bf16.gmra.mxu0 %v4384
      %v4584 = vpop.f32.mrf.mxu0
      %v4585 = vadd.f32 %v4400, %v4584
      %v4586 = vpop.f32.mrf.mxu0
      %v4587 = vadd.f32 %v4400, %v4586
      %4588 = vmatmul.bf16.gmra.mxu0 %v4388
      %v4589 = vpop.f32.mrf.mxu0
      %v4590 = vadd.f32 %v4400, %v4589
      %v4591 = vpop.f32.mrf.mxu0
      %v4592 = vadd.f32 %v4400, %v4591
      %4593 = vmatmul.bf16.gmra.mxu0 %v4392
      %v4594 = vpop.f32.mrf.mxu0
      %v4595 = vadd.f32 %v4400, %v4594
      %v4596 = vpop.f32.mrf.mxu0
      %v4597 = vadd.f32 %v4400, %v4596
      %4598 = vmatmul.bf16.gmra.mxu0 %v4396
      %v4599 = vpop.f32.mrf.mxu0
      %v4600 = vadd.f32 %v4400, %v4599
      %v4601 = vpop.f32.mrf.mxu0
      %v4602 = vadd.f32 %v4400, %v4601
      %4603 = vdwg.mxu0
      %4604 = vmatpush.bf16.msra.mxu0 %v4524
      %4605 = vmatpush.bf16.msra.mxu0 %v4523
      %4606 = vmatpush.bf16.msra.mxu0 %v4522
      %4607 = vmatpush.bf16.msra.mxu0 %v4521
      %4608 = vmatpush.bf16.msra.mxu0 %v4520
      %4609 = vmatpush.bf16.msra.mxu0 %v4519
      %4610 = vmatpush.bf16.msra.mxu0 %v4518
      %4611 = vmatpush.bf16.msra.mxu0 %v4517
      %4612 = vmatmul.bf16.gmra.mxu0 %v4385
      %v4613 = vpop.f32.mrf.mxu0
      %v4614 = vadd.f32 %v4585, %v4613
      %v4615 = vpop.f32.mrf.mxu0
      %v4616 = vadd.f32 %v4587, %v4615
      %4617 = vmatmul.bf16.gmra.mxu0 %v4389
      %v4618 = vpop.f32.mrf.mxu0
      %v4619 = vadd.f32 %v4590, %v4618
      %v4620 = vpop.f32.mrf.mxu0
      %v4621 = vadd.f32 %v4592, %v4620
      %4622 = vmatmul.bf16.gmra.mxu0 %v4393
      %v4623 = vpop.f32.mrf.mxu0
      %v4624 = vadd.f32 %v4595, %v4623
      %v4625 = vpop.f32.mrf.mxu0
      %v4626 = vadd.f32 %v4597, %v4625
      %4627 = vmatmul.bf16.gmra.mxu0 %v4397
      %v4628 = vpop.f32.mrf.mxu0
      %v4629 = vadd.f32 %v4600, %v4628
      %v4630 = vpop.f32.mrf.mxu0
      %v4631 = vadd.f32 %v4602, %v4630
      %4632 = vdwg.mxu0
      %4633 = vmatpush.bf16.msra.mxu0 %v4532
      %4634 = vmatpush.bf16.msra.mxu0 %v4531
      %4635 = vmatpush.bf16.msra.mxu0 %v4530
      %4636 = vmatpush.bf16.msra.mxu0 %v4529
      %4637 = vmatpush.bf16.msra.mxu0 %v4528
      %4638 = vmatpush.bf16.msra.mxu0 %v4527
      %4639 = vmatpush.bf16.msra.mxu0 %v4526
      %4640 = vmatpush.bf16.msra.mxu0 %v4525
      %4641 = vmatmul.bf16.gmra.mxu0 %v4386
      %v4642 = vpop.f32.mrf.mxu0
      %v4643 = vadd.f32 %v4614, %v4642
      %v4644 = vpop.f32.mrf.mxu0
      %v4645 = vadd.f32 %v4616, %v4644
      %4646 = vmatmul.bf16.gmra.mxu0 %v4390
      %v4647 = vpop.f32.mrf.mxu0
      %v4648 = vadd.f32 %v4619, %v4647
      %v4649 = vpop.f32.mrf.mxu0
      %v4650 = vadd.f32 %v4621, %v4649
      %4651 = vmatmul.bf16.gmra.mxu0 %v4394
      %v4652 = vpop.f32.mrf.mxu0
      %v4653 = vadd.f32 %v4624, %v4652
      %v4654 = vpop.f32.mrf.mxu0
      %v4655 = vadd.f32 %v4626, %v4654
      %4656 = vmatmul.bf16.gmra.mxu0 %v4398
      %v4657 = vpop.f32.mrf.mxu0
      %v4658 = vadd.f32 %v4629, %v4657
      %v4659 = vpop.f32.mrf.mxu0
      %v4660 = vadd.f32 %v4631, %v4659
      %4661 = vdwg.mxu0
      %4662 = vmatpush.bf16.msra.mxu0 0
      %4663 = vmatpush.bf16.msra.mxu0 0
      %4664 = vmatpush.bf16.msra.mxu0 0
      %4665 = vmatpush.bf16.msra.mxu0 0
      %4666 = vmatpush.bf16.msra.mxu0 0
      %4667 = vmatpush.bf16.msra.mxu0 %v4535
      %4668 = vmatpush.bf16.msra.mxu0 %v4534
      %4669 = vmatpush.bf16.msra.mxu0 %v4533
      %4670 = vmatmul.bf16.gmra.mxu0 %v4564
      %v4671 = vpop.f32.mrf.mxu0
      %v4672 = vadd.f32 %v4643, %v4671
      %v4673 = vpop.f32.mrf.mxu0
      %v4674 = vadd.f32 %v4645, %v4673
      %4675 = vmatmul.bf16.gmra.mxu0 %v4567
      %v4676 = vpop.f32.mrf.mxu0
      %v4677 = vadd.f32 %v4648, %v4676
      %v4678 = vpop.f32.mrf.mxu0
      %v4679 = vadd.f32 %v4650, %v4678
      %4680 = vmatmul.bf16.gmra.mxu0 %v4570
      %v4681 = vpop.f32.mrf.mxu0
      %v4682 = vadd.f32 %v4653, %v4681
      %v4683 = vpop.f32.mrf.mxu0
      %v4684 = vadd.f32 %v4655, %v4683
      %4685 = vmatmul.bf16.gmra.mxu0 %v4573
      %v4686 = vpop.f32.mrf.mxu0
      %v4687 = vadd.f32 %v4658, %v4686
      %v4688 = vpop.f32.mrf.mxu0
      %v4689 = vadd.f32 %v4660, %v4688
      %4690 = vdwg.mxu0
      %v4691 = vmul.f32 %v4672, %v3376
      %v4692 = vmul.f32 %v4674, %v3381
      %v4693 = vmul.f32 %v4677, %v3386
      %v4694 = vmul.f32 %v4679, %v3391
      %v4695 = vmul.f32 %v4682, %v3396
      %v4696 = vmul.f32 %v4684, %v3401
      %v4697 = vmul.f32 %v4687, %v3406
      %v4698 = vmul.f32 %v4689, %v3411
      %v4699 = vsel %vm536, %v4691, 0.0
      %v4700 = vsel %vm536, %v4692, 0.0
      %v4701 = vadd.f32 %v4699, %v4700
      %v4702 = vsel %vm536, %v4693, 0.0
      %v4703 = vadd.f32 %v4701, %v4702
      %v4704 = vsel %vm536, %v4694, 0.0
      %v4705 = vadd.f32 %v4703, %v4704
      %v4706 = vsel %vm536, %v4695, 0.0
      %v4707 = vadd.f32 %v4705, %v4706
      %v4708 = vsel %vm536, %v4696, 0.0
      %v4709 = vadd.f32 %v4707, %v4708
      %v4710 = vsel %vm536, %v4697, 0.0
      %v4711 = vadd.f32 %v4709, %v4710
      %v4712 = vsel %vm3434, %v4698, 0.0
      %v4713 = vadd.f32 %v4711, %v4712
      %v4714 = vrot.slane %v4713, 4
      %v4715 = vadd.f32 %v4713, %v4714
      %v4716 = vrot.slane %v4715, 2
      %v4717 = vadd.f32 %v4715, %v4716
      %v4718 = vrot.slane %v4717, 1
      %v4719 = vadd.f32 %v4717, %v4718
      %v4720 = vmul.f32 %v4691, %v4691
      %v4721 = vmul.f32 %v4692, %v4692
      %v4722 = vmul.f32 %v4693, %v4693
      %v4723 = vmul.f32 %v4694, %v4694
      %v4724 = vmul.f32 %v4695, %v4695
      %v4725 = vmul.f32 %v4696, %v4696
      %v4726 = vmul.f32 %v4697, %v4697
      %v4727 = vmul.f32 %v4698, %v4698
      %v4728 = vsel %vm536, %v4720, 0.0
      %v4729 = vsel %vm536, %v4721, 0.0
      %v4730 = vadd.f32 %v4728, %v4729
      %v4731 = vsel %vm536, %v4722, 0.0
      %v4732 = vadd.f32 %v4730, %v4731
      %v4733 = vsel %vm536, %v4723, 0.0
      %v4734 = vadd.f32 %v4732, %v4733
      %v4735 = vsel %vm536, %v4724, 0.0
      %v4736 = vadd.f32 %v4734, %v4735
      %v4737 = vsel %vm536, %v4725, 0.0
      %v4738 = vadd.f32 %v4736, %v4737
      %v4739 = vsel %vm536, %v4726, 0.0
      %v4740 = vadd.f32 %v4738, %v4739
      %v4741 = vsel %vm3434, %v4727, 0.0
      %v4742 = vadd.f32 %v4740, %v4741
      %v4743 = vrot.slane %v4742, 4
      %v4744 = vadd.f32 %v4742, %v4743
      %v4745 = vrot.slane %v4744, 2
      %v4746 = vadd.f32 %v4744, %v4745
      %v4747 = vrot.slane %v4746, 1
      %v4748 = vadd.f32 %v4746, %v4747
      %v4749 = vsel %vm1655, %v4719, %v4748
      %v4750 = vmul.f32 %v4749, 0.020408163
      %v4752 = vsel %vm536, %v4750, 0
      %4754 = vmatpush.msra.mxu0 0.0
      %4755 = vmatpush.msra.mxu0 0.0
      %4756 = vmatpush.msra.mxu0 0.0
      %4757 = vmatpush.msra.mxu0 0.0
      %4758 = vmatpush.msra.mxu0 0.0
      %4759 = vmatpush.msra.mxu0 0.0
      %4760 = vmatpush.msra.mxu0 0.0
      %4761 = vmatpush.msra.mxu0 0.0
      %4762 = vmatpush.msra.mxu0 0.0
      %4763 = vmatpush.msra.mxu0 0.0
      %4764 = vmatpush.msra.mxu0 0.0
      %4765 = vmatpush.msra.mxu0 0.0
      %4766 = vmatpush.msra.mxu0 %v579
      %4767 = vmatpush.msra.mxu0 %v578
      %4768 = vmatpush.msra.mxu0 %v577
      %4769 = vmatpush.msra.mxu0 %v576
      %4770 = vmatmul.f32.gmra.mxu0 %v4752
      %v4771 = vpop.f32.mrf.mxu0
      %v4772 = vadd.f32 0.0, %v4771
      %4773 = vdwg.mxu0
      %v4774 = vmul.f32 %v4772, %v4772
      %v4776 = vrot.slane %v4774, 7
      %v4778 = vsub.f32 %v4772, %v4776
      %v4779 = vmax.f32 %v4778, 0.0
      %v4780 = vadd.f32 %v4779, 1e-05
      %v4781 = vrsqrt.pop %v4780
      %v4782 = vmul.f32 %v4781, %v4780
      %v4783 = vmul.f32 %v4782, %v4781
      %v4784 = vmul.f32 0.5, %v4783
      %v4785 = vsub.f32 1.5, %v4784
      %v4786 = vmul.f32 %v4781, %v4785
      %vm4787 = vweird.f32 %v4780
      %vm4788 = vweird.f32 %v4781
      %vm4789 = vmor %vm4787, %vm4788
      %v4790 = vsel %vm4789, %v4781, %v4786
      %v4791 = vmul.f32 %v585, %v4790
      %v4793 = vrot.slane %v4791, 1
      %v4795 = vmul.f32 %v4772, %v4793
      %v4797 = vrot.slane %v4795, 6
      %v4799 = vsub.f32 %v585, %v4797
      %v4800 = vperm.slane %v4791, 1
      %v4801 = vmul.f32 %v4691, %v4800
      %v4802 = vmul.f32 %v4692, %v4800
      %v4803 = vmul.f32 %v4693, %v4800
      %v4804 = vmul.f32 %v4694, %v4800
      %v4805 = vmul.f32 %v4695, %v4800
      %v4806 = vmul.f32 %v4696, %v4800
      %v4807 = vmul.f32 %v4697, %v4800
      %v4808 = vmul.f32 %v4698, %v4800
      %v4809 = vperm.slane %v4799, 2
      %v4810 = vadd.f32 %v4801, %v4809
      %v4811 = vadd.f32 %v4802, %v4809
      %v4812 = vadd.f32 %v4803, %v4809
      %v4813 = vadd.f32 %v4804, %v4809
      %v4814 = vadd.f32 %v4805, %v4809
      %v4815 = vadd.f32 %v4806, %v4809
      %v4816 = vadd.f32 %v4807, %v4809
      %v4817 = vadd.f32 %v4808, %v4809
      %v4818 = vmax.f32 %v4810, 0.0
      %v4819 = vmax.f32 %v4811, 0.0
      %v4820 = vmax.f32 %v4812, 0.0
      %v4821 = vmax.f32 %v4813, 0.0
      %v4822 = vmax.f32 %v4814, 0.0
      %v4823 = vmax.f32 %v4815, 0.0
      %v4824 = vmax.f32 %v4816, 0.0
      %v4825 = vmax.f32 %v4817, 0.0
      %v4826 = vmul.f32 %v4818, %v3376
      %v4827 = vmul.f32 %v4819, %v3381
      %v4828 = vmul.f32 %v4820, %v3386
      %v4829 = vmul.f32 %v4821, %v3391
      %v4830 = vmul.f32 %v4822, %v3396
      %v4831 = vmul.f32 %v4823, %v3401
      %v4832 = vmul.f32 %v4824, %v3406
      %v4833 = vmul.f32 %v4825, %v3411
      %4834 = vst.msk [vmem:[#allocation2 + $0xa] sm:$0xff] %vm536, %v4826
      %4835 = vst.msk [vmem:[#allocation2 + $0x12] sm:$0xff] %vm536, %v4827
      %4836 = vst.msk [vmem:[#allocation2 + $0x1a] sm:$0xff] %vm536, %v4828
      %4837 = vst.msk [vmem:[#allocation2 + $0x22] sm:$0xff] %vm536, %v4829
      %4838 = vst.msk [vmem:[#allocation2 + $0x2a] sm:$0xff] %vm536, %v4830
      %4839 = vst.msk [vmem:[#allocation2 + $0x32] sm:$0xff] %vm536, %v4831
      %4840 = vst.msk [vmem:[#allocation2 + $0x3a] sm:$0xff] %vm536, %v4832
      %4841 = vst.msk [vmem:[#allocation2 + $0x42] sm:$0x1f] %vm3434, %v4833
      %s4842 = scalar_lea.vmem %s3, 576
      %v4843 = vld [vmem:[%s4842] sm:$0xf]
      %v4844 = vld [vmem:[%s4842 + $0x4] sm:$0xf]
      %v4845 = vld [vmem:[%s4842 + $0x8] sm:$0xf]
      %v4846 = vld [vmem:[%s4842 + $0xc] sm:$0xf]
      %v4847 = vld [vmem:[%s4842 + $0x10] sm:$0xf]
      %v4848 = vld [vmem:[%s4842 + $0x14] sm:$0xf]
      %v4849 = vld [vmem:[%s4842 + $0x18] sm:$0xf]
      %v4850 = vld [vmem:[%s4842 + $0x1c] sm:$0xf]
      %v4851 = vld [vmem:[%s4842 + $0x20] sm:$0xf]
      %v4852 = vld [vmem:[%s4842 + $0x24] sm:$0xf]
      %v4853 = vld [vmem:[%s4842 + $0x28] sm:$0xf]
      %v4854 = vld [vmem:[%s4842 + $0x2c] sm:$0xf]
      %v4855 = vld [vmem:[%s4842 + $0x30] sm:$0xf]
      %v4856 = vld [vmem:[%s4842 + $0x34] sm:$0xf]
      %v4857 = vld [vmem:[%s4842 + $0x38] sm:$0xf]
      %v4858 = vld [vmem:[%s4842 + $0x3c] sm:$0xf]
      %v4859 = vld [vmem:[%s4842 + $0x40] sm:$0xf]
      %v4860 = vld [vmem:[%s4842 + $0x44] sm:$0xf]
      %v4861 = vld [vmem:[%s4842 + $0x48] sm:$0xf]
      %v4862 = vld [vmem:[%s4842 + $0x4c] sm:$0xf]
      %v4863 = vld [vmem:[%s4842 + $0x50] sm:$0xf]
      %v4864 = vld [vmem:[%s4842 + $0x54] sm:$0xf]
      %v4865 = vld [vmem:[%s4842 + $0x58] sm:$0xf]
      %v4866 = vld [vmem:[%s4842 + $0x5c] sm:$0xf]
      %v4867 = vld [vmem:[%s4842 + $0x60] sm:$0xf]
      %v4868 = vld [vmem:[%s4842 + $0x64] sm:$0xf]
      %v4869 = vld [vmem:[%s4842 + $0x68] sm:$0xf]
      %v4870 = vld [vmem:[%s4842 + $0x6c] sm:$0xf]
      %v4871 = vld [vmem:[%s4842 + $0x70] sm:$0xf]
      %v4872 = vld [vmem:[%s4842 + $0x74] sm:$0xf]
      %v4873 = vld [vmem:[%s4842 + $0x78] sm:$0xf]
      %v4874 = vld [vmem:[%s4842 + $0x7c] sm:$0xf]
      %v4875 = vld [vmem:[%s4842 + $0x80] sm:$0xf]
      %v4876 = vld [vmem:[%s4842 + $0x84] sm:$0xf]
      %v4877 = vld [vmem:[%s4842 + $0x88] sm:$0xf]
      %v4878 = vld [vmem:[%s4842 + $0x8c] sm:$0xf]
      %v4879 = vld [vmem:[#allocation2 + $0xa] sm:$0xff]
      %v4880 = vld [vmem:[#allocation2 + $0x12] sm:$0xff]
      %v4881 = vld [vmem:[#allocation2 + $0x1a] sm:$0xff]
      %v4882 = vld [vmem:[#allocation2 + $0x22] sm:$0xff]
      %v4883 = vld [vmem:[#allocation2 + $0x2a] sm:$0xff]
      %v4884 = vld [vmem:[#allocation2 + $0x32] sm:$0x1]
      %v4885 = vld [vmem:[#allocation2 + $0xb] sm:$0xff]
      %v4886 = vld [vmem:[#allocation2 + $0x13] sm:$0xff]
      %v4887 = vld [vmem:[#allocation2 + $0x1b] sm:$0xff]
      %v4888 = vld [vmem:[#allocation2 + $0x23] sm:$0xff]
      %v4889 = vld [vmem:[#allocation2 + $0x2b] sm:$0xff]
      %v4890 = vld [vmem:[#allocation2 + $0x33] sm:$0x1]
      %v4891 = vld [vmem:[#allocation2 + $0xc] sm:$0xff]
      %v4892 = vld [vmem:[#allocation2 + $0x14] sm:$0xff]
      %v4893 = vld [vmem:[#allocation2 + $0x1c] sm:$0xff]
      %v4894 = vld [vmem:[#allocation2 + $0x24] sm:$0xff]
      %v4895 = vld [vmem:[#allocation2 + $0x2c] sm:$0xff]
      %v4896 = vld [vmem:[#allocation2 + $0x34] sm:$0x1]
      %v4897 = vld [vmem:[#allocation2 + $0x33] sm:$0xff]
      %v4898 = vld [vmem:[#allocation2 + $0x3b] sm:$0x1]
      %v4899 = vld [vmem:[#allocation2 + $0x34] sm:$0xff]
      %v4900 = vld [vmem:[#allocation2 + $0x3c] sm:$0x1]
      %v4901 = vld [vmem:[#allocation2 + $0x15] sm:$0xff]
      %v4902 = vld [vmem:[#allocation2 + $0x1d] sm:$0xff]
      %v4903 = vld [vmem:[#allocation2 + $0x25] sm:$0xff]
      %v4904 = vld [vmem:[#allocation2 + $0x2d] sm:$0xff]
      %v4905 = vld [vmem:[#allocation2 + $0x35] sm:$0xff]
      %v4906 = vld [vmem:[#allocation2 + $0x3d] sm:$0x1]
      %v4907 = vld [vmem:[#allocation2 + $0x3c] sm:$0xff]
      %v4908 = vld [vmem:[#allocation2 + $0x44] sm:$0x1]
      %v4909 = vld [vmem:[#allocation2 + $0x3d] sm:$0xff]
      %v4910 = vld [vmem:[#allocation2 + $0x45] sm:$0x1]
      %v4911 = vld [vmem:[#allocation2 + $0x1e] sm:$0xff]
      %v4912 = vld [vmem:[#allocation2 + $0x26] sm:$0xff]
      %v4913 = vld [vmem:[#allocation2 + $0x2e] sm:$0xff]
      %v4914 = vld [vmem:[#allocation2 + $0x36] sm:$0xff]
      %v4915 = vld [vmem:[#allocation2 + $0x3e] sm:$0xff]
      %v4916 = vld [vmem:[#allocation2 + $0x46] sm:$0x1]
      %4923 = vrot.lane.b32.xlu0 %v4885, 32
      %v4924 = vpop.permute.xlu0 %4923
      %4925 = vrot.lane.b32.xlu0 %v4886, 32
      %v4926 = vpop.permute.xlu0 %4925
      %4927 = vrot.lane.b32.xlu0 %v4887, 32
      %v4928 = vpop.permute.xlu0 %4927
      %4929 = vrot.lane.b32.xlu0 %v4888, 32
      %v4930 = vpop.permute.xlu0 %4929
      %4931 = vrot.lane.b32.xlu0 %v4889, 32
      %v4932 = vpop.permute.xlu0 %4931
      %4933 = vrot.lane.b32.xlu0 %v4890, 32
      %v4934 = vpop.permute.xlu0 %4933
      %4947 = vrot.lane.b32.xlu0 %v4891, 64
      %v4948 = vpop.permute.xlu0 %4947
      %4949 = vrot.lane.b32.xlu0 %v4892, 64
      %v4950 = vpop.permute.xlu0 %4949
      %4951 = vrot.lane.b32.xlu0 %v4893, 64
      %v4952 = vpop.permute.xlu0 %4951
      %4953 = vrot.lane.b32.xlu0 %v4894, 64
      %v4954 = vpop.permute.xlu0 %4953
      %4955 = vrot.lane.b32.xlu0 %v4895, 64
      %v4956 = vpop.permute.xlu0 %4955
      %4957 = vrot.lane.b32.xlu0 %v4896, 64
      %v4958 = vpop.permute.xlu0 %4957
      %4967 = vrot.lane.b32.xlu0 %v4886, 96
      %v4968 = vpop.permute.xlu0 %4967
      %4969 = vrot.lane.b32.xlu0 %v4887, 96
      %v4970 = vpop.permute.xlu0 %4969
      %4971 = vrot.lane.b32.xlu0 %v4888, 96
      %v4972 = vpop.permute.xlu0 %4971
      %4973 = vrot.lane.b32.xlu0 %v4889, 96
      %v4974 = vpop.permute.xlu0 %4973
      %4975 = vrot.lane.b32.xlu0 %v4897, 96
      %v4976 = vpop.permute.xlu0 %4975
      %4977 = vrot.lane.b32.xlu0 %v4898, 96
      %v4978 = vpop.permute.xlu0 %4977
      %4991 = vrot.lane.b32.xlu0 %v4901, 32
      %v4992 = vpop.permute.xlu0 %4991
      %4993 = vrot.lane.b32.xlu0 %v4902, 32
      %v4994 = vpop.permute.xlu0 %4993
      %4995 = vrot.lane.b32.xlu0 %v4903, 32
      %v4996 = vpop.permute.xlu0 %4995
      %4997 = vrot.lane.b32.xlu0 %v4904, 32
      %v4998 = vpop.permute.xlu0 %4997
      %4999 = vrot.lane.b32.xlu0 %v4905, 32
      %v5000 = vpop.permute.xlu0 %4999
      %5001 = vrot.lane.b32.xlu0 %v4906, 32
      %v5002 = vpop.permute.xlu0 %5001
      %5012 = vrot.lane.b32.xlu0 %v4899, 64
      %v5013 = vpop.permute.xlu0 %5012
      %5014 = vrot.lane.b32.xlu0 %v4907, 64
      %v5015 = vpop.permute.xlu0 %5014
      %5016 = vrot.lane.b32.xlu0 %v4908, 64
      %v5017 = vpop.permute.xlu0 %5016
      %5023 = vrot.lane.b32.xlu0 %v4902, 96
      %v5024 = vpop.permute.xlu0 %5023
      %5025 = vrot.lane.b32.xlu0 %v4903, 96
      %v5026 = vpop.permute.xlu0 %5025
      %5027 = vrot.lane.b32.xlu0 %v4904, 96
      %v5028 = vpop.permute.xlu0 %5027
      %5029 = vrot.lane.b32.xlu0 %v4905, 96
      %v5030 = vpop.permute.xlu0 %5029
      %5031 = vrot.lane.b32.xlu0 %v4909, 96
      %v5032 = vpop.permute.xlu0 %5031
      %5033 = vrot.lane.b32.xlu0 %v4910, 96
      %v5034 = vpop.permute.xlu0 %5033
      %v5041 = vsel %vm536, %v4879, %v4924
      %v5042 = vsel %vm536, %v4880, %v4926
      %v5043 = vsel %vm536, %v4881, %v4928
      %v5044 = vsel %vm536, %v4882, %v4930
      %v5045 = vsel %vm536, %v4883, %v4932
      %v5046 = vsel %vm536, %v4884, %v4934
      %v5047 = vsel %vm549, %v5041, %v4948
      %v5048 = vsel %vm549, %v5042, %v4950
      %v5049 = vsel %vm549, %v5043, %v4952
      %v5050 = vsel %vm549, %v5044, %v4954
      %v5051 = vsel %vm549, %v5045, %v4956
      %v5052 = vsel %vm549, %v5046, %v4958
      %v5053 = vsel %vm1157, %v5047, %v4968
      %v5054 = vsel %vm1157, %v5048, %v4970
      %v5055 = vsel %vm1157, %v5049, %v4972
      %v5056 = vsel %vm1157, %v5050, %v4974
      %v5057 = vsel %vm1157, %v5051, %v4976
      %v5058 = vsel %vm1157, %v5052, %v4978
      %v5059 = vsel %vm536, %v4892, %v4992
      %v5060 = vsel %vm536, %v4893, %v4994
      %v5061 = vsel %vm536, %v4894, %v4996
      %v5062 = vsel %vm536, %v4895, %v4998
      %v5063 = vsel %vm536, %v4899, %v5000
      %v5064 = vsel %vm536, %v4900, %v5002
      %v5065 = vsel %vm549, %v5059, %v4952
      %v5066 = vsel %vm549, %v5060, %v4954
      %v5067 = vsel %vm549, %v5061, %v4956
      %v5068 = vsel %vm549, %v5062, %v5013
      %v5069 = vsel %vm549, %v5063, %v5015
      %v5070 = vsel %vm549, %v5064, %v5017
      %v5071 = vsel %vm1157, %v5065, %v5024
      %v5072 = vsel %vm1157, %v5066, %v5026
      %v5073 = vsel %vm1157, %v5067, %v5028
      %v5074 = vsel %vm1157, %v5068, %v5030
      %v5075 = vsel %vm1157, %v5069, %v5032
      %v5076 = vsel %vm1157, %v5070, %v5034
      %v5077 = vpack.c.bf16 %v5054, %v5053
      %v5078 = vpack.c.bf16 %v5072, %v5071
      %v5079 = vpack.c.bf16 %v4912, %v4911
      %v5080 = vpack.c.bf16 %v5056, %v5055
      %v5081 = vpack.c.bf16 %v5074, %v5073
      %v5082 = vpack.c.bf16 %v4914, %v4913
      %v5083 = vpack.c.bf16 %v5058, %v5057
      %v5084 = vpack.c.bf16 %v5076, %v5075
      %v5085 = vpack.c.bf16 %v4916, %v4915
      %v5086 = vperm.slane %v585, 3
      %v5123 = vunpack.c.l.b16 %v4843
      %v5124 = vunpack.c.l.b16 %v4844
      %v5125 = vunpack.c.l.b16 %v4845
      %v5126 = vunpack.c.l.b16 %v4846
      %v5127 = vunpack.c.l.b16 %v4847
      %v5128 = vunpack.c.l.b16 %v4848
      %v5129 = vunpack.c.l.b16 %v4849
      %v5130 = vunpack.c.l.b16 %v4850
      %v5131 = vunpack.c.l.b16 %v4851
      %v5132 = vunpack.c.l.b16 %v4852
      %v5133 = vunpack.c.l.b16 %v4853
      %v5134 = vunpack.c.l.b16 %v4854
      %v5135 = vunpack.c.l.b16 %v4855
      %v5136 = vunpack.c.l.b16 %v4856
      %v5137 = vunpack.c.l.b16 %v4857
      %v5138 = vunpack.c.l.b16 %v4858
      %v5139 = vunpack.c.l.b16 %v4859
      %v5140 = vunpack.c.l.b16 %v4860
      %v5141 = vunpack.c.l.b16 %v4861
      %v5142 = vunpack.c.l.b16 %v4862
      %v5143 = vunpack.c.l.b16 %v4863
      %v5144 = vunpack.c.l.b16 %v4864
      %v5145 = vunpack.c.l.b16 %v4865
      %v5146 = vunpack.c.l.b16 %v4866
      %v5147 = vunpack.c.l.b16 %v4867
      %v5148 = vunpack.c.l.b16 %v4868
      %v5149 = vunpack.c.l.b16 %v4869
      %v5150 = vunpack.c.l.b16 %v4870
      %v5151 = vunpack.c.l.b16 %v4871
      %v5152 = vunpack.c.l.b16 %v4872
      %v5153 = vunpack.c.l.b16 %v4873
      %v5154 = vunpack.c.l.b16 %v4874
      %v5155 = vunpack.c.l.b16 %v4875
      %v5156 = vunpack.c.l.b16 %v4876
      %v5157 = vunpack.c.l.b16 %v4877
      %v5158 = vunpack.c.l.b16 %v4878
      %v5159 = vpack.c.b16 %v5124, %v5123
      %v5160 = vpack.c.b16 %v5126, %v5125
      %v5161 = vpack.c.b16 %v5128, %v5127
      %v5162 = vpack.c.b16 %v5130, %v5129
      %v5163 = vpack.c.b16 %v5132, %v5131
      %v5164 = vpack.c.b16 %v5134, %v5133
      %v5165 = vpack.c.b16 %v5136, %v5135
      %v5166 = vpack.c.b16 %v5138, %v5137
      %v5167 = vpack.c.b16 %v5140, %v5139
      %v5168 = vpack.c.b16 %v5142, %v5141
      %v5169 = vpack.c.b16 %v5144, %v5143
      %v5170 = vpack.c.b16 %v5146, %v5145
      %v5171 = vpack.c.b16 %v5148, %v5147
      %v5172 = vpack.c.b16 %v5150, %v5149
      %v5173 = vpack.c.b16 %v5152, %v5151
      %v5174 = vpack.c.b16 %v5154, %v5153
      %v5175 = vpack.c.b16 %v5156, %v5155
      %v5176 = vpack.c.b16 %v5158, %v5157
      %v5196 = vsel %vm536, %v5079, 0
      %v5199 = vsel %vm536, %v5082, 0
      %v5202 = vsel %vm536, %v5085, 0
      %5204 = vmatpush.bf16.msra.mxu0 %v5166
      %5205 = vmatpush.bf16.msra.mxu0 %v5165
      %5206 = vmatpush.bf16.msra.mxu0 %v5164
      %5207 = vmatpush.bf16.msra.mxu0 %v5163
      %5208 = vmatpush.bf16.msra.mxu0 %v5162
      %5209 = vmatpush.bf16.msra.mxu0 %v5161
      %5210 = vmatpush.bf16.msra.mxu0 %v5160
      %5211 = vmatpush.bf16.msra.mxu0 %v5159
      %5212 = vmatmul.bf16.gmra.mxu0 %v5077
      %v5213 = vpop.f32.mrf.mxu0
      %v5214 = vadd.f32 %v5086, %v5213
      %v5215 = vpop.f32.mrf.mxu0
      %v5216 = vadd.f32 %v5086, %v5215
      %5217 = vmatmul.bf16.gmra.mxu0 %v5080
      %v5218 = vpop.f32.mrf.mxu0
      %v5219 = vadd.f32 %v5086, %v5218
      %v5220 = vpop.f32.mrf.mxu0
      %v5221 = vadd.f32 %v5086, %v5220
      %5222 = vmatmul.bf16.gmra.mxu0 %v5083
      %v5223 = vpop.f32.mrf.mxu0
      %v5224 = vadd.f32 %v5086, %v5223
      %v5225 = vpop.f32.mrf.mxu0
      %v5226 = vadd.f32 %v5086, %v5225
      %5227 = vdwg.mxu0
      %5228 = vmatpush.bf16.msra.mxu0 %v5174
      %5229 = vmatpush.bf16.msra.mxu0 %v5173
      %5230 = vmatpush.bf16.msra.mxu0 %v5172
      %5231 = vmatpush.bf16.msra.mxu0 %v5171
      %5232 = vmatpush.bf16.msra.mxu0 %v5170
      %5233 = vmatpush.bf16.msra.mxu0 %v5169
      %5234 = vmatpush.bf16.msra.mxu0 %v5168
      %5235 = vmatpush.bf16.msra.mxu0 %v5167
      %5236 = vmatmul.bf16.gmra.mxu0 %v5078
      %v5237 = vpop.f32.mrf.mxu0
      %v5238 = vadd.f32 %v5214, %v5237
      %v5239 = vpop.f32.mrf.mxu0
      %v5240 = vadd.f32 %v5216, %v5239
      %5241 = vmatmul.bf16.gmra.mxu0 %v5081
      %v5242 = vpop.f32.mrf.mxu0
      %v5243 = vadd.f32 %v5219, %v5242
      %v5244 = vpop.f32.mrf.mxu0
      %v5245 = vadd.f32 %v5221, %v5244
      %5246 = vmatmul.bf16.gmra.mxu0 %v5084
      %v5247 = vpop.f32.mrf.mxu0
      %v5248 = vadd.f32 %v5224, %v5247
      %v5249 = vpop.f32.mrf.mxu0
      %v5250 = vadd.f32 %v5226, %v5249
      %5251 = vdwg.mxu0
      %5252 = vmatpush.bf16.msra.mxu0 0
      %5253 = vmatpush.bf16.msra.mxu0 0
      %5254 = vmatpush.bf16.msra.mxu0 0
      %5255 = vmatpush.bf16.msra.mxu0 0
      %5256 = vmatpush.bf16.msra.mxu0 0
      %5257 = vmatpush.bf16.msra.mxu0 0
      %5258 = vmatpush.bf16.msra.mxu0 %v5176
      %5259 = vmatpush.bf16.msra.mxu0 %v5175
      %5260 = vmatmul.bf16.gmra.mxu0 %v5196
      %v5261 = vpop.f32.mrf.mxu0
      %v5262 = vadd.f32 %v5238, %v5261
      %v5263 = vpop.f32.mrf.mxu0
      %v5264 = vadd.f32 %v5240, %v5263
      %5265 = vmatmul.bf16.gmra.mxu0 %v5199
      %v5266 = vpop.f32.mrf.mxu0
      %v5267 = vadd.f32 %v5243, %v5266
      %v5268 = vpop.f32.mrf.mxu0
      %v5269 = vadd.f32 %v5245, %v5268
      %5270 = vmatmul.bf16.gmra.mxu0 %v5202
      %v5271 = vpop.f32.mrf.mxu0
      %v5272 = vadd.f32 %v5248, %v5271
      %v5273 = vpop.f32.mrf.mxu0
      %v5274 = vadd.f32 %v5250, %v5273
      %5275 = vdwg.mxu0
      %5282 = vrot.lane.b32.xlu0 %v5262, 32
      %v5283 = vpop.permute.xlu0 %5282
      %5284 = vrot.lane.b32.xlu0 %v5264, 32
      %v5285 = vpop.permute.xlu0 %5284
      %5286 = vrot.lane.b32.xlu0 %v5267, 32
      %v5287 = vpop.permute.xlu0 %5286
      %5288 = vrot.lane.b32.xlu0 %v5269, 32
      %v5289 = vpop.permute.xlu0 %5288
      %5290 = vrot.lane.b32.xlu0 %v5272, 32
      %v5291 = vpop.permute.xlu0 %5290
      %5292 = vrot.lane.b32.xlu0 %v5274, 32
      %v5293 = vpop.permute.xlu0 %5292
      %v5300 = vsel %vm536, %v3988, %v5283
      %v5301 = vsel %vm536, %v3990, %v5285
      %v5302 = vsel %vm536, %v3993, %v5287
      %v5303 = vsel %vm536, %v3995, %v5289
      %v5304 = vsel %vm536, %v3998, %v5291
      %v5305 = vsel %vm536, %v4000, %v5293
      %v5306 = vmax.f32 %v5300, 0.0
      %v5307 = vmax.f32 %v5301, 0.0
      %v5308 = vmax.f32 %v5302, 0.0
      %v5309 = vmax.f32 %v5303, 0.0
      %v5310 = vmax.f32 %v5304, 0.0
      %v5311 = vmax.f32 %v5305, 0.0
      %5313 = vset.pattern.permute.xlu0 0
      %5314 = vperm.xlu0 %5313, %v570
      %v5315 = vpop.permute.xlu0 %5314
      %5318 = vset.pattern.permute.xlu0 0
      %5319 = vperm.xlu0 %5318, %v571
      %v5320 = vpop.permute.xlu0 %5319
      %5323 = vset.pattern.permute.xlu0 0
      %5324 = vperm.xlu0 %5323, %v572
      %v5325 = vpop.permute.xlu0 %5324
      %5328 = vset.pattern.permute.xlu0 0
      %5329 = vperm.xlu0 %5328, %v573
      %v5330 = vpop.permute.xlu0 %5329
      %5333 = vset.pattern.permute.xlu0 0
      %5334 = vperm.xlu0 %5333, %v574
      %v5335 = vpop.permute.xlu0 %5334
      %5338 = vset.pattern.permute.xlu0 0
      %5339 = vperm.xlu0 %5338, %v575
      %v5340 = vpop.permute.xlu0 %5339
      %v5342 = vmul.f32 %v5306, %v5315
      %v5343 = vmul.f32 %v5307, %v5320
      %v5344 = vmul.f32 %v5308, %v5325
      %v5345 = vmul.f32 %v5309, %v5330
      %v5346 = vmul.f32 %v5310, %v5335
      %v5347 = vmul.f32 %v5311, %v5340
      %5348 = vst.msk [vmem:[#allocation3 + $0x14] sm:$0xff] %vm549, %v5342
      %5349 = vst.msk [vmem:[#allocation3 + $0x1c] sm:$0xff] %vm549, %v5343
      %5350 = vst.msk [vmem:[#allocation3 + $0x24] sm:$0xff] %vm549, %v5344
      %5351 = vst.msk [vmem:[#allocation3 + $0x2c] sm:$0xff] %vm549, %v5345
      %5352 = vst.msk [vmem:[#allocation3 + $0x34] sm:$0xff] %vm549, %v5346
      %5353 = vst.msk [vmem:[#allocation3 + $0x3c] sm:$0x1] %vm560, %v5347
      %v5354 = vld [vmem:[%s6] sm:$0xf]
      %v5355 = vld [vmem:[%s6 + $0x4] sm:$0xf]
      %v5356 = vld [vmem:[%s6 + $0x8] sm:$0xf]
      %v5357 = vld [vmem:[%s6 + $0xc] sm:$0xf]
      %v5358 = vld [vmem:[%s6 + $0x10] sm:$0xf]
      %v5359 = vld [vmem:[%s6 + $0x14] sm:$0xf]
      %v5360 = vld [vmem:[%s6 + $0x18] sm:$0xf]
      %v5361 = vld [vmem:[%s6 + $0x1c] sm:$0xf]
      %v5362 = vld [vmem:[%s6 + $0x20] sm:$0xf]
      %v5363 = vld [vmem:[%s6 + $0x24] sm:$0xf]
      %v5364 = vld [vmem:[%s6 + $0x28] sm:$0xf]
      %v5365 = vld [vmem:[%s6 + $0x2c] sm:$0xf]
      %v5366 = vld [vmem:[%s6 + $0x30] sm:$0xf]
      %v5367 = vld [vmem:[%s6 + $0x34] sm:$0xf]
      %v5368 = vld [vmem:[%s6 + $0x38] sm:$0xf]
      %v5369 = vld [vmem:[%s6 + $0x3c] sm:$0xf]
      %v5370 = vld [vmem:[%s6 + $0x40] sm:$0xf]
      %v5371 = vld [vmem:[%s6 + $0x44] sm:$0xf]
      %v5372 = vld [vmem:[%s6 + $0x48] sm:$0xf]
      %v5373 = vld [vmem:[%s6 + $0x4c] sm:$0xf]
      %v5374 = vld [vmem:[%s6 + $0x50] sm:$0xf]
      %v5375 = vld [vmem:[%s6 + $0x54] sm:$0xf]
      %v5376 = vld [vmem:[%s6 + $0x58] sm:$0xf]
      %v5377 = vld [vmem:[%s6 + $0x5c] sm:$0xf]
      %v5378 = vld [vmem:[%s6 + $0x60] sm:$0xf]
      %v5379 = vld [vmem:[%s6 + $0x64] sm:$0xf]
      %v5380 = vld [vmem:[%s6 + $0x68] sm:$0xf]
      %v5381 = vld [vmem:[%s6 + $0x6c] sm:$0xf]
      %v5382 = vld [vmem:[%s6 + $0x70] sm:$0xf]
      %v5383 = vld [vmem:[%s6 + $0x74] sm:$0xf]
      %v5384 = vld [vmem:[%s6 + $0x78] sm:$0xf]
      %v5385 = vld [vmem:[%s6 + $0x7c] sm:$0xf]
      %v5386 = vld [vmem:[%s6 + $0x80] sm:$0xf]
      %v5387 = vld [vmem:[%s6 + $0x84] sm:$0xf]
      %v5388 = vld [vmem:[%s6 + $0x88] sm:$0xf]
      %v5389 = vld [vmem:[%s6 + $0x8c] sm:$0xf]
      %v5390 = vld [vmem:[%s6 + $0x90] sm:$0xf]
      %v5391 = vld [vmem:[%s6 + $0x94] sm:$0xf]
      %v5392 = vld [vmem:[%s6 + $0x98] sm:$0xf]
      %v5393 = vld [vmem:[%s6 + $0x9c] sm:$0xf]
      %v5394 = vld [vmem:[%s6 + $0xa0] sm:$0xf]
      %v5395 = vld [vmem:[%s6 + $0xa4] sm:$0xf]
      %v5396 = vld [vmem:[%s6 + $0xa8] sm:$0xf]
      %v5397 = vld [vmem:[%s6 + $0xac] sm:$0xf]
      %v5398 = vld [vmem:[%s6 + $0xb0] sm:$0xf]
      %v5399 = vld [vmem:[%s6 + $0xb4] sm:$0xf]
      %v5400 = vld [vmem:[%s6 + $0xb8] sm:$0xf]
      %v5401 = vld [vmem:[%s6 + $0xbc] sm:$0xf]
      %v5402 = vld [vmem:[%s6 + $0xc0] sm:$0xf]
      %v5403 = vld [vmem:[%s6 + $0xc4] sm:$0xf]
      %v5404 = vld [vmem:[%s6 + $0xc8] sm:$0xf]
      %v5405 = vld [vmem:[%s6 + $0xcc] sm:$0xf]
      %v5406 = vld [vmem:[%s6 + $0xd0] sm:$0xf]
      %v5407 = vld [vmem:[%s6 + $0xd4] sm:$0xf]
      %v5408 = vld [vmem:[%s6 + $0xd8] sm:$0xf]
      %v5409 = vld [vmem:[%s6 + $0xdc] sm:$0xf]
      %v5410 = vld [vmem:[%s6 + $0xe0] sm:$0xf]
      %v5411 = vld [vmem:[%s6 + $0xe4] sm:$0xf]
      %v5412 = vld [vmem:[%s6 + $0xe8] sm:$0xf]
      %v5413 = vld [vmem:[%s6 + $0xec] sm:$0xf]
      %v5414 = vld [vmem:[%s6 + $0xf0] sm:$0xf]
      %v5415 = vld [vmem:[%s6 + $0xf4] sm:$0xf]
      %v5416 = vld [vmem:[%s6 + $0xf8] sm:$0xf]
      %v5417 = vld [vmem:[%s6 + $0xfc] sm:$0xf]
      %v5418 = vld [vmem:[%s6 + $0x100] sm:$0xf]
      %v5419 = vld [vmem:[%s6 + $0x104] sm:$0xf]
      %v5420 = vld [vmem:[%s6 + $0x108] sm:$0xf]
      %v5421 = vld [vmem:[%s6 + $0x10c] sm:$0xf]
      %v5422 = vld [vmem:[%s6 + $0x110] sm:$0xf]
      %v5423 = vld [vmem:[%s6 + $0x114] sm:$0xf]
      %v5424 = vld [vmem:[%s6 + $0x118] sm:$0xf]
      %v5425 = vld [vmem:[%s6 + $0x11c] sm:$0xf]
      %v5426 = vld [vmem:[#allocation3] sm:$0xff]
      %v5427 = vld [vmem:[#allocation3 + $0x8] sm:$0xff]
      %v5428 = vld [vmem:[#allocation3 + $0x10] sm:$0xff]
      %v5429 = vld [vmem:[#allocation3 + $0x18] sm:$0xff]
      %v5430 = vld [vmem:[#allocation3 + $0x20] sm:$0xff]
      %v5431 = vld [vmem:[#allocation3 + $0x28] sm:$0xff]
      %v5432 = vld [vmem:[#allocation3 + $0x30] sm:$0xff]
      %v5433 = vld [vmem:[#allocation3 + $0x38] sm:$0x1f]
      %v5434 = vld [vmem:[#allocation3 + $0x1] sm:$0xff]
      %v5435 = vld [vmem:[#allocation3 + $0x9] sm:$0xff]
      %v5436 = vld [vmem:[#allocation3 + $0x11] sm:$0xff]
      %v5437 = vld [vmem:[#allocation3 + $0x19] sm:$0xff]
      %v5438 = vld [vmem:[#allocation3 + $0x21] sm:$0xff]
      %v5439 = vld [vmem:[#allocation3 + $0x29] sm:$0xff]
      %v5440 = vld [vmem:[#allocation3 + $0x31] sm:$0xff]
      %v5441 = vld [vmem:[#allocation3 + $0x39] sm:$0x1f]
      %v5442 = vld [vmem:[#allocation3 + $0x2] sm:$0xff]
      %v5443 = vld [vmem:[#allocation3 + $0xa] sm:$0xff]
      %v5444 = vld [vmem:[#allocation3 + $0x12] sm:$0xff]
      %v5445 = vld [vmem:[#allocation3 + $0x1a] sm:$0xff]
      %v5446 = vld [vmem:[#allocation3 + $0x22] sm:$0xff]
      %v5447 = vld [vmem:[#allocation3 + $0x2a] sm:$0xff]
      %v5448 = vld [vmem:[#allocation3 + $0x32] sm:$0xff]
      %v5449 = vld [vmem:[#allocation3 + $0x3a] sm:$0x1f]
      %v5450 = vld [vmem:[#allocation3 + $0x39] sm:$0xff]
      %v5451 = vld [vmem:[#allocation3 + $0x41] sm:$0x1f]
      %v5452 = vld [vmem:[#allocation3 + $0x3a] sm:$0xff]
      %v5453 = vld [vmem:[#allocation3 + $0x42] sm:$0x1f]
      %v5454 = vld [vmem:[#allocation3 + $0xb] sm:$0xff]
      %v5455 = vld [vmem:[#allocation3 + $0x13] sm:$0xff]
      %v5456 = vld [vmem:[#allocation3 + $0x1b] sm:$0xff]
      %v5457 = vld [vmem:[#allocation3 + $0x23] sm:$0xff]
      %v5458 = vld [vmem:[#allocation3 + $0x2b] sm:$0xff]
      %v5459 = vld [vmem:[#allocation3 + $0x33] sm:$0xff]
      %v5460 = vld [vmem:[#allocation3 + $0x3b] sm:$0xff]
      %v5461 = vld [vmem:[#allocation3 + $0x43] sm:$0x1f]
      %v5462 = vld [vmem:[#allocation3 + $0x42] sm:$0xff]
      %v5463 = vld [vmem:[#allocation3 + $0x4a] sm:$0x1f]
      %v5464 = vld [vmem:[#allocation3 + $0x43] sm:$0xff]
      %v5465 = vld [vmem:[#allocation3 + $0x4b] sm:$0x1f]
      %v5466 = vld [vmem:[#allocation3 + $0x14] sm:$0xff]
      %v5467 = vld [vmem:[#allocation3 + $0x1c] sm:$0xff]
      %v5468 = vld [vmem:[#allocation3 + $0x24] sm:$0xff]
      %v5469 = vld [vmem:[#allocation3 + $0x2c] sm:$0xff]
      %v5470 = vld [vmem:[#allocation3 + $0x34] sm:$0xff]
      %v5471 = vld [vmem:[#allocation3 + $0x3c] sm:$0xff]
      %v5472 = vld [vmem:[#allocation3 + $0x44] sm:$0xff]
      %v5473 = vld [vmem:[#allocation3 + $0x4c] sm:$0x1f]
      %5482 = vrot.lane.b32.xlu0 %v5434, 64
      %v5483 = vpop.permute.xlu0 %5482
      %5484 = vrot.lane.b32.xlu0 %v5435, 64
      %v5485 = vpop.permute.xlu0 %5484
      %5486 = vrot.lane.b32.xlu0 %v5436, 64
      %v5487 = vpop.permute.xlu0 %5486
      %5488 = vrot.lane.b32.xlu0 %v5437, 64
      %v5489 = vpop.permute.xlu0 %5488
      %5490 = vrot.lane.b32.xlu0 %v5438, 64
      %v5491 = vpop.permute.xlu0 %5490
      %5492 = vrot.lane.b32.xlu0 %v5439, 64
      %v5493 = vpop.permute.xlu0 %5492
      %5494 = vrot.lane.b32.xlu0 %v5440, 64
      %v5495 = vpop.permute.xlu0 %5494
      %5496 = vrot.lane.b32.xlu0 %v5441, 64
      %v5497 = vpop.permute.xlu0 %5496
      %5508 = vrot.lane.b32.xlu0 %v5450, 64
      %v5509 = vpop.permute.xlu0 %5508
      %5510 = vrot.lane.b32.xlu0 %v5451, 64
      %v5511 = vpop.permute.xlu0 %5510
      %5522 = vrot.lane.b32.xlu0 %v5454, 64
      %v5523 = vpop.permute.xlu0 %5522
      %5524 = vrot.lane.b32.xlu0 %v5455, 64
      %v5525 = vpop.permute.xlu0 %5524
      %5526 = vrot.lane.b32.xlu0 %v5456, 64
      %v5527 = vpop.permute.xlu0 %5526
      %5528 = vrot.lane.b32.xlu0 %v5457, 64
      %v5529 = vpop.permute.xlu0 %5528
      %5530 = vrot.lane.b32.xlu0 %v5458, 64
      %v5531 = vpop.permute.xlu0 %5530
      %5532 = vrot.lane.b32.xlu0 %v5459, 64
      %v5533 = vpop.permute.xlu0 %5532
      %5534 = vrot.lane.b32.xlu0 %v5460, 64
      %v5535 = vpop.permute.xlu0 %5534
      %5536 = vrot.lane.b32.xlu0 %v5461, 64
      %v5537 = vpop.permute.xlu0 %5536
      %5548 = vrot.lane.b32.xlu0 %v5464, 64
      %v5549 = vpop.permute.xlu0 %5548
      %5550 = vrot.lane.b32.xlu0 %v5465, 64
      %v5551 = vpop.permute.xlu0 %5550
      %v5554 = vsel %vm549, %v5426, %v5483
      %v5555 = vsel %vm549, %v5427, %v5485
      %v5556 = vsel %vm549, %v5428, %v5487
      %v5557 = vsel %vm549, %v5429, %v5489
      %v5558 = vsel %vm549, %v5430, %v5491
      %v5559 = vsel %vm549, %v5431, %v5493
      %v5560 = vsel %vm549, %v5432, %v5495
      %v5561 = vsel %vm549, %v5433, %v5497
      %v5562 = vsel %vm549, %v5442, %v5485
      %v5563 = vsel %vm549, %v5443, %v5487
      %v5564 = vsel %vm549, %v5444, %v5489
      %v5565 = vsel %vm549, %v5445, %v5491
      %v5566 = vsel %vm549, %v5446, %v5493
      %v5567 = vsel %vm549, %v5447, %v5495
      %v5568 = vsel %vm549, %v5448, %v5509
      %v5569 = vsel %vm549, %v5449, %v5511
      %v5570 = vsel %vm549, %v5443, %v5523
      %v5571 = vsel %vm549, %v5444, %v5525
      %v5572 = vsel %vm549, %v5445, %v5527
      %v5573 = vsel %vm549, %v5446, %v5529
      %v5574 = vsel %vm549, %v5447, %v5531
      %v5575 = vsel %vm549, %v5448, %v5533
      %v5576 = vsel %vm549, %v5452, %v5535
      %v5577 = vsel %vm549, %v5453, %v5537
      %v5578 = vsel %vm549, %v5462, %v5549
      %v5579 = vsel %vm549, %v5463, %v5551
      %v5580 = vpack.c.bf16 %v5555, %v5554
      %v5581 = vpack.c.bf16 %v5563, %v5562
      %v5582 = vpack.c.bf16 %v5571, %v5570
      %v5583 = vpack.c.bf16 %v5572, %v5571
      %v5584 = vpack.c.bf16 %v5467, %v5466
      %v5585 = vpack.c.bf16 %v5557, %v5556
      %v5586 = vpack.c.bf16 %v5565, %v5564
      %v5587 = vpack.c.bf16 %v5573, %v5572
      %v5588 = vpack.c.bf16 %v5574, %v5573
      %v5589 = vpack.c.bf16 %v5469, %v5468
      %v5590 = vpack.c.bf16 %v5559, %v5558
      %v5591 = vpack.c.bf16 %v5567, %v5566
      %v5592 = vpack.c.bf16 %v5575, %v5574
      %v5593 = vpack.c.bf16 %v5576, %v5575
      %v5594 = vpack.c.bf16 %v5471, %v5470
      %v5595 = vpack.c.bf16 %v5561, %v5560
      %v5596 = vpack.c.bf16 %v5569, %v5568
      %v5597 = vpack.c.bf16 %v5577, %v5576
      %v5598 = vpack.c.bf16 %v5579, %v5578
      %v5599 = vpack.c.bf16 %v5473, %v5472
      %v5600 = vperm.slane %v585, 4
      %v5673 = vunpack.c.l.b16 %v5354
      %v5674 = vunpack.c.l.b16 %v5355
      %v5675 = vunpack.c.l.b16 %v5356
      %v5676 = vunpack.c.l.b16 %v5357
      %v5677 = vunpack.c.l.b16 %v5358
      %v5678 = vunpack.c.l.b16 %v5359
      %v5679 = vunpack.c.l.b16 %v5360
      %v5680 = vunpack.c.l.b16 %v5361
      %v5681 = vunpack.c.l.b16 %v5362
      %v5682 = vunpack.c.l.b16 %v5363
      %v5683 = vunpack.c.l.b16 %v5364
      %v5684 = vunpack.c.l.b16 %v5365
      %v5685 = vunpack.c.l.b16 %v5366
      %v5686 = vunpack.c.l.b16 %v5367
      %v5687 = vunpack.c.l.b16 %v5368
      %v5688 = vunpack.c.l.b16 %v5369
      %v5689 = vunpack.c.l.b16 %v5370
      %v5690 = vunpack.c.l.b16 %v5371
      %v5691 = vunpack.c.l.b16 %v5372
      %v5692 = vunpack.c.l.b16 %v5373
      %v5693 = vunpack.c.l.b16 %v5374
      %v5694 = vunpack.c.l.b16 %v5375
      %v5695 = vunpack.c.l.b16 %v5376
      %v5696 = vunpack.c.l.b16 %v5377
      %v5697 = vunpack.c.l.b16 %v5378
      %v5698 = vunpack.c.l.b16 %v5379
      %v5699 = vunpack.c.l.b16 %v5380
      %v5700 = vunpack.c.l.b16 %v5381
      %v5701 = vunpack.c.l.b16 %v5382
      %v5702 = vunpack.c.l.b16 %v5383
      %v5703 = vunpack.c.l.b16 %v5384
      %v5704 = vunpack.c.l.b16 %v5385
      %v5705 = vunpack.c.l.b16 %v5386
      %v5706 = vunpack.c.l.b16 %v5387
      %v5707 = vunpack.c.l.b16 %v5388
      %v5708 = vunpack.c.l.b16 %v5389
      %v5709 = vunpack.c.l.b16 %v5390
      %v5710 = vunpack.c.l.b16 %v5391
      %v5711 = vunpack.c.l.b16 %v5392
      %v5712 = vunpack.c.l.b16 %v5393
      %v5713 = vunpack.c.l.b16 %v5394
      %v5714 = vunpack.c.l.b16 %v5395
      %v5715 = vunpack.c.l.b16 %v5396
      %v5716 = vunpack.c.l.b16 %v5397
      %v5717 = vunpack.c.l.b16 %v5398
      %v5718 = vunpack.c.l.b16 %v5399
      %v5719 = vunpack.c.l.b16 %v5400
      %v5720 = vunpack.c.l.b16 %v5401
      %v5721 = vunpack.c.l.b16 %v5402
      %v5722 = vunpack.c.l.b16 %v5403
      %v5723 = vunpack.c.l.b16 %v5404
      %v5724 = vunpack.c.l.b16 %v5405
      %v5725 = vunpack.c.l.b16 %v5406
      %v5726 = vunpack.c.l.b16 %v5407
      %v5727 = vunpack.c.l.b16 %v5408
      %v5728 = vunpack.c.l.b16 %v5409
      %v5729 = vunpack.c.l.b16 %v5410
      %v5730 = vunpack.c.l.b16 %v5411
      %v5731 = vunpack.c.l.b16 %v5412
      %v5732 = vunpack.c.l.b16 %v5413
      %v5733 = vunpack.c.l.b16 %v5414
      %v5734 = vunpack.c.l.b16 %v5415
      %v5735 = vunpack.c.l.b16 %v5416
      %v5736 = vunpack.c.l.b16 %v5417
      %v5737 = vunpack.c.l.b16 %v5418
      %v5738 = vunpack.c.l.b16 %v5419
      %v5739 = vunpack.c.l.b16 %v5420
      %v5740 = vunpack.c.l.b16 %v5421
      %v5741 = vunpack.c.l.b16 %v5422
      %v5742 = vunpack.c.l.b16 %v5423
      %v5743 = vunpack.c.l.b16 %v5424
      %v5744 = vunpack.c.l.b16 %v5425
      %v5745 = vpack.c.b16 %v5674, %v5673
      %v5746 = vpack.c.b16 %v5676, %v5675
      %v5747 = vpack.c.b16 %v5678, %v5677
      %v5748 = vpack.c.b16 %v5680, %v5679
      %v5749 = vpack.c.b16 %v5682, %v5681
      %v5750 = vpack.c.b16 %v5684, %v5683
      %v5751 = vpack.c.b16 %v5686, %v5685
      %v5752 = vpack.c.b16 %v5688, %v5687
      %v5753 = vpack.c.b16 %v5690, %v5689
      %v5754 = vpack.c.b16 %v5692, %v5691
      %v5755 = vpack.c.b16 %v5694, %v5693
      %v5756 = vpack.c.b16 %v5696, %v5695
      %v5757 = vpack.c.b16 %v5698, %v5697
      %v5758 = vpack.c.b16 %v5700, %v5699
      %v5759 = vpack.c.b16 %v5702, %v5701
      %v5760 = vpack.c.b16 %v5704, %v5703
      %v5761 = vpack.c.b16 %v5706, %v5705
      %v5762 = vpack.c.b16 %v5708, %v5707
      %v5763 = vpack.c.b16 %v5710, %v5709
      %v5764 = vpack.c.b16 %v5712, %v5711
      %v5765 = vpack.c.b16 %v5714, %v5713
      %v5766 = vpack.c.b16 %v5716, %v5715
      %v5767 = vpack.c.b16 %v5718, %v5717
      %v5768 = vpack.c.b16 %v5720, %v5719
      %v5769 = vpack.c.b16 %v5722, %v5721
      %v5770 = vpack.c.b16 %v5724, %v5723
      %v5771 = vpack.c.b16 %v5726, %v5725
      %v5772 = vpack.c.b16 %v5728, %v5727
      %v5773 = vpack.c.b16 %v5730, %v5729
      %v5774 = vpack.c.b16 %v5732, %v5731
      %v5775 = vpack.c.b16 %v5734, %v5733
      %v5776 = vpack.c.b16 %v5736, %v5735
      %v5777 = vpack.c.b16 %v5738, %v5737
      %v5778 = vpack.c.b16 %v5740, %v5739
      %v5779 = vpack.c.b16 %v5742, %v5741
      %v5780 = vpack.c.b16 %v5744, %v5743
      %v5818 = vsel %vm549, %v5584, 0
      %v5821 = vsel %vm549, %v5589, 0
      %v5824 = vsel %vm549, %v5594, 0
      %v5827 = vsel %vm549, %v5599, 0
      %5829 = vmatpush.bf16.msra.mxu0 %v5752
      %5830 = vmatpush.bf16.msra.mxu0 %v5751
      %5831 = vmatpush.bf16.msra.mxu0 %v5750
      %5832 = vmatpush.bf16.msra.mxu0 %v5749
      %5833 = vmatpush.bf16.msra.mxu0 %v5748
      %5834 = vmatpush.bf16.msra.mxu0 %v5747
      %5835 = vmatpush.bf16.msra.mxu0 %v5746
      %5836 = vmatpush.bf16.msra.mxu0 %v5745
      %5837 = vmatmul.bf16.gmra.mxu0 %v5580
      %v5838 = vpop.f32.mrf.mxu0
      %v5839 = vadd.f32 %v5600, %v5838
      %v5840 = vpop.f32.mrf.mxu0
      %v5841 = vadd.f32 %v5600, %v5840
      %5842 = vmatmul.bf16.gmra.mxu0 %v5585
      %v5843 = vpop.f32.mrf.mxu0
      %v5844 = vadd.f32 %v5600, %v5843
      %v5845 = vpop.f32.mrf.mxu0
      %v5846 = vadd.f32 %v5600, %v5845
      %5847 = vmatmul.bf16.gmra.mxu0 %v5590
      %v5848 = vpop.f32.mrf.mxu0
      %v5849 = vadd.f32 %v5600, %v5848
      %v5850 = vpop.f32.mrf.mxu0
      %v5851 = vadd.f32 %v5600, %v5850
      %5852 = vmatmul.bf16.gmra.mxu0 %v5595
      %v5853 = vpop.f32.mrf.mxu0
      %v5854 = vadd.f32 %v5600, %v5853
      %v5855 = vpop.f32.mrf.mxu0
      %v5856 = vadd.f32 %v5600, %v5855
      %5857 = vdwg.mxu0
      %5858 = vmatpush.bf16.msra.mxu0 %v5760
      %5859 = vmatpush.bf16.msra.mxu0 %v5759
      %5860 = vmatpush.bf16.msra.mxu0 %v5758
      %5861 = vmatpush.bf16.msra.mxu0 %v5757
      %5862 = vmatpush.bf16.msra.mxu0 %v5756
      %5863 = vmatpush.bf16.msra.mxu0 %v5755
      %5864 = vmatpush.bf16.msra.mxu0 %v5754
      %5865 = vmatpush.bf16.msra.mxu0 %v5753
      %5866 = vmatmul.bf16.gmra.mxu0 %v5581
      %v5867 = vpop.f32.mrf.mxu0
      %v5868 = vadd.f32 %v5839, %v5867
      %v5869 = vpop.f32.mrf.mxu0
      %v5870 = vadd.f32 %v5841, %v5869
      %5871 = vmatmul.bf16.gmra.mxu0 %v5586
      %v5872 = vpop.f32.mrf.mxu0
      %v5873 = vadd.f32 %v5844, %v5872
      %v5874 = vpop.f32.mrf.mxu0
      %v5875 = vadd.f32 %v5846, %v5874
      %5876 = vmatmul.bf16.gmra.mxu0 %v5591
      %v5877 = vpop.f32.mrf.mxu0
      %v5878 = vadd.f32 %v5849, %v5877
      %v5879 = vpop.f32.mrf.mxu0
      %v5880 = vadd.f32 %v5851, %v5879
      %5881 = vmatmul.bf16.gmra.mxu0 %v5596
      %v5882 = vpop.f32.mrf.mxu0
      %v5883 = vadd.f32 %v5854, %v5882
      %v5884 = vpop.f32.mrf.mxu0
      %v5885 = vadd.f32 %v5856, %v5884
      %5886 = vdwg.mxu0
      %5887 = vmatpush.bf16.msra.mxu0 %v5768
      %5888 = vmatpush.bf16.msra.mxu0 %v5767
      %5889 = vmatpush.bf16.msra.mxu0 %v5766
      %5890 = vmatpush.bf16.msra.mxu0 %v5765
      %5891 = vmatpush.bf16.msra.mxu0 %v5764
      %5892 = vmatpush.bf16.msra.mxu0 %v5763
      %5893 = vmatpush.bf16.msra.mxu0 %v5762
      %5894 = vmatpush.bf16.msra.mxu0 %v5761
      %5895 = vmatmul.bf16.gmra.mxu0 %v5582
      %v5896 = vpop.f32.mrf.mxu0
      %v5897 = vadd.f32 %v5868, %v5896
      %v5898 = vpop.f32.mrf.mxu0
      %v5899 = vadd.f32 %v5870, %v5898
      %5900 = vmatmul.bf16.gmra.mxu0 %v5587
      %v5901 = vpop.f32.mrf.mxu0
      %v5902 = vadd.f32 %v5873, %v5901
      %v5903 = vpop.f32.mrf.mxu0
      %v5904 = vadd.f32 %v5875, %v5903
      %5905 = vmatmul.bf16.gmra.mxu0 %v5592
      %v5906 = vpop.f32.mrf.mxu0
      %v5907 = vadd.f32 %v5878, %v5906
      %v5908 = vpop.f32.mrf.mxu0
      %v5909 = vadd.f32 %v5880, %v5908
      %5910 = vmatmul.bf16.gmra.mxu0 %v5597
      %v5911 = vpop.f32.mrf.mxu0
      %v5912 = vadd.f32 %v5883, %v5911
      %v5913 = vpop.f32.mrf.mxu0
      %v5914 = vadd.f32 %v5885, %v5913
      %5915 = vdwg.mxu0
      %5916 = vmatpush.bf16.msra.mxu0 %v5776
      %5917 = vmatpush.bf16.msra.mxu0 %v5775
      %5918 = vmatpush.bf16.msra.mxu0 %v5774
      %5919 = vmatpush.bf16.msra.mxu0 %v5773
      %5920 = vmatpush.bf16.msra.mxu0 %v5772
      %5921 = vmatpush.bf16.msra.mxu0 %v5771
      %5922 = vmatpush.bf16.msra.mxu0 %v5770
      %5923 = vmatpush.bf16.msra.mxu0 %v5769
      %5924 = vmatmul.bf16.gmra.mxu0 %v5583
      %v5925 = vpop.f32.mrf.mxu0
      %v5926 = vadd.f32 %v5897, %v5925
      %v5927 = vpop.f32.mrf.mxu0
      %v5928 = vadd.f32 %v5899, %v5927
      %5929 = vmatmul.bf16.gmra.mxu0 %v5588
      %v5930 = vpop.f32.mrf.mxu0
      %v5931 = vadd.f32 %v5902, %v5930
      %v5932 = vpop.f32.mrf.mxu0
      %v5933 = vadd.f32 %v5904, %v5932
      %5934 = vmatmul.bf16.gmra.mxu0 %v5593
      %v5935 = vpop.f32.mrf.mxu0
      %v5936 = vadd.f32 %v5907, %v5935
      %v5937 = vpop.f32.mrf.mxu0
      %v5938 = vadd.f32 %v5909, %v5937
      %5939 = vmatmul.bf16.gmra.mxu0 %v5598
      %v5940 = vpop.f32.mrf.mxu0
      %v5941 = vadd.f32 %v5912, %v5940
      %v5942 = vpop.f32.mrf.mxu0
      %v5943 = vadd.f32 %v5914, %v5942
      %5944 = vdwg.mxu0
      %5945 = vmatpush.bf16.msra.mxu0 0
      %5946 = vmatpush.bf16.msra.mxu0 0
      %5947 = vmatpush.bf16.msra.mxu0 0
      %5948 = vmatpush.bf16.msra.mxu0 0
      %5949 = vmatpush.bf16.msra.mxu0 %v5780
      %5950 = vmatpush.bf16.msra.mxu0 %v5779
      %5951 = vmatpush.bf16.msra.mxu0 %v5778
      %5952 = vmatpush.bf16.msra.mxu0 %v5777
      %5953 = vmatmul.bf16.gmra.mxu0 %v5818
      %v5954 = vpop.f32.mrf.mxu0
      %v5955 = vadd.f32 %v5926, %v5954
      %v5956 = vpop.f32.mrf.mxu0
      %v5957 = vadd.f32 %v5928, %v5956
      %5958 = vmatmul.bf16.gmra.mxu0 %v5821
      %v5959 = vpop.f32.mrf.mxu0
      %v5960 = vadd.f32 %v5931, %v5959
      %v5961 = vpop.f32.mrf.mxu0
      %v5962 = vadd.f32 %v5933, %v5961
      %5963 = vmatmul.bf16.gmra.mxu0 %v5824
      %v5964 = vpop.f32.mrf.mxu0
      %v5965 = vadd.f32 %v5936, %v5964
      %v5966 = vpop.f32.mrf.mxu0
      %v5967 = vadd.f32 %v5938, %v5966
      %5968 = vmatmul.bf16.gmra.mxu0 %v5827
      %v5969 = vpop.f32.mrf.mxu0
      %v5970 = vadd.f32 %v5941, %v5969
      %v5971 = vpop.f32.mrf.mxu0
      %v5972 = vadd.f32 %v5943, %v5971
      %5973 = vdwg.mxu0
      %v5974 = vmul.f32 %v5955, %v3376
      %v5975 = vmul.f32 %v5957, %v3381
      %v5976 = vmul.f32 %v5960, %v3386
      %v5977 = vmul.f32 %v5962, %v3391
      %v5978 = vmul.f32 %v5965, %v3396
      %v5979 = vmul.f32 %v5967, %v3401
      %v5980 = vmul.f32 %v5970, %v3406
      %v5981 = vmul.f32 %v5972, %v3411
      %5982 = vst.msk [vmem:[#allocation2 + $0xa] sm:$0xff] %vm536, %v5974
      %5983 = vst.msk [vmem:[#allocation2 + $0x12] sm:$0xff] %vm536, %v5975
      %5984 = vst.msk [vmem:[#allocation2 + $0x1a] sm:$0xff] %vm536, %v5976
      %5985 = vst.msk [vmem:[#allocation2 + $0x22] sm:$0xff] %vm536, %v5977
      %5986 = vst.msk [vmem:[#allocation2 + $0x2a] sm:$0xff] %vm536, %v5978
      %5987 = vst.msk [vmem:[#allocation2 + $0x32] sm:$0xff] %vm536, %v5979
      %5988 = vst.msk [vmem:[#allocation2 + $0x3a] sm:$0xff] %vm536, %v5980
      %5989 = vst.msk [vmem:[#allocation2 + $0x42] sm:$0x1f] %vm3434, %v5981
      %v5990 = vld [vmem:[%s4] sm:$0xf]
      %v5991 = vld [vmem:[%s4 + $0x4] sm:$0xf]
      %v5992 = vld [vmem:[%s4 + $0x8] sm:$0xf]
      %v5993 = vld [vmem:[%s4 + $0xc] sm:$0xf]
      %v5994 = vld [vmem:[%s4 + $0x10] sm:$0xf]
      %v5995 = vld [vmem:[%s4 + $0x14] sm:$0xf]
      %v5996 = vld [vmem:[%s4 + $0x18] sm:$0xf]
      %v5997 = vld [vmem:[%s4 + $0x1c] sm:$0xf]
      %v5998 = vld [vmem:[%s4 + $0x20] sm:$0xf]
      %v5999 = vld [vmem:[%s4 + $0x24] sm:$0xf]
      %v6000 = vld [vmem:[%s4 + $0x28] sm:$0xf]
      %v6001 = vld [vmem:[%s4 + $0x2c] sm:$0xf]
      %v6002 = vld [vmem:[%s4 + $0x30] sm:$0xf]
      %v6003 = vld [vmem:[%s4 + $0x34] sm:$0xf]
      %v6004 = vld [vmem:[%s4 + $0x38] sm:$0xf]
      %v6005 = vld [vmem:[%s4 + $0x3c] sm:$0xf]
      %v6006 = vld [vmem:[%s4 + $0x40] sm:$0xf]
      %v6007 = vld [vmem:[%s4 + $0x44] sm:$0xf]
      %v6008 = vld [vmem:[%s4 + $0x48] sm:$0xf]
      %v6009 = vld [vmem:[%s4 + $0x4c] sm:$0xf]
      %v6010 = vld [vmem:[%s4 + $0x50] sm:$0xf]
      %v6011 = vld [vmem:[%s4 + $0x54] sm:$0xf]
      %v6012 = vld [vmem:[%s4 + $0x58] sm:$0xf]
      %v6013 = vld [vmem:[%s4 + $0x5c] sm:$0xf]
      %v6014 = vld [vmem:[%s4 + $0x60] sm:$0xf]
      %v6015 = vld [vmem:[%s4 + $0x64] sm:$0xf]
      %v6016 = vld [vmem:[%s4 + $0x68] sm:$0xf]
      %v6017 = vld [vmem:[%s4 + $0x6c] sm:$0xf]
      %v6018 = vld [vmem:[%s4 + $0x70] sm:$0xf]
      %v6019 = vld [vmem:[%s4 + $0x74] sm:$0xf]
      %v6020 = vld [vmem:[%s4 + $0x78] sm:$0xf]
      %v6021 = vld [vmem:[%s4 + $0x7c] sm:$0xf]
      %v6022 = vld [vmem:[%s4 + $0x80] sm:$0xf]
      %v6023 = vld [vmem:[%s4 + $0x84] sm:$0xf]
      %v6024 = vld [vmem:[%s4 + $0x88] sm:$0xf]
      %v6025 = vld [vmem:[%s4 + $0x8c] sm:$0xf]
      %v6026 = vld [vmem:[#allocation2] sm:$0xff]
      %v6027 = vld [vmem:[#allocation2 + $0x8] sm:$0xff]
      %v6028 = vld [vmem:[#allocation2 + $0x10] sm:$0xff]
      %v6029 = vld [vmem:[#allocation2 + $0x18] sm:$0xff]
      %v6030 = vld [vmem:[#allocation2 + $0x20] sm:$0xff]
      %v6031 = vld [vmem:[#allocation2 + $0x28] sm:$0xff]
      %v6032 = vld [vmem:[#allocation2 + $0x30] sm:$0xff]
      %v6033 = vld [vmem:[#allocation2 + $0x38] sm:$0x1f]
      %v6034 = vld [vmem:[#allocation2 + $0x1] sm:$0xff]
      %v6035 = vld [vmem:[#allocation2 + $0x9] sm:$0xff]
      %v6036 = vld [vmem:[#allocation2 + $0x11] sm:$0xff]
      %v6037 = vld [vmem:[#allocation2 + $0x19] sm:$0xff]
      %v6038 = vld [vmem:[#allocation2 + $0x21] sm:$0xff]
      %v6039 = vld [vmem:[#allocation2 + $0x29] sm:$0xff]
      %v6040 = vld [vmem:[#allocation2 + $0x31] sm:$0xff]
      %v6041 = vld [vmem:[#allocation2 + $0x39] sm:$0x1f]
      %v6042 = vld [vmem:[#allocation2 + $0x2] sm:$0xff]
      %v6043 = vld [vmem:[#allocation2 + $0xa] sm:$0xff]
      %v6044 = vld [vmem:[#allocation2 + $0x12] sm:$0xff]
      %v6045 = vld [vmem:[#allocation2 + $0x1a] sm:$0xff]
      %v6046 = vld [vmem:[#allocation2 + $0x22] sm:$0xff]
      %v6047 = vld [vmem:[#allocation2 + $0x2a] sm:$0xff]
      %v6048 = vld [vmem:[#allocation2 + $0x32] sm:$0xff]
      %v6049 = vld [vmem:[#allocation2 + $0x3a] sm:$0x1f]
      %v6050 = vld [vmem:[#allocation2 + $0x39] sm:$0xff]
      %v6051 = vld [vmem:[#allocation2 + $0x41] sm:$0x1f]
      %v6052 = vld [vmem:[#allocation2 + $0x3a] sm:$0xff]
      %v6053 = vld [vmem:[#allocation2 + $0x42] sm:$0x1f]
      %v6054 = vld [vmem:[#allocation2 + $0xb] sm:$0xff]
      %v6055 = vld [vmem:[#allocation2 + $0x13] sm:$0xff]
      %v6056 = vld [vmem:[#allocation2 + $0x1b] sm:$0xff]
      %v6057 = vld [vmem:[#allocation2 + $0x23] sm:$0xff]
      %v6058 = vld [vmem:[#allocation2 + $0x2b] sm:$0xff]
      %v6059 = vld [vmem:[#allocation2 + $0x33] sm:$0xff]
      %v6060 = vld [vmem:[#allocation2 + $0x3b] sm:$0xff]
      %v6061 = vld [vmem:[#allocation2 + $0x43] sm:$0x1f]
      %v6062 = vld [vmem:[#allocation2 + $0x42] sm:$0xff]
      %v6063 = vld [vmem:[#allocation2 + $0x4a] sm:$0x1f]
      %v6064 = vld [vmem:[#allocation2 + $0x43] sm:$0xff]
      %v6065 = vld [vmem:[#allocation2 + $0x4b] sm:$0x1f]
      %v6066 = vld [vmem:[#allocation2 + $0x14] sm:$0xff]
      %v6067 = vld [vmem:[#allocation2 + $0x1c] sm:$0xff]
      %v6068 = vld [vmem:[#allocation2 + $0x24] sm:$0xff]
      %v6069 = vld [vmem:[#allocation2 + $0x2c] sm:$0xff]
      %v6070 = vld [vmem:[#allocation2 + $0x34] sm:$0xff]
      %v6071 = vld [vmem:[#allocation2 + $0x3c] sm:$0xff]
      %v6072 = vld [vmem:[#allocation2 + $0x44] sm:$0xff]
      %v6073 = vld [vmem:[#allocation2 + $0x4c] sm:$0x1f]
      %6082 = vrot.lane.b32.xlu0 %v6034, 32
      %v6083 = vpop.permute.xlu0 %6082
      %6084 = vrot.lane.b32.xlu0 %v6035, 32
      %v6085 = vpop.permute.xlu0 %6084
      %6086 = vrot.lane.b32.xlu0 %v6036, 32
      %v6087 = vpop.permute.xlu0 %6086
      %6088 = vrot.lane.b32.xlu0 %v6037, 32
      %v6089 = vpop.permute.xlu0 %6088
      %6090 = vrot.lane.b32.xlu0 %v6038, 32
      %v6091 = vpop.permute.xlu0 %6090
      %6092 = vrot.lane.b32.xlu0 %v6039, 32
      %v6093 = vpop.permute.xlu0 %6092
      %6094 = vrot.lane.b32.xlu0 %v6040, 32
      %v6095 = vpop.permute.xlu0 %6094
      %6096 = vrot.lane.b32.xlu0 %v6041, 32
      %v6097 = vpop.permute.xlu0 %6096
      %6114 = vrot.lane.b32.xlu0 %v6042, 64
      %v6115 = vpop.permute.xlu0 %6114
      %6116 = vrot.lane.b32.xlu0 %v6043, 64
      %v6117 = vpop.permute.xlu0 %6116
      %6118 = vrot.lane.b32.xlu0 %v6044, 64
      %v6119 = vpop.permute.xlu0 %6118
      %6120 = vrot.lane.b32.xlu0 %v6045, 64
      %v6121 = vpop.permute.xlu0 %6120
      %6122 = vrot.lane.b32.xlu0 %v6046, 64
      %v6123 = vpop.permute.xlu0 %6122
      %6124 = vrot.lane.b32.xlu0 %v6047, 64
      %v6125 = vpop.permute.xlu0 %6124
      %6126 = vrot.lane.b32.xlu0 %v6048, 64
      %v6127 = vpop.permute.xlu0 %6126
      %6128 = vrot.lane.b32.xlu0 %v6049, 64
      %v6129 = vpop.permute.xlu0 %6128
      %6140 = vrot.lane.b32.xlu0 %v6035, 96
      %v6141 = vpop.permute.xlu0 %6140
      %6142 = vrot.lane.b32.xlu0 %v6036, 96
      %v6143 = vpop.permute.xlu0 %6142
      %6144 = vrot.lane.b32.xlu0 %v6037, 96
      %v6145 = vpop.permute.xlu0 %6144
      %6146 = vrot.lane.b32.xlu0 %v6038, 96
      %v6147 = vpop.permute.xlu0 %6146
      %6148 = vrot.lane.b32.xlu0 %v6039, 96
      %v6149 = vpop.permute.xlu0 %6148
      %6150 = vrot.lane.b32.xlu0 %v6040, 96
      %v6151 = vpop.permute.xlu0 %6150
      %6152 = vrot.lane.b32.xlu0 %v6050, 96
      %v6153 = vpop.permute.xlu0 %6152
      %6154 = vrot.lane.b32.xlu0 %v6051, 96
      %v6155 = vpop.permute.xlu0 %6154
      %6172 = vrot.lane.b32.xlu0 %v6054, 32
      %v6173 = vpop.permute.xlu0 %6172
      %6174 = vrot.lane.b32.xlu0 %v6055, 32
      %v6175 = vpop.permute.xlu0 %6174
      %6176 = vrot.lane.b32.xlu0 %v6056, 32
      %v6177 = vpop.permute.xlu0 %6176
      %6178 = vrot.lane.b32.xlu0 %v6057, 32
      %v6179 = vpop.permute.xlu0 %6178
      %6180 = vrot.lane.b32.xlu0 %v6058, 32
      %v6181 = vpop.permute.xlu0 %6180
      %6182 = vrot.lane.b32.xlu0 %v6059, 32
      %v6183 = vpop.permute.xlu0 %6182
      %6184 = vrot.lane.b32.xlu0 %v6060, 32
      %v6185 = vpop.permute.xlu0 %6184
      %6186 = vrot.lane.b32.xlu0 %v6061, 32
      %v6187 = vpop.permute.xlu0 %6186
      %6199 = vrot.lane.b32.xlu0 %v6052, 64
      %v6200 = vpop.permute.xlu0 %6199
      %6201 = vrot.lane.b32.xlu0 %v6062, 64
      %v6202 = vpop.permute.xlu0 %6201
      %6203 = vrot.lane.b32.xlu0 %v6063, 64
      %v6204 = vpop.permute.xlu0 %6203
      %6210 = vrot.lane.b32.xlu0 %v6055, 96
      %v6211 = vpop.permute.xlu0 %6210
      %6212 = vrot.lane.b32.xlu0 %v6056, 96
      %v6213 = vpop.permute.xlu0 %6212
      %6214 = vrot.lane.b32.xlu0 %v6057, 96
      %v6215 = vpop.permute.xlu0 %6214
      %6216 = vrot.lane.b32.xlu0 %v6058, 96
      %v6217 = vpop.permute.xlu0 %6216
      %6218 = vrot.lane.b32.xlu0 %v6059, 96
      %v6219 = vpop.permute.xlu0 %6218
      %6220 = vrot.lane.b32.xlu0 %v6060, 96
      %v6221 = vpop.permute.xlu0 %6220
      %6222 = vrot.lane.b32.xlu0 %v6064, 96
      %v6223 = vpop.permute.xlu0 %6222
      %6224 = vrot.lane.b32.xlu0 %v6065, 96
      %v6225 = vpop.permute.xlu0 %6224
      %v6234 = vsel %vm536, %v6026, %v6083
      %v6235 = vsel %vm536, %v6027, %v6085
      %v6236 = vsel %vm536, %v6028, %v6087
      %v6237 = vsel %vm536, %v6029, %v6089
      %v6238 = vsel %vm536, %v6030, %v6091
      %v6239 = vsel %vm536, %v6031, %v6093
      %v6240 = vsel %vm536, %v6032, %v6095
      %v6241 = vsel %vm536, %v6033, %v6097
      %v6242 = vsel %vm549, %v6234, %v6115
      %v6243 = vsel %vm549, %v6235, %v6117
      %v6244 = vsel %vm549, %v6236, %v6119
      %v6245 = vsel %vm549, %v6237, %v6121
      %v6246 = vsel %vm549, %v6238, %v6123
      %v6247 = vsel %vm549, %v6239, %v6125
      %v6248 = vsel %vm549, %v6240, %v6127
      %v6249 = vsel %vm549, %v6241, %v6129
      %v6250 = vsel %vm1157, %v6242, %v6141
      %v6251 = vsel %vm1157, %v6243, %v6143
      %v6252 = vsel %vm1157, %v6244, %v6145
      %v6253 = vsel %vm1157, %v6245, %v6147
      %v6254 = vsel %vm1157, %v6246, %v6149
      %v6255 = vsel %vm1157, %v6247, %v6151
      %v6256 = vsel %vm1157, %v6248, %v6153
      %v6257 = vsel %vm1157, %v6249, %v6155
      %v6258 = vsel %vm536, %v6043, %v6173
      %v6259 = vsel %vm536, %v6044, %v6175
      %v6260 = vsel %vm536, %v6045, %v6177
      %v6261 = vsel %vm536, %v6046, %v6179
      %v6262 = vsel %vm536, %v6047, %v6181
      %v6263 = vsel %vm536, %v6048, %v6183
      %v6264 = vsel %vm536, %v6052, %v6185
      %v6265 = vsel %vm536, %v6053, %v6187
      %v6266 = vsel %vm549, %v6258, %v6119
      %v6267 = vsel %vm549, %v6259, %v6121
      %v6268 = vsel %vm549, %v6260, %v6123
      %v6269 = vsel %vm549, %v6261, %v6125
      %v6270 = vsel %vm549, %v6262, %v6127
      %v6271 = vsel %vm549, %v6263, %v6200
      %v6272 = vsel %vm549, %v6264, %v6202
      %v6273 = vsel %vm549, %v6265, %v6204
      %v6274 = vsel %vm1157, %v6266, %v6211
      %v6275 = vsel %vm1157, %v6267, %v6213
      %v6276 = vsel %vm1157, %v6268, %v6215
      %v6277 = vsel %vm1157, %v6269, %v6217
      %v6278 = vsel %vm1157, %v6270, %v6219
      %v6279 = vsel %vm1157, %v6271, %v6221
      %v6280 = vsel %vm1157, %v6272, %v6223
      %v6281 = vsel %vm1157, %v6273, %v6225
      %v6282 = vpack.c.bf16 %v6251, %v6250
      %v6283 = vpack.c.bf16 %v6275, %v6274
      %v6284 = vpack.c.bf16 %v6067, %v6066
      %v6285 = vpack.c.bf16 %v6253, %v6252
      %v6286 = vpack.c.bf16 %v6277, %v6276
      %v6287 = vpack.c.bf16 %v6069, %v6068
      %v6288 = vpack.c.bf16 %v6255, %v6254
      %v6289 = vpack.c.bf16 %v6279, %v6278
      %v6290 = vpack.c.bf16 %v6071, %v6070
      %v6291 = vpack.c.bf16 %v6257, %v6256
      %v6292 = vpack.c.bf16 %v6281, %v6280
      %v6293 = vpack.c.bf16 %v6073, %v6072
      %v6294 = vperm.slane %v586, 0
      %v6331 = vunpack.c.l.b16 %v5990
      %v6332 = vunpack.c.l.b16 %v5991
      %v6333 = vunpack.c.l.b16 %v5992
      %v6334 = vunpack.c.l.b16 %v5993
      %v6335 = vunpack.c.l.b16 %v5994
      %v6336 = vunpack.c.l.b16 %v5995
      %v6337 = vunpack.c.l.b16 %v5996
      %v6338 = vunpack.c.l.b16 %v5997
      %v6339 = vunpack.c.l.b16 %v5998
      %v6340 = vunpack.c.l.b16 %v5999
      %v6341 = vunpack.c.l.b16 %v6000
      %v6342 = vunpack.c.l.b16 %v6001
      %v6343 = vunpack.c.l.b16 %v6002
      %v6344 = vunpack.c.l.b16 %v6003
      %v6345 = vunpack.c.l.b16 %v6004
      %v6346 = vunpack.c.l.b16 %v6005
      %v6347 = vunpack.c.l.b16 %v6006
      %v6348 = vunpack.c.l.b16 %v6007
      %v6349 = vunpack.c.l.b16 %v6008
      %v6350 = vunpack.c.l.b16 %v6009
      %v6351 = vunpack.c.l.b16 %v6010
      %v6352 = vunpack.c.l.b16 %v6011
      %v6353 = vunpack.c.l.b16 %v6012
      %v6354 = vunpack.c.l.b16 %v6013
      %v6355 = vunpack.c.l.b16 %v6014
      %v6356 = vunpack.c.l.b16 %v6015
      %v6357 = vunpack.c.l.b16 %v6016
      %v6358 = vunpack.c.l.b16 %v6017
      %v6359 = vunpack.c.l.b16 %v6018
      %v6360 = vunpack.c.l.b16 %v6019
      %v6361 = vunpack.c.l.b16 %v6020
      %v6362 = vunpack.c.l.b16 %v6021
      %v6363 = vunpack.c.l.b16 %v6022
      %v6364 = vunpack.c.l.b16 %v6023
      %v6365 = vunpack.c.l.b16 %v6024
      %v6366 = vunpack.c.l.b16 %v6025
      %v6367 = vpack.c.b16 %v6332, %v6331
      %v6368 = vpack.c.b16 %v6334, %v6333
      %v6369 = vpack.c.b16 %v6336, %v6335
      %v6370 = vpack.c.b16 %v6338, %v6337
      %v6371 = vpack.c.b16 %v6340, %v6339
      %v6372 = vpack.c.b16 %v6342, %v6341
      %v6373 = vpack.c.b16 %v6344, %v6343
      %v6374 = vpack.c.b16 %v6346, %v6345
      %v6375 = vpack.c.b16 %v6348, %v6347
      %v6376 = vpack.c.b16 %v6350, %v6349
      %v6377 = vpack.c.b16 %v6352, %v6351
      %v6378 = vpack.c.b16 %v6354, %v6353
      %v6379 = vpack.c.b16 %v6356, %v6355
      %v6380 = vpack.c.b16 %v6358, %v6357
      %v6381 = vpack.c.b16 %v6360, %v6359
      %v6382 = vpack.c.b16 %v6362, %v6361
      %v6383 = vpack.c.b16 %v6364, %v6363
      %v6384 = vpack.c.b16 %v6366, %v6365
      %v6404 = vsel %vm536, %v6284, 0
      %v6407 = vsel %vm536, %v6287, 0
      %v6410 = vsel %vm536, %v6290, 0
      %v6413 = vsel %vm536, %v6293, 0
      %6415 = vmatpush.bf16.msra.mxu0 %v6374
      %6416 = vmatpush.bf16.msra.mxu0 %v6373
      %6417 = vmatpush.bf16.msra.mxu0 %v6372
      %6418 = vmatpush.bf16.msra.mxu0 %v6371
      %6419 = vmatpush.bf16.msra.mxu0 %v6370
      %6420 = vmatpush.bf16.msra.mxu0 %v6369
      %6421 = vmatpush.bf16.msra.mxu0 %v6368
      %6422 = vmatpush.bf16.msra.mxu0 %v6367
      %6423 = vmatmul.bf16.gmra.mxu0 %v6282
      %v6424 = vpop.f32.mrf.mxu0
      %v6425 = vadd.f32 %v6294, %v6424
      %v6426 = vpop.f32.mrf.mxu0
      %v6427 = vadd.f32 %v6294, %v6426
      %6428 = vmatmul.bf16.gmra.mxu0 %v6285
      %v6429 = vpop.f32.mrf.mxu0
      %v6430 = vadd.f32 %v6294, %v6429
      %v6431 = vpop.f32.mrf.mxu0
      %v6432 = vadd.f32 %v6294, %v6431
      %6433 = vmatmul.bf16.gmra.mxu0 %v6288
      %v6434 = vpop.f32.mrf.mxu0
      %v6435 = vadd.f32 %v6294, %v6434
      %v6436 = vpop.f32.mrf.mxu0
      %v6437 = vadd.f32 %v6294, %v6436
      %6438 = vmatmul.bf16.gmra.mxu0 %v6291
      %v6439 = vpop.f32.mrf.mxu0
      %v6440 = vadd.f32 %v6294, %v6439
      %v6441 = vpop.f32.mrf.mxu0
      %v6442 = vadd.f32 %v6294, %v6441
      %6443 = vdwg.mxu0
      %6444 = vmatpush.bf16.msra.mxu0 %v6382
      %6445 = vmatpush.bf16.msra.mxu0 %v6381
      %6446 = vmatpush.bf16.msra.mxu0 %v6380
      %6447 = vmatpush.bf16.msra.mxu0 %v6379
      %6448 = vmatpush.bf16.msra.mxu0 %v6378
      %6449 = vmatpush.bf16.msra.mxu0 %v6377
      %6450 = vmatpush.bf16.msra.mxu0 %v6376
      %6451 = vmatpush.bf16.msra.mxu0 %v6375
      %6452 = vmatmul.bf16.gmra.mxu0 %v6283
      %v6453 = vpop.f32.mrf.mxu0
      %v6454 = vadd.f32 %v6425, %v6453
      %v6455 = vpop.f32.mrf.mxu0
      %v6456 = vadd.f32 %v6427, %v6455
      %6457 = vmatmul.bf16.gmra.mxu0 %v6286
      %v6458 = vpop.f32.mrf.mxu0
      %v6459 = vadd.f32 %v6430, %v6458
      %v6460 = vpop.f32.mrf.mxu0
      %v6461 = vadd.f32 %v6432, %v6460
      %6462 = vmatmul.bf16.gmra.mxu0 %v6289
      %v6463 = vpop.f32.mrf.mxu0
      %v6464 = vadd.f32 %v6435, %v6463
      %v6465 = vpop.f32.mrf.mxu0
      %v6466 = vadd.f32 %v6437, %v6465
      %6467 = vmatmul.bf16.gmra.mxu0 %v6292
      %v6468 = vpop.f32.mrf.mxu0
      %v6469 = vadd.f32 %v6440, %v6468
      %v6470 = vpop.f32.mrf.mxu0
      %v6471 = vadd.f32 %v6442, %v6470
      %6472 = vdwg.mxu0
      %6473 = vmatpush.bf16.msra.mxu0 0
      %6474 = vmatpush.bf16.msra.mxu0 0
      %6475 = vmatpush.bf16.msra.mxu0 0
      %6476 = vmatpush.bf16.msra.mxu0 0
      %6477 = vmatpush.bf16.msra.mxu0 0
      %6478 = vmatpush.bf16.msra.mxu0 0
      %6479 = vmatpush.bf16.msra.mxu0 %v6384
      %6480 = vmatpush.bf16.msra.mxu0 %v6383
      %6481 = vmatmul.bf16.gmra.mxu0 %v6404
      %v6482 = vpop.f32.mrf.mxu0
      %v6483 = vadd.f32 %v6454, %v6482
      %v6484 = vpop.f32.mrf.mxu0
      %v6485 = vadd.f32 %v6456, %v6484
      %6486 = vmatmul.bf16.gmra.mxu0 %v6407
      %v6487 = vpop.f32.mrf.mxu0
      %v6488 = vadd.f32 %v6459, %v6487
      %v6489 = vpop.f32.mrf.mxu0
      %v6490 = vadd.f32 %v6461, %v6489
      %6491 = vmatmul.bf16.gmra.mxu0 %v6410
      %v6492 = vpop.f32.mrf.mxu0
      %v6493 = vadd.f32 %v6464, %v6492
      %v6494 = vpop.f32.mrf.mxu0
      %v6495 = vadd.f32 %v6466, %v6494
      %6496 = vmatmul.bf16.gmra.mxu0 %v6413
      %v6497 = vpop.f32.mrf.mxu0
      %v6498 = vadd.f32 %v6469, %v6497
      %v6499 = vpop.f32.mrf.mxu0
      %v6500 = vadd.f32 %v6471, %v6499
      %6501 = vdwg.mxu0
      %v6502 = vmul.f32 %v6483, %v3376
      %v6503 = vmul.f32 %v6485, %v3381
      %v6504 = vmul.f32 %v6488, %v3386
      %v6505 = vmul.f32 %v6490, %v3391
      %v6506 = vmul.f32 %v6493, %v3396
      %v6507 = vmul.f32 %v6495, %v3401
      %v6508 = vmul.f32 %v6498, %v3406
      %v6509 = vmul.f32 %v6500, %v3411
      %v6510 = vsel %vm549, %v6502, 0.0
      %v6511 = vsel %vm549, %v6503, 0.0
      %v6512 = vadd.f32 %v6510, %v6511
      %v6513 = vsel %vm549, %v6504, 0.0
      %v6514 = vadd.f32 %v6512, %v6513
      %v6515 = vsel %vm549, %v6505, 0.0
      %v6516 = vadd.f32 %v6514, %v6515
      %v6517 = vsel %vm549, %v6506, 0.0
      %v6518 = vadd.f32 %v6516, %v6517
      %v6519 = vsel %vm549, %v6507, 0.0
      %v6520 = vadd.f32 %v6518, %v6519
      %v6521 = vsel %vm549, %v6508, 0.0
      %v6522 = vadd.f32 %v6520, %v6521
      %vm6523 = vcmask 520192
      %v6524 = vsel %vm6523, %v6509, 0.0
      %v6525 = vadd.f32 %v6522, %v6524
      %v6526 = vrot.slane %v6525, 4
      %v6527 = vadd.f32 %v6525, %v6526
      %v6528 = vrot.slane %v6527, 2
      %v6529 = vadd.f32 %v6527, %v6528
      %v6530 = vrot.slane %v6529, 1
      %v6531 = vadd.f32 %v6529, %v6530
      %v6532 = vmul.f32 %v6502, %v6502
      %v6533 = vmul.f32 %v6503, %v6503
      %v6534 = vmul.f32 %v6504, %v6504
      %v6535 = vmul.f32 %v6505, %v6505
      %v6536 = vmul.f32 %v6506, %v6506
      %v6537 = vmul.f32 %v6507, %v6507
      %v6538 = vmul.f32 %v6508, %v6508
      %v6539 = vmul.f32 %v6509, %v6509
      %v6540 = vsel %vm549, %v6532, 0.0
      %v6541 = vsel %vm549, %v6533, 0.0
      %v6542 = vadd.f32 %v6540, %v6541
      %v6543 = vsel %vm549, %v6534, 0.0
      %v6544 = vadd.f32 %v6542, %v6543
      %v6545 = vsel %vm549, %v6535, 0.0
      %v6546 = vadd.f32 %v6544, %v6545
      %v6547 = vsel %vm549, %v6536, 0.0
      %v6548 = vadd.f32 %v6546, %v6547
      %v6549 = vsel %vm549, %v6537, 0.0
      %v6550 = vadd.f32 %v6548, %v6549
      %v6551 = vsel %vm549, %v6538, 0.0
      %v6552 = vadd.f32 %v6550, %v6551
      %v6553 = vsel %vm6523, %v6539, 0.0
      %v6554 = vadd.f32 %v6552, %v6553
      %v6555 = vrot.slane %v6554, 4
      %v6556 = vadd.f32 %v6554, %v6555
      %v6557 = vrot.slane %v6556, 2
      %v6558 = vadd.f32 %v6556, %v6557
      %v6559 = vrot.slane %v6558, 1
      %v6560 = vadd.f32 %v6558, %v6559
      %v6561 = vsel %vm1655, %v6531, %v6560
      %v6562 = vmul.f32 %v6561, 0.020408163
      %v6564 = vsel %vm549, %v6562, 0
      %6566 = vmatpush.msra.mxu0 0.0
      %6567 = vmatpush.msra.mxu0 0.0
      %6568 = vmatpush.msra.mxu0 0.0
      %6569 = vmatpush.msra.mxu0 0.0
      %6570 = vmatpush.msra.mxu0 0.0
      %6571 = vmatpush.msra.mxu0 0.0
      %6572 = vmatpush.msra.mxu0 0.0
      %6573 = vmatpush.msra.mxu0 0.0
      %6574 = vmatpush.msra.mxu0 %v583
      %6575 = vmatpush.msra.mxu0 %v582
      %6576 = vmatpush.msra.mxu0 %v581
      %6577 = vmatpush.msra.mxu0 %v580
      %6578 = vmatpush.msra.mxu0 %v579
      %6579 = vmatpush.msra.mxu0 %v578
      %6580 = vmatpush.msra.mxu0 %v577
      %6581 = vmatpush.msra.mxu0 %v576
      %6582 = vmatmul.f32.gmra.mxu0 %v6564
      %v6583 = vpop.f32.mrf.mxu0
      %v6584 = vadd.f32 0.0, %v6583
      %6585 = vdwg.mxu0
      %v6586 = vmul.f32 %v6584, %v6584
      %v6588 = vrot.slane %v6586, 7
      %v6590 = vsub.f32 %v6584, %v6588
      %v6591 = vmax.f32 %v6590, 0.0
      %v6592 = vadd.f32 %v6591, 1e-05
      %v6593 = vrsqrt.pop %v6592
      %v6594 = vmul.f32 %v6593, %v6592
      %v6595 = vmul.f32 %v6594, %v6593
      %v6596 = vmul.f32 0.5, %v6595
      %v6597 = vsub.f32 1.5, %v6596
      %v6598 = vmul.f32 %v6593, %v6597
      %vm6599 = vweird.f32 %v6592
      %vm6600 = vweird.f32 %v6593
      %vm6601 = vmor %vm6599, %vm6600
      %v6602 = vsel %vm6601, %v6593, %v6598
      %v6603 = vmul.f32 %v586, %v6602
      %v6605 = vrot.slane %v6603, 1
      %v6607 = vmul.f32 %v6584, %v6605
      %v6609 = vrot.slane %v6607, 6
      %v6611 = vsub.f32 %v586, %v6609
      %v6612 = vperm.slane %v6603, 1
      %v6613 = vmul.f32 %v6502, %v6612
      %v6614 = vmul.f32 %v6503, %v6612
      %v6615 = vmul.f32 %v6504, %v6612
      %v6616 = vmul.f32 %v6505, %v6612
      %v6617 = vmul.f32 %v6506, %v6612
      %v6618 = vmul.f32 %v6507, %v6612
      %v6619 = vmul.f32 %v6508, %v6612
      %v6620 = vmul.f32 %v6509, %v6612
      %v6621 = vperm.slane %v6611, 2
      %v6622 = vadd.f32 %v6613, %v6621
      %v6623 = vadd.f32 %v6614, %v6621
      %v6624 = vadd.f32 %v6615, %v6621
      %v6625 = vadd.f32 %v6616, %v6621
      %v6626 = vadd.f32 %v6617, %v6621
      %v6627 = vadd.f32 %v6618, %v6621
      %v6628 = vadd.f32 %v6619, %v6621
      %v6629 = vadd.f32 %v6620, %v6621
      %v6630 = vmax.f32 %v6622, 0.0
      %v6631 = vmax.f32 %v6623, 0.0
      %v6632 = vmax.f32 %v6624, 0.0
      %v6633 = vmax.f32 %v6625, 0.0
      %v6634 = vmax.f32 %v6626, 0.0
      %v6635 = vmax.f32 %v6627, 0.0
      %v6636 = vmax.f32 %v6628, 0.0
      %v6637 = vmax.f32 %v6629, 0.0
      %v6638 = vmul.f32 %v6630, %v3376
      %v6639 = vmul.f32 %v6631, %v3381
      %v6640 = vmul.f32 %v6632, %v3386
      %v6641 = vmul.f32 %v6633, %v3391
      %v6642 = vmul.f32 %v6634, %v3396
      %v6643 = vmul.f32 %v6635, %v3401
      %v6644 = vmul.f32 %v6636, %v3406
      %v6645 = vmul.f32 %v6637, %v3411
      %6646 = vst.msk [vmem:[#allocation3 + $0xa] sm:$0xff] %vm549, %v6638
      %6647 = vst.msk [vmem:[#allocation3 + $0x12] sm:$0xff] %vm549, %v6639
      %6648 = vst.msk [vmem:[#allocation3 + $0x1a] sm:$0xff] %vm549, %v6640
      %6649 = vst.msk [vmem:[#allocation3 + $0x22] sm:$0xff] %vm549, %v6641
      %6650 = vst.msk [vmem:[#allocation3 + $0x2a] sm:$0xff] %vm549, %v6642
      %6651 = vst.msk [vmem:[#allocation3 + $0x32] sm:$0xff] %vm549, %v6643
      %6652 = vst.msk [vmem:[#allocation3 + $0x3a] sm:$0xff] %vm549, %v6644
      %6653 = vst.msk [vmem:[#allocation3 + $0x42] sm:$0x1f] %vm6523, %v6645
      %v6654 = vld [vmem:[%s7] sm:$0xf]
      %v6655 = vld [vmem:[%s7 + $0x4] sm:$0xf]
      %v6656 = vld [vmem:[%s7 + $0x8] sm:$0xf]
      %v6657 = vld [vmem:[%s7 + $0xc] sm:$0xf]
      %v6658 = vld [vmem:[%s7 + $0x10] sm:$0xf]
      %v6659 = vld [vmem:[%s7 + $0x14] sm:$0xf]
      %v6660 = vld [vmem:[%s7 + $0x18] sm:$0xf]
      %v6661 = vld [vmem:[%s7 + $0x1c] sm:$0xf]
      %v6662 = vld [vmem:[%s7 + $0x20] sm:$0xf]
      %v6663 = vld [vmem:[%s7 + $0x24] sm:$0xf]
      %v6664 = vld [vmem:[%s7 + $0x28] sm:$0xf]
      %v6665 = vld [vmem:[%s7 + $0x2c] sm:$0xf]
      %v6666 = vld [vmem:[%s7 + $0x30] sm:$0xf]
      %v6667 = vld [vmem:[%s7 + $0x34] sm:$0xf]
      %v6668 = vld [vmem:[%s7 + $0x38] sm:$0xf]
      %v6669 = vld [vmem:[%s7 + $0x3c] sm:$0xf]
      %v6670 = vld [vmem:[%s7 + $0x40] sm:$0xf]
      %v6671 = vld [vmem:[%s7 + $0x44] sm:$0xf]
      %v6672 = vld [vmem:[%s7 + $0x48] sm:$0xf]
      %v6673 = vld [vmem:[%s7 + $0x4c] sm:$0xf]
      %v6674 = vld [vmem:[%s7 + $0x50] sm:$0xf]
      %v6675 = vld [vmem:[%s7 + $0x54] sm:$0xf]
      %v6676 = vld [vmem:[%s7 + $0x58] sm:$0xf]
      %v6677 = vld [vmem:[%s7 + $0x5c] sm:$0xf]
      %v6678 = vld [vmem:[%s7 + $0x60] sm:$0xf]
      %v6679 = vld [vmem:[%s7 + $0x64] sm:$0xf]
      %v6680 = vld [vmem:[%s7 + $0x68] sm:$0xf]
      %v6681 = vld [vmem:[%s7 + $0x6c] sm:$0xf]
      %v6682 = vld [vmem:[%s7 + $0x70] sm:$0xf]
      %v6683 = vld [vmem:[%s7 + $0x74] sm:$0xf]
      %v6684 = vld [vmem:[%s7 + $0x78] sm:$0xf]
      %v6685 = vld [vmem:[%s7 + $0x7c] sm:$0xf]
      %v6686 = vld [vmem:[%s7 + $0x80] sm:$0xf]
      %v6687 = vld [vmem:[%s7 + $0x84] sm:$0xf]
      %v6688 = vld [vmem:[%s7 + $0x88] sm:$0xf]
      %v6689 = vld [vmem:[%s7 + $0x8c] sm:$0xf]
      %v6690 = vld [vmem:[%s7 + $0x90] sm:$0xf]
      %v6691 = vld [vmem:[%s7 + $0x94] sm:$0xf]
      %v6692 = vld [vmem:[%s7 + $0x98] sm:$0xf]
      %v6693 = vld [vmem:[%s7 + $0x9c] sm:$0xf]
      %v6694 = vld [vmem:[%s7 + $0xa0] sm:$0xf]
      %v6695 = vld [vmem:[%s7 + $0xa4] sm:$0xf]
      %v6696 = vld [vmem:[%s7 + $0xa8] sm:$0xf]
      %v6697 = vld [vmem:[%s7 + $0xac] sm:$0xf]
      %v6698 = vld [vmem:[%s7 + $0xb0] sm:$0xf]
      %v6699 = vld [vmem:[%s7 + $0xb4] sm:$0xf]
      %v6700 = vld [vmem:[%s7 + $0xb8] sm:$0xf]
      %v6701 = vld [vmem:[%s7 + $0xbc] sm:$0xf]
      %v6702 = vld [vmem:[%s7 + $0xc0] sm:$0xf]
      %v6703 = vld [vmem:[%s7 + $0xc4] sm:$0xf]
      %v6704 = vld [vmem:[%s7 + $0xc8] sm:$0xf]
      %v6705 = vld [vmem:[%s7 + $0xcc] sm:$0xf]
      %v6706 = vld [vmem:[%s7 + $0xd0] sm:$0xf]
      %v6707 = vld [vmem:[%s7 + $0xd4] sm:$0xf]
      %v6708 = vld [vmem:[%s7 + $0xd8] sm:$0xf]
      %v6709 = vld [vmem:[%s7 + $0xdc] sm:$0xf]
      %v6710 = vld [vmem:[%s7 + $0xe0] sm:$0xf]
      %v6711 = vld [vmem:[%s7 + $0xe4] sm:$0xf]
      %v6712 = vld [vmem:[%s7 + $0xe8] sm:$0xf]
      %v6713 = vld [vmem:[%s7 + $0xec] sm:$0xf]
      %v6714 = vld [vmem:[%s7 + $0xf0] sm:$0xf]
      %v6715 = vld [vmem:[%s7 + $0xf4] sm:$0xf]
      %v6716 = vld [vmem:[%s7 + $0xf8] sm:$0xf]
      %v6717 = vld [vmem:[%s7 + $0xfc] sm:$0xf]
      %v6718 = vld [vmem:[%s7 + $0x100] sm:$0xf]
      %v6719 = vld [vmem:[%s7 + $0x104] sm:$0xf]
      %v6720 = vld [vmem:[%s7 + $0x108] sm:$0xf]
      %v6721 = vld [vmem:[%s7 + $0x10c] sm:$0xf]
      %v6722 = vld [vmem:[%s7 + $0x110] sm:$0xf]
      %v6723 = vld [vmem:[%s7 + $0x114] sm:$0xf]
      %v6724 = vld [vmem:[%s7 + $0x118] sm:$0xf]
      %v6725 = vld [vmem:[%s7 + $0x11c] sm:$0xf]
      %v6726 = vld [vmem:[#allocation3] sm:$0xff]
      %v6727 = vld [vmem:[#allocation3 + $0x8] sm:$0xff]
      %v6728 = vld [vmem:[#allocation3 + $0x10] sm:$0xff]
      %v6729 = vld [vmem:[#allocation3 + $0x18] sm:$0xff]
      %v6730 = vld [vmem:[#allocation3 + $0x20] sm:$0xff]
      %v6731 = vld [vmem:[#allocation3 + $0x28] sm:$0xff]
      %v6732 = vld [vmem:[#allocation3 + $0x30] sm:$0xff]
      %v6733 = vld [vmem:[#allocation3 + $0x38] sm:$0x1f]
      %v6734 = vld [vmem:[#allocation3 + $0x1] sm:$0xff]
      %v6735 = vld [vmem:[#allocation3 + $0x9] sm:$0xff]
      %v6736 = vld [vmem:[#allocation3 + $0x11] sm:$0xff]
      %v6737 = vld [vmem:[#allocation3 + $0x19] sm:$0xff]
      %v6738 = vld [vmem:[#allocation3 + $0x21] sm:$0xff]
      %v6739 = vld [vmem:[#allocation3 + $0x29] sm:$0xff]
      %v6740 = vld [vmem:[#allocation3 + $0x31] sm:$0xff]
      %v6741 = vld [vmem:[#allocation3 + $0x39] sm:$0x1f]
      %v6742 = vld [vmem:[#allocation3 + $0x2] sm:$0xff]
      %v6743 = vld [vmem:[#allocation3 + $0xa] sm:$0xff]
      %v6744 = vld [vmem:[#allocation3 + $0x12] sm:$0xff]
      %v6745 = vld [vmem:[#allocation3 + $0x1a] sm:$0xff]
      %v6746 = vld [vmem:[#allocation3 + $0x22] sm:$0xff]
      %v6747 = vld [vmem:[#allocation3 + $0x2a] sm:$0xff]
      %v6748 = vld [vmem:[#allocation3 + $0x32] sm:$0xff]
      %v6749 = vld [vmem:[#allocation3 + $0x3a] sm:$0x1f]
      %v6750 = vld [vmem:[#allocation3 + $0x39] sm:$0xff]
      %v6751 = vld [vmem:[#allocation3 + $0x41] sm:$0x1f]
      %v6752 = vld [vmem:[#allocation3 + $0x3a] sm:$0xff]
      %v6753 = vld [vmem:[#allocation3 + $0x42] sm:$0x1f]
      %v6754 = vld [vmem:[#allocation3 + $0xb] sm:$0xff]
      %v6755 = vld [vmem:[#allocation3 + $0x13] sm:$0xff]
      %v6756 = vld [vmem:[#allocation3 + $0x1b] sm:$0xff]
      %v6757 = vld [vmem:[#allocation3 + $0x23] sm:$0xff]
      %v6758 = vld [vmem:[#allocation3 + $0x2b] sm:$0xff]
      %v6759 = vld [vmem:[#allocation3 + $0x33] sm:$0xff]
      %v6760 = vld [vmem:[#allocation3 + $0x3b] sm:$0xff]
      %v6761 = vld [vmem:[#allocation3 + $0x43] sm:$0x1f]
      %v6762 = vld [vmem:[#allocation3 + $0x42] sm:$0xff]
      %v6763 = vld [vmem:[#allocation3 + $0x4a] sm:$0x1f]
      %v6764 = vld [vmem:[#allocation3 + $0x43] sm:$0xff]
      %v6765 = vld [vmem:[#allocation3 + $0x4b] sm:$0x1f]
      %v6766 = vld [vmem:[#allocation3 + $0x14] sm:$0xff]
      %v6767 = vld [vmem:[#allocation3 + $0x1c] sm:$0xff]
      %v6768 = vld [vmem:[#allocation3 + $0x24] sm:$0xff]
      %v6769 = vld [vmem:[#allocation3 + $0x2c] sm:$0xff]
      %v6770 = vld [vmem:[#allocation3 + $0x34] sm:$0xff]
      %v6771 = vld [vmem:[#allocation3 + $0x3c] sm:$0xff]
      %v6772 = vld [vmem:[#allocation3 + $0x44] sm:$0xff]
      %v6773 = vld [vmem:[#allocation3 + $0x4c] sm:$0x1f]
      %6782 = vrot.lane.b32.xlu0 %v6734, 64
      %v6783 = vpop.permute.xlu0 %6782
      %6784 = vrot.lane.b32.xlu0 %v6735, 64
      %v6785 = vpop.permute.xlu0 %6784
      %6786 = vrot.lane.b32.xlu0 %v6736, 64
      %v6787 = vpop.permute.xlu0 %6786
      %6788 = vrot.lane.b32.xlu0 %v6737, 64
      %v6789 = vpop.permute.xlu0 %6788
      %6790 = vrot.lane.b32.xlu0 %v6738, 64
      %v6791 = vpop.permute.xlu0 %6790
      %6792 = vrot.lane.b32.xlu0 %v6739, 64
      %v6793 = vpop.permute.xlu0 %6792
      %6794 = vrot.lane.b32.xlu0 %v6740, 64
      %v6795 = vpop.permute.xlu0 %6794
      %6796 = vrot.lane.b32.xlu0 %v6741, 64
      %v6797 = vpop.permute.xlu0 %6796
      %6808 = vrot.lane.b32.xlu0 %v6750, 64
      %v6809 = vpop.permute.xlu0 %6808
      %6810 = vrot.lane.b32.xlu0 %v6751, 64
      %v6811 = vpop.permute.xlu0 %6810
      %6822 = vrot.lane.b32.xlu0 %v6754, 64
      %v6823 = vpop.permute.xlu0 %6822
      %6824 = vrot.lane.b32.xlu0 %v6755, 64
      %v6825 = vpop.permute.xlu0 %6824
      %6826 = vrot.lane.b32.xlu0 %v6756, 64
      %v6827 = vpop.permute.xlu0 %6826
      %6828 = vrot.lane.b32.xlu0 %v6757, 64
      %v6829 = vpop.permute.xlu0 %6828
      %6830 = vrot.lane.b32.xlu0 %v6758, 64
      %v6831 = vpop.permute.xlu0 %6830
      %6832 = vrot.lane.b32.xlu0 %v6759, 64
      %v6833 = vpop.permute.xlu0 %6832
      %6834 = vrot.lane.b32.xlu0 %v6760, 64
      %v6835 = vpop.permute.xlu0 %6834
      %6836 = vrot.lane.b32.xlu0 %v6761, 64
      %v6837 = vpop.permute.xlu0 %6836
      %6848 = vrot.lane.b32.xlu0 %v6764, 64
      %v6849 = vpop.permute.xlu0 %6848
      %6850 = vrot.lane.b32.xlu0 %v6765, 64
      %v6851 = vpop.permute.xlu0 %6850
      %v6854 = vsel %vm549, %v6726, %v6783
      %v6855 = vsel %vm549, %v6727, %v6785
      %v6856 = vsel %vm549, %v6728, %v6787
      %v6857 = vsel %vm549, %v6729, %v6789
      %v6858 = vsel %vm549, %v6730, %v6791
      %v6859 = vsel %vm549, %v6731, %v6793
      %v6860 = vsel %vm549, %v6732, %v6795
      %v6861 = vsel %vm549, %v6733, %v6797
      %v6862 = vsel %vm549, %v6742, %v6785
      %v6863 = vsel %vm549, %v6743, %v6787
      %v6864 = vsel %vm549, %v6744, %v6789
      %v6865 = vsel %vm549, %v6745, %v6791
      %v6866 = vsel %vm549, %v6746, %v6793
      %v6867 = vsel %vm549, %v6747, %v6795
      %v6868 = vsel %vm549, %v6748, %v6809
      %v6869 = vsel %vm549, %v6749, %v6811
      %v6870 = vsel %vm549, %v6743, %v6823
      %v6871 = vsel %vm549, %v6744, %v6825
      %v6872 = vsel %vm549, %v6745, %v6827
      %v6873 = vsel %vm549, %v6746, %v6829
      %v6874 = vsel %vm549, %v6747, %v6831
      %v6875 = vsel %vm549, %v6748, %v6833
      %v6876 = vsel %vm549, %v6752, %v6835
      %v6877 = vsel %vm549, %v6753, %v6837
      %v6878 = vsel %vm549, %v6762, %v6849
      %v6879 = vsel %vm549, %v6763, %v6851
      %v6880 = vpack.c.bf16 %v6855, %v6854
      %v6881 = vpack.c.bf16 %v6863, %v6862
      %v6882 = vpack.c.bf16 %v6871, %v6870
      %v6883 = vpack.c.bf16 %v6872, %v6871
      %v6884 = vpack.c.bf16 %v6767, %v6766
      %v6885 = vpack.c.bf16 %v6857, %v6856
      %v6886 = vpack.c.bf16 %v6865, %v6864
      %v6887 = vpack.c.bf16 %v6873, %v6872
      %v6888 = vpack.c.bf16 %v6874, %v6873
      %v6889 = vpack.c.bf16 %v6769, %v6768
      %v6890 = vpack.c.bf16 %v6859, %v6858
      %v6891 = vpack.c.bf16 %v6867, %v6866
      %v6892 = vpack.c.bf16 %v6875, %v6874
      %v6893 = vpack.c.bf16 %v6876, %v6875
      %v6894 = vpack.c.bf16 %v6771, %v6770
      %v6895 = vpack.c.bf16 %v6861, %v6860
      %v6896 = vpack.c.bf16 %v6869, %v6868
      %v6897 = vpack.c.bf16 %v6877, %v6876
      %v6898 = vpack.c.bf16 %v6879, %v6878
      %v6899 = vpack.c.bf16 %v6773, %v6772
      %v6900 = vperm.slane %v586, 3
      %v6973 = vunpack.c.l.b16 %v6654
      %v6974 = vunpack.c.l.b16 %v6655
      %v6975 = vunpack.c.l.b16 %v6656
      %v6976 = vunpack.c.l.b16 %v6657
      %v6977 = vunpack.c.l.b16 %v6658
      %v6978 = vunpack.c.l.b16 %v6659
      %v6979 = vunpack.c.l.b16 %v6660
      %v6980 = vunpack.c.l.b16 %v6661
      %v6981 = vunpack.c.l.b16 %v6662
      %v6982 = vunpack.c.l.b16 %v6663
      %v6983 = vunpack.c.l.b16 %v6664
      %v6984 = vunpack.c.l.b16 %v6665
      %v6985 = vunpack.c.l.b16 %v6666
      %v6986 = vunpack.c.l.b16 %v6667
      %v6987 = vunpack.c.l.b16 %v6668
      %v6988 = vunpack.c.l.b16 %v6669
      %v6989 = vunpack.c.l.b16 %v6670
      %v6990 = vunpack.c.l.b16 %v6671
      %v6991 = vunpack.c.l.b16 %v6672
      %v6992 = vunpack.c.l.b16 %v6673
      %v6993 = vunpack.c.l.b16 %v6674
      %v6994 = vunpack.c.l.b16 %v6675
      %v6995 = vunpack.c.l.b16 %v6676
      %v6996 = vunpack.c.l.b16 %v6677
      %v6997 = vunpack.c.l.b16 %v6678
      %v6998 = vunpack.c.l.b16 %v6679
      %v6999 = vunpack.c.l.b16 %v6680
      %v7000 = vunpack.c.l.b16 %v6681
      %v7001 = vunpack.c.l.b16 %v6682
      %v7002 = vunpack.c.l.b16 %v6683
      %v7003 = vunpack.c.l.b16 %v6684
      %v7004 = vunpack.c.l.b16 %v6685
      %v7005 = vunpack.c.l.b16 %v6686
      %v7006 = vunpack.c.l.b16 %v6687
      %v7007 = vunpack.c.l.b16 %v6688
      %v7008 = vunpack.c.l.b16 %v6689
      %v7009 = vunpack.c.l.b16 %v6690
      %v7010 = vunpack.c.l.b16 %v6691
      %v7011 = vunpack.c.l.b16 %v6692
      %v7012 = vunpack.c.l.b16 %v6693
      %v7013 = vunpack.c.l.b16 %v6694
      %v7014 = vunpack.c.l.b16 %v6695
      %v7015 = vunpack.c.l.b16 %v6696
      %v7016 = vunpack.c.l.b16 %v6697
      %v7017 = vunpack.c.l.b16 %v6698
      %v7018 = vunpack.c.l.b16 %v6699
      %v7019 = vunpack.c.l.b16 %v6700
      %v7020 = vunpack.c.l.b16 %v6701
      %v7021 = vunpack.c.l.b16 %v6702
      %v7022 = vunpack.c.l.b16 %v6703
      %v7023 = vunpack.c.l.b16 %v6704
      %v7024 = vunpack.c.l.b16 %v6705
      %v7025 = vunpack.c.l.b16 %v6706
      %v7026 = vunpack.c.l.b16 %v6707
      %v7027 = vunpack.c.l.b16 %v6708
      %v7028 = vunpack.c.l.b16 %v6709
      %v7029 = vunpack.c.l.b16 %v6710
      %v7030 = vunpack.c.l.b16 %v6711
      %v7031 = vunpack.c.l.b16 %v6712
      %v7032 = vunpack.c.l.b16 %v6713
      %v7033 = vunpack.c.l.b16 %v6714
      %v7034 = vunpack.c.l.b16 %v6715
      %v7035 = vunpack.c.l.b16 %v6716
      %v7036 = vunpack.c.l.b16 %v6717
      %v7037 = vunpack.c.l.b16 %v6718
      %v7038 = vunpack.c.l.b16 %v6719
      %v7039 = vunpack.c.l.b16 %v6720
      %v7040 = vunpack.c.l.b16 %v6721
      %v7041 = vunpack.c.l.b16 %v6722
      %v7042 = vunpack.c.l.b16 %v6723
      %v7043 = vunpack.c.l.b16 %v6724
      %v7044 = vunpack.c.l.b16 %v6725
      %v7045 = vpack.c.b16 %v6974, %v6973
      %v7046 = vpack.c.b16 %v6976, %v6975
      %v7047 = vpack.c.b16 %v6978, %v6977
      %v7048 = vpack.c.b16 %v6980, %v6979
      %v7049 = vpack.c.b16 %v6982, %v6981
      %v7050 = vpack.c.b16 %v6984, %v6983
      %v7051 = vpack.c.b16 %v6986, %v6985
      %v7052 = vpack.c.b16 %v6988, %v6987
      %v7053 = vpack.c.b16 %v6990, %v6989
      %v7054 = vpack.c.b16 %v6992, %v6991
      %v7055 = vpack.c.b16 %v6994, %v6993
      %v7056 = vpack.c.b16 %v6996, %v6995
      %v7057 = vpack.c.b16 %v6998, %v6997
      %v7058 = vpack.c.b16 %v7000, %v6999
      %v7059 = vpack.c.b16 %v7002, %v7001
      %v7060 = vpack.c.b16 %v7004, %v7003
      %v7061 = vpack.c.b16 %v7006, %v7005
      %v7062 = vpack.c.b16 %v7008, %v7007
      %v7063 = vpack.c.b16 %v7010, %v7009
      %v7064 = vpack.c.b16 %v7012, %v7011
      %v7065 = vpack.c.b16 %v7014, %v7013
      %v7066 = vpack.c.b16 %v7016, %v7015
      %v7067 = vpack.c.b16 %v7018, %v7017
      %v7068 = vpack.c.b16 %v7020, %v7019
      %v7069 = vpack.c.b16 %v7022, %v7021
      %v7070 = vpack.c.b16 %v7024, %v7023
      %v7071 = vpack.c.b16 %v7026, %v7025
      %v7072 = vpack.c.b16 %v7028, %v7027
      %v7073 = vpack.c.b16 %v7030, %v7029
      %v7074 = vpack.c.b16 %v7032, %v7031
      %v7075 = vpack.c.b16 %v7034, %v7033
      %v7076 = vpack.c.b16 %v7036, %v7035
      %v7077 = vpack.c.b16 %v7038, %v7037
      %v7078 = vpack.c.b16 %v7040, %v7039
      %v7079 = vpack.c.b16 %v7042, %v7041
      %v7080 = vpack.c.b16 %v7044, %v7043
      %v7118 = vsel %vm549, %v6884, 0
      %v7121 = vsel %vm549, %v6889, 0
      %v7124 = vsel %vm549, %v6894, 0
      %v7127 = vsel %vm549, %v6899, 0
      %7129 = vmatpush.bf16.msra.mxu0 %v7052
      %7130 = vmatpush.bf16.msra.mxu0 %v7051
      %7131 = vmatpush.bf16.msra.mxu0 %v7050
      %7132 = vmatpush.bf16.msra.mxu0 %v7049
      %7133 = vmatpush.bf16.msra.mxu0 %v7048
      %7134 = vmatpush.bf16.msra.mxu0 %v7047
      %7135 = vmatpush.bf16.msra.mxu0 %v7046
      %7136 = vmatpush.bf16.msra.mxu0 %v7045
      %7137 = vmatmul.bf16.gmra.mxu0 %v6880
      %v7138 = vpop.f32.mrf.mxu0
      %v7139 = vadd.f32 %v6900, %v7138
      %v7140 = vpop.f32.mrf.mxu0
      %v7141 = vadd.f32 %v6900, %v7140
      %7142 = vmatmul.bf16.gmra.mxu0 %v6885
      %v7143 = vpop.f32.mrf.mxu0
      %v7144 = vadd.f32 %v6900, %v7143
      %v7145 = vpop.f32.mrf.mxu0
      %v7146 = vadd.f32 %v6900, %v7145
      %7147 = vmatmul.bf16.gmra.mxu0 %v6890
      %v7148 = vpop.f32.mrf.mxu0
      %v7149 = vadd.f32 %v6900, %v7148
      %v7150 = vpop.f32.mrf.mxu0
      %v7151 = vadd.f32 %v6900, %v7150
      %7152 = vmatmul.bf16.gmra.mxu0 %v6895
      %v7153 = vpop.f32.mrf.mxu0
      %v7154 = vadd.f32 %v6900, %v7153
      %v7155 = vpop.f32.mrf.mxu0
      %v7156 = vadd.f32 %v6900, %v7155
      %7157 = vdwg.mxu0
      %7158 = vmatpush.bf16.msra.mxu0 %v7060
      %7159 = vmatpush.bf16.msra.mxu0 %v7059
      %7160 = vmatpush.bf16.msra.mxu0 %v7058
      %7161 = vmatpush.bf16.msra.mxu0 %v7057
      %7162 = vmatpush.bf16.msra.mxu0 %v7056
      %7163 = vmatpush.bf16.msra.mxu0 %v7055
      %7164 = vmatpush.bf16.msra.mxu0 %v7054
      %7165 = vmatpush.bf16.msra.mxu0 %v7053
      %7166 = vmatmul.bf16.gmra.mxu0 %v6881
      %v7167 = vpop.f32.mrf.mxu0
      %v7168 = vadd.f32 %v7139, %v7167
      %v7169 = vpop.f32.mrf.mxu0
      %v7170 = vadd.f32 %v7141, %v7169
      %7171 = vmatmul.bf16.gmra.mxu0 %v6886
      %v7172 = vpop.f32.mrf.mxu0
      %v7173 = vadd.f32 %v7144, %v7172
      %v7174 = vpop.f32.mrf.mxu0
      %v7175 = vadd.f32 %v7146, %v7174
      %7176 = vmatmul.bf16.gmra.mxu0 %v6891
      %v7177 = vpop.f32.mrf.mxu0
      %v7178 = vadd.f32 %v7149, %v7177
      %v7179 = vpop.f32.mrf.mxu0
      %v7180 = vadd.f32 %v7151, %v7179
      %7181 = vmatmul.bf16.gmra.mxu0 %v6896
      %v7182 = vpop.f32.mrf.mxu0
      %v7183 = vadd.f32 %v7154, %v7182
      %v7184 = vpop.f32.mrf.mxu0
      %v7185 = vadd.f32 %v7156, %v7184
      %7186 = vdwg.mxu0
      %7187 = vmatpush.bf16.msra.mxu0 %v7068
      %7188 = vmatpush.bf16.msra.mxu0 %v7067
      %7189 = vmatpush.bf16.msra.mxu0 %v7066
      %7190 = vmatpush.bf16.msra.mxu0 %v7065
      %7191 = vmatpush.bf16.msra.mxu0 %v7064
      %7192 = vmatpush.bf16.msra.mxu0 %v7063
      %7193 = vmatpush.bf16.msra.mxu0 %v7062
      %7194 = vmatpush.bf16.msra.mxu0 %v7061
      %7195 = vmatmul.bf16.gmra.mxu0 %v6882
      %v7196 = vpop.f32.mrf.mxu0
      %v7197 = vadd.f32 %v7168, %v7196
      %v7198 = vpop.f32.mrf.mxu0
      %v7199 = vadd.f32 %v7170, %v7198
      %7200 = vmatmul.bf16.gmra.mxu0 %v6887
      %v7201 = vpop.f32.mrf.mxu0
      %v7202 = vadd.f32 %v7173, %v7201
      %v7203 = vpop.f32.mrf.mxu0
      %v7204 = vadd.f32 %v7175, %v7203
      %7205 = vmatmul.bf16.gmra.mxu0 %v6892
      %v7206 = vpop.f32.mrf.mxu0
      %v7207 = vadd.f32 %v7178, %v7206
      %v7208 = vpop.f32.mrf.mxu0
      %v7209 = vadd.f32 %v7180, %v7208
      %7210 = vmatmul.bf16.gmra.mxu0 %v6897
      %v7211 = vpop.f32.mrf.mxu0
      %v7212 = vadd.f32 %v7183, %v7211
      %v7213 = vpop.f32.mrf.mxu0
      %v7214 = vadd.f32 %v7185, %v7213
      %7215 = vdwg.mxu0
      %7216 = vmatpush.bf16.msra.mxu0 %v7076
      %7217 = vmatpush.bf16.msra.mxu0 %v7075
      %7218 = vmatpush.bf16.msra.mxu0 %v7074
      %7219 = vmatpush.bf16.msra.mxu0 %v7073
      %7220 = vmatpush.bf16.msra.mxu0 %v7072
      %7221 = vmatpush.bf16.msra.mxu0 %v7071
      %7222 = vmatpush.bf16.msra.mxu0 %v7070
      %7223 = vmatpush.bf16.msra.mxu0 %v7069
      %7224 = vmatmul.bf16.gmra.mxu0 %v6883
      %v7225 = vpop.f32.mrf.mxu0
      %v7226 = vadd.f32 %v7197, %v7225
      %v7227 = vpop.f32.mrf.mxu0
      %v7228 = vadd.f32 %v7199, %v7227
      %7229 = vmatmul.bf16.gmra.mxu0 %v6888
      %v7230 = vpop.f32.mrf.mxu0
      %v7231 = vadd.f32 %v7202, %v7230
      %v7232 = vpop.f32.mrf.mxu0
      %v7233 = vadd.f32 %v7204, %v7232
      %7234 = vmatmul.bf16.gmra.mxu0 %v6893
      %v7235 = vpop.f32.mrf.mxu0
      %v7236 = vadd.f32 %v7207, %v7235
      %v7237 = vpop.f32.mrf.mxu0
      %v7238 = vadd.f32 %v7209, %v7237
      %7239 = vmatmul.bf16.gmra.mxu0 %v6898
      %v7240 = vpop.f32.mrf.mxu0
      %v7241 = vadd.f32 %v7212, %v7240
      %v7242 = vpop.f32.mrf.mxu0
      %v7243 = vadd.f32 %v7214, %v7242
      %7244 = vdwg.mxu0
      %7245 = vmatpush.bf16.msra.mxu0 0
      %7246 = vmatpush.bf16.msra.mxu0 0
      %7247 = vmatpush.bf16.msra.mxu0 0
      %7248 = vmatpush.bf16.msra.mxu0 0
      %7249 = vmatpush.bf16.msra.mxu0 %v7080
      %7250 = vmatpush.bf16.msra.mxu0 %v7079
      %7251 = vmatpush.bf16.msra.mxu0 %v7078
      %7252 = vmatpush.bf16.msra.mxu0 %v7077
      %7253 = vmatmul.bf16.gmra.mxu0 %v7118
      %v7254 = vpop.f32.mrf.mxu0
      %v7255 = vadd.f32 %v7226, %v7254
      %v7256 = vpop.f32.mrf.mxu0
      %v7257 = vadd.f32 %v7228, %v7256
      %7258 = vmatmul.bf16.gmra.mxu0 %v7121
      %v7259 = vpop.f32.mrf.mxu0
      %v7260 = vadd.f32 %v7231, %v7259
      %v7261 = vpop.f32.mrf.mxu0
      %v7262 = vadd.f32 %v7233, %v7261
      %7263 = vmatmul.bf16.gmra.mxu0 %v7124
      %v7264 = vpop.f32.mrf.mxu0
      %v7265 = vadd.f32 %v7236, %v7264
      %v7266 = vpop.f32.mrf.mxu0
      %v7267 = vadd.f32 %v7238, %v7266
      %7268 = vmatmul.bf16.gmra.mxu0 %v7127
      %v7269 = vpop.f32.mrf.mxu0
      %v7270 = vadd.f32 %v7241, %v7269
      %v7271 = vpop.f32.mrf.mxu0
      %v7272 = vadd.f32 %v7243, %v7271
      %7273 = vdwg.mxu0
      %v7274 = vmul.f32 %v7255, %v3376
      %v7275 = vmul.f32 %v7257, %v3381
      %v7276 = vmul.f32 %v7260, %v3386
      %v7277 = vmul.f32 %v7262, %v3391
      %v7278 = vmul.f32 %v7265, %v3396
      %v7279 = vmul.f32 %v7267, %v3401
      %v7280 = vmul.f32 %v7270, %v3406
      %v7281 = vmul.f32 %v7272, %v3411
      %v7282 = vsel %vm549, %v7274, 0.0
      %v7283 = vsel %vm549, %v7275, 0.0
      %v7284 = vadd.f32 %v7282, %v7283
      %v7285 = vsel %vm549, %v7276, 0.0
      %v7286 = vadd.f32 %v7284, %v7285
      %v7287 = vsel %vm549, %v7277, 0.0
      %v7288 = vadd.f32 %v7286, %v7287
      %v7289 = vsel %vm549, %v7278, 0.0
      %v7290 = vadd.f32 %v7288, %v7289
      %v7291 = vsel %vm549, %v7279, 0.0
      %v7292 = vadd.f32 %v7290, %v7291
      %v7293 = vsel %vm549, %v7280, 0.0
      %v7294 = vadd.f32 %v7292, %v7293
      %v7295 = vsel %vm6523, %v7281, 0.0
      %v7296 = vadd.f32 %v7294, %v7295
      %v7297 = vrot.slane %v7296, 4
      %v7298 = vadd.f32 %v7296, %v7297
      %v7299 = vrot.slane %v7298, 2
      %v7300 = vadd.f32 %v7298, %v7299
      %v7301 = vrot.slane %v7300, 1
      %v7302 = vadd.f32 %v7300, %v7301
      %v7303 = vmul.f32 %v7274, %v7274
      %v7304 = vmul.f32 %v7275, %v7275
      %v7305 = vmul.f32 %v7276, %v7276
      %v7306 = vmul.f32 %v7277, %v7277
      %v7307 = vmul.f32 %v7278, %v7278
      %v7308 = vmul.f32 %v7279, %v7279
      %v7309 = vmul.f32 %v7280, %v7280
      %v7310 = vmul.f32 %v7281, %v7281
      %v7311 = vsel %vm549, %v7303, 0.0
      %v7312 = vsel %vm549, %v7304, 0.0
      %v7313 = vadd.f32 %v7311, %v7312
      %v7314 = vsel %vm549, %v7305, 0.0
      %v7315 = vadd.f32 %v7313, %v7314
      %v7316 = vsel %vm549, %v7306, 0.0
      %v7317 = vadd.f32 %v7315, %v7316
      %v7318 = vsel %vm549, %v7307, 0.0
      %v7319 = vadd.f32 %v7317, %v7318
      %v7320 = vsel %vm549, %v7308, 0.0
      %v7321 = vadd.f32 %v7319, %v7320
      %v7322 = vsel %vm549, %v7309, 0.0
      %v7323 = vadd.f32 %v7321, %v7322
      %v7324 = vsel %vm6523, %v7310, 0.0
      %v7325 = vadd.f32 %v7323, %v7324
      %v7326 = vrot.slane %v7325, 4
      %v7327 = vadd.f32 %v7325, %v7326
      %v7328 = vrot.slane %v7327, 2
      %v7329 = vadd.f32 %v7327, %v7328
      %v7330 = vrot.slane %v7329, 1
      %v7331 = vadd.f32 %v7329, %v7330
      %v7332 = vsel %vm1655, %v7302, %v7331
      %v7333 = vmul.f32 %v7332, 0.020408163
      %v7335 = vsel %vm549, %v7333, 0
      %7337 = vmatpush.msra.mxu0 0.0
      %7338 = vmatpush.msra.mxu0 0.0
      %7339 = vmatpush.msra.mxu0 0.0
      %7340 = vmatpush.msra.mxu0 0.0
      %7341 = vmatpush.msra.mxu0 0.0
      %7342 = vmatpush.msra.mxu0 0.0
      %7343 = vmatpush.msra.mxu0 0.0
      %7344 = vmatpush.msra.mxu0 0.0
      %7345 = vmatpush.msra.mxu0 %v583
      %7346 = vmatpush.msra.mxu0 %v582
      %7347 = vmatpush.msra.mxu0 %v581
      %7348 = vmatpush.msra.mxu0 %v580
      %7349 = vmatpush.msra.mxu0 %v579
      %7350 = vmatpush.msra.mxu0 %v578
      %7351 = vmatpush.msra.mxu0 %v577
      %7352 = vmatpush.msra.mxu0 %v576
      %7353 = vmatmul.f32.gmra.mxu0 %v7335
      %v7354 = vpop.f32.mrf.mxu0
      %v7355 = vadd.f32 0.0, %v7354
      %7356 = vdwg.mxu0
      %v7357 = vmul.f32 %v7355, %v7355
      %v7359 = vrot.slane %v7357, 7
      %v7361 = vsub.f32 %v7355, %v7359
      %v7362 = vmax.f32 %v7361, 0.0
      %v7363 = vadd.f32 %v7362, 1e-05
      %v7364 = vrsqrt.pop %v7363
      %v7365 = vmul.f32 %v7364, %v7363
      %v7366 = vmul.f32 %v7365, %v7364
      %v7367 = vmul.f32 0.5, %v7366
      %v7368 = vsub.f32 1.5, %v7367
      %v7369 = vmul.f32 %v7364, %v7368
      %vm7370 = vweird.f32 %v7363
      %vm7371 = vweird.f32 %v7364
      %vm7372 = vmor %vm7370, %vm7371
      %v7373 = vsel %vm7372, %v7364, %v7369
      %v7375 = vrot.slane %v7373, 5
      %v7377 = vmul.f32 %v586, %v7375
      %v7379 = vrot.slane %v7377, 4
      %v7381 = vmul.f32 %v7355, %v7379
      %v7383 = vrot.slane %v7381, 3
      %v7385 = vsub.f32 %v586, %v7383
      %v7386 = vperm.slane %v7377, 4
      %v7387 = vmul.f32 %v7274, %v7386
      %v7388 = vmul.f32 %v7275, %v7386
      %v7389 = vmul.f32 %v7276, %v7386
      %v7390 = vmul.f32 %v7277, %v7386
      %v7391 = vmul.f32 %v7278, %v7386
      %v7392 = vmul.f32 %v7279, %v7386
      %v7393 = vmul.f32 %v7280, %v7386
      %v7394 = vmul.f32 %v7281, %v7386
      %v7395 = vperm.slane %v7385, 5
      %v7396 = vadd.f32 %v7387, %v7395
      %v7397 = vadd.f32 %v7388, %v7395
      %v7398 = vadd.f32 %v7389, %v7395
      %v7399 = vadd.f32 %v7390, %v7395
      %v7400 = vadd.f32 %v7391, %v7395
      %v7401 = vadd.f32 %v7392, %v7395
      %v7402 = vadd.f32 %v7393, %v7395
      %v7403 = vadd.f32 %v7394, %v7395
      %v7404 = vmax.f32 %v7396, 0.0
      %v7405 = vmax.f32 %v7397, 0.0
      %v7406 = vmax.f32 %v7398, 0.0
      %v7407 = vmax.f32 %v7399, 0.0
      %v7408 = vmax.f32 %v7400, 0.0
      %v7409 = vmax.f32 %v7401, 0.0
      %v7410 = vmax.f32 %v7402, 0.0
      %v7411 = vmax.f32 %v7403, 0.0
      %v7412 = vmul.f32 %v7404, %v3376
      %v7413 = vmul.f32 %v7405, %v3381
      %v7414 = vmul.f32 %v7406, %v3386
      %v7415 = vmul.f32 %v7407, %v3391
      %v7416 = vmul.f32 %v7408, %v3396
      %v7417 = vmul.f32 %v7409, %v3401
      %v7418 = vmul.f32 %v7410, %v3406
      %v7419 = vmul.f32 %v7411, %v3411
      %7420 = vst.msk [vmem:[#allocation3 + $0xa] sm:$0xff] %vm549, %v7412
      %7421 = vst.msk [vmem:[#allocation3 + $0x12] sm:$0xff] %vm549, %v7413
      %7422 = vst.msk [vmem:[#allocation3 + $0x1a] sm:$0xff] %vm549, %v7414
      %7423 = vst.msk [vmem:[#allocation3 + $0x22] sm:$0xff] %vm549, %v7415
      %7424 = vst.msk [vmem:[#allocation3 + $0x2a] sm:$0xff] %vm549, %v7416
      %7425 = vst.msk [vmem:[#allocation3 + $0x32] sm:$0xff] %vm549, %v7417
      %7426 = vst.msk [vmem:[#allocation3 + $0x3a] sm:$0xff] %vm549, %v7418
      %7427 = vst.msk [vmem:[#allocation3 + $0x42] sm:$0x1f] %vm6523, %v7419
      %v7428 = vld [vmem:[%s8] sm:$0xf]
      %v7429 = vld [vmem:[%s8 + $0x4] sm:$0xf]
      %v7430 = vld [vmem:[%s8 + $0x8] sm:$0xf]
      %v7431 = vld [vmem:[%s8 + $0xc] sm:$0xf]
      %v7432 = vld [vmem:[%s8 + $0x10] sm:$0xf]
      %v7433 = vld [vmem:[%s8 + $0x14] sm:$0xf]
      %v7434 = vld [vmem:[%s8 + $0x18] sm:$0xf]
      %v7435 = vld [vmem:[%s8 + $0x1c] sm:$0xf]
      %v7436 = vld [vmem:[%s8 + $0x20] sm:$0xf]
      %v7437 = vld [vmem:[%s8 + $0x24] sm:$0xf]
      %v7438 = vld [vmem:[%s8 + $0x28] sm:$0xf]
      %v7439 = vld [vmem:[%s8 + $0x2c] sm:$0xf]
      %v7440 = vld [vmem:[%s8 + $0x30] sm:$0xf]
      %v7441 = vld [vmem:[%s8 + $0x34] sm:$0xf]
      %v7442 = vld [vmem:[%s8 + $0x38] sm:$0xf]
      %v7443 = vld [vmem:[%s8 + $0x3c] sm:$0xf]
      %v7444 = vld [vmem:[%s8 + $0x40] sm:$0xf]
      %v7445 = vld [vmem:[%s8 + $0x44] sm:$0xf]
      %v7446 = vld [vmem:[%s8 + $0x48] sm:$0xf]
      %v7447 = vld [vmem:[%s8 + $0x4c] sm:$0xf]
      %v7448 = vld [vmem:[%s8 + $0x50] sm:$0xf]
      %v7449 = vld [vmem:[%s8 + $0x54] sm:$0xf]
      %v7450 = vld [vmem:[%s8 + $0x58] sm:$0xf]
      %v7451 = vld [vmem:[%s8 + $0x5c] sm:$0xf]
      %v7452 = vld [vmem:[%s8 + $0x60] sm:$0xf]
      %v7453 = vld [vmem:[%s8 + $0x64] sm:$0xf]
      %v7454 = vld [vmem:[%s8 + $0x68] sm:$0xf]
      %v7455 = vld [vmem:[%s8 + $0x6c] sm:$0xf]
      %v7456 = vld [vmem:[%s8 + $0x70] sm:$0xf]
      %v7457 = vld [vmem:[%s8 + $0x74] sm:$0xf]
      %v7458 = vld [vmem:[%s8 + $0x78] sm:$0xf]
      %v7459 = vld [vmem:[%s8 + $0x7c] sm:$0xf]
      %v7460 = vld [vmem:[%s8 + $0x80] sm:$0xf]
      %v7461 = vld [vmem:[%s8 + $0x84] sm:$0xf]
      %v7462 = vld [vmem:[%s8 + $0x88] sm:$0xf]
      %v7463 = vld [vmem:[%s8 + $0x8c] sm:$0xf]
      %v7464 = vld [vmem:[%s8 + $0x90] sm:$0xf]
      %v7465 = vld [vmem:[%s8 + $0x94] sm:$0xf]
      %v7466 = vld [vmem:[%s8 + $0x98] sm:$0xf]
      %v7467 = vld [vmem:[%s8 + $0x9c] sm:$0xf]
      %v7468 = vld [vmem:[%s8 + $0xa0] sm:$0xf]
      %v7469 = vld [vmem:[%s8 + $0xa4] sm:$0xf]
      %v7470 = vld [vmem:[%s8 + $0xa8] sm:$0xf]
      %v7471 = vld [vmem:[%s8 + $0xac] sm:$0xf]
      %v7472 = vld [vmem:[%s8 + $0xb0] sm:$0xf]
      %v7473 = vld [vmem:[%s8 + $0xb4] sm:$0xf]
      %v7474 = vld [vmem:[%s8 + $0xb8] sm:$0xf]
      %v7475 = vld [vmem:[%s8 + $0xbc] sm:$0xf]
      %v7476 = vld [vmem:[%s8 + $0xc0] sm:$0xf]
      %v7477 = vld [vmem:[%s8 + $0xc4] sm:$0xf]
      %v7478 = vld [vmem:[%s8 + $0xc8] sm:$0xf]
      %v7479 = vld [vmem:[%s8 + $0xcc] sm:$0xf]
      %v7480 = vld [vmem:[%s8 + $0xd0] sm:$0xf]
      %v7481 = vld [vmem:[%s8 + $0xd4] sm:$0xf]
      %v7482 = vld [vmem:[%s8 + $0xd8] sm:$0xf]
      %v7483 = vld [vmem:[%s8 + $0xdc] sm:$0xf]
      %v7484 = vld [vmem:[%s8 + $0xe0] sm:$0xf]
      %v7485 = vld [vmem:[%s8 + $0xe4] sm:$0xf]
      %v7486 = vld [vmem:[%s8 + $0xe8] sm:$0xf]
      %v7487 = vld [vmem:[%s8 + $0xec] sm:$0xf]
      %v7488 = vld [vmem:[%s8 + $0xf0] sm:$0xf]
      %v7489 = vld [vmem:[%s8 + $0xf4] sm:$0xf]
      %v7490 = vld [vmem:[%s8 + $0xf8] sm:$0xf]
      %v7491 = vld [vmem:[%s8 + $0xfc] sm:$0xf]
      %v7492 = vld [vmem:[%s8 + $0x100] sm:$0xf]
      %v7493 = vld [vmem:[%s8 + $0x104] sm:$0xf]
      %v7494 = vld [vmem:[%s8 + $0x108] sm:$0xf]
      %v7495 = vld [vmem:[%s8 + $0x10c] sm:$0xf]
      %v7496 = vld [vmem:[%s8 + $0x110] sm:$0xf]
      %v7497 = vld [vmem:[%s8 + $0x114] sm:$0xf]
      %v7498 = vld [vmem:[%s8 + $0x118] sm:$0xf]
      %v7499 = vld [vmem:[%s8 + $0x11c] sm:$0xf]
      %v7500 = vld [vmem:[#allocation3] sm:$0xff]
      %v7501 = vld [vmem:[#allocation3 + $0x8] sm:$0xff]
      %v7502 = vld [vmem:[#allocation3 + $0x10] sm:$0xff]
      %v7503 = vld [vmem:[#allocation3 + $0x18] sm:$0xff]
      %v7504 = vld [vmem:[#allocation3 + $0x20] sm:$0xff]
      %v7505 = vld [vmem:[#allocation3 + $0x28] sm:$0xff]
      %v7506 = vld [vmem:[#allocation3 + $0x30] sm:$0xff]
      %v7507 = vld [vmem:[#allocation3 + $0x38] sm:$0x1f]
      %v7508 = vld [vmem:[#allocation3 + $0x1] sm:$0xff]
      %v7509 = vld [vmem:[#allocation3 + $0x9] sm:$0xff]
      %v7510 = vld [vmem:[#allocation3 + $0x11] sm:$0xff]
      %v7511 = vld [vmem:[#allocation3 + $0x19] sm:$0xff]
      %v7512 = vld [vmem:[#allocation3 + $0x21] sm:$0xff]
      %v7513 = vld [vmem:[#allocation3 + $0x29] sm:$0xff]
      %v7514 = vld [vmem:[#allocation3 + $0x31] sm:$0xff]
      %v7515 = vld [vmem:[#allocation3 + $0x39] sm:$0x1f]
      %v7516 = vld [vmem:[#allocation3 + $0x2] sm:$0xff]
      %v7517 = vld [vmem:[#allocation3 + $0xa] sm:$0xff]
      %v7518 = vld [vmem:[#allocation3 + $0x12] sm:$0xff]
      %v7519 = vld [vmem:[#allocation3 + $0x1a] sm:$0xff]
      %v7520 = vld [vmem:[#allocation3 + $0x22] sm:$0xff]
      %v7521 = vld [vmem:[#allocation3 + $0x2a] sm:$0xff]
      %v7522 = vld [vmem:[#allocation3 + $0x32] sm:$0xff]
      %v7523 = vld [vmem:[#allocation3 + $0x3a] sm:$0x1f]
      %v7524 = vld [vmem:[#allocation3 + $0x39] sm:$0xff]
      %v7525 = vld [vmem:[#allocation3 + $0x41] sm:$0x1f]
      %v7526 = vld [vmem:[#allocation3 + $0x3a] sm:$0xff]
      %v7527 = vld [vmem:[#allocation3 + $0x42] sm:$0x1f]
      %v7528 = vld [vmem:[#allocation3 + $0xb] sm:$0xff]
      %v7529 = vld [vmem:[#allocation3 + $0x13] sm:$0xff]
      %v7530 = vld [vmem:[#allocation3 + $0x1b] sm:$0xff]
      %v7531 = vld [vmem:[#allocation3 + $0x23] sm:$0xff]
      %v7532 = vld [vmem:[#allocation3 + $0x2b] sm:$0xff]
      %v7533 = vld [vmem:[#allocation3 + $0x33] sm:$0xff]
      %v7534 = vld [vmem:[#allocation3 + $0x3b] sm:$0xff]
      %v7535 = vld [vmem:[#allocation3 + $0x43] sm:$0x1f]
      %v7536 = vld [vmem:[#allocation3 + $0x42] sm:$0xff]
      %v7537 = vld [vmem:[#allocation3 + $0x4a] sm:$0x1f]
      %v7538 = vld [vmem:[#allocation3 + $0x43] sm:$0xff]
      %v7539 = vld [vmem:[#allocation3 + $0x4b] sm:$0x1f]
      %v7540 = vld [vmem:[#allocation3 + $0x14] sm:$0xff]
      %v7541 = vld [vmem:[#allocation3 + $0x1c] sm:$0xff]
      %v7542 = vld [vmem:[#allocation3 + $0x24] sm:$0xff]
      %v7543 = vld [vmem:[#allocation3 + $0x2c] sm:$0xff]
      %v7544 = vld [vmem:[#allocation3 + $0x34] sm:$0xff]
      %v7545 = vld [vmem:[#allocation3 + $0x3c] sm:$0xff]
      %v7546 = vld [vmem:[#allocation3 + $0x44] sm:$0xff]
      %v7547 = vld [vmem:[#allocation3 + $0x4c] sm:$0x1f]
      %7556 = vrot.lane.b32.xlu0 %v7508, 64
      %v7557 = vpop.permute.xlu0 %7556
      %7558 = vrot.lane.b32.xlu0 %v7509, 64
      %v7559 = vpop.permute.xlu0 %7558
      %7560 = vrot.lane.b32.xlu0 %v7510, 64
      %v7561 = vpop.permute.xlu0 %7560
      %7562 = vrot.lane.b32.xlu0 %v7511, 64
      %v7563 = vpop.permute.xlu0 %7562
      %7564 = vrot.lane.b32.xlu0 %v7512, 64
      %v7565 = vpop.permute.xlu0 %7564
      %7566 = vrot.lane.b32.xlu0 %v7513, 64
      %v7567 = vpop.permute.xlu0 %7566
      %7568 = vrot.lane.b32.xlu0 %v7514, 64
      %v7569 = vpop.permute.xlu0 %7568
      %7570 = vrot.lane.b32.xlu0 %v7515, 64
      %v7571 = vpop.permute.xlu0 %7570
      %7582 = vrot.lane.b32.xlu0 %v7524, 64
      %v7583 = vpop.permute.xlu0 %7582
      %7584 = vrot.lane.b32.xlu0 %v7525, 64
      %v7585 = vpop.permute.xlu0 %7584
      %7596 = vrot.lane.b32.xlu0 %v7528, 64
      %v7597 = vpop.permute.xlu0 %7596
      %7598 = vrot.lane.b32.xlu0 %v7529, 64
      %v7599 = vpop.permute.xlu0 %7598
      %7600 = vrot.lane.b32.xlu0 %v7530, 64
      %v7601 = vpop.permute.xlu0 %7600
      %7602 = vrot.lane.b32.xlu0 %v7531, 64
      %v7603 = vpop.permute.xlu0 %7602
      %7604 = vrot.lane.b32.xlu0 %v7532, 64
      %v7605 = vpop.permute.xlu0 %7604
      %7606 = vrot.lane.b32.xlu0 %v7533, 64
      %v7607 = vpop.permute.xlu0 %7606
      %7608 = vrot.lane.b32.xlu0 %v7534, 64
      %v7609 = vpop.permute.xlu0 %7608
      %7610 = vrot.lane.b32.xlu0 %v7535, 64
      %v7611 = vpop.permute.xlu0 %7610
      %7622 = vrot.lane.b32.xlu0 %v7538, 64
      %v7623 = vpop.permute.xlu0 %7622
      %7624 = vrot.lane.b32.xlu0 %v7539, 64
      %v7625 = vpop.permute.xlu0 %7624
      %v7628 = vsel %vm549, %v7500, %v7557
      %v7629 = vsel %vm549, %v7501, %v7559
      %v7630 = vsel %vm549, %v7502, %v7561
      %v7631 = vsel %vm549, %v7503, %v7563
      %v7632 = vsel %vm549, %v7504, %v7565
      %v7633 = vsel %vm549, %v7505, %v7567
      %v7634 = vsel %vm549, %v7506, %v7569
      %v7635 = vsel %vm549, %v7507, %v7571
      %v7636 = vsel %vm549, %v7516, %v7559
      %v7637 = vsel %vm549, %v7517, %v7561
      %v7638 = vsel %vm549, %v7518, %v7563
      %v7639 = vsel %vm549, %v7519, %v7565
      %v7640 = vsel %vm549, %v7520, %v7567
      %v7641 = vsel %vm549, %v7521, %v7569
      %v7642 = vsel %vm549, %v7522, %v7583
      %v7643 = vsel %vm549, %v7523, %v7585
      %v7644 = vsel %vm549, %v7517, %v7597
      %v7645 = vsel %vm549, %v7518, %v7599
      %v7646 = vsel %vm549, %v7519, %v7601
      %v7647 = vsel %vm549, %v7520, %v7603
      %v7648 = vsel %vm549, %v7521, %v7605
      %v7649 = vsel %vm549, %v7522, %v7607
      %v7650 = vsel %vm549, %v7526, %v7609
      %v7651 = vsel %vm549, %v7527, %v7611
      %v7652 = vsel %vm549, %v7536, %v7623
      %v7653 = vsel %vm549, %v7537, %v7625
      %v7654 = vpack.c.bf16 %v7629, %v7628
      %v7655 = vpack.c.bf16 %v7637, %v7636
      %v7656 = vpack.c.bf16 %v7645, %v7644
      %v7657 = vpack.c.bf16 %v7646, %v7645
      %v7658 = vpack.c.bf16 %v7541, %v7540
      %v7659 = vpack.c.bf16 %v7631, %v7630
      %v7660 = vpack.c.bf16 %v7639, %v7638
      %v7661 = vpack.c.bf16 %v7647, %v7646
      %v7662 = vpack.c.bf16 %v7648, %v7647
      %v7663 = vpack.c.bf16 %v7543, %v7542
      %v7664 = vpack.c.bf16 %v7633, %v7632
      %v7665 = vpack.c.bf16 %v7641, %v7640
      %v7666 = vpack.c.bf16 %v7649, %v7648
      %v7667 = vpack.c.bf16 %v7650, %v7649
      %v7668 = vpack.c.bf16 %v7545, %v7544
      %v7669 = vpack.c.bf16 %v7635, %v7634
      %v7670 = vpack.c.bf16 %v7643, %v7642
      %v7671 = vpack.c.bf16 %v7651, %v7650
      %v7672 = vpack.c.bf16 %v7653, %v7652
      %v7673 = vpack.c.bf16 %v7547, %v7546
      %v7674 = vld [vmem:[%s12] sm:$0x1]
      %v7676 = vperm.slane %v7674, 0
      %v7750 = vunpack.c.l.b16 %v7428
      %v7751 = vunpack.c.l.b16 %v7429
      %v7752 = vunpack.c.l.b16 %v7430
      %v7753 = vunpack.c.l.b16 %v7431
      %v7754 = vunpack.c.l.b16 %v7432
      %v7755 = vunpack.c.l.b16 %v7433
      %v7756 = vunpack.c.l.b16 %v7434
      %v7757 = vunpack.c.l.b16 %v7435
      %v7758 = vunpack.c.l.b16 %v7436
      %v7759 = vunpack.c.l.b16 %v7437
      %v7760 = vunpack.c.l.b16 %v7438
      %v7761 = vunpack.c.l.b16 %v7439
      %v7762 = vunpack.c.l.b16 %v7440
      %v7763 = vunpack.c.l.b16 %v7441
      %v7764 = vunpack.c.l.b16 %v7442
      %v7765 = vunpack.c.l.b16 %v7443
      %v7766 = vunpack.c.l.b16 %v7444
      %v7767 = vunpack.c.l.b16 %v7445
      %v7768 = vunpack.c.l.b16 %v7446
      %v7769 = vunpack.c.l.b16 %v7447
      %v7770 = vunpack.c.l.b16 %v7448
      %v7771 = vunpack.c.l.b16 %v7449
      %v7772 = vunpack.c.l.b16 %v7450
      %v7773 = vunpack.c.l.b16 %v7451
      %v7774 = vunpack.c.l.b16 %v7452
      %v7775 = vunpack.c.l.b16 %v7453
      %v7776 = vunpack.c.l.b16 %v7454
      %v7777 = vunpack.c.l.b16 %v7455
      %v7778 = vunpack.c.l.b16 %v7456
      %v7779 = vunpack.c.l.b16 %v7457
      %v7780 = vunpack.c.l.b16 %v7458
      %v7781 = vunpack.c.l.b16 %v7459
      %v7782 = vunpack.c.l.b16 %v7460
      %v7783 = vunpack.c.l.b16 %v7461
      %v7784 = vunpack.c.l.b16 %v7462
      %v7785 = vunpack.c.l.b16 %v7463
      %v7786 = vunpack.c.l.b16 %v7464
      %v7787 = vunpack.c.l.b16 %v7465
      %v7788 = vunpack.c.l.b16 %v7466
      %v7789 = vunpack.c.l.b16 %v7467
      %v7790 = vunpack.c.l.b16 %v7468
      %v7791 = vunpack.c.l.b16 %v7469
      %v7792 = vunpack.c.l.b16 %v7470
      %v7793 = vunpack.c.l.b16 %v7471
      %v7794 = vunpack.c.l.b16 %v7472
      %v7795 = vunpack.c.l.b16 %v7473
      %v7796 = vunpack.c.l.b16 %v7474
      %v7797 = vunpack.c.l.b16 %v7475
      %v7798 = vunpack.c.l.b16 %v7476
      %v7799 = vunpack.c.l.b16 %v7477
      %v7800 = vunpack.c.l.b16 %v7478
      %v7801 = vunpack.c.l.b16 %v7479
      %v7802 = vunpack.c.l.b16 %v7480
      %v7803 = vunpack.c.l.b16 %v7481
      %v7804 = vunpack.c.l.b16 %v7482
      %v7805 = vunpack.c.l.b16 %v7483
      %v7806 = vunpack.c.l.b16 %v7484
      %v7807 = vunpack.c.l.b16 %v7485
      %v7808 = vunpack.c.l.b16 %v7486
      %v7809 = vunpack.c.l.b16 %v7487
      %v7810 = vunpack.c.l.b16 %v7488
      %v7811 = vunpack.c.l.b16 %v7489
      %v7812 = vunpack.c.l.b16 %v7490
      %v7813 = vunpack.c.l.b16 %v7491
      %v7814 = vunpack.c.l.b16 %v7492
      %v7815 = vunpack.c.l.b16 %v7493
      %v7816 = vunpack.c.l.b16 %v7494
      %v7817 = vunpack.c.l.b16 %v7495
      %v7818 = vunpack.c.l.b16 %v7496
      %v7819 = vunpack.c.l.b16 %v7497
      %v7820 = vunpack.c.l.b16 %v7498
      %v7821 = vunpack.c.l.b16 %v7499
      %v7822 = vpack.c.b16 %v7751, %v7750
      %v7823 = vpack.c.b16 %v7753, %v7752
      %v7824 = vpack.c.b16 %v7755, %v7754
      %v7825 = vpack.c.b16 %v7757, %v7756
      %v7826 = vpack.c.b16 %v7759, %v7758
      %v7827 = vpack.c.b16 %v7761, %v7760
      %v7828 = vpack.c.b16 %v7763, %v7762
      %v7829 = vpack.c.b16 %v7765, %v7764
      %v7830 = vpack.c.b16 %v7767, %v7766
      %v7831 = vpack.c.b16 %v7769, %v7768
      %v7832 = vpack.c.b16 %v7771, %v7770
      %v7833 = vpack.c.b16 %v7773, %v7772
      %v7834 = vpack.c.b16 %v7775, %v7774
      %v7835 = vpack.c.b16 %v7777, %v7776
      %v7836 = vpack.c.b16 %v7779, %v7778
      %v7837 = vpack.c.b16 %v7781, %v7780
      %v7838 = vpack.c.b16 %v7783, %v7782
      %v7839 = vpack.c.b16 %v7785, %v7784
      %v7840 = vpack.c.b16 %v7787, %v7786
      %v7841 = vpack.c.b16 %v7789, %v7788
      %v7842 = vpack.c.b16 %v7791, %v7790
      %v7843 = vpack.c.b16 %v7793, %v7792
      %v7844 = vpack.c.b16 %v7795, %v7794
      %v7845 = vpack.c.b16 %v7797, %v7796
      %v7846 = vpack.c.b16 %v7799, %v7798
      %v7847 = vpack.c.b16 %v7801, %v7800
      %v7848 = vpack.c.b16 %v7803, %v7802
      %v7849 = vpack.c.b16 %v7805, %v7804
      %v7850 = vpack.c.b16 %v7807, %v7806
      %v7851 = vpack.c.b16 %v7809, %v7808
      %v7852 = vpack.c.b16 %v7811, %v7810
      %v7853 = vpack.c.b16 %v7813, %v7812
      %v7854 = vpack.c.b16 %v7815, %v7814
      %v7855 = vpack.c.b16 %v7817, %v7816
      %v7856 = vpack.c.b16 %v7819, %v7818
      %v7857 = vpack.c.b16 %v7821, %v7820
      %v7895 = vsel %vm549, %v7658, 0
      %v7898 = vsel %vm549, %v7663, 0
      %v7901 = vsel %vm549, %v7668, 0
      %v7904 = vsel %vm549, %v7673, 0
      %7906 = vmatpush.bf16.msra.mxu0 %v7829
      %7907 = vmatpush.bf16.msra.mxu0 %v7828
      %7908 = vmatpush.bf16.msra.mxu0 %v7827
      %7909 = vmatpush.bf16.msra.mxu0 %v7826
      %7910 = vmatpush.bf16.msra.mxu0 %v7825
      %7911 = vmatpush.bf16.msra.mxu0 %v7824
      %7912 = vmatpush.bf16.msra.mxu0 %v7823
      %7913 = vmatpush.bf16.msra.mxu0 %v7822
      %7914 = vmatmul.bf16.gmra.mxu0 %v7654
      %v7915 = vpop.f32.mrf.mxu0
      %v7916 = vadd.f32 %v7676, %v7915
      %v7917 = vpop.f32.mrf.mxu0
      %v7918 = vadd.f32 %v7676, %v7917
      %7919 = vmatmul.bf16.gmra.mxu0 %v7659
      %v7920 = vpop.f32.mrf.mxu0
      %v7921 = vadd.f32 %v7676, %v7920
      %v7922 = vpop.f32.mrf.mxu0
      %v7923 = vadd.f32 %v7676, %v7922
      %7924 = vmatmul.bf16.gmra.mxu0 %v7664
      %v7925 = vpop.f32.mrf.mxu0
      %v7926 = vadd.f32 %v7676, %v7925
      %v7927 = vpop.f32.mrf.mxu0
      %v7928 = vadd.f32 %v7676, %v7927
      %7929 = vmatmul.bf16.gmra.mxu0 %v7669
      %v7930 = vpop.f32.mrf.mxu0
      %v7931 = vadd.f32 %v7676, %v7930
      %v7932 = vpop.f32.mrf.mxu0
      %v7933 = vadd.f32 %v7676, %v7932
      %7934 = vdwg.mxu0
      %7935 = vmatpush.bf16.msra.mxu0 %v7837
      %7936 = vmatpush.bf16.msra.mxu0 %v7836
      %7937 = vmatpush.bf16.msra.mxu0 %v7835
      %7938 = vmatpush.bf16.msra.mxu0 %v7834
      %7939 = vmatpush.bf16.msra.mxu0 %v7833
      %7940 = vmatpush.bf16.msra.mxu0 %v7832
      %7941 = vmatpush.bf16.msra.mxu0 %v7831
      %7942 = vmatpush.bf16.msra.mxu0 %v7830
      %7943 = vmatmul.bf16.gmra.mxu0 %v7655
      %v7944 = vpop.f32.mrf.mxu0
      %v7945 = vadd.f32 %v7916, %v7944
      %v7946 = vpop.f32.mrf.mxu0
      %v7947 = vadd.f32 %v7918, %v7946
      %7948 = vmatmul.bf16.gmra.mxu0 %v7660
      %v7949 = vpop.f32.mrf.mxu0
      %v7950 = vadd.f32 %v7921, %v7949
      %v7951 = vpop.f32.mrf.mxu0
      %v7952 = vadd.f32 %v7923, %v7951
      %7953 = vmatmul.bf16.gmra.mxu0 %v7665
      %v7954 = vpop.f32.mrf.mxu0
      %v7955 = vadd.f32 %v7926, %v7954
      %v7956 = vpop.f32.mrf.mxu0
      %v7957 = vadd.f32 %v7928, %v7956
      %7958 = vmatmul.bf16.gmra.mxu0 %v7670
      %v7959 = vpop.f32.mrf.mxu0
      %v7960 = vadd.f32 %v7931, %v7959
      %v7961 = vpop.f32.mrf.mxu0
      %v7962 = vadd.f32 %v7933, %v7961
      %7963 = vdwg.mxu0
      %7964 = vmatpush.bf16.msra.mxu0 %v7845
      %7965 = vmatpush.bf16.msra.mxu0 %v7844
      %7966 = vmatpush.bf16.msra.mxu0 %v7843
      %7967 = vmatpush.bf16.msra.mxu0 %v7842
      %7968 = vmatpush.bf16.msra.mxu0 %v7841
      %7969 = vmatpush.bf16.msra.mxu0 %v7840
      %7970 = vmatpush.bf16.msra.mxu0 %v7839
      %7971 = vmatpush.bf16.msra.mxu0 %v7838
      %7972 = vmatmul.bf16.gmra.mxu0 %v7656
      %v7973 = vpop.f32.mrf.mxu0
      %v7974 = vadd.f32 %v7945, %v7973
      %v7975 = vpop.f32.mrf.mxu0
      %v7976 = vadd.f32 %v7947, %v7975
      %7977 = vmatmul.bf16.gmra.mxu0 %v7661
      %v7978 = vpop.f32.mrf.mxu0
      %v7979 = vadd.f32 %v7950, %v7978
      %v7980 = vpop.f32.mrf.mxu0
      %v7981 = vadd.f32 %v7952, %v7980
      %7982 = vmatmul.bf16.gmra.mxu0 %v7666
      %v7983 = vpop.f32.mrf.mxu0
      %v7984 = vadd.f32 %v7955, %v7983
      %v7985 = vpop.f32.mrf.mxu0
      %v7986 = vadd.f32 %v7957, %v7985
      %7987 = vmatmul.bf16.gmra.mxu0 %v7671
      %v7988 = vpop.f32.mrf.mxu0
      %v7989 = vadd.f32 %v7960, %v7988
      %v7990 = vpop.f32.mrf.mxu0
      %v7991 = vadd.f32 %v7962, %v7990
      %7992 = vdwg.mxu0
      %7993 = vmatpush.bf16.msra.mxu0 %v7853
      %7994 = vmatpush.bf16.msra.mxu0 %v7852
      %7995 = vmatpush.bf16.msra.mxu0 %v7851
      %7996 = vmatpush.bf16.msra.mxu0 %v7850
      %7997 = vmatpush.bf16.msra.mxu0 %v7849
      %7998 = vmatpush.bf16.msra.mxu0 %v7848
      %7999 = vmatpush.bf16.msra.mxu0 %v7847
      %8000 = vmatpush.bf16.msra.mxu0 %v7846
      %8001 = vmatmul.bf16.gmra.mxu0 %v7657
      %v8002 = vpop.f32.mrf.mxu0
      %v8003 = vadd.f32 %v7974, %v8002
      %v8004 = vpop.f32.mrf.mxu0
      %v8005 = vadd.f32 %v7976, %v8004
      %8006 = vmatmul.bf16.gmra.mxu0 %v7662
      %v8007 = vpop.f32.mrf.mxu0
      %v8008 = vadd.f32 %v7979, %v8007
      %v8009 = vpop.f32.mrf.mxu0
      %v8010 = vadd.f32 %v7981, %v8009
      %8011 = vmatmul.bf16.gmra.mxu0 %v7667
      %v8012 = vpop.f32.mrf.mxu0
      %v8013 = vadd.f32 %v7984, %v8012
      %v8014 = vpop.f32.mrf.mxu0
      %v8015 = vadd.f32 %v7986, %v8014
      %8016 = vmatmul.bf16.gmra.mxu0 %v7672
      %v8017 = vpop.f32.mrf.mxu0
      %v8018 = vadd.f32 %v7989, %v8017
      %v8019 = vpop.f32.mrf.mxu0
      %v8020 = vadd.f32 %v7991, %v8019
      %8021 = vdwg.mxu0
      %8022 = vmatpush.bf16.msra.mxu0 0
      %8023 = vmatpush.bf16.msra.mxu0 0
      %8024 = vmatpush.bf16.msra.mxu0 0
      %8025 = vmatpush.bf16.msra.mxu0 0
      %8026 = vmatpush.bf16.msra.mxu0 %v7857
      %8027 = vmatpush.bf16.msra.mxu0 %v7856
      %8028 = vmatpush.bf16.msra.mxu0 %v7855
      %8029 = vmatpush.bf16.msra.mxu0 %v7854
      %8030 = vmatmul.bf16.gmra.mxu0 %v7895
      %v8031 = vpop.f32.mrf.mxu0
      %v8032 = vadd.f32 %v8003, %v8031
      %v8033 = vpop.f32.mrf.mxu0
      %v8034 = vadd.f32 %v8005, %v8033
      %8035 = vmatmul.bf16.gmra.mxu0 %v7898
      %v8036 = vpop.f32.mrf.mxu0
      %v8037 = vadd.f32 %v8008, %v8036
      %v8038 = vpop.f32.mrf.mxu0
      %v8039 = vadd.f32 %v8010, %v8038
      %8040 = vmatmul.bf16.gmra.mxu0 %v7901
      %v8041 = vpop.f32.mrf.mxu0
      %v8042 = vadd.f32 %v8013, %v8041
      %v8043 = vpop.f32.mrf.mxu0
      %v8044 = vadd.f32 %v8015, %v8043
      %8045 = vmatmul.bf16.gmra.mxu0 %v7904
      %v8046 = vpop.f32.mrf.mxu0
      %v8047 = vadd.f32 %v8018, %v8046
      %v8048 = vpop.f32.mrf.mxu0
      %v8049 = vadd.f32 %v8020, %v8048
      %8050 = vdwg.mxu0
      %vm8051 = vcmask 72704
      %8052 = vst.msk [vmem:[%s534] sm:$0xff] %vm8051, %v8032
      %8053 = vst.msk [vmem:[%s534 + $0x8] sm:$0xff] %vm8051, %v8034
      %8054 = vst.msk [vmem:[%s534 + $0x10] sm:$0xff] %vm8051, %v8037
      %8055 = vst.msk [vmem:[%s534 + $0x18] sm:$0xff] %vm8051, %v8039
      %8056 = vst.msk [vmem:[%s534 + $0x20] sm:$0xff] %vm8051, %v8042
      %8057 = vst.msk [vmem:[%s534 + $0x28] sm:$0xff] %vm8051, %v8044
      %8058 = vst.msk [vmem:[%s534 + $0x30] sm:$0xff] %vm8051, %v8047
      %vm8059 = vcmask 69632
      %8060 = vst.msk [vmem:[%s534 + $0x38] sm:$0x1f] %vm8059, %v8049
      %p8061 = scmp.lt.s32.totalorder %s26, 1
      %s8062 = scalar_select %p8061, %s26, 1
      %s8063 = smul.addr %s8062, 8
      %s8064 = smul.addr %s8063, 8
      %s8065 = scalar_lea.vmem %s15, %s8064
      // Predicated region
      $region81: #{clsandloc_pallas.1} parent=79 // pred_check
        %p8066 = pneg %p374
      $region82: #{clsandloc_pallas.1} parent=79 // pred_check_branch
        %8068 = sbr.rel (%p8066) target = $region84
      $region83: #{clsandloc_pallas.1} parent=79 // pred_region
        _
      $region84: #{clsandloc_pallas.1} parent=79 // pred_fallthru
        _
    $region80: #{clsandloc_pallas.1} parent=5 // pred_fallthru
      _
    %p8069 = scmp.le.s32.totalorder 2, %s21
    // Predicated region
    $region85: #{clsandloc_pallas.1} parent=5 // pred_check
      %p8070 = pneg %p8069
    $region86: #{clsandloc_pallas.1} parent=5 // pred_check_branch
      %8072 = sbr.rel (%p8070) target = $region88
    $region87: #{clsandloc_pallas.1} parent=5 // pred_region
      %s8073 = ssub.s32 %s21, 2
      // Predicated region
      $region89: #{clsandloc_pallas.1} parent=87 // pred_check
        %p8074 = pneg %p380
      $region90: #{clsandloc_pallas.1} parent=87 // pred_check_branch
        %8076 = sbr.rel (%p8074) target = $region92
      $region91: #{clsandloc_pallas.1} parent=87 // pred_region
        %p8077 = scmp.lt.s32.totalorder %s27, 1
        %s8078 = scalar_select %p8077, %s27, 1
        %s8079 = smul.addr %s8078, 8
        %s8080 = smul.addr %s8079, 8
        %s8081 = scalar_lea.vmem %s15, %s8080
      $region92: #{clsandloc_pallas.1} parent=87 // pred_fallthru
        _
    $region88: #{clsandloc_pallas.1} parent=5 // pred_fallthru
      _
  $region6: #{clsandloc_pallas.1} parent=0 // loop_footer
    %s25 = sadd.s32 1, %s21
  $region7: #{clsandloc_pallas.1} parent=0 // loop_footer_branch
    %20 = sbr.rel target = $region3
  $region8: #{clsandloc_pallas.1} parent=0 // loop_exit
    _

</llo_original>
